<compile_context>
chip_gen: v5e
topology: v5e:2x2
jax: 0.10.0
libtpu: 0.0.40
codegen_flags: <defaults>
</compile_context>

<pallas_src>
import jax
import jax.numpy as jnp
from jax import lax
from jax.experimental import pallas as pl
from jax.experimental.pallas import tpu as pltpu

_PL = 8     # left padding (sublanes) of the padded VMEM scratch -> interior stores sublane-aligned
_RS = 8     # image rows per depthwise processing strip (sublane-tile aligned)
_C = 128    # padded channel width for all internal activations / weights

# (kernel_size, exp_size, out_channels, se, nl, stride) -- from the PyTorch module
LAYER_SETTING = [
    (3, 128, 128, False, "RL", 1),
    (3, 96, 96, False, "RL", 1),
    (3, 64, 64, False, "RL", 1),
    (3, 32, 32, False, "RL", 1),
]


# -----------------------------------------------------------------------------
# Fused kernel: per batch element, runs the whole estimator with activations in VMEM
# -----------------------------------------------------------------------------
def _fused_flow_kernel(x_ref, *args):
    # args = [w1,b1,wd,b2,w3,b3] * n_blocks + [w_out_t, b_out] + [o_ref] + [pad, act, dw]
    *wrefs, o_ref, pad_ref, act_ref, dw_ref = args
    n_blocks = (len(wrefs) - 2) // 6
    w_out_ref, b_out_ref = wrefs[6 * n_blocks], wrefs[6 * n_blocks + 1]

    _, H, W, Cin = x_ref.shape
    HW = H * W
    C = pad_ref.shape[-1]              # 128 (padded channel width)
    Wp = W + 2 * _PL
    n_strips = H // _RS
    SP = _RS * W                       # pixels per strip

    # ---- zero only the halo cells the 3x3 taps actually read (not the whole buffer) ----
    zrow = jnp.zeros((1, Wp, C), jnp.float32)
    pad_ref[0:1, :, :] = zrow                      # top halo row
    pad_ref[H + 1:H + 2, :, :] = zrow              # bottom halo row
    zcol = jnp.zeros((H, _PL, C), jnp.float32)
    pad_ref[1:H + 1, 0:_PL, :] = zcol              # aligned strip covering halo column _PL-1
    pad_ref[1:H + 1, _PL + W:Wp, :] = zcol         # aligned strip covering halo column _PL+W

    for bi in range(n_blocks):
        w1_ref, b1_ref, wd_ref, b2_ref, w3_ref, b3_ref = wrefs[6 * bi:6 * bi + 6]

        # ---- 1x1 expand (+folded-BN bias) + ReLU, whole image on the MXU ----
        if bi == 0:
            xs = x_ref[...].reshape(HW, Cin)
        else:
            xs = act_ref[...]
        e = jnp.dot(xs.astype(jnp.bfloat16), w1_ref[...],
                    preferred_element_type=jnp.float32)
        e = jnp.maximum(e + b1_ref[...], 0.0)
        pad_ref[1:H + 1, _PL:_PL + W, :] = e.reshape(H, W, C)

        # ---- 3x3 depthwise (+bias, ReLU) on the VPU, strip-mined (f32 accumulation) ----
        for s in range(n_strips):
            acc = jnp.zeros((_RS, W, C), jnp.float32)
            for ky in range(3):
                for kx in range(3):
                    tap = pad_ref[_RS * s + ky:_RS * s + ky + _RS,
                                  _PL - 1 + kx:_PL - 1 + kx + W, :]
                    acc = acc + tap * wd_ref[3 * ky + kx, :]
            d = jnp.maximum(acc + b2_ref[0, :], 0.0)
            dw_ref[SP * s:SP * (s + 1), :] = d.reshape(SP, C)

        # ---- 1x1 project (+folded-BN bias), whole image on the MXU ----
        p = jnp.dot(dw_ref[...].astype(jnp.bfloat16), w3_ref[...],
                    preferred_element_type=jnp.float32) + b3_ref[...]
        act_ref[...] = p
        # NOTE: use_res_connect is False for every block in this layer_setting (no residual add).

    # ---- layer_out: 3x3 conv (32 -> 2, channel-padded) + folded BN, lane-dense result ----
    Co = o_ref.shape[1]
    pad_ref[1:H + 1, _PL:_PL + W, :] = act_ref[...].reshape(H, W, C)
    acc = jnp.zeros((w_out_ref.shape[1], HW), jnp.float32)          # (8, HW): pixels on lanes
    for k in range(9):
        ky, kx = divmod(k, 3)
        tap = pad_ref[ky:ky + H, _PL - 1 + kx:_PL - 1 + kx + W, :].reshape(HW, C)
        # (8, C) x (HW, C)^T -> (8, HW)  (same trans_b contraction pattern as q @ k^T)
        acc = acc + lax.dot_general(
            w_out_ref[k], tap.astype(jnp.bfloat16),
            dimension_numbers=(((1,), (1,)), ((), ())),
            preferred_element_type=jnp.float32)
    y = acc[:Co, :] + b_out_ref[...]                                # (Co, HW)
    o_ref[...] = y.reshape(1, Co, HW).astype(o_ref.dtype)


# -----------------------------------------------------------------------------
# Wrapper
# -----------------------------------------------------------------------------
def _const_spec(arr):
    zeros = (0,) * arr.ndim
    return pl.BlockSpec(arr.shape, lambda n: zeros)


@jax.jit
def optical_flow_estimator_forward(x_nchw, params):
    """Forward of OpticalFlowEstimatorBad.  x: (N, C_in, H, W) -> (N, 2, H, W)."""
    x = jnp.transpose(x_nchw, (0, 2, 3, 1)).astype(jnp.float32)  # NCHW -> NHWC
    N, H, W, Cin = x.shape
    assert H % _RS == 0 and W % 8 == 0
    Cout = int(params["b_out"].shape[0])
    HW = H * W

    flat = [x]
    in_specs = [pl.BlockSpec((1, H, W, Cin), lambda n: (n, 0, 0, 0))]
    for p in params["blocks"]:
        for name in ("w1", "b1", "wd", "b2", "w3", "b3"):
            flat.append(p[name])
            in_specs.append(_const_spec(p[name]))
    flat += [params["w_out"], params["b_out"]]
    in_specs += [_const_spec(params["w_out"]), _const_spec(params["b_out"])]

    out = pl.pallas_call(
        _fused_flow_kernel,
        out_shape=jax.ShapeDtypeStruct((N, Cout, HW), jnp.float32),   # lane-dense: pixels last
        grid_spec=pltpu.PrefetchScalarGridSpec(
            num_scalar_prefetch=0,
            grid=(N,),
            in_specs=in_specs,
            out_specs=pl.BlockSpec((1, Cout, HW), lambda n: (n, 0, 0)),
            scratch_shapes=[
                pltpu.VMEM((H + 2, W + 2 * _PL, _C), jnp.float32),  # zero-halo padded buffer
                pltpu.VMEM((HW, _C), jnp.float32),                  # flat block in/out activations
                pltpu.VMEM((HW, _C), jnp.float32),                  # flat depthwise output
            ],
        ),
        compiler_params=pltpu.CompilerParams(
            dimension_semantics=("parallel",),
        ),
    )(*flat)
    # (N, 2, H*W) -> (N, 2, H, W): pure reshape, no transpose needed.
    return out.reshape(N, Cout, H, W)


# -----------------------------------------------------------------------------
# Deterministic synthetic parameters (BN folded into scale/shift, scale folded into weights,
# all internal channel dims zero-padded to _C=128 for full-lane kernel access)
# -----------------------------------------------------------------------------
def _bn_params(key, c):
    k1, k2, k3, k4 = jax.random.split(key, 4)
    gamma = jax.random.uniform(k1, (c,), jnp.float32, 0.5, 1.5)
    beta = jax.random.normal(k2, (c,), jnp.float32) * 0.1
    mean = jax.random.normal(k3, (c,), jnp.float32) * 0.1
    var = jax.random.uniform(k4, (c,), jnp.float32, 0.5, 1.5)
    scale = gamma / jnp.sqrt(var + 1e-5)
    shift = beta - mean * scale
    return scale, shift


def _pad_to(a, shape):
    return jnp.pad(a, [(0, t - s) for s, t in zip(a.shape, shape)])


def init_params(key, ch_in):
    blocks = []
    cin = ch_in
    for (_k, exp, out, _se, _nl, _s) in LAYER_SETTING:
        key, *ks = jax.random.split(key, 7)
        w1 = jax.random.normal(ks[0], (cin, exp), jnp.float32) * 0.1   # 1x1 expand
        s1, b1 = _bn_params(ks[1], exp)
        wd = jax.random.normal(ks[2], (9, exp), jnp.float32) * 0.1     # 3x3 depthwise
        s2, b2 = _bn_params(ks[3], exp)
        w3 = jax.random.normal(ks[4], (exp, out), jnp.float32) * 0.1   # 1x1 project
        s3, b3 = _bn_params(ks[5], out)
        cin_rows = cin if not blocks else _C   # block 0 keeps the true input channel count
        blocks.append(dict(
            w1=_pad_to((w1 * s1[None, :]).astype(jnp.bfloat16), (cin_rows, _C)),
            b1=_pad_to(b1.reshape(1, exp), (1, _C)),
            wd=_pad_to(wd * s2[None, :], (9, _C)),                     # f32 (VPU path)
            b2=_pad_to(b2.reshape(1, exp), (1, _C)),
            w3=_pad_to((w3 * s3[None, :]).astype(jnp.bfloat16), (_C, _C)),
            b3=_pad_to(b3.reshape(1, out), (1, _C)),
        ))
        cin = out
    key, k1, k2 = jax.random.split(key, 3)
    w_out = jax.random.normal(k1, (9, cin, 2), jnp.float32) * 0.1      # layer_out 3x3 conv
    so, bo = _bn_params(k2, 2)
    w_out_t = jnp.transpose(w_out * so[None, None, :], (0, 2, 1))      # (9, 2, cin)
    return dict(
        blocks=blocks,
        w_out=_pad_to(w_out_t, (9, 8, _C)).astype(jnp.bfloat16),       # (9, 8, 128), rows 2..7 zero
        b_out=bo.reshape(2, 1),
    )


# -----------------------------------------------------------------------------
# Pure-JAX reference (same folded-BN / bf16-matmul semantics, padded weights) for validation
# -----------------------------------------------------------------------------
@jax.jit
def reference_forward(x_nchw, params):
    x = jnp.transpose(x_nchw, (0, 2, 3, 1)).astype(jnp.float32)
    N, H, W, _ = x.shape
    for p in params["blocks"]:
        cin, E = p["w1"].shape
        e = jnp.dot(x.reshape(-1, cin).astype(jnp.bfloat16), p["w1"],
                    preferred_element_type=jnp.float32).reshape(N, H, W, E)
        e = jnp.maximum(e + p["b1"][0], 0.0)
        ep = jnp.pad(e, ((0, 0), (1, 1), (1, 1), (0, 0)))
        acc = jnp.zeros((N, H, W, E), jnp.float32)
        for ky in range(3):
            for kx in range(3):
                acc = acc + ep[:, ky:ky + H, kx:kx + W, :] * p["wd"][3 * ky + kx]
        d = jnp.maximum(acc + p["b2"][0], 0.0)
        x = (jnp.dot(d.reshape(-1, E).astype(jnp.bfloat16), p["w3"],
                     preferred_element_type=jnp.float32).reshape(N, H, W, E)
             + p["b3"][0])
        # residual never active for this layer_setting
    C = x.shape[-1]
    Co = params["b_out"].shape[0]
    xp = jnp.pad(x, ((0, 0), (1, 1), (1, 1), (0, 0)))
    acc = jnp.zeros((N * H * W, params["w_out"].shape[1]), jnp.float32)
    for k in range(9):
        ky, kx = divmod(k, 3)
        tap = xp[:, ky:ky + H, kx:kx + W, :].reshape(-1, C).astype(jnp.bfloat16)
        acc = acc + lax.dot_general(
            tap, params["w_out"][k],
            dimension_numbers=(((1,), (1,)), ((), ())),
            preferred_element_type=jnp.float32)
    y = acc[:, :Co] + params["b_out"][:, 0][None, :]
    y = y.reshape(N, H, W, Co)
    return jnp.transpose(y, (0, 3, 1, 2))


if __name__ == "__main__":
    N, C_IN, H, W = 2, 16, 16, 16
    key = jax.random.PRNGKey(0)
    kx_key, kp_key = jax.random.split(key)
    x = jax.random.normal(kx_key, (N, C_IN, H, W), jnp.float32)
    params = init_params(kp_key, C_IN)

    y = jax.block_until_ready(optical_flow_estimator_forward(x, params))
    assert y.shape == (N, 2, H, W), y.shape
    assert bool(jnp.all(jnp.isfinite(y)))

    y_ref = jax.block_until_ready(reference_forward(x, params))
    max_err = float(jnp.max(jnp.abs(y - y_ref)))
    assert bool(jnp.allclose(y, y_ref, rtol=1e-3, atol=1e-3)), max_err

    print("KERNEL_OK")
</pallas_src>

<mosaic_0001>
module attributes {stable_mosaic.version = 11 : i64} {
  func.func @_fused_flow_kernel(%arg0: i32, %arg1: memref<1x16x16x16xf32, #tpu.memory_space<vmem>>, %arg2: memref<16x128xbf16, #tpu.memory_space<vmem>>, %arg3: memref<1x128xf32, #tpu.memory_space<vmem>>, %arg4: memref<9x128xf32, #tpu.memory_space<vmem>>, %arg5: memref<1x128xf32, #tpu.memory_space<vmem>>, %arg6: memref<128x128xbf16, #tpu.memory_space<vmem>>, %arg7: memref<1x128xf32, #tpu.memory_space<vmem>>, %arg8: memref<128x128xbf16, #tpu.memory_space<vmem>>, %arg9: memref<1x128xf32, #tpu.memory_space<vmem>>, %arg10: memref<9x128xf32, #tpu.memory_space<vmem>>, %arg11: memref<1x128xf32, #tpu.memory_space<vmem>>, %arg12: memref<128x128xbf16, #tpu.memory_space<vmem>>, %arg13: memref<1x128xf32, #tpu.memory_space<vmem>>, %arg14: memref<128x128xbf16, #tpu.memory_space<vmem>>, %arg15: memref<1x128xf32, #tpu.memory_space<vmem>>, %arg16: memref<9x128xf32, #tpu.memory_space<vmem>>, %arg17: memref<1x128xf32, #tpu.memory_space<vmem>>, %arg18: memref<128x128xbf16, #tpu.memory_space<vmem>>, %arg19: memref<1x128xf32, #tpu.memory_space<vmem>>, %arg20: memref<128x128xbf16, #tpu.memory_space<vmem>>, %arg21: memref<1x128xf32, #tpu.memory_space<vmem>>, %arg22: memref<9x128xf32, #tpu.memory_space<vmem>>, %arg23: memref<1x128xf32, #tpu.memory_space<vmem>>, %arg24: memref<128x128xbf16, #tpu.memory_space<vmem>>, %arg25: memref<1x128xf32, #tpu.memory_space<vmem>>, %arg26: memref<9x8x128xbf16, #tpu.memory_space<vmem>>, %arg27: memref<2x1xf32, #tpu.memory_space<vmem>>, %arg28: memref<1x2x256xf32, #tpu.memory_space<vmem>>, %arg29: memref<18x32x128xf32, #tpu.memory_space<vmem>>, %arg30: memref<256x128xf32, #tpu.memory_space<vmem>>, %arg31: memref<256x128xf32, #tpu.memory_space<vmem>>) attributes {dimension_semantics = [#tpu.dimension_semantics<parallel>], iteration_bounds = array<i64: 2>, scalar_prefetch = 0 : i64, scratch_operands = 3 : i64, tpu.core_type = #tpu.core_type<tc>, window_params = [{transform_indices = @transform_0, window_bounds = array<i64: 1, 16, 16, 16>}, {pipeline_mode = #tpu.pipeline_mode<synchronous>, transform_indices = @transform_1, window_bounds = array<i64: 16, 128>}, {pipeline_mode = #tpu.pipeline_mode<synchronous>, transform_indices = @transform_2, window_bounds = array<i64: 1, 128>}, {pipeline_mode = #tpu.pipeline_mode<synchronous>, transform_indices = @transform_3, window_bounds = array<i64: 9, 128>}, {pipeline_mode = #tpu.pipeline_mode<synchronous>, transform_indices = @transform_4, window_bounds = array<i64: 1, 128>}, {pipeline_mode = #tpu.pipeline_mode<synchronous>, transform_indices = @transform_5, window_bounds = array<i64: 128, 128>}, {pipeline_mode = #tpu.pipeline_mode<synchronous>, transform_indices = @transform_6, window_bounds = array<i64: 1, 128>}, {pipeline_mode = #tpu.pipeline_mode<synchronous>, transform_indices = @transform_7, window_bounds = array<i64: 128, 128>}, {pipeline_mode = #tpu.pipeline_mode<synchronous>, transform_indices = @transform_8, window_bounds = array<i64: 1, 128>}, {pipeline_mode = #tpu.pipeline_mode<synchronous>, transform_indices = @transform_9, window_bounds = array<i64: 9, 128>}, {pipeline_mode = #tpu.pipeline_mode<synchronous>, transform_indices = @transform_10, window_bounds = array<i64: 1, 128>}, {pipeline_mode = #tpu.pipeline_mode<synchronous>, transform_indices = @transform_11, window_bounds = array<i64: 128, 128>}, {pipeline_mode = #tpu.pipeline_mode<synchronous>, transform_indices = @transform_12, window_bounds = array<i64: 1, 128>}, {pipeline_mode = #tpu.pipeline_mode<synchronous>, transform_indices = @transform_13, window_bounds = array<i64: 128, 128>}, {pipeline_mode = #tpu.pipeline_mode<synchronous>, transform_indices = @transform_14, window_bounds = array<i64: 1, 128>}, {pipeline_mode = #tpu.pipeline_mode<synchronous>, transform_indices = @transform_15, window_bounds = array<i64: 9, 128>}, {pipeline_mode = #tpu.pipeline_mode<synchronous>, transform_indices = @transform_16, window_bounds = array<i64: 1, 128>}, {pipeline_mode = #tpu.pipeline_mode<synchronous>, transform_indices = @transform_17, window_bounds = array<i64: 128, 128>}, {pipeline_mode = #tpu.pipeline_mode<synchronous>, transform_indices = @transform_18, window_bounds = array<i64: 1, 128>}, {pipeline_mode = #tpu.pipeline_mode<synchronous>, transform_indices = @transform_19, window_bounds = array<i64: 128, 128>}, {pipeline_mode = #tpu.pipeline_mode<synchronous>, transform_indices = @transform_20, window_bounds = array<i64: 1, 128>}, {pipeline_mode = #tpu.pipeline_mode<synchronous>, transform_indices = @transform_21, window_bounds = array<i64: 9, 128>}, {pipeline_mode = #tpu.pipeline_mode<synchronous>, transform_indices = @transform_22, window_bounds = array<i64: 1, 128>}, {pipeline_mode = #tpu.pipeline_mode<synchronous>, transform_indices = @transform_23, window_bounds = array<i64: 128, 128>}, {pipeline_mode = #tpu.pipeline_mode<synchronous>, transform_indices = @transform_24, window_bounds = array<i64: 1, 128>}, {pipeline_mode = #tpu.pipeline_mode<synchronous>, transform_indices = @transform_25, window_bounds = array<i64: 9, 8, 128>}, {pipeline_mode = #tpu.pipeline_mode<synchronous>, transform_indices = @transform_26, window_bounds = array<i64: 2, 1>}, {transform_indices = @transform_27, window_bounds = array<i64: 1, 2, 256>}]} {
    %cst = arith.constant 0.000000e+00 : f32
    %0 = vector.broadcast %cst : f32 to vector<1x32x128xf32>
    %c0 = arith.constant 0 : index
    %c0_0 = arith.constant 0 : index
    %c0_1 = arith.constant 0 : index
    %1 = vector.load %arg29[%c0, %c0_0, %c0_1] : memref<18x32x128xf32, #tpu.memory_space<vmem>>, vector<1x32x128xf32>
    tpu.vector_store %arg29[%c0, %c0_0, %c0_1], %0 {strides = array<i32>} : memref<18x32x128xf32, #tpu.memory_space<vmem>>, vector<1x32x128xf32>,
    %c17 = arith.constant 17 : index
    %c0_2 = arith.constant 0 : index
    %c0_3 = arith.constant 0 : index
    %2 = vector.load %arg29[%c17, %c0_2, %c0_3] : memref<18x32x128xf32, #tpu.memory_space<vmem>>, vector<1x32x128xf32>
    tpu.vector_store %arg29[%c17, %c0_2, %c0_3], %0 {strides = array<i32>} : memref<18x32x128xf32, #tpu.memory_space<vmem>>, vector<1x32x128xf32>,
    %cst_4 = arith.constant 0.000000e+00 : f32
    %3 = vector.broadcast %cst_4 : f32 to vector<16x8x128xf32>
    %c1 = arith.constant 1 : index
    %c0_5 = arith.constant 0 : index
    %c0_6 = arith.constant 0 : index
    %4 = vector.load %arg29[%c1, %c0_5, %c0_6] : memref<18x32x128xf32, #tpu.memory_space<vmem>>, vector<16x8x128xf32>
    tpu.vector_store %arg29[%c1, %c0_5, %c0_6], %3 {strides = array<i32>} : memref<18x32x128xf32, #tpu.memory_space<vmem>>, vector<16x8x128xf32>,
    %c1_7 = arith.constant 1 : index
    %c24 = arith.constant 24 : index
    %c0_8 = arith.constant 0 : index
    %5 = vector.load %arg29[%c1_7, %c24, %c0_8] : memref<18x32x128xf32, #tpu.memory_space<vmem>>, vector<16x8x128xf32>
    tpu.vector_store %arg29[%c1_7, %c24, %c0_8], %3 {strides = array<i32>} : memref<18x32x128xf32, #tpu.memory_space<vmem>>, vector<16x8x128xf32>,
    %c0_9 = arith.constant 0 : index
    %c0_10 = arith.constant 0 : index
    %c0_11 = arith.constant 0 : index
    %c0_12 = arith.constant 0 : index
    %6 = vector.load %arg1[%c0_9, %c0_10, %c0_11, %c0_12] : memref<1x16x16x16xf32, #tpu.memory_space<vmem>>, vector<1x16x16x16xf32>
    %7 = vector.shape_cast %6 : vector<1x16x16x16xf32> to vector<256x16xf32>
    %8 = arith.truncf %7 : vector<256x16xf32> to vector<256x16xbf16>
    %c0_13 = arith.constant 0 : index
    %c0_14 = arith.constant 0 : index
    %9 = vector.load %arg2[%c0_13, %c0_14] : memref<16x128xbf16, #tpu.memory_space<vmem>>, vector<16x128xbf16>
    %cst_15 = arith.constant dense<0.000000e+00> : vector<256x128xf32>
    %10 = tpu.matmul %8, %9, %cst_15 {dimension_numbers = #tpu.dot_dimension_numbers<[1], [0], [0], [1], [0, 0, 1, 1], [], []>} : vector<256x16xbf16>, vector<16x128xbf16>, vector<256x128xf32> -> vector<256x128xf32>
    %c0_16 = arith.constant 0 : index
    %c0_17 = arith.constant 0 : index
    %11 = vector.load %arg3[%c0_16, %c0_17] : memref<1x128xf32, #tpu.memory_space<vmem>>, vector<1x128xf32>
    %12 = vector.broadcast %11 : vector<1x128xf32> to vector<256x128xf32>
    %13 = arith.addf %10, %12 : vector<256x128xf32>
    %cst_18 = arith.constant 0.000000e+00 : f32
    %14 = vector.broadcast %cst_18 : f32 to vector<256x128xf32>
    %15 = arith.maximumf %13, %14 : vector<256x128xf32>
    %16 = vector.shape_cast %15 : vector<256x128xf32> to vector<16x16x128xf32>
    %c1_19 = arith.constant 1 : index
    %c8 = arith.constant 8 : index
    %c0_20 = arith.constant 0 : index
    %17 = vector.load %arg29[%c1_19, %c8, %c0_20] : memref<18x32x128xf32, #tpu.memory_space<vmem>>, vector<16x16x128xf32>
    tpu.vector_store %arg29[%c1_19, %c8, %c0_20], %16 {strides = array<i32>} : memref<18x32x128xf32, #tpu.memory_space<vmem>>, vector<16x16x128xf32>,
    %cst_21 = arith.constant 0.000000e+00 : f32
    %18 = vector.broadcast %cst_21 : f32 to vector<8x16x128xf32>
    %c0_22 = arith.constant 0 : index
    %c7 = arith.constant 7 : index
    %c0_23 = arith.constant 0 : index
    %19 = vector.load %arg29[%c0_22, %c7, %c0_23] : memref<18x32x128xf32, #tpu.memory_space<vmem>>, vector<8x16x128xf32>
    %c0_24 = arith.constant 0 : index
    %c0_25 = arith.constant 0 : index
    %20 = vector.load %arg4[%c0_24, %c0_25] : memref<9x128xf32, #tpu.memory_space<vmem>>, vector<1x128xf32>
    %21 = vector.shape_cast %20 : vector<1x128xf32> to vector<128xf32>
    %22 = vector.shape_cast %21 : vector<128xf32> to vector<1x1x128xf32>
    %23 = vector.broadcast %22 : vector<1x1x128xf32> to vector<8x16x128xf32>
    %24 = arith.mulf %19, %23 : vector<8x16x128xf32>
    %25 = arith.addf %18, %24 : vector<8x16x128xf32>
    %c0_26 = arith.constant 0 : index
    %c8_27 = arith.constant 8 : index
    %c0_28 = arith.constant 0 : index
    %26 = vector.load %arg29[%c0_26, %c8_27, %c0_28] : memref<18x32x128xf32, #tpu.memory_space<vmem>>, vector<8x16x128xf32>
    %c1_29 = arith.constant 1 : index
    %c0_30 = arith.constant 0 : index
    %27 = vector.load %arg4[%c1_29, %c0_30] : memref<9x128xf32, #tpu.memory_space<vmem>>, vector<1x128xf32>
    %28 = vector.shape_cast %27 : vector<1x128xf32> to vector<128xf32>
    %29 = vector.shape_cast %28 : vector<128xf32> to vector<1x1x128xf32>
    %30 = vector.broadcast %29 : vector<1x1x128xf32> to vector<8x16x128xf32>
    %31 = arith.mulf %26, %30 : vector<8x16x128xf32>
    %32 = arith.addf %25, %31 : vector<8x16x128xf32>
    %c0_31 = arith.constant 0 : index
    %c9 = arith.constant 9 : index
    %c0_32 = arith.constant 0 : index
    %33 = vector.load %arg29[%c0_31, %c9, %c0_32] : memref<18x32x128xf32, #tpu.memory_space<vmem>>, vector<8x16x128xf32>
    %c2 = arith.constant 2 : index
    %c0_33 = arith.constant 0 : index
    %34 = vector.load %arg4[%c2, %c0_33] : memref<9x128xf32, #tpu.memory_space<vmem>>, vector<1x128xf32>
    %35 = vector.shape_cast %34 : vector<1x128xf32> to vector<128xf32>
    %36 = vector.shape_cast %35 : vector<128xf32> to vector<1x1x128xf32>
    %37 = vector.broadcast %36 : vector<1x1x128xf32> to vector<8x16x128xf32>
    %38 = arith.mulf %33, %37 : vector<8x16x128xf32>
    %39 = arith.addf %32, %38 : vector<8x16x128xf32>
    %c1_34 = arith.constant 1 : index
    %c7_35 = arith.constant 7 : index
    %c0_36 = arith.constant 0 : index
    %40 = vector.load %arg29[%c1_34, %c7_35, %c0_36] : memref<18x32x128xf32, #tpu.memory_space<vmem>>, vector<8x16x128xf32>
    %c3 = arith.constant 3 : index
    %c0_37 = arith.constant 0 : index
    %41 = vector.load %arg4[%c3, %c0_37] : memref<9x128xf32, #tpu.memory_space<vmem>>, vector<1x128xf32>
    %42 = vector.shape_cast %41 : vector<1x128xf32> to vector<128xf32>
    %43 = vector.shape_cast %42 : vector<128xf32> to vector<1x1x128xf32>
    %44 = vector.broadcast %43 : vector<1x1x128xf32> to vector<8x16x128xf32>
    %45 = arith.mulf %40, %44 : vector<8x16x128xf32>
    %46 = arith.addf %39, %45 : vector<8x16x128xf32>
    %c1_38 = arith.constant 1 : index
    %c8_39 = arith.constant 8 : index
    %c0_40 = arith.constant 0 : index
    %47 = vector.load %arg29[%c1_38, %c8_39, %c0_40] : memref<18x32x128xf32, #tpu.memory_space<vmem>>, vector<8x16x128xf32>
    %c4 = arith.constant 4 : index
    %c0_41 = arith.constant 0 : index
    %48 = vector.load %arg4[%c4, %c0_41] : memref<9x128xf32, #tpu.memory_space<vmem>>, vector<1x128xf32>
    %49 = vector.shape_cast %48 : vector<1x128xf32> to vector<128xf32>
    %50 = vector.shape_cast %49 : vector<128xf32> to vector<1x1x128xf32>
    %51 = vector.broadcast %50 : vector<1x1x128xf32> to vector<8x16x128xf32>
    %52 = arith.mulf %47, %51 : vector<8x16x128xf32>
    %53 = arith.addf %46, %52 : vector<8x16x128xf32>
    %c1_42 = arith.constant 1 : index
    %c9_43 = arith.constant 9 : index
    %c0_44 = arith.constant 0 : index
    %54 = vector.load %arg29[%c1_42, %c9_43, %c0_44] : memref<18x32x128xf32, #tpu.memory_space<vmem>>, vector<8x16x128xf32>
    %c5 = arith.constant 5 : index
    %c0_45 = arith.constant 0 : index
    %55 = vector.load %arg4[%c5, %c0_45] : memref<9x128xf32, #tpu.memory_space<vmem>>, vector<1x128xf32>
    %56 = vector.shape_cast %55 : vector<1x128xf32> to vector<128xf32>
    %57 = vector.shape_cast %56 : vector<128xf32> to vector<1x1x128xf32>
    %58 = vector.broadcast %57 : vector<1x1x128xf32> to vector<8x16x128xf32>
    %59 = arith.mulf %54, %58 : vector<8x16x128xf32>
    %60 = arith.addf %53, %59 : vector<8x16x128xf32>
    %c2_46 = arith.constant 2 : index
    %c7_47 = arith.constant 7 : index
    %c0_48 = arith.constant 0 : index
    %61 = vector.load %arg29[%c2_46, %c7_47, %c0_48] : memref<18x32x128xf32, #tpu.memory_space<vmem>>, vector<8x16x128xf32>
    %c6 = arith.constant 6 : index
    %c0_49 = arith.constant 0 : index
    %62 = vector.load %arg4[%c6, %c0_49] : memref<9x128xf32, #tpu.memory_space<vmem>>, vector<1x128xf32>
    %63 = vector.shape_cast %62 : vector<1x128xf32> to vector<128xf32>
    %64 = vector.shape_cast %63 : vector<128xf32> to vector<1x1x128xf32>
    %65 = vector.broadcast %64 : vector<1x1x128xf32> to vector<8x16x128xf32>
    %66 = arith.mulf %61, %65 : vector<8x16x128xf32>
    %67 = arith.addf %60, %66 : vector<8x16x128xf32>
    %c2_50 = arith.constant 2 : index
    %c8_51 = arith.constant 8 : index
    %c0_52 = arith.constant 0 : index
    %68 = vector.load %arg29[%c2_50, %c8_51, %c0_52] : memref<18x32x128xf32, #tpu.memory_space<vmem>>, vector<8x16x128xf32>
    %c7_53 = arith.constant 7 : index
    %c0_54 = arith.constant 0 : index
    %69 = vector.load %arg4[%c7_53, %c0_54] : memref<9x128xf32, #tpu.memory_space<vmem>>, vector<1x128xf32>
    %70 = vector.shape_cast %69 : vector<1x128xf32> to vector<128xf32>
    %71 = vector.shape_cast %70 : vector<128xf32> to vector<1x1x128xf32>
    %72 = vector.broadcast %71 : vector<1x1x128xf32> to vector<8x16x128xf32>
    %73 = arith.mulf %68, %72 : vector<8x16x128xf32>
    %74 = arith.addf %67, %73 : vector<8x16x128xf32>
    %c2_55 = arith.constant 2 : index
    %c9_56 = arith.constant 9 : index
    %c0_57 = arith.constant 0 : index
    %75 = vector.load %arg29[%c2_55, %c9_56, %c0_57] : memref<18x32x128xf32, #tpu.memory_space<vmem>>, vector<8x16x128xf32>
    %c8_58 = arith.constant 8 : index
    %c0_59 = arith.constant 0 : index
    %76 = vector.load %arg4[%c8_58, %c0_59] : memref<9x128xf32, #tpu.memory_space<vmem>>, vector<1x128xf32>
    %77 = vector.shape_cast %76 : vector<1x128xf32> to vector<128xf32>
    %78 = vector.shape_cast %77 : vector<128xf32> to vector<1x1x128xf32>
    %79 = vector.broadcast %78 : vector<1x1x128xf32> to vector<8x16x128xf32>
    %80 = arith.mulf %75, %79 : vector<8x16x128xf32>
    %81 = arith.addf %74, %80 : vector<8x16x128xf32>
    %c0_60 = arith.constant 0 : index
    %c0_61 = arith.constant 0 : index
    %82 = vector.load %arg5[%c0_60, %c0_61] : memref<1x128xf32, #tpu.memory_space<vmem>>, vector<1x128xf32>
    %83 = vector.shape_cast %82 : vector<1x128xf32> to vector<128xf32>
    %84 = vector.shape_cast %83 : vector<128xf32> to vector<1x1x128xf32>
    %85 = vector.broadcast %84 : vector<1x1x128xf32> to vector<8x16x128xf32>
    %86 = arith.addf %81, %85 : vector<8x16x128xf32>
    %cst_62 = arith.constant 0.000000e+00 : f32
    %87 = vector.broadcast %cst_62 : f32 to vector<8x16x128xf32>
    %88 = arith.maximumf %86, %87 : vector<8x16x128xf32>
    %89 = vector.shape_cast %88 : vector<8x16x128xf32> to vector<128x128xf32>
    %c0_63 = arith.constant 0 : index
    %c0_64 = arith.constant 0 : index
    %90 = vector.load %arg31[%c0_63, %c0_64] : memref<256x128xf32, #tpu.memory_space<vmem>>, vector<128x128xf32>
    tpu.vector_store %arg31[%c0_63, %c0_64], %89 {strides = array<i32>} : memref<256x128xf32, #tpu.memory_space<vmem>>, vector<128x128xf32>,
    %cst_65 = arith.constant 0.000000e+00 : f32
    %91 = vector.broadcast %cst_65 : f32 to vector<8x16x128xf32>
    %c8_66 = arith.constant 8 : index
    %c7_67 = arith.constant 7 : index
    %c0_68 = arith.constant 0 : index
    %92 = vector.load %arg29[%c8_66, %c7_67, %c0_68] : memref<18x32x128xf32, #tpu.memory_space<vmem>>, vector<8x16x128xf32>
    %c0_69 = arith.constant 0 : index
    %c0_70 = arith.constant 0 : index
    %93 = vector.load %arg4[%c0_69, %c0_70] : memref<9x128xf32, #tpu.memory_space<vmem>>, vector<1x128xf32>
    %94 = vector.shape_cast %93 : vector<1x128xf32> to vector<128xf32>
    %95 = vector.shape_cast %94 : vector<128xf32> to vector<1x1x128xf32>
    %96 = vector.broadcast %95 : vector<1x1x128xf32> to vector<8x16x128xf32>
    %97 = arith.mulf %92, %96 : vector<8x16x128xf32>
    %98 = arith.addf %91, %97 : vector<8x16x128xf32>
    %c8_71 = arith.constant 8 : index
    %c8_72 = arith.constant 8 : index
    %c0_73 = arith.constant 0 : index
    %99 = vector.load %arg29[%c8_71, %c8_72, %c0_73] : memref<18x32x128xf32, #tpu.memory_space<vmem>>, vector<8x16x128xf32>
    %c1_74 = arith.constant 1 : index
    %c0_75 = arith.constant 0 : index
    %100 = vector.load %arg4[%c1_74, %c0_75] : memref<9x128xf32, #tpu.memory_space<vmem>>, vector<1x128xf32>
    %101 = vector.shape_cast %100 : vector<1x128xf32> to vector<128xf32>
    %102 = vector.shape_cast %101 : vector<128xf32> to vector<1x1x128xf32>
    %103 = vector.broadcast %102 : vector<1x1x128xf32> to vector<8x16x128xf32>
    %104 = arith.mulf %99, %103 : vector<8x16x128xf32>
    %105 = arith.addf %98, %104 : vector<8x16x128xf32>
    %c8_76 = arith.constant 8 : index
    %c9_77 = arith.constant 9 : index
    %c0_78 = arith.constant 0 : index
    %106 = vector.load %arg29[%c8_76, %c9_77, %c0_78] : memref<18x32x128xf32, #tpu.memory_space<vmem>>, vector<8x16x128xf32>
    %c2_79 = arith.constant 2 : index
    %c0_80 = arith.constant 0 : index
    %107 = vector.load %arg4[%c2_79, %c0_80] : memref<9x128xf32, #tpu.memory_space<vmem>>, vector<1x128xf32>
    %108 = vector.shape_cast %107 : vector<1x128xf32> to vector<128xf32>
    %109 = vector.shape_cast %108 : vector<128xf32> to vector<1x1x128xf32>
    %110 = vector.broadcast %109 : vector<1x1x128xf32> to vector<8x16x128xf32>
    %111 = arith.mulf %106, %110 : vector<8x16x128xf32>
    %112 = arith.addf %105, %111 : vector<8x16x128xf32>
    %c9_81 = arith.constant 9 : index
    %c7_82 = arith.constant 7 : index
    %c0_83 = arith.constant 0 : index
    %113 = vector.load %arg29[%c9_81, %c7_82, %c0_83] : memref<18x32x128xf32, #tpu.memory_space<vmem>>, vector<8x16x128xf32>
    %c3_84 = arith.constant 3 : index
    %c0_85 = arith.constant 0 : index
    %114 = vector.load %arg4[%c3_84, %c0_85] : memref<9x128xf32, #tpu.memory_space<vmem>>, vector<1x128xf32>
    %115 = vector.shape_cast %114 : vector<1x128xf32> to vector<128xf32>
    %116 = vector.shape_cast %115 : vector<128xf32> to vector<1x1x128xf32>
    %117 = vector.broadcast %116 : vector<1x1x128xf32> to vector<8x16x128xf32>
    %118 = arith.mulf %113, %117 : vector<8x16x128xf32>
    %119 = arith.addf %112, %118 : vector<8x16x128xf32>
    %c9_86 = arith.constant 9 : index
    %c8_87 = arith.constant 8 : index
    %c0_88 = arith.constant 0 : index
    %120 = vector.load %arg29[%c9_86, %c8_87, %c0_88] : memref<18x32x128xf32, #tpu.memory_space<vmem>>, vector<8x16x128xf32>
    %c4_89 = arith.constant 4 : index
    %c0_90 = arith.constant 0 : index
    %121 = vector.load %arg4[%c4_89, %c0_90] : memref<9x128xf32, #tpu.memory_space<vmem>>, vector<1x128xf32>
    %122 = vector.shape_cast %121 : vector<1x128xf32> to vector<128xf32>
    %123 = vector.shape_cast %122 : vector<128xf32> to vector<1x1x128xf32>
    %124 = vector.broadcast %123 : vector<1x1x128xf32> to vector<8x16x128xf32>
    %125 = arith.mulf %120, %124 : vector<8x16x128xf32>
    %126 = arith.addf %119, %125 : vector<8x16x128xf32>
    %c9_91 = arith.constant 9 : index
    %c9_92 = arith.constant 9 : index
    %c0_93 = arith.constant 0 : index
    %127 = vector.load %arg29[%c9_91, %c9_92, %c0_93] : memref<18x32x128xf32, #tpu.memory_space<vmem>>, vector<8x16x128xf32>
    %c5_94 = arith.constant 5 : index
    %c0_95 = arith.constant 0 : index
    %128 = vector.load %arg4[%c5_94, %c0_95] : memref<9x128xf32, #tpu.memory_space<vmem>>, vector<1x128xf32>
    %129 = vector.shape_cast %128 : vector<1x128xf32> to vector<128xf32>
    %130 = vector.shape_cast %129 : vector<128xf32> to vector<1x1x128xf32>
    %131 = vector.broadcast %130 : vector<1x1x128xf32> to vector<8x16x128xf32>
    %132 = arith.mulf %127, %131 : vector<8x16x128xf32>
    %133 = arith.addf %126, %132 : vector<8x16x128xf32>
    %c10 = arith.constant 10 : index
    %c7_96 = arith.constant 7 : index
    %c0_97 = arith.constant 0 : index
    %134 = vector.load %arg29[%c10, %c7_96, %c0_97] : memref<18x32x128xf32, #tpu.memory_space<vmem>>, vector<8x16x128xf32>
    %c6_98 = arith.constant 6 : index
    %c0_99 = arith.constant 0 : index
    %135 = vector.load %arg4[%c6_98, %c0_99] : memref<9x128xf32, #tpu.memory_space<vmem>>, vector<1x128xf32>
    %136 = vector.shape_cast %135 : vector<1x128xf32> to vector<128xf32>
    %137 = vector.shape_cast %136 : vector<128xf32> to vector<1x1x128xf32>
    %138 = vector.broadcast %137 : vector<1x1x128xf32> to vector<8x16x128xf32>
    %139 = arith.mulf %134, %138 : vector<8x16x128xf32>
    %140 = arith.addf %133, %139 : vector<8x16x128xf32>
    %c10_100 = arith.constant 10 : index
    %c8_101 = arith.constant 8 : index
    %c0_102 = arith.constant 0 : index
    %141 = vector.load %arg29[%c10_100, %c8_101, %c0_102] : memref<18x32x128xf32, #tpu.memory_space<vmem>>, vector<8x16x128xf32>
    %c7_103 = arith.constant 7 : index
    %c0_104 = arith.constant 0 : index
    %142 = vector.load %arg4[%c7_103, %c0_104] : memref<9x128xf32, #tpu.memory_space<vmem>>, vector<1x128xf32>
    %143 = vector.shape_cast %142 : vector<1x128xf32> to vector<128xf32>
    %144 = vector.shape_cast %143 : vector<128xf32> to vector<1x1x128xf32>
    %145 = vector.broadcast %144 : vector<1x1x128xf32> to vector<8x16x128xf32>
    %146 = arith.mulf %141, %145 : vector<8x16x128xf32>
    %147 = arith.addf %140, %146 : vector<8x16x128xf32>
    %c10_105 = arith.constant 10 : index
    %c9_106 = arith.constant 9 : index
    %c0_107 = arith.constant 0 : index
    %148 = vector.load %arg29[%c10_105, %c9_106, %c0_107] : memref<18x32x128xf32, #tpu.memory_space<vmem>>, vector<8x16x128xf32>
    %c8_108 = arith.constant 8 : index
    %c0_109 = arith.constant 0 : index
    %149 = vector.load %arg4[%c8_108, %c0_109] : memref<9x128xf32, #tpu.memory_space<vmem>>, vector<1x128xf32>
    %150 = vector.shape_cast %149 : vector<1x128xf32> to vector<128xf32>
    %151 = vector.shape_cast %150 : vector<128xf32> to vector<1x1x128xf32>
    %152 = vector.broadcast %151 : vector<1x1x128xf32> to vector<8x16x128xf32>
    %153 = arith.mulf %148, %152 : vector<8x16x128xf32>
    %154 = arith.addf %147, %153 : vector<8x16x128xf32>
    %c0_110 = arith.constant 0 : index
    %c0_111 = arith.constant 0 : index
    %155 = vector.load %arg5[%c0_110, %c0_111] : memref<1x128xf32, #tpu.memory_space<vmem>>, vector<1x128xf32>
    %156 = vector.shape_cast %155 : vector<1x128xf32> to vector<128xf32>
    %157 = vector.shape_cast %156 : vector<128xf32> to vector<1x1x128xf32>
    %158 = vector.broadcast %157 : vector<1x1x128xf32> to vector<8x16x128xf32>
    %159 = arith.addf %154, %158 : vector<8x16x128xf32>
    %cst_112 = arith.constant 0.000000e+00 : f32
    %160 = vector.broadcast %cst_112 : f32 to vector<8x16x128xf32>
    %161 = arith.maximumf %159, %160 : vector<8x16x128xf32>
    %162 = vector.shape_cast %161 : vector<8x16x128xf32> to vector<128x128xf32>
    %c128 = arith.constant 128 : index
    %c0_113 = arith.constant 0 : index
    %163 = vector.load %arg31[%c128, %c0_113] : memref<256x128xf32, #tpu.memory_space<vmem>>, vector<128x128xf32>
    tpu.vector_store %arg31[%c128, %c0_113], %162 {strides = array<i32>} : memref<256x128xf32, #tpu.memory_space<vmem>>, vector<128x128xf32>,
    %c0_114 = arith.constant 0 : index
    %c0_115 = arith.constant 0 : index
    %164 = vector.load %arg31[%c0_114, %c0_115] : memref<256x128xf32, #tpu.memory_space<vmem>>, vector<256x128xf32>
    %165 = arith.truncf %164 : vector<256x128xf32> to vector<256x128xbf16>
    %c0_116 = arith.constant 0 : index
    %c0_117 = arith.constant 0 : index
    %166 = vector.load %arg6[%c0_116, %c0_117] : memref<128x128xbf16, #tpu.memory_space<vmem>>, vector<128x128xbf16>
    %cst_118 = arith.constant dense<0.000000e+00> : vector<256x128xf32>
    %167 = tpu.matmul %165, %166, %cst_118 {dimension_numbers = #tpu.dot_dimension_numbers<[1], [0], [0], [1], [0, 0, 1, 1], [], []>} : vector<256x128xbf16>, vector<128x128xbf16>, vector<256x128xf32> -> vector<256x128xf32>
    %c0_119 = arith.constant 0 : index
    %c0_120 = arith.constant 0 : index
    %168 = vector.load %arg7[%c0_119, %c0_120] : memref<1x128xf32, #tpu.memory_space<vmem>>, vector<1x128xf32>
    %169 = vector.broadcast %168 : vector<1x128xf32> to vector<256x128xf32>
    %170 = arith.addf %167, %169 : vector<256x128xf32>
    %c0_121 = arith.constant 0 : index
    %c0_122 = arith.constant 0 : index
    %171 = vector.load %arg30[%c0_121, %c0_122] : memref<256x128xf32, #tpu.memory_space<vmem>>, vector<256x128xf32>
    tpu.vector_store %arg30[%c0_121, %c0_122], %170 {strides = array<i32>} : memref<256x128xf32, #tpu.memory_space<vmem>>, vector<256x128xf32>,
    %c0_123 = arith.constant 0 : index
    %c0_124 = arith.constant 0 : index
    %172 = vector.load %arg30[%c0_123, %c0_124] : memref<256x128xf32, #tpu.memory_space<vmem>>, vector<256x128xf32>
    %173 = arith.truncf %172 : vector<256x128xf32> to vector<256x128xbf16>
    %c0_125 = arith.constant 0 : index
    %c0_126 = arith.constant 0 : index
    %174 = vector.load %arg8[%c0_125, %c0_126] : memref<128x128xbf16, #tpu.memory_space<vmem>>, vector<128x128xbf16>
    %cst_127 = arith.constant dense<0.000000e+00> : vector<256x128xf32>
    %175 = tpu.matmul %173, %174, %cst_127 {dimension_numbers = #tpu.dot_dimension_numbers<[1], [0], [0], [1], [0, 0, 1, 1], [], []>} : vector<256x128xbf16>, vector<128x128xbf16>, vector<256x128xf32> -> vector<256x128xf32>
    %c0_128 = arith.constant 0 : index
    %c0_129 = arith.constant 0 : index
    %176 = vector.load %arg9[%c0_128, %c0_129] : memref<1x128xf32, #tpu.memory_space<vmem>>, vector<1x128xf32>
    %177 = vector.broadcast %176 : vector<1x128xf32> to vector<256x128xf32>
    %178 = arith.addf %175, %177 : vector<256x128xf32>
    %cst_130 = arith.constant 0.000000e+00 : f32
    %179 = vector.broadcast %cst_130 : f32 to vector<256x128xf32>
    %180 = arith.maximumf %178, %179 : vector<256x128xf32>
    %181 = vector.shape_cast %180 : vector<256x128xf32> to vector<16x16x128xf32>
    %c1_131 = arith.constant 1 : index
    %c8_132 = arith.constant 8 : index
    %c0_133 = arith.constant 0 : index
    %182 = vector.load %arg29[%c1_131, %c8_132, %c0_133] : memref<18x32x128xf32, #tpu.memory_space<vmem>>, vector<16x16x128xf32>
    tpu.vector_store %arg29[%c1_131, %c8_132, %c0_133], %181 {strides = array<i32>} : memref<18x32x128xf32, #tpu.memory_space<vmem>>, vector<16x16x128xf32>,
    %cst_134 = arith.constant 0.000000e+00 : f32
    %183 = vector.broadcast %cst_134 : f32 to vector<8x16x128xf32>
    %c0_135 = arith.constant 0 : index
    %c7_136 = arith.constant 7 : index
    %c0_137 = arith.constant 0 : index
    %184 = vector.load %arg29[%c0_135, %c7_136, %c0_137] : memref<18x32x128xf32, #tpu.memory_space<vmem>>, vector<8x16x128xf32>
    %c0_138 = arith.constant 0 : index
    %c0_139 = arith.constant 0 : index
    %185 = vector.load %arg10[%c0_138, %c0_139] : memref<9x128xf32, #tpu.memory_space<vmem>>, vector<1x128xf32>
    %186 = vector.shape_cast %185 : vector<1x128xf32> to vector<128xf32>
    %187 = vector.shape_cast %186 : vector<128xf32> to vector<1x1x128xf32>
    %188 = vector.broadcast %187 : vector<1x1x128xf32> to vector<8x16x128xf32>
    %189 = arith.mulf %184, %188 : vector<8x16x128xf32>
    %190 = arith.addf %183, %189 : vector<8x16x128xf32>
    %c0_140 = arith.constant 0 : index
    %c8_141 = arith.constant 8 : index
    %c0_142 = arith.constant 0 : index
    %191 = vector.load %arg29[%c0_140, %c8_141, %c0_142] : memref<18x32x128xf32, #tpu.memory_space<vmem>>, vector<8x16x128xf32>
    %c1_143 = arith.constant 1 : index
    %c0_144 = arith.constant 0 : index
    %192 = vector.load %arg10[%c1_143, %c0_144] : memref<9x128xf32, #tpu.memory_space<vmem>>, vector<1x128xf32>
    %193 = vector.shape_cast %192 : vector<1x128xf32> to vector<128xf32>
    %194 = vector.shape_cast %193 : vector<128xf32> to vector<1x1x128xf32>
    %195 = vector.broadcast %194 : vector<1x1x128xf32> to vector<8x16x128xf32>
    %196 = arith.mulf %191, %195 : vector<8x16x128xf32>
    %197 = arith.addf %190, %196 : vector<8x16x128xf32>
    %c0_145 = arith.constant 0 : index
    %c9_146 = arith.constant 9 : index
    %c0_147 = arith.constant 0 : index
    %198 = vector.load %arg29[%c0_145, %c9_146, %c0_147] : memref<18x32x128xf32, #tpu.memory_space<vmem>>, vector<8x16x128xf32>
    %c2_148 = arith.constant 2 : index
    %c0_149 = arith.constant 0 : index
    %199 = vector.load %arg10[%c2_148, %c0_149] : memref<9x128xf32, #tpu.memory_space<vmem>>, vector<1x128xf32>
    %200 = vector.shape_cast %199 : vector<1x128xf32> to vector<128xf32>
    %201 = vector.shape_cast %200 : vector<128xf32> to vector<1x1x128xf32>
    %202 = vector.broadcast %201 : vector<1x1x128xf32> to vector<8x16x128xf32>
    %203 = arith.mulf %198, %202 : vector<8x16x128xf32>
    %204 = arith.addf %197, %203 : vector<8x16x128xf32>
    %c1_150 = arith.constant 1 : index
    %c7_151 = arith.constant 7 : index
    %c0_152 = arith.constant 0 : index
    %205 = vector.load %arg29[%c1_150, %c7_151, %c0_152] : memref<18x32x128xf32, #tpu.memory_space<vmem>>, vector<8x16x128xf32>
    %c3_153 = arith.constant 3 : index
    %c0_154 = arith.constant 0 : index
    %206 = vector.load %arg10[%c3_153, %c0_154] : memref<9x128xf32, #tpu.memory_space<vmem>>, vector<1x128xf32>
    %207 = vector.shape_cast %206 : vector<1x128xf32> to vector<128xf32>
    %208 = vector.shape_cast %207 : vector<128xf32> to vector<1x1x128xf32>
    %209 = vector.broadcast %208 : vector<1x1x128xf32> to vector<8x16x128xf32>
    %210 = arith.mulf %205, %209 : vector<8x16x128xf32>
    %211 = arith.addf %204, %210 : vector<8x16x128xf32>
    %c1_155 = arith.constant 1 : index
    %c8_156 = arith.constant 8 : index
    %c0_157 = arith.constant 0 : index
    %212 = vector.load %arg29[%c1_155, %c8_156, %c0_157] : memref<18x32x128xf32, #tpu.memory_space<vmem>>, vector<8x16x128xf32>
    %c4_158 = arith.constant 4 : index
    %c0_159 = arith.constant 0 : index
    %213 = vector.load %arg10[%c4_158, %c0_159] : memref<9x128xf32, #tpu.memory_space<vmem>>, vector<1x128xf32>
    %214 = vector.shape_cast %213 : vector<1x128xf32> to vector<128xf32>
    %215 = vector.shape_cast %214 : vector<128xf32> to vector<1x1x128xf32>
    %216 = vector.broadcast %215 : vector<1x1x128xf32> to vector<8x16x128xf32>
    %217 = arith.mulf %212, %216 : vector<8x16x128xf32>
    %218 = arith.addf %211, %217 : vector<8x16x128xf32>
    %c1_160 = arith.constant 1 : index
    %c9_161 = arith.constant 9 : index
    %c0_162 = arith.constant 0 : index
    %219 = vector.load %arg29[%c1_160, %c9_161, %c0_162] : memref<18x32x128xf32, #tpu.memory_space<vmem>>, vector<8x16x128xf32>
    %c5_163 = arith.constant 5 : index
    %c0_164 = arith.constant 0 : index
    %220 = vector.load %arg10[%c5_163, %c0_164] : memref<9x128xf32, #tpu.memory_space<vmem>>, vector<1x128xf32>
    %221 = vector.shape_cast %220 : vector<1x128xf32> to vector<128xf32>
    %222 = vector.shape_cast %221 : vector<128xf32> to vector<1x1x128xf32>
    %223 = vector.broadcast %222 : vector<1x1x128xf32> to vector<8x16x128xf32>
    %224 = arith.mulf %219, %223 : vector<8x16x128xf32>
    %225 = arith.addf %218, %224 : vector<8x16x128xf32>
    %c2_165 = arith.constant 2 : index
    %c7_166 = arith.constant 7 : index
    %c0_167 = arith.constant 0 : index
    %226 = vector.load %arg29[%c2_165, %c7_166, %c0_167] : memref<18x32x128xf32, #tpu.memory_space<vmem>>, vector<8x16x128xf32>
    %c6_168 = arith.constant 6 : index
    %c0_169 = arith.constant 0 : index
    %227 = vector.load %arg10[%c6_168, %c0_169] : memref<9x128xf32, #tpu.memory_space<vmem>>, vector<1x128xf32>
    %228 = vector.shape_cast %227 : vector<1x128xf32> to vector<128xf32>
    %229 = vector.shape_cast %228 : vector<128xf32> to vector<1x1x128xf32>
    %230 = vector.broadcast %229 : vector<1x1x128xf32> to vector<8x16x128xf32>
    %231 = arith.mulf %226, %230 : vector<8x16x128xf32>
    %232 = arith.addf %225, %231 : vector<8x16x128xf32>
    %c2_170 = arith.constant 2 : index
    %c8_171 = arith.constant 8 : index
    %c0_172 = arith.constant 0 : index
    %233 = vector.load %arg29[%c2_170, %c8_171, %c0_172] : memref<18x32x128xf32, #tpu.memory_space<vmem>>, vector<8x16x128xf32>
    %c7_173 = arith.constant 7 : index
    %c0_174 = arith.constant 0 : index
    %234 = vector.load %arg10[%c7_173, %c0_174] : memref<9x128xf32, #tpu.memory_space<vmem>>, vector<1x128xf32>
    %235 = vector.shape_cast %234 : vector<1x128xf32> to vector<128xf32>
    %236 = vector.shape_cast %235 : vector<128xf32> to vector<1x1x128xf32>
    %237 = vector.broadcast %236 : vector<1x1x128xf32> to vector<8x16x128xf32>
    %238 = arith.mulf %233, %237 : vector<8x16x128xf32>
    %239 = arith.addf %232, %238 : vector<8x16x128xf32>
    %c2_175 = arith.constant 2 : index
    %c9_176 = arith.constant 9 : index
    %c0_177 = arith.constant 0 : index
    %240 = vector.load %arg29[%c2_175, %c9_176, %c0_177] : memref<18x32x128xf32, #tpu.memory_space<vmem>>, vector<8x16x128xf32>
    %c8_178 = arith.constant 8 : index
    %c0_179 = arith.constant 0 : index
    %241 = vector.load %arg10[%c8_178, %c0_179] : memref<9x128xf32, #tpu.memory_space<vmem>>, vector<1x128xf32>
    %242 = vector.shape_cast %241 : vector<1x128xf32> to vector<128xf32>
    %243 = vector.shape_cast %242 : vector<128xf32> to vector<1x1x128xf32>
    %244 = vector.broadcast %243 : vector<1x1x128xf32> to vector<8x16x128xf32>
    %245 = arith.mulf %240, %244 : vector<8x16x128xf32>
    %246 = arith.addf %239, %245 : vector<8x16x128xf32>
    %c0_180 = arith.constant 0 : index
    %c0_181 = arith.constant 0 : index
    %247 = vector.load %arg11[%c0_180, %c0_181] : memref<1x128xf32, #tpu.memory_space<vmem>>, vector<1x128xf32>
    %248 = vector.shape_cast %247 : vector<1x128xf32> to vector<128xf32>
    %249 = vector.shape_cast %248 : vector<128xf32> to vector<1x1x128xf32>
    %250 = vector.broadcast %249 : vector<1x1x128xf32> to vector<8x16x128xf32>
    %251 = arith.addf %246, %250 : vector<8x16x128xf32>
    %cst_182 = arith.constant 0.000000e+00 : f32
    %252 = vector.broadcast %cst_182 : f32 to vector<8x16x128xf32>
    %253 = arith.maximumf %251, %252 : vector<8x16x128xf32>
    %254 = vector.shape_cast %253 : vector<8x16x128xf32> to vector<128x128xf32>
    %c0_183 = arith.constant 0 : index
    %c0_184 = arith.constant 0 : index
    %255 = vector.load %arg31[%c0_183, %c0_184] : memref<256x128xf32, #tpu.memory_space<vmem>>, vector<128x128xf32>
    tpu.vector_store %arg31[%c0_183, %c0_184], %254 {strides = array<i32>} : memref<256x128xf32, #tpu.memory_space<vmem>>, vector<128x128xf32>,
    %cst_185 = arith.constant 0.000000e+00 : f32
    %256 = vector.broadcast %cst_185 : f32 to vector<8x16x128xf32>
    %c8_186 = arith.constant 8 : index
    %c7_187 = arith.constant 7 : index
    %c0_188 = arith.constant 0 : index
    %257 = vector.load %arg29[%c8_186, %c7_187, %c0_188] : memref<18x32x128xf32, #tpu.memory_space<vmem>>, vector<8x16x128xf32>
    %c0_189 = arith.constant 0 : index
    %c0_190 = arith.constant 0 : index
    %258 = vector.load %arg10[%c0_189, %c0_190] : memref<9x128xf32, #tpu.memory_space<vmem>>, vector<1x128xf32>
    %259 = vector.shape_cast %258 : vector<1x128xf32> to vector<128xf32>
    %260 = vector.shape_cast %259 : vector<128xf32> to vector<1x1x128xf32>
    %261 = vector.broadcast %260 : vector<1x1x128xf32> to vector<8x16x128xf32>
    %262 = arith.mulf %257, %261 : vector<8x16x128xf32>
    %263 = arith.addf %256, %262 : vector<8x16x128xf32>
    %c8_191 = arith.constant 8 : index
    %c8_192 = arith.constant 8 : index
    %c0_193 = arith.constant 0 : index
    %264 = vector.load %arg29[%c8_191, %c8_192, %c0_193] : memref<18x32x128xf32, #tpu.memory_space<vmem>>, vector<8x16x128xf32>
    %c1_194 = arith.constant 1 : index
    %c0_195 = arith.constant 0 : index
    %265 = vector.load %arg10[%c1_194, %c0_195] : memref<9x128xf32, #tpu.memory_space<vmem>>, vector<1x128xf32>
    %266 = vector.shape_cast %265 : vector<1x128xf32> to vector<128xf32>
    %267 = vector.shape_cast %266 : vector<128xf32> to vector<1x1x128xf32>
    %268 = vector.broadcast %267 : vector<1x1x128xf32> to vector<8x16x128xf32>
    %269 = arith.mulf %264, %268 : vector<8x16x128xf32>
    %270 = arith.addf %263, %269 : vector<8x16x128xf32>
    %c8_196 = arith.constant 8 : index
    %c9_197 = arith.constant 9 : index
    %c0_198 = arith.constant 0 : index
    %271 = vector.load %arg29[%c8_196, %c9_197, %c0_198] : memref<18x32x128xf32, #tpu.memory_space<vmem>>, vector<8x16x128xf32>
    %c2_199 = arith.constant 2 : index
    %c0_200 = arith.constant 0 : index
    %272 = vector.load %arg10[%c2_199, %c0_200] : memref<9x128xf32, #tpu.memory_space<vmem>>, vector<1x128xf32>
    %273 = vector.shape_cast %272 : vector<1x128xf32> to vector<128xf32>
    %274 = vector.shape_cast %273 : vector<128xf32> to vector<1x1x128xf32>
    %275 = vector.broadcast %274 : vector<1x1x128xf32> to vector<8x16x128xf32>
    %276 = arith.mulf %271, %275 : vector<8x16x128xf32>
    %277 = arith.addf %270, %276 : vector<8x16x128xf32>
    %c9_201 = arith.constant 9 : index
    %c7_202 = arith.constant 7 : index
    %c0_203 = arith.constant 0 : index
    %278 = vector.load %arg29[%c9_201, %c7_202, %c0_203] : memref<18x32x128xf32, #tpu.memory_space<vmem>>, vector<8x16x128xf32>
    %c3_204 = arith.constant 3 : index
    %c0_205 = arith.constant 0 : index
    %279 = vector.load %arg10[%c3_204, %c0_205] : memref<9x128xf32, #tpu.memory_space<vmem>>, vector<1x128xf32>
    %280 = vector.shape_cast %279 : vector<1x128xf32> to vector<128xf32>
    %281 = vector.shape_cast %280 : vector<128xf32> to vector<1x1x128xf32>
    %282 = vector.broadcast %281 : vector<1x1x128xf32> to vector<8x16x128xf32>
    %283 = arith.mulf %278, %282 : vector<8x16x128xf32>
    %284 = arith.addf %277, %283 : vector<8x16x128xf32>
    %c9_206 = arith.constant 9 : index
    %c8_207 = arith.constant 8 : index
    %c0_208 = arith.constant 0 : index
    %285 = vector.load %arg29[%c9_206, %c8_207, %c0_208] : memref<18x32x128xf32, #tpu.memory_space<vmem>>, vector<8x16x128xf32>
    %c4_209 = arith.constant 4 : index
    %c0_210 = arith.constant 0 : index
    %286 = vector.load %arg10[%c4_209, %c0_210] : memref<9x128xf32, #tpu.memory_space<vmem>>, vector<1x128xf32>
    %287 = vector.shape_cast %286 : vector<1x128xf32> to vector<128xf32>
    %288 = vector.shape_cast %287 : vector<128xf32> to vector<1x1x128xf32>
    %289 = vector.broadcast %288 : vector<1x1x128xf32> to vector<8x16x128xf32>
    %290 = arith.mulf %285, %289 : vector<8x16x128xf32>
    %291 = arith.addf %284, %290 : vector<8x16x128xf32>
    %c9_211 = arith.constant 9 : index
    %c9_212 = arith.constant 9 : index
    %c0_213 = arith.constant 0 : index
    %292 = vector.load %arg29[%c9_211, %c9_212, %c0_213] : memref<18x32x128xf32, #tpu.memory_space<vmem>>, vector<8x16x128xf32>
    %c5_214 = arith.constant 5 : index
    %c0_215 = arith.constant 0 : index
    %293 = vector.load %arg10[%c5_214, %c0_215] : memref<9x128xf32, #tpu.memory_space<vmem>>, vector<1x128xf32>
    %294 = vector.shape_cast %293 : vector<1x128xf32> to vector<128xf32>
    %295 = vector.shape_cast %294 : vector<128xf32> to vector<1x1x128xf32>
    %296 = vector.broadcast %295 : vector<1x1x128xf32> to vector<8x16x128xf32>
    %297 = arith.mulf %292, %296 : vector<8x16x128xf32>
    %298 = arith.addf %291, %297 : vector<8x16x128xf32>
    %c10_216 = arith.constant 10 : index
    %c7_217 = arith.constant 7 : index
    %c0_218 = arith.constant 0 : index
    %299 = vector.load %arg29[%c10_216, %c7_217, %c0_218] : memref<18x32x128xf32, #tpu.memory_space<vmem>>, vector<8x16x128xf32>
    %c6_219 = arith.constant 6 : index
    %c0_220 = arith.constant 0 : index
    %300 = vector.load %arg10[%c6_219, %c0_220] : memref<9x128xf32, #tpu.memory_space<vmem>>, vector<1x128xf32>
    %301 = vector.shape_cast %300 : vector<1x128xf32> to vector<128xf32>
    %302 = vector.shape_cast %301 : vector<128xf32> to vector<1x1x128xf32>
    %303 = vector.broadcast %302 : vector<1x1x128xf32> to vector<8x16x128xf32>
    %304 = arith.mulf %299, %303 : vector<8x16x128xf32>
    %305 = arith.addf %298, %304 : vector<8x16x128xf32>
    %c10_221 = arith.constant 10 : index
    %c8_222 = arith.constant 8 : index
    %c0_223 = arith.constant 0 : index
    %306 = vector.load %arg29[%c10_221, %c8_222, %c0_223] : memref<18x32x128xf32, #tpu.memory_space<vmem>>, vector<8x16x128xf32>
    %c7_224 = arith.constant 7 : index
    %c0_225 = arith.constant 0 : index
    %307 = vector.load %arg10[%c7_224, %c0_225] : memref<9x128xf32, #tpu.memory_space<vmem>>, vector<1x128xf32>
    %308 = vector.shape_cast %307 : vector<1x128xf32> to vector<128xf32>
    %309 = vector.shape_cast %308 : vector<128xf32> to vector<1x1x128xf32>
    %310 = vector.broadcast %309 : vector<1x1x128xf32> to vector<8x16x128xf32>
    %311 = arith.mulf %306, %310 : vector<8x16x128xf32>
    %312 = arith.addf %305, %311 : vector<8x16x128xf32>
    %c10_226 = arith.constant 10 : index
    %c9_227 = arith.constant 9 : index
    %c0_228 = arith.constant 0 : index
    %313 = vector.load %arg29[%c10_226, %c9_227, %c0_228] : memref<18x32x128xf32, #tpu.memory_space<vmem>>, vector<8x16x128xf32>
    %c8_229 = arith.constant 8 : index
    %c0_230 = arith.constant 0 : index
    %314 = vector.load %arg10[%c8_229, %c0_230] : memref<9x128xf32, #tpu.memory_space<vmem>>, vector<1x128xf32>
    %315 = vector.shape_cast %314 : vector<1x128xf32> to vector<128xf32>
    %316 = vector.shape_cast %315 : vector<128xf32> to vector<1x1x128xf32>
    %317 = vector.broadcast %316 : vector<1x1x128xf32> to vector<8x16x128xf32>
    %318 = arith.mulf %313, %317 : vector<8x16x128xf32>
    %319 = arith.addf %312, %318 : vector<8x16x128xf32>
    %c0_231 = arith.constant 0 : index
    %c0_232 = arith.constant 0 : index
    %320 = vector.load %arg11[%c0_231, %c0_232] : memref<1x128xf32, #tpu.memory_space<vmem>>, vector<1x128xf32>
    %321 = vector.shape_cast %320 : vector<1x128xf32> to vector<128xf32>
    %322 = vector.shape_cast %321 : vector<128xf32> to vector<1x1x128xf32>
    %323 = vector.broadcast %322 : vector<1x1x128xf32> to vector<8x16x128xf32>
    %324 = arith.addf %319, %323 : vector<8x16x128xf32>
    %cst_233 = arith.constant 0.000000e+00 : f32
    %325 = vector.broadcast %cst_233 : f32 to vector<8x16x128xf32>
    %326 = arith.maximumf %324, %325 : vector<8x16x128xf32>
    %327 = vector.shape_cast %326 : vector<8x16x128xf32> to vector<128x128xf32>
    %c128_234 = arith.constant 128 : index
    %c0_235 = arith.constant 0 : index
    %328 = vector.load %arg31[%c128_234, %c0_235] : memref<256x128xf32, #tpu.memory_space<vmem>>, vector<128x128xf32>
    tpu.vector_store %arg31[%c128_234, %c0_235], %327 {strides = array<i32>} : memref<256x128xf32, #tpu.memory_space<vmem>>, vector<128x128xf32>,
    %c0_236 = arith.constant 0 : index
    %c0_237 = arith.constant 0 : index
    %329 = vector.load %arg31[%c0_236, %c0_237] : memref<256x128xf32, #tpu.memory_space<vmem>>, vector<256x128xf32>
    %330 = arith.truncf %329 : vector<256x128xf32> to vector<256x128xbf16>
    %c0_238 = arith.constant 0 : index
    %c0_239 = arith.constant 0 : index
    %331 = vector.load %arg12[%c0_238, %c0_239] : memref<128x128xbf16, #tpu.memory_space<vmem>>, vector<128x128xbf16>
    %cst_240 = arith.constant dense<0.000000e+00> : vector<256x128xf32>
    %332 = tpu.matmul %330, %331, %cst_240 {dimension_numbers = #tpu.dot_dimension_numbers<[1], [0], [0], [1], [0, 0, 1, 1], [], []>} : vector<256x128xbf16>, vector<128x128xbf16>, vector<256x128xf32> -> vector<256x128xf32>
    %c0_241 = arith.constant 0 : index
    %c0_242 = arith.constant 0 : index
    %333 = vector.load %arg13[%c0_241, %c0_242] : memref<1x128xf32, #tpu.memory_space<vmem>>, vector<1x128xf32>
    %334 = vector.broadcast %333 : vector<1x128xf32> to vector<256x128xf32>
    %335 = arith.addf %332, %334 : vector<256x128xf32>
    %c0_243 = arith.constant 0 : index
    %c0_244 = arith.constant 0 : index
    %336 = vector.load %arg30[%c0_243, %c0_244] : memref<256x128xf32, #tpu.memory_space<vmem>>, vector<256x128xf32>
    tpu.vector_store %arg30[%c0_243, %c0_244], %335 {strides = array<i32>} : memref<256x128xf32, #tpu.memory_space<vmem>>, vector<256x128xf32>,
    %c0_245 = arith.constant 0 : index
    %c0_246 = arith.constant 0 : index
    %337 = vector.load %arg30[%c0_245, %c0_246] : memref<256x128xf32, #tpu.memory_space<vmem>>, vector<256x128xf32>
    %338 = arith.truncf %337 : vector<256x128xf32> to vector<256x128xbf16>
    %c0_247 = arith.constant 0 : index
    %c0_248 = arith.constant 0 : index
    %339 = vector.load %arg14[%c0_247, %c0_248] : memref<128x128xbf16, #tpu.memory_space<vmem>>, vector<128x128xbf16>
    %cst_249 = arith.constant dense<0.000000e+00> : vector<256x128xf32>
    %340 = tpu.matmul %338, %339, %cst_249 {dimension_numbers = #tpu.dot_dimension_numbers<[1], [0], [0], [1], [0, 0, 1, 1], [], []>} : vector<256x128xbf16>, vector<128x128xbf16>, vector<256x128xf32> -> vector<256x128xf32>
    %c0_250 = arith.constant 0 : index
    %c0_251 = arith.constant 0 : index
    %341 = vector.load %arg15[%c0_250, %c0_251] : memref<1x128xf32, #tpu.memory_space<vmem>>, vector<1x128xf32>
    %342 = vector.broadcast %341 : vector<1x128xf32> to vector<256x128xf32>
    %343 = arith.addf %340, %342 : vector<256x128xf32>
    %cst_252 = arith.constant 0.000000e+00 : f32
    %344 = vector.broadcast %cst_252 : f32 to vector<256x128xf32>
    %345 = arith.maximumf %343, %344 : vector<256x128xf32>
    %346 = vector.shape_cast %345 : vector<256x128xf32> to vector<16x16x128xf32>
    %c1_253 = arith.constant 1 : index
    %c8_254 = arith.constant 8 : index
    %c0_255 = arith.constant 0 : index
    %347 = vector.load %arg29[%c1_253, %c8_254, %c0_255] : memref<18x32x128xf32, #tpu.memory_space<vmem>>, vector<16x16x128xf32>
    tpu.vector_store %arg29[%c1_253, %c8_254, %c0_255], %346 {strides = array<i32>} : memref<18x32x128xf32, #tpu.memory_space<vmem>>, vector<16x16x128xf32>,
    %cst_256 = arith.constant 0.000000e+00 : f32
    %348 = vector.broadcast %cst_256 : f32 to vector<8x16x128xf32>
    %c0_257 = arith.constant 0 : index
    %c7_258 = arith.constant 7 : index
    %c0_259 = arith.constant 0 : index
    %349 = vector.load %arg29[%c0_257, %c7_258, %c0_259] : memref<18x32x128xf32, #tpu.memory_space<vmem>>, vector<8x16x128xf32>
    %c0_260 = arith.constant 0 : index
    %c0_261 = arith.constant 0 : index
    %350 = vector.load %arg16[%c0_260, %c0_261] : memref<9x128xf32, #tpu.memory_space<vmem>>, vector<1x128xf32>
    %351 = vector.shape_cast %350 : vector<1x128xf32> to vector<128xf32>
    %352 = vector.shape_cast %351 : vector<128xf32> to vector<1x1x128xf32>
    %353 = vector.broadcast %352 : vector<1x1x128xf32> to vector<8x16x128xf32>
    %354 = arith.mulf %349, %353 : vector<8x16x128xf32>
    %355 = arith.addf %348, %354 : vector<8x16x128xf32>
    %c0_262 = arith.constant 0 : index
    %c8_263 = arith.constant 8 : index
    %c0_264 = arith.constant 0 : index
    %356 = vector.load %arg29[%c0_262, %c8_263, %c0_264] : memref<18x32x128xf32, #tpu.memory_space<vmem>>, vector<8x16x128xf32>
    %c1_265 = arith.constant 1 : index
    %c0_266 = arith.constant 0 : index
    %357 = vector.load %arg16[%c1_265, %c0_266] : memref<9x128xf32, #tpu.memory_space<vmem>>, vector<1x128xf32>
    %358 = vector.shape_cast %357 : vector<1x128xf32> to vector<128xf32>
    %359 = vector.shape_cast %358 : vector<128xf32> to vector<1x1x128xf32>
    %360 = vector.broadcast %359 : vector<1x1x128xf32> to vector<8x16x128xf32>
    %361 = arith.mulf %356, %360 : vector<8x16x128xf32>
    %362 = arith.addf %355, %361 : vector<8x16x128xf32>
    %c0_267 = arith.constant 0 : index
    %c9_268 = arith.constant 9 : index
    %c0_269 = arith.constant 0 : index
    %363 = vector.load %arg29[%c0_267, %c9_268, %c0_269] : memref<18x32x128xf32, #tpu.memory_space<vmem>>, vector<8x16x128xf32>
    %c2_270 = arith.constant 2 : index
    %c0_271 = arith.constant 0 : index
    %364 = vector.load %arg16[%c2_270, %c0_271] : memref<9x128xf32, #tpu.memory_space<vmem>>, vector<1x128xf32>
    %365 = vector.shape_cast %364 : vector<1x128xf32> to vector<128xf32>
    %366 = vector.shape_cast %365 : vector<128xf32> to vector<1x1x128xf32>
    %367 = vector.broadcast %366 : vector<1x1x128xf32> to vector<8x16x128xf32>
    %368 = arith.mulf %363, %367 : vector<8x16x128xf32>
    %369 = arith.addf %362, %368 : vector<8x16x128xf32>
    %c1_272 = arith.constant 1 : index
    %c7_273 = arith.constant 7 : index
    %c0_274 = arith.constant 0 : index
    %370 = vector.load %arg29[%c1_272, %c7_273, %c0_274] : memref<18x32x128xf32, #tpu.memory_space<vmem>>, vector<8x16x128xf32>
    %c3_275 = arith.constant 3 : index
    %c0_276 = arith.constant 0 : index
    %371 = vector.load %arg16[%c3_275, %c0_276] : memref<9x128xf32, #tpu.memory_space<vmem>>, vector<1x128xf32>
    %372 = vector.shape_cast %371 : vector<1x128xf32> to vector<128xf32>
    %373 = vector.shape_cast %372 : vector<128xf32> to vector<1x1x128xf32>
    %374 = vector.broadcast %373 : vector<1x1x128xf32> to vector<8x16x128xf32>
    %375 = arith.mulf %370, %374 : vector<8x16x128xf32>
    %376 = arith.addf %369, %375 : vector<8x16x128xf32>
    %c1_277 = arith.constant 1 : index
    %c8_278 = arith.constant 8 : index
    %c0_279 = arith.constant 0 : index
    %377 = vector.load %arg29[%c1_277, %c8_278, %c0_279] : memref<18x32x128xf32, #tpu.memory_space<vmem>>, vector<8x16x128xf32>
    %c4_280 = arith.constant 4 : index
    %c0_281 = arith.constant 0 : index
    %378 = vector.load %arg16[%c4_280, %c0_281] : memref<9x128xf32, #tpu.memory_space<vmem>>, vector<1x128xf32>
    %379 = vector.shape_cast %378 : vector<1x128xf32> to vector<128xf32>
    %380 = vector.shape_cast %379 : vector<128xf32> to vector<1x1x128xf32>
    %381 = vector.broadcast %380 : vector<1x1x128xf32> to vector<8x16x128xf32>
    %382 = arith.mulf %377, %381 : vector<8x16x128xf32>
    %383 = arith.addf %376, %382 : vector<8x16x128xf32>
    %c1_282 = arith.constant 1 : index
    %c9_283 = arith.constant 9 : index
    %c0_284 = arith.constant 0 : index
    %384 = vector.load %arg29[%c1_282, %c9_283, %c0_284] : memref<18x32x128xf32, #tpu.memory_space<vmem>>, vector<8x16x128xf32>
    %c5_285 = arith.constant 5 : index
    %c0_286 = arith.constant 0 : index
    %385 = vector.load %arg16[%c5_285, %c0_286] : memref<9x128xf32, #tpu.memory_space<vmem>>, vector<1x128xf32>
    %386 = vector.shape_cast %385 : vector<1x128xf32> to vector<128xf32>
    %387 = vector.shape_cast %386 : vector<128xf32> to vector<1x1x128xf32>
    %388 = vector.broadcast %387 : vector<1x1x128xf32> to vector<8x16x128xf32>
    %389 = arith.mulf %384, %388 : vector<8x16x128xf32>
    %390 = arith.addf %383, %389 : vector<8x16x128xf32>
    %c2_287 = arith.constant 2 : index
    %c7_288 = arith.constant 7 : index
    %c0_289 = arith.constant 0 : index
    %391 = vector.load %arg29[%c2_287, %c7_288, %c0_289] : memref<18x32x128xf32, #tpu.memory_space<vmem>>, vector<8x16x128xf32>
    %c6_290 = arith.constant 6 : index
    %c0_291 = arith.constant 0 : index
    %392 = vector.load %arg16[%c6_290, %c0_291] : memref<9x128xf32, #tpu.memory_space<vmem>>, vector<1x128xf32>
    %393 = vector.shape_cast %392 : vector<1x128xf32> to vector<128xf32>
    %394 = vector.shape_cast %393 : vector<128xf32> to vector<1x1x128xf32>
    %395 = vector.broadcast %394 : vector<1x1x128xf32> to vector<8x16x128xf32>
    %396 = arith.mulf %391, %395 : vector<8x16x128xf32>
    %397 = arith.addf %390, %396 : vector<8x16x128xf32>
    %c2_292 = arith.constant 2 : index
    %c8_293 = arith.constant 8 : index
    %c0_294 = arith.constant 0 : index
    %398 = vector.load %arg29[%c2_292, %c8_293, %c0_294] : memref<18x32x128xf32, #tpu.memory_space<vmem>>, vector<8x16x128xf32>
    %c7_295 = arith.constant 7 : index
    %c0_296 = arith.constant 0 : index
    %399 = vector.load %arg16[%c7_295, %c0_296] : memref<9x128xf32, #tpu.memory_space<vmem>>, vector<1x128xf32>
    %400 = vector.shape_cast %399 : vector<1x128xf32> to vector<128xf32>
    %401 = vector.shape_cast %400 : vector<128xf32> to vector<1x1x128xf32>
    %402 = vector.broadcast %401 : vector<1x1x128xf32> to vector<8x16x128xf32>
    %403 = arith.mulf %398, %402 : vector<8x16x128xf32>
    %404 = arith.addf %397, %403 : vector<8x16x128xf32>
    %c2_297 = arith.constant 2 : index
    %c9_298 = arith.constant 9 : index
    %c0_299 = arith.constant 0 : index
    %405 = vector.load %arg29[%c2_297, %c9_298, %c0_299] : memref<18x32x128xf32, #tpu.memory_space<vmem>>, vector<8x16x128xf32>
    %c8_300 = arith.constant 8 : index
    %c0_301 = arith.constant 0 : index
    %406 = vector.load %arg16[%c8_300, %c0_301] : memref<9x128xf32, #tpu.memory_space<vmem>>, vector<1x128xf32>
    %407 = vector.shape_cast %406 : vector<1x128xf32> to vector<128xf32>
    %408 = vector.shape_cast %407 : vector<128xf32> to vector<1x1x128xf32>
    %409 = vector.broadcast %408 : vector<1x1x128xf32> to vector<8x16x128xf32>
    %410 = arith.mulf %405, %409 : vector<8x16x128xf32>
    %411 = arith.addf %404, %410 : vector<8x16x128xf32>
    %c0_302 = arith.constant 0 : index
    %c0_303 = arith.constant 0 : index
    %412 = vector.load %arg17[%c0_302, %c0_303] : memref<1x128xf32, #tpu.memory_space<vmem>>, vector<1x128xf32>
    %413 = vector.shape_cast %412 : vector<1x128xf32> to vector<128xf32>
    %414 = vector.shape_cast %413 : vector<128xf32> to vector<1x1x128xf32>
    %415 = vector.broadcast %414 : vector<1x1x128xf32> to vector<8x16x128xf32>
    %416 = arith.addf %411, %415 : vector<8x16x128xf32>
    %cst_304 = arith.constant 0.000000e+00 : f32
    %417 = vector.broadcast %cst_304 : f32 to vector<8x16x128xf32>
    %418 = arith.maximumf %416, %417 : vector<8x16x128xf32>
    %419 = vector.shape_cast %418 : vector<8x16x128xf32> to vector<128x128xf32>
    %c0_305 = arith.constant 0 : index
    %c0_306 = arith.constant 0 : index
    %420 = vector.load %arg31[%c0_305, %c0_306] : memref<256x128xf32, #tpu.memory_space<vmem>>, vector<128x128xf32>
    tpu.vector_store %arg31[%c0_305, %c0_306], %419 {strides = array<i32>} : memref<256x128xf32, #tpu.memory_space<vmem>>, vector<128x128xf32>,
    %cst_307 = arith.constant 0.000000e+00 : f32
    %421 = vector.broadcast %cst_307 : f32 to vector<8x16x128xf32>
    %c8_308 = arith.constant 8 : index
    %c7_309 = arith.constant 7 : index
    %c0_310 = arith.constant 0 : index
    %422 = vector.load %arg29[%c8_308, %c7_309, %c0_310] : memref<18x32x128xf32, #tpu.memory_space<vmem>>, vector<8x16x128xf32>
    %c0_311 = arith.constant 0 : index
    %c0_312 = arith.constant 0 : index
    %423 = vector.load %arg16[%c0_311, %c0_312] : memref<9x128xf32, #tpu.memory_space<vmem>>, vector<1x128xf32>
    %424 = vector.shape_cast %423 : vector<1x128xf32> to vector<128xf32>
    %425 = vector.shape_cast %424 : vector<128xf32> to vector<1x1x128xf32>
    %426 = vector.broadcast %425 : vector<1x1x128xf32> to vector<8x16x128xf32>
    %427 = arith.mulf %422, %426 : vector<8x16x128xf32>
    %428 = arith.addf %421, %427 : vector<8x16x128xf32>
    %c8_313 = arith.constant 8 : index
    %c8_314 = arith.constant 8 : index
    %c0_315 = arith.constant 0 : index
    %429 = vector.load %arg29[%c8_313, %c8_314, %c0_315] : memref<18x32x128xf32, #tpu.memory_space<vmem>>, vector<8x16x128xf32>
    %c1_316 = arith.constant 1 : index
    %c0_317 = arith.constant 0 : index
    %430 = vector.load %arg16[%c1_316, %c0_317] : memref<9x128xf32, #tpu.memory_space<vmem>>, vector<1x128xf32>
    %431 = vector.shape_cast %430 : vector<1x128xf32> to vector<128xf32>
    %432 = vector.shape_cast %431 : vector<128xf32> to vector<1x1x128xf32>
    %433 = vector.broadcast %432 : vector<1x1x128xf32> to vector<8x16x128xf32>
    %434 = arith.mulf %429, %433 : vector<8x16x128xf32>
    %435 = arith.addf %428, %434 : vector<8x16x128xf32>
    %c8_318 = arith.constant 8 : index
    %c9_319 = arith.constant 9 : index
    %c0_320 = arith.constant 0 : index
    %436 = vector.load %arg29[%c8_318, %c9_319, %c0_320] : memref<18x32x128xf32, #tpu.memory_space<vmem>>, vector<8x16x128xf32>
    %c2_321 = arith.constant 2 : index
    %c0_322 = arith.constant 0 : index
    %437 = vector.load %arg16[%c2_321, %c0_322] : memref<9x128xf32, #tpu.memory_space<vmem>>, vector<1x128xf32>
    %438 = vector.shape_cast %437 : vector<1x128xf32> to vector<128xf32>
    %439 = vector.shape_cast %438 : vector<128xf32> to vector<1x1x128xf32>
    %440 = vector.broadcast %439 : vector<1x1x128xf32> to vector<8x16x128xf32>
    %441 = arith.mulf %436, %440 : vector<8x16x128xf32>
    %442 = arith.addf %435, %441 : vector<8x16x128xf32>
    %c9_323 = arith.constant 9 : index
    %c7_324 = arith.constant 7 : index
    %c0_325 = arith.constant 0 : index
    %443 = vector.load %arg29[%c9_323, %c7_324, %c0_325] : memref<18x32x128xf32, #tpu.memory_space<vmem>>, vector<8x16x128xf32>
    %c3_326 = arith.constant 3 : index
    %c0_327 = arith.constant 0 : index
    %444 = vector.load %arg16[%c3_326, %c0_327] : memref<9x128xf32, #tpu.memory_space<vmem>>, vector<1x128xf32>
    %445 = vector.shape_cast %444 : vector<1x128xf32> to vector<128xf32>
    %446 = vector.shape_cast %445 : vector<128xf32> to vector<1x1x128xf32>
    %447 = vector.broadcast %446 : vector<1x1x128xf32> to vector<8x16x128xf32>
    %448 = arith.mulf %443, %447 : vector<8x16x128xf32>
    %449 = arith.addf %442, %448 : vector<8x16x128xf32>
    %c9_328 = arith.constant 9 : index
    %c8_329 = arith.constant 8 : index
    %c0_330 = arith.constant 0 : index
    %450 = vector.load %arg29[%c9_328, %c8_329, %c0_330] : memref<18x32x128xf32, #tpu.memory_space<vmem>>, vector<8x16x128xf32>
    %c4_331 = arith.constant 4 : index
    %c0_332 = arith.constant 0 : index
    %451 = vector.load %arg16[%c4_331, %c0_332] : memref<9x128xf32, #tpu.memory_space<vmem>>, vector<1x128xf32>
    %452 = vector.shape_cast %451 : vector<1x128xf32> to vector<128xf32>
    %453 = vector.shape_cast %452 : vector<128xf32> to vector<1x1x128xf32>
    %454 = vector.broadcast %453 : vector<1x1x128xf32> to vector<8x16x128xf32>
    %455 = arith.mulf %450, %454 : vector<8x16x128xf32>
    %456 = arith.addf %449, %455 : vector<8x16x128xf32>
    %c9_333 = arith.constant 9 : index
    %c9_334 = arith.constant 9 : index
    %c0_335 = arith.constant 0 : index
    %457 = vector.load %arg29[%c9_333, %c9_334, %c0_335] : memref<18x32x128xf32, #tpu.memory_space<vmem>>, vector<8x16x128xf32>
    %c5_336 = arith.constant 5 : index
    %c0_337 = arith.constant 0 : index
    %458 = vector.load %arg16[%c5_336, %c0_337] : memref<9x128xf32, #tpu.memory_space<vmem>>, vector<1x128xf32>
    %459 = vector.shape_cast %458 : vector<1x128xf32> to vector<128xf32>
    %460 = vector.shape_cast %459 : vector<128xf32> to vector<1x1x128xf32>
    %461 = vector.broadcast %460 : vector<1x1x128xf32> to vector<8x16x128xf32>
    %462 = arith.mulf %457, %461 : vector<8x16x128xf32>
    %463 = arith.addf %456, %462 : vector<8x16x128xf32>
    %c10_338 = arith.constant 10 : index
    %c7_339 = arith.constant 7 : index
    %c0_340 = arith.constant 0 : index
    %464 = vector.load %arg29[%c10_338, %c7_339, %c0_340] : memref<18x32x128xf32, #tpu.memory_space<vmem>>, vector<8x16x128xf32>
    %c6_341 = arith.constant 6 : index
    %c0_342 = arith.constant 0 : index
    %465 = vector.load %arg16[%c6_341, %c0_342] : memref<9x128xf32, #tpu.memory_space<vmem>>, vector<1x128xf32>
    %466 = vector.shape_cast %465 : vector<1x128xf32> to vector<128xf32>
    %467 = vector.shape_cast %466 : vector<128xf32> to vector<1x1x128xf32>
    %468 = vector.broadcast %467 : vector<1x1x128xf32> to vector<8x16x128xf32>
    %469 = arith.mulf %464, %468 : vector<8x16x128xf32>
    %470 = arith.addf %463, %469 : vector<8x16x128xf32>
    %c10_343 = arith.constant 10 : index
    %c8_344 = arith.constant 8 : index
    %c0_345 = arith.constant 0 : index
    %471 = vector.load %arg29[%c10_343, %c8_344, %c0_345] : memref<18x32x128xf32, #tpu.memory_space<vmem>>, vector<8x16x128xf32>
    %c7_346 = arith.constant 7 : index
    %c0_347 = arith.constant 0 : index
    %472 = vector.load %arg16[%c7_346, %c0_347] : memref<9x128xf32, #tpu.memory_space<vmem>>, vector<1x128xf32>
    %473 = vector.shape_cast %472 : vector<1x128xf32> to vector<128xf32>
    %474 = vector.shape_cast %473 : vector<128xf32> to vector<1x1x128xf32>
    %475 = vector.broadcast %474 : vector<1x1x128xf32> to vector<8x16x128xf32>
    %476 = arith.mulf %471, %475 : vector<8x16x128xf32>
    %477 = arith.addf %470, %476 : vector<8x16x128xf32>
    %c10_348 = arith.constant 10 : index
    %c9_349 = arith.constant 9 : index
    %c0_350 = arith.constant 0 : index
    %478 = vector.load %arg29[%c10_348, %c9_349, %c0_350] : memref<18x32x128xf32, #tpu.memory_space<vmem>>, vector<8x16x128xf32>
    %c8_351 = arith.constant 8 : index
    %c0_352 = arith.constant 0 : index
    %479 = vector.load %arg16[%c8_351, %c0_352] : memref<9x128xf32, #tpu.memory_space<vmem>>, vector<1x128xf32>
    %480 = vector.shape_cast %479 : vector<1x128xf32> to vector<128xf32>
    %481 = vector.shape_cast %480 : vector<128xf32> to vector<1x1x128xf32>
    %482 = vector.broadcast %481 : vector<1x1x128xf32> to vector<8x16x128xf32>
    %483 = arith.mulf %478, %482 : vector<8x16x128xf32>
    %484 = arith.addf %477, %483 : vector<8x16x128xf32>
    %c0_353 = arith.constant 0 : index
    %c0_354 = arith.constant 0 : index
    %485 = vector.load %arg17[%c0_353, %c0_354] : memref<1x128xf32, #tpu.memory_space<vmem>>, vector<1x128xf32>
    %486 = vector.shape_cast %485 : vector<1x128xf32> to vector<128xf32>
    %487 = vector.shape_cast %486 : vector<128xf32> to vector<1x1x128xf32>
    %488 = vector.broadcast %487 : vector<1x1x128xf32> to vector<8x16x128xf32>
    %489 = arith.addf %484, %488 : vector<8x16x128xf32>
    %cst_355 = arith.constant 0.000000e+00 : f32
    %490 = vector.broadcast %cst_355 : f32 to vector<8x16x128xf32>
    %491 = arith.maximumf %489, %490 : vector<8x16x128xf32>
    %492 = vector.shape_cast %491 : vector<8x16x128xf32> to vector<128x128xf32>
    %c128_356 = arith.constant 128 : index
    %c0_357 = arith.constant 0 : index
    %493 = vector.load %arg31[%c128_356, %c0_357] : memref<256x128xf32, #tpu.memory_space<vmem>>, vector<128x128xf32>
    tpu.vector_store %arg31[%c128_356, %c0_357], %492 {strides = array<i32>} : memref<256x128xf32, #tpu.memory_space<vmem>>, vector<128x128xf32>,
    %c0_358 = arith.constant 0 : index
    %c0_359 = arith.constant 0 : index
    %494 = vector.load %arg31[%c0_358, %c0_359] : memref<256x128xf32, #tpu.memory_space<vmem>>, vector<256x128xf32>
    %495 = arith.truncf %494 : vector<256x128xf32> to vector<256x128xbf16>
    %c0_360 = arith.constant 0 : index
    %c0_361 = arith.constant 0 : index
    %496 = vector.load %arg18[%c0_360, %c0_361] : memref<128x128xbf16, #tpu.memory_space<vmem>>, vector<128x128xbf16>
    %cst_362 = arith.constant dense<0.000000e+00> : vector<256x128xf32>
    %497 = tpu.matmul %495, %496, %cst_362 {dimension_numbers = #tpu.dot_dimension_numbers<[1], [0], [0], [1], [0, 0, 1, 1], [], []>} : vector<256x128xbf16>, vector<128x128xbf16>, vector<256x128xf32> -> vector<256x128xf32>
    %c0_363 = arith.constant 0 : index
    %c0_364 = arith.constant 0 : index
    %498 = vector.load %arg19[%c0_363, %c0_364] : memref<1x128xf32, #tpu.memory_space<vmem>>, vector<1x128xf32>
    %499 = vector.broadcast %498 : vector<1x128xf32> to vector<256x128xf32>
    %500 = arith.addf %497, %499 : vector<256x128xf32>
    %c0_365 = arith.constant 0 : index
    %c0_366 = arith.constant 0 : index
    %501 = vector.load %arg30[%c0_365, %c0_366] : memref<256x128xf32, #tpu.memory_space<vmem>>, vector<256x128xf32>
    tpu.vector_store %arg30[%c0_365, %c0_366], %500 {strides = array<i32>} : memref<256x128xf32, #tpu.memory_space<vmem>>, vector<256x128xf32>,
    %c0_367 = arith.constant 0 : index
    %c0_368 = arith.constant 0 : index
    %502 = vector.load %arg30[%c0_367, %c0_368] : memref<256x128xf32, #tpu.memory_space<vmem>>, vector<256x128xf32>
    %503 = arith.truncf %502 : vector<256x128xf32> to vector<256x128xbf16>
    %c0_369 = arith.constant 0 : index
    %c0_370 = arith.constant 0 : index
    %504 = vector.load %arg20[%c0_369, %c0_370] : memref<128x128xbf16, #tpu.memory_space<vmem>>, vector<128x128xbf16>
    %cst_371 = arith.constant dense<0.000000e+00> : vector<256x128xf32>
    %505 = tpu.matmul %503, %504, %cst_371 {dimension_numbers = #tpu.dot_dimension_numbers<[1], [0], [0], [1], [0, 0, 1, 1], [], []>} : vector<256x128xbf16>, vector<128x128xbf16>, vector<256x128xf32> -> vector<256x128xf32>
    %c0_372 = arith.constant 0 : index
    %c0_373 = arith.constant 0 : index
    %506 = vector.load %arg21[%c0_372, %c0_373] : memref<1x128xf32, #tpu.memory_space<vmem>>, vector<1x128xf32>
    %507 = vector.broadcast %506 : vector<1x128xf32> to vector<256x128xf32>
    %508 = arith.addf %505, %507 : vector<256x128xf32>
    %cst_374 = arith.constant 0.000000e+00 : f32
    %509 = vector.broadcast %cst_374 : f32 to vector<256x128xf32>
    %510 = arith.maximumf %508, %509 : vector<256x128xf32>
    %511 = vector.shape_cast %510 : vector<256x128xf32> to vector<16x16x128xf32>
    %c1_375 = arith.constant 1 : index
    %c8_376 = arith.constant 8 : index
    %c0_377 = arith.constant 0 : index
    %512 = vector.load %arg29[%c1_375, %c8_376, %c0_377] : memref<18x32x128xf32, #tpu.memory_space<vmem>>, vector<16x16x128xf32>
    tpu.vector_store %arg29[%c1_375, %c8_376, %c0_377], %511 {strides = array<i32>} : memref<18x32x128xf32, #tpu.memory_space<vmem>>, vector<16x16x128xf32>,
    %cst_378 = arith.constant 0.000000e+00 : f32
    %513 = vector.broadcast %cst_378 : f32 to vector<8x16x128xf32>
    %c0_379 = arith.constant 0 : index
    %c7_380 = arith.constant 7 : index
    %c0_381 = arith.constant 0 : index
    %514 = vector.load %arg29[%c0_379, %c7_380, %c0_381] : memref<18x32x128xf32, #tpu.memory_space<vmem>>, vector<8x16x128xf32>
    %c0_382 = arith.constant 0 : index
    %c0_383 = arith.constant 0 : index
    %515 = vector.load %arg22[%c0_382, %c0_383] : memref<9x128xf32, #tpu.memory_space<vmem>>, vector<1x128xf32>
    %516 = vector.shape_cast %515 : vector<1x128xf32> to vector<128xf32>
    %517 = vector.shape_cast %516 : vector<128xf32> to vector<1x1x128xf32>
    %518 = vector.broadcast %517 : vector<1x1x128xf32> to vector<8x16x128xf32>
    %519 = arith.mulf %514, %518 : vector<8x16x128xf32>
    %520 = arith.addf %513, %519 : vector<8x16x128xf32>
    %c0_384 = arith.constant 0 : index
    %c8_385 = arith.constant 8 : index
    %c0_386 = arith.constant 0 : index
    %521 = vector.load %arg29[%c0_384, %c8_385, %c0_386] : memref<18x32x128xf32, #tpu.memory_space<vmem>>, vector<8x16x128xf32>
    %c1_387 = arith.constant 1 : index
    %c0_388 = arith.constant 0 : index
    %522 = vector.load %arg22[%c1_387, %c0_388] : memref<9x128xf32, #tpu.memory_space<vmem>>, vector<1x128xf32>
    %523 = vector.shape_cast %522 : vector<1x128xf32> to vector<128xf32>
    %524 = vector.shape_cast %523 : vector<128xf32> to vector<1x1x128xf32>
    %525 = vector.broadcast %524 : vector<1x1x128xf32> to vector<8x16x128xf32>
    %526 = arith.mulf %521, %525 : vector<8x16x128xf32>
    %527 = arith.addf %520, %526 : vector<8x16x128xf32>
    %c0_389 = arith.constant 0 : index
    %c9_390 = arith.constant 9 : index
    %c0_391 = arith.constant 0 : index
    %528 = vector.load %arg29[%c0_389, %c9_390, %c0_391] : memref<18x32x128xf32, #tpu.memory_space<vmem>>, vector<8x16x128xf32>
    %c2_392 = arith.constant 2 : index
    %c0_393 = arith.constant 0 : index
    %529 = vector.load %arg22[%c2_392, %c0_393] : memref<9x128xf32, #tpu.memory_space<vmem>>, vector<1x128xf32>
    %530 = vector.shape_cast %529 : vector<1x128xf32> to vector<128xf32>
    %531 = vector.shape_cast %530 : vector<128xf32> to vector<1x1x128xf32>
    %532 = vector.broadcast %531 : vector<1x1x128xf32> to vector<8x16x128xf32>
    %533 = arith.mulf %528, %532 : vector<8x16x128xf32>
    %534 = arith.addf %527, %533 : vector<8x16x128xf32>
    %c1_394 = arith.constant 1 : index
    %c7_395 = arith.constant 7 : index
    %c0_396 = arith.constant 0 : index
    %535 = vector.load %arg29[%c1_394, %c7_395, %c0_396] : memref<18x32x128xf32, #tpu.memory_space<vmem>>, vector<8x16x128xf32>
    %c3_397 = arith.constant 3 : index
    %c0_398 = arith.constant 0 : index
    %536 = vector.load %arg22[%c3_397, %c0_398] : memref<9x128xf32, #tpu.memory_space<vmem>>, vector<1x128xf32>
    %537 = vector.shape_cast %536 : vector<1x128xf32> to vector<128xf32>
    %538 = vector.shape_cast %537 : vector<128xf32> to vector<1x1x128xf32>
    %539 = vector.broadcast %538 : vector<1x1x128xf32> to vector<8x16x128xf32>
    %540 = arith.mulf %535, %539 : vector<8x16x128xf32>
    %541 = arith.addf %534, %540 : vector<8x16x128xf32>
    %c1_399 = arith.constant 1 : index
    %c8_400 = arith.constant 8 : index
    %c0_401 = arith.constant 0 : index
    %542 = vector.load %arg29[%c1_399, %c8_400, %c0_401] : memref<18x32x128xf32, #tpu.memory_space<vmem>>, vector<8x16x128xf32>
    %c4_402 = arith.constant 4 : index
    %c0_403 = arith.constant 0 : index
    %543 = vector.load %arg22[%c4_402, %c0_403] : memref<9x128xf32, #tpu.memory_space<vmem>>, vector<1x128xf32>
    %544 = vector.shape_cast %543 : vector<1x128xf32> to vector<128xf32>
    %545 = vector.shape_cast %544 : vector<128xf32> to vector<1x1x128xf32>
    %546 = vector.broadcast %545 : vector<1x1x128xf32> to vector<8x16x128xf32>
    %547 = arith.mulf %542, %546 : vector<8x16x128xf32>
    %548 = arith.addf %541, %547 : vector<8x16x128xf32>
    %c1_404 = arith.constant 1 : index
    %c9_405 = arith.constant 9 : index
    %c0_406 = arith.constant 0 : index
    %549 = vector.load %arg29[%c1_404, %c9_405, %c0_406] : memref<18x32x128xf32, #tpu.memory_space<vmem>>, vector<8x16x128xf32>
    %c5_407 = arith.constant 5 : index
    %c0_408 = arith.constant 0 : index
    %550 = vector.load %arg22[%c5_407, %c0_408] : memref<9x128xf32, #tpu.memory_space<vmem>>, vector<1x128xf32>
    %551 = vector.shape_cast %550 : vector<1x128xf32> to vector<128xf32>
    %552 = vector.shape_cast %551 : vector<128xf32> to vector<1x1x128xf32>
    %553 = vector.broadcast %552 : vector<1x1x128xf32> to vector<8x16x128xf32>
    %554 = arith.mulf %549, %553 : vector<8x16x128xf32>
    %555 = arith.addf %548, %554 : vector<8x16x128xf32>
    %c2_409 = arith.constant 2 : index
    %c7_410 = arith.constant 7 : index
    %c0_411 = arith.constant 0 : index
    %556 = vector.load %arg29[%c2_409, %c7_410, %c0_411] : memref<18x32x128xf32, #tpu.memory_space<vmem>>, vector<8x16x128xf32>
    %c6_412 = arith.constant 6 : index
    %c0_413 = arith.constant 0 : index
    %557 = vector.load %arg22[%c6_412, %c0_413] : memref<9x128xf32, #tpu.memory_space<vmem>>, vector<1x128xf32>
    %558 = vector.shape_cast %557 : vector<1x128xf32> to vector<128xf32>
    %559 = vector.shape_cast %558 : vector<128xf32> to vector<1x1x128xf32>
    %560 = vector.broadcast %559 : vector<1x1x128xf32> to vector<8x16x128xf32>
    %561 = arith.mulf %556, %560 : vector<8x16x128xf32>
    %562 = arith.addf %555, %561 : vector<8x16x128xf32>
    %c2_414 = arith.constant 2 : index
    %c8_415 = arith.constant 8 : index
    %c0_416 = arith.constant 0 : index
    %563 = vector.load %arg29[%c2_414, %c8_415, %c0_416] : memref<18x32x128xf32, #tpu.memory_space<vmem>>, vector<8x16x128xf32>
    %c7_417 = arith.constant 7 : index
    %c0_418 = arith.constant 0 : index
    %564 = vector.load %arg22[%c7_417, %c0_418] : memref<9x128xf32, #tpu.memory_space<vmem>>, vector<1x128xf32>
    %565 = vector.shape_cast %564 : vector<1x128xf32> to vector<128xf32>
    %566 = vector.shape_cast %565 : vector<128xf32> to vector<1x1x128xf32>
    %567 = vector.broadcast %566 : vector<1x1x128xf32> to vector<8x16x128xf32>
    %568 = arith.mulf %563, %567 : vector<8x16x128xf32>
    %569 = arith.addf %562, %568 : vector<8x16x128xf32>
    %c2_419 = arith.constant 2 : index
    %c9_420 = arith.constant 9 : index
    %c0_421 = arith.constant 0 : index
    %570 = vector.load %arg29[%c2_419, %c9_420, %c0_421] : memref<18x32x128xf32, #tpu.memory_space<vmem>>, vector<8x16x128xf32>
    %c8_422 = arith.constant 8 : index
    %c0_423 = arith.constant 0 : index
    %571 = vector.load %arg22[%c8_422, %c0_423] : memref<9x128xf32, #tpu.memory_space<vmem>>, vector<1x128xf32>
    %572 = vector.shape_cast %571 : vector<1x128xf32> to vector<128xf32>
    %573 = vector.shape_cast %572 : vector<128xf32> to vector<1x1x128xf32>
    %574 = vector.broadcast %573 : vector<1x1x128xf32> to vector<8x16x128xf32>
    %575 = arith.mulf %570, %574 : vector<8x16x128xf32>
    %576 = arith.addf %569, %575 : vector<8x16x128xf32>
    %c0_424 = arith.constant 0 : index
    %c0_425 = arith.constant 0 : index
    %577 = vector.load %arg23[%c0_424, %c0_425] : memref<1x128xf32, #tpu.memory_space<vmem>>, vector<1x128xf32>
    %578 = vector.shape_cast %577 : vector<1x128xf32> to vector<128xf32>
    %579 = vector.shape_cast %578 : vector<128xf32> to vector<1x1x128xf32>
    %580 = vector.broadcast %579 : vector<1x1x128xf32> to vector<8x16x128xf32>
    %581 = arith.addf %576, %580 : vector<8x16x128xf32>
    %cst_426 = arith.constant 0.000000e+00 : f32
    %582 = vector.broadcast %cst_426 : f32 to vector<8x16x128xf32>
    %583 = arith.maximumf %581, %582 : vector<8x16x128xf32>
    %584 = vector.shape_cast %583 : vector<8x16x128xf32> to vector<128x128xf32>
    %c0_427 = arith.constant 0 : index
    %c0_428 = arith.constant 0 : index
    %585 = vector.load %arg31[%c0_427, %c0_428] : memref<256x128xf32, #tpu.memory_space<vmem>>, vector<128x128xf32>
    tpu.vector_store %arg31[%c0_427, %c0_428], %584 {strides = array<i32>} : memref<256x128xf32, #tpu.memory_space<vmem>>, vector<128x128xf32>,
    %cst_429 = arith.constant 0.000000e+00 : f32
    %586 = vector.broadcast %cst_429 : f32 to vector<8x16x128xf32>
    %c8_430 = arith.constant 8 : index
    %c7_431 = arith.constant 7 : index
    %c0_432 = arith.constant 0 : index
    %587 = vector.load %arg29[%c8_430, %c7_431, %c0_432] : memref<18x32x128xf32, #tpu.memory_space<vmem>>, vector<8x16x128xf32>
    %c0_433 = arith.constant 0 : index
    %c0_434 = arith.constant 0 : index
    %588 = vector.load %arg22[%c0_433, %c0_434] : memref<9x128xf32, #tpu.memory_space<vmem>>, vector<1x128xf32>
    %589 = vector.shape_cast %588 : vector<1x128xf32> to vector<128xf32>
    %590 = vector.shape_cast %589 : vector<128xf32> to vector<1x1x128xf32>
    %591 = vector.broadcast %590 : vector<1x1x128xf32> to vector<8x16x128xf32>
    %592 = arith.mulf %587, %591 : vector<8x16x128xf32>
    %593 = arith.addf %586, %592 : vector<8x16x128xf32>
    %c8_435 = arith.constant 8 : index
    %c8_436 = arith.constant 8 : index
    %c0_437 = arith.constant 0 : index
    %594 = vector.load %arg29[%c8_435, %c8_436, %c0_437] : memref<18x32x128xf32, #tpu.memory_space<vmem>>, vector<8x16x128xf32>
    %c1_438 = arith.constant 1 : index
    %c0_439 = arith.constant 0 : index
    %595 = vector.load %arg22[%c1_438, %c0_439] : memref<9x128xf32, #tpu.memory_space<vmem>>, vector<1x128xf32>
    %596 = vector.shape_cast %595 : vector<1x128xf32> to vector<128xf32>
    %597 = vector.shape_cast %596 : vector<128xf32> to vector<1x1x128xf32>
    %598 = vector.broadcast %597 : vector<1x1x128xf32> to vector<8x16x128xf32>
    %599 = arith.mulf %594, %598 : vector<8x16x128xf32>
    %600 = arith.addf %593, %599 : vector<8x16x128xf32>
    %c8_440 = arith.constant 8 : index
    %c9_441 = arith.constant 9 : index
    %c0_442 = arith.constant 0 : index
    %601 = vector.load %arg29[%c8_440, %c9_441, %c0_442] : memref<18x32x128xf32, #tpu.memory_space<vmem>>, vector<8x16x128xf32>
    %c2_443 = arith.constant 2 : index
    %c0_444 = arith.constant 0 : index
    %602 = vector.load %arg22[%c2_443, %c0_444] : memref<9x128xf32, #tpu.memory_space<vmem>>, vector<1x128xf32>
    %603 = vector.shape_cast %602 : vector<1x128xf32> to vector<128xf32>
    %604 = vector.shape_cast %603 : vector<128xf32> to vector<1x1x128xf32>
    %605 = vector.broadcast %604 : vector<1x1x128xf32> to vector<8x16x128xf32>
    %606 = arith.mulf %601, %605 : vector<8x16x128xf32>
    %607 = arith.addf %600, %606 : vector<8x16x128xf32>
    %c9_445 = arith.constant 9 : index
    %c7_446 = arith.constant 7 : index
    %c0_447 = arith.constant 0 : index
    %608 = vector.load %arg29[%c9_445, %c7_446, %c0_447] : memref<18x32x128xf32, #tpu.memory_space<vmem>>, vector<8x16x128xf32>
    %c3_448 = arith.constant 3 : index
    %c0_449 = arith.constant 0 : index
    %609 = vector.load %arg22[%c3_448, %c0_449] : memref<9x128xf32, #tpu.memory_space<vmem>>, vector<1x128xf32>
    %610 = vector.shape_cast %609 : vector<1x128xf32> to vector<128xf32>
    %611 = vector.shape_cast %610 : vector<128xf32> to vector<1x1x128xf32>
    %612 = vector.broadcast %611 : vector<1x1x128xf32> to vector<8x16x128xf32>
    %613 = arith.mulf %608, %612 : vector<8x16x128xf32>
    %614 = arith.addf %607, %613 : vector<8x16x128xf32>
    %c9_450 = arith.constant 9 : index
    %c8_451 = arith.constant 8 : index
    %c0_452 = arith.constant 0 : index
    %615 = vector.load %arg29[%c9_450, %c8_451, %c0_452] : memref<18x32x128xf32, #tpu.memory_space<vmem>>, vector<8x16x128xf32>
    %c4_453 = arith.constant 4 : index
    %c0_454 = arith.constant 0 : index
    %616 = vector.load %arg22[%c4_453, %c0_454] : memref<9x128xf32, #tpu.memory_space<vmem>>, vector<1x128xf32>
    %617 = vector.shape_cast %616 : vector<1x128xf32> to vector<128xf32>
    %618 = vector.shape_cast %617 : vector<128xf32> to vector<1x1x128xf32>
    %619 = vector.broadcast %618 : vector<1x1x128xf32> to vector<8x16x128xf32>
    %620 = arith.mulf %615, %619 : vector<8x16x128xf32>
    %621 = arith.addf %614, %620 : vector<8x16x128xf32>
    %c9_455 = arith.constant 9 : index
    %c9_456 = arith.constant 9 : index
    %c0_457 = arith.constant 0 : index
    %622 = vector.load %arg29[%c9_455, %c9_456, %c0_457] : memref<18x32x128xf32, #tpu.memory_space<vmem>>, vector<8x16x128xf32>
    %c5_458 = arith.constant 5 : index
    %c0_459 = arith.constant 0 : index
    %623 = vector.load %arg22[%c5_458, %c0_459] : memref<9x128xf32, #tpu.memory_space<vmem>>, vector<1x128xf32>
    %624 = vector.shape_cast %623 : vector<1x128xf32> to vector<128xf32>
    %625 = vector.shape_cast %624 : vector<128xf32> to vector<1x1x128xf32>
    %626 = vector.broadcast %625 : vector<1x1x128xf32> to vector<8x16x128xf32>
    %627 = arith.mulf %622, %626 : vector<8x16x128xf32>
    %628 = arith.addf %621, %627 : vector<8x16x128xf32>
    %c10_460 = arith.constant 10 : index
    %c7_461 = arith.constant 7 : index
    %c0_462 = arith.constant 0 : index
    %629 = vector.load %arg29[%c10_460, %c7_461, %c0_462] : memref<18x32x128xf32, #tpu.memory_space<vmem>>, vector<8x16x128xf32>
    %c6_463 = arith.constant 6 : index
    %c0_464 = arith.constant 0 : index
    %630 = vector.load %arg22[%c6_463, %c0_464] : memref<9x128xf32, #tpu.memory_space<vmem>>, vector<1x128xf32>
    %631 = vector.shape_cast %630 : vector<1x128xf32> to vector<128xf32>
    %632 = vector.shape_cast %631 : vector<128xf32> to vector<1x1x128xf32>
    %633 = vector.broadcast %632 : vector<1x1x128xf32> to vector<8x16x128xf32>
    %634 = arith.mulf %629, %633 : vector<8x16x128xf32>
    %635 = arith.addf %628, %634 : vector<8x16x128xf32>
    %c10_465 = arith.constant 10 : index
    %c8_466 = arith.constant 8 : index
    %c0_467 = arith.constant 0 : index
    %636 = vector.load %arg29[%c10_465, %c8_466, %c0_467] : memref<18x32x128xf32, #tpu.memory_space<vmem>>, vector<8x16x128xf32>
    %c7_468 = arith.constant 7 : index
    %c0_469 = arith.constant 0 : index
    %637 = vector.load %arg22[%c7_468, %c0_469] : memref<9x128xf32, #tpu.memory_space<vmem>>, vector<1x128xf32>
    %638 = vector.shape_cast %637 : vector<1x128xf32> to vector<128xf32>
    %639 = vector.shape_cast %638 : vector<128xf32> to vector<1x1x128xf32>
    %640 = vector.broadcast %639 : vector<1x1x128xf32> to vector<8x16x128xf32>
    %641 = arith.mulf %636, %640 : vector<8x16x128xf32>
    %642 = arith.addf %635, %641 : vector<8x16x128xf32>
    %c10_470 = arith.constant 10 : index
    %c9_471 = arith.constant 9 : index
    %c0_472 = arith.constant 0 : index
    %643 = vector.load %arg29[%c10_470, %c9_471, %c0_472] : memref<18x32x128xf32, #tpu.memory_space<vmem>>, vector<8x16x128xf32>
    %c8_473 = arith.constant 8 : index
    %c0_474 = arith.constant 0 : index
    %644 = vector.load %arg22[%c8_473, %c0_474] : memref<9x128xf32, #tpu.memory_space<vmem>>, vector<1x128xf32>
    %645 = vector.shape_cast %644 : vector<1x128xf32> to vector<128xf32>
    %646 = vector.shape_cast %645 : vector<128xf32> to vector<1x1x128xf32>
    %647 = vector.broadcast %646 : vector<1x1x128xf32> to vector<8x16x128xf32>
    %648 = arith.mulf %643, %647 : vector<8x16x128xf32>
    %649 = arith.addf %642, %648 : vector<8x16x128xf32>
    %c0_475 = arith.constant 0 : index
    %c0_476 = arith.constant 0 : index
    %650 = vector.load %arg23[%c0_475, %c0_476] : memref<1x128xf32, #tpu.memory_space<vmem>>, vector<1x128xf32>
    %651 = vector.shape_cast %650 : vector<1x128xf32> to vector<128xf32>
    %652 = vector.shape_cast %651 : vector<128xf32> to vector<1x1x128xf32>
    %653 = vector.broadcast %652 : vector<1x1x128xf32> to vector<8x16x128xf32>
    %654 = arith.addf %649, %653 : vector<8x16x128xf32>
    %cst_477 = arith.constant 0.000000e+00 : f32
    %655 = vector.broadcast %cst_477 : f32 to vector<8x16x128xf32>
    %656 = arith.maximumf %654, %655 : vector<8x16x128xf32>
    %657 = vector.shape_cast %656 : vector<8x16x128xf32> to vector<128x128xf32>
    %c128_478 = arith.constant 128 : index
    %c0_479 = arith.constant 0 : index
    %658 = vector.load %arg31[%c128_478, %c0_479] : memref<256x128xf32, #tpu.memory_space<vmem>>, vector<128x128xf32>
    tpu.vector_store %arg31[%c128_478, %c0_479], %657 {strides = array<i32>} : memref<256x128xf32, #tpu.memory_space<vmem>>, vector<128x128xf32>,
    %c0_480 = arith.constant 0 : index
    %c0_481 = arith.constant 0 : index
    %659 = vector.load %arg31[%c0_480, %c0_481] : memref<256x128xf32, #tpu.memory_space<vmem>>, vector<256x128xf32>
    %660 = arith.truncf %659 : vector<256x128xf32> to vector<256x128xbf16>
    %c0_482 = arith.constant 0 : index
    %c0_483 = arith.constant 0 : index
    %661 = vector.load %arg24[%c0_482, %c0_483] : memref<128x128xbf16, #tpu.memory_space<vmem>>, vector<128x128xbf16>
    %cst_484 = arith.constant dense<0.000000e+00> : vector<256x128xf32>
    %662 = tpu.matmul %660, %661, %cst_484 {dimension_numbers = #tpu.dot_dimension_numbers<[1], [0], [0], [1], [0, 0, 1, 1], [], []>} : vector<256x128xbf16>, vector<128x128xbf16>, vector<256x128xf32> -> vector<256x128xf32>
    %c0_485 = arith.constant 0 : index
    %c0_486 = arith.constant 0 : index
    %663 = vector.load %arg25[%c0_485, %c0_486] : memref<1x128xf32, #tpu.memory_space<vmem>>, vector<1x128xf32>
    %664 = vector.broadcast %663 : vector<1x128xf32> to vector<256x128xf32>
    %665 = arith.addf %662, %664 : vector<256x128xf32>
    %c0_487 = arith.constant 0 : index
    %c0_488 = arith.constant 0 : index
    %666 = vector.load %arg30[%c0_487, %c0_488] : memref<256x128xf32, #tpu.memory_space<vmem>>, vector<256x128xf32>
    tpu.vector_store %arg30[%c0_487, %c0_488], %665 {strides = array<i32>} : memref<256x128xf32, #tpu.memory_space<vmem>>, vector<256x128xf32>,
    %c0_489 = arith.constant 0 : index
    %c0_490 = arith.constant 0 : index
    %667 = vector.load %arg30[%c0_489, %c0_490] : memref<256x128xf32, #tpu.memory_space<vmem>>, vector<256x128xf32>
    %668 = vector.shape_cast %667 : vector<256x128xf32> to vector<16x16x128xf32>
    %c1_491 = arith.constant 1 : index
    %c8_492 = arith.constant 8 : index
    %c0_493 = arith.constant 0 : index
    %669 = vector.load %arg29[%c1_491, %c8_492, %c0_493] : memref<18x32x128xf32, #tpu.memory_space<vmem>>, vector<16x16x128xf32>
    tpu.vector_store %arg29[%c1_491, %c8_492, %c0_493], %668 {strides = array<i32>} : memref<18x32x128xf32, #tpu.memory_space<vmem>>, vector<16x16x128xf32>,
    %cst_494 = arith.constant 0.000000e+00 : f32
    %670 = vector.broadcast %cst_494 : f32 to vector<8x256xf32>
    %c0_495 = arith.constant 0 : index
    %c7_496 = arith.constant 7 : index
    %c0_497 = arith.constant 0 : index
    %671 = vector.load %arg29[%c0_495, %c7_496, %c0_497] : memref<18x32x128xf32, #tpu.memory_space<vmem>>, vector<16x16x128xf32>
    %672 = vector.shape_cast %671 : vector<16x16x128xf32> to vector<256x128xf32>
    %c0_498 = arith.constant 0 : index
    %c0_499 = arith.constant 0 : index
    %c0_500 = arith.constant 0 : index
    %673 = vector.load %arg26[%c0_498, %c0_499, %c0_500] : memref<9x8x128xbf16, #tpu.memory_space<vmem>>, vector<1x8x128xbf16>
    %674 = vector.shape_cast %673 : vector<1x8x128xbf16> to vector<8x128xbf16>
    %675 = arith.truncf %672 : vector<256x128xf32> to vector<256x128xbf16>
    %cst_501 = arith.constant dense<0.000000e+00> : vector<8x256xf32>
    %676 = tpu.matmul %674, %675, %cst_501 {dimension_numbers = #tpu.dot_dimension_numbers<[1], [1], [0], [0], [0, 0, 1, 0], [], []>} : vector<8x128xbf16>, vector<256x128xbf16>, vector<8x256xf32> -> vector<8x256xf32>
    %677 = arith.addf %670, %676 : vector<8x256xf32>
    %c0_502 = arith.constant 0 : index
    %c8_503 = arith.constant 8 : index
    %c0_504 = arith.constant 0 : index
    %678 = vector.load %arg29[%c0_502, %c8_503, %c0_504] : memref<18x32x128xf32, #tpu.memory_space<vmem>>, vector<16x16x128xf32>
    %679 = vector.shape_cast %678 : vector<16x16x128xf32> to vector<256x128xf32>
    %c1_505 = arith.constant 1 : index
    %c0_506 = arith.constant 0 : index
    %c0_507 = arith.constant 0 : index
    %680 = vector.load %arg26[%c1_505, %c0_506, %c0_507] : memref<9x8x128xbf16, #tpu.memory_space<vmem>>, vector<1x8x128xbf16>
    %681 = vector.shape_cast %680 : vector<1x8x128xbf16> to vector<8x128xbf16>
    %682 = arith.truncf %679 : vector<256x128xf32> to vector<256x128xbf16>
    %cst_508 = arith.constant dense<0.000000e+00> : vector<8x256xf32>
    %683 = tpu.matmul %681, %682, %cst_508 {dimension_numbers = #tpu.dot_dimension_numbers<[1], [1], [0], [0], [0, 0, 1, 0], [], []>} : vector<8x128xbf16>, vector<256x128xbf16>, vector<8x256xf32> -> vector<8x256xf32>
    %684 = arith.addf %677, %683 : vector<8x256xf32>
    %c0_509 = arith.constant 0 : index
    %c9_510 = arith.constant 9 : index
    %c0_511 = arith.constant 0 : index
    %685 = vector.load %arg29[%c0_509, %c9_510, %c0_511] : memref<18x32x128xf32, #tpu.memory_space<vmem>>, vector<16x16x128xf32>
    %686 = vector.shape_cast %685 : vector<16x16x128xf32> to vector<256x128xf32>
    %c2_512 = arith.constant 2 : index
    %c0_513 = arith.constant 0 : index
    %c0_514 = arith.constant 0 : index
    %687 = vector.load %arg26[%c2_512, %c0_513, %c0_514] : memref<9x8x128xbf16, #tpu.memory_space<vmem>>, vector<1x8x128xbf16>
    %688 = vector.shape_cast %687 : vector<1x8x128xbf16> to vector<8x128xbf16>
    %689 = arith.truncf %686 : vector<256x128xf32> to vector<256x128xbf16>
    %cst_515 = arith.constant dense<0.000000e+00> : vector<8x256xf32>
    %690 = tpu.matmul %688, %689, %cst_515 {dimension_numbers = #tpu.dot_dimension_numbers<[1], [1], [0], [0], [0, 0, 1, 0], [], []>} : vector<8x128xbf16>, vector<256x128xbf16>, vector<8x256xf32> -> vector<8x256xf32>
    %691 = arith.addf %684, %690 : vector<8x256xf32>
    %c1_516 = arith.constant 1 : index
    %c7_517 = arith.constant 7 : index
    %c0_518 = arith.constant 0 : index
    %692 = vector.load %arg29[%c1_516, %c7_517, %c0_518] : memref<18x32x128xf32, #tpu.memory_space<vmem>>, vector<16x16x128xf32>
    %693 = vector.shape_cast %692 : vector<16x16x128xf32> to vector<256x128xf32>
    %c3_519 = arith.constant 3 : index
    %c0_520 = arith.constant 0 : index
    %c0_521 = arith.constant 0 : index
    %694 = vector.load %arg26[%c3_519, %c0_520, %c0_521] : memref<9x8x128xbf16, #tpu.memory_space<vmem>>, vector<1x8x128xbf16>
    %695 = vector.shape_cast %694 : vector<1x8x128xbf16> to vector<8x128xbf16>
    %696 = arith.truncf %693 : vector<256x128xf32> to vector<256x128xbf16>
    %cst_522 = arith.constant dense<0.000000e+00> : vector<8x256xf32>
    %697 = tpu.matmul %695, %696, %cst_522 {dimension_numbers = #tpu.dot_dimension_numbers<[1], [1], [0], [0], [0, 0, 1, 0], [], []>} : vector<8x128xbf16>, vector<256x128xbf16>, vector<8x256xf32> -> vector<8x256xf32>
    %698 = arith.addf %691, %697 : vector<8x256xf32>
    %c1_523 = arith.constant 1 : index
    %c8_524 = arith.constant 8 : index
    %c0_525 = arith.constant 0 : index
    %699 = vector.load %arg29[%c1_523, %c8_524, %c0_525] : memref<18x32x128xf32, #tpu.memory_space<vmem>>, vector<16x16x128xf32>
    %700 = vector.shape_cast %699 : vector<16x16x128xf32> to vector<256x128xf32>
    %c4_526 = arith.constant 4 : index
    %c0_527 = arith.constant 0 : index
    %c0_528 = arith.constant 0 : index
    %701 = vector.load %arg26[%c4_526, %c0_527, %c0_528] : memref<9x8x128xbf16, #tpu.memory_space<vmem>>, vector<1x8x128xbf16>
    %702 = vector.shape_cast %701 : vector<1x8x128xbf16> to vector<8x128xbf16>
    %703 = arith.truncf %700 : vector<256x128xf32> to vector<256x128xbf16>
    %cst_529 = arith.constant dense<0.000000e+00> : vector<8x256xf32>
    %704 = tpu.matmul %702, %703, %cst_529 {dimension_numbers = #tpu.dot_dimension_numbers<[1], [1], [0], [0], [0, 0, 1, 0], [], []>} : vector<8x128xbf16>, vector<256x128xbf16>, vector<8x256xf32> -> vector<8x256xf32>
    %705 = arith.addf %698, %704 : vector<8x256xf32>
    %c1_530 = arith.constant 1 : index
    %c9_531 = arith.constant 9 : index
    %c0_532 = arith.constant 0 : index
    %706 = vector.load %arg29[%c1_530, %c9_531, %c0_532] : memref<18x32x128xf32, #tpu.memory_space<vmem>>, vector<16x16x128xf32>
    %707 = vector.shape_cast %706 : vector<16x16x128xf32> to vector<256x128xf32>
    %c5_533 = arith.constant 5 : index
    %c0_534 = arith.constant 0 : index
    %c0_535 = arith.constant 0 : index
    %708 = vector.load %arg26[%c5_533, %c0_534, %c0_535] : memref<9x8x128xbf16, #tpu.memory_space<vmem>>, vector<1x8x128xbf16>
    %709 = vector.shape_cast %708 : vector<1x8x128xbf16> to vector<8x128xbf16>
    %710 = arith.truncf %707 : vector<256x128xf32> to vector<256x128xbf16>
    %cst_536 = arith.constant dense<0.000000e+00> : vector<8x256xf32>
    %711 = tpu.matmul %709, %710, %cst_536 {dimension_numbers = #tpu.dot_dimension_numbers<[1], [1], [0], [0], [0, 0, 1, 0], [], []>} : vector<8x128xbf16>, vector<256x128xbf16>, vector<8x256xf32> -> vector<8x256xf32>
    %712 = arith.addf %705, %711 : vector<8x256xf32>
    %c2_537 = arith.constant 2 : index
    %c7_538 = arith.constant 7 : index
    %c0_539 = arith.constant 0 : index
    %713 = vector.load %arg29[%c2_537, %c7_538, %c0_539] : memref<18x32x128xf32, #tpu.memory_space<vmem>>, vector<16x16x128xf32>
    %714 = vector.shape_cast %713 : vector<16x16x128xf32> to vector<256x128xf32>
    %c6_540 = arith.constant 6 : index
    %c0_541 = arith.constant 0 : index
    %c0_542 = arith.constant 0 : index
    %715 = vector.load %arg26[%c6_540, %c0_541, %c0_542] : memref<9x8x128xbf16, #tpu.memory_space<vmem>>, vector<1x8x128xbf16>
    %716 = vector.shape_cast %715 : vector<1x8x128xbf16> to vector<8x128xbf16>
    %717 = arith.truncf %714 : vector<256x128xf32> to vector<256x128xbf16>
    %cst_543 = arith.constant dense<0.000000e+00> : vector<8x256xf32>
    %718 = tpu.matmul %716, %717, %cst_543 {dimension_numbers = #tpu.dot_dimension_numbers<[1], [1], [0], [0], [0, 0, 1, 0], [], []>} : vector<8x128xbf16>, vector<256x128xbf16>, vector<8x256xf32> -> vector<8x256xf32>
    %719 = arith.addf %712, %718 : vector<8x256xf32>
    %c2_544 = arith.constant 2 : index
    %c8_545 = arith.constant 8 : index
    %c0_546 = arith.constant 0 : index
    %720 = vector.load %arg29[%c2_544, %c8_545, %c0_546] : memref<18x32x128xf32, #tpu.memory_space<vmem>>, vector<16x16x128xf32>
    %721 = vector.shape_cast %720 : vector<16x16x128xf32> to vector<256x128xf32>
    %c7_547 = arith.constant 7 : index
    %c0_548 = arith.constant 0 : index
    %c0_549 = arith.constant 0 : index
    %722 = vector.load %arg26[%c7_547, %c0_548, %c0_549] : memref<9x8x128xbf16, #tpu.memory_space<vmem>>, vector<1x8x128xbf16>
    %723 = vector.shape_cast %722 : vector<1x8x128xbf16> to vector<8x128xbf16>
    %724 = arith.truncf %721 : vector<256x128xf32> to vector<256x128xbf16>
    %cst_550 = arith.constant dense<0.000000e+00> : vector<8x256xf32>
    %725 = tpu.matmul %723, %724, %cst_550 {dimension_numbers = #tpu.dot_dimension_numbers<[1], [1], [0], [0], [0, 0, 1, 0], [], []>} : vector<8x128xbf16>, vector<256x128xbf16>, vector<8x256xf32> -> vector<8x256xf32>
    %726 = arith.addf %719, %725 : vector<8x256xf32>
    %c2_551 = arith.constant 2 : index
    %c9_552 = arith.constant 9 : index
    %c0_553 = arith.constant 0 : index
    %727 = vector.load %arg29[%c2_551, %c9_552, %c0_553] : memref<18x32x128xf32, #tpu.memory_space<vmem>>, vector<16x16x128xf32>
    %728 = vector.shape_cast %727 : vector<16x16x128xf32> to vector<256x128xf32>
    %c8_554 = arith.constant 8 : index
    %c0_555 = arith.constant 0 : index
    %c0_556 = arith.constant 0 : index
    %729 = vector.load %arg26[%c8_554, %c0_555, %c0_556] : memref<9x8x128xbf16, #tpu.memory_space<vmem>>, vector<1x8x128xbf16>
    %730 = vector.shape_cast %729 : vector<1x8x128xbf16> to vector<8x128xbf16>
    %731 = arith.truncf %728 : vector<256x128xf32> to vector<256x128xbf16>
    %cst_557 = arith.constant dense<0.000000e+00> : vector<8x256xf32>
    %732 = tpu.matmul %730, %731, %cst_557 {dimension_numbers = #tpu.dot_dimension_numbers<[1], [1], [0], [0], [0, 0, 1, 0], [], []>} : vector<8x128xbf16>, vector<256x128xbf16>, vector<8x256xf32> -> vector<8x256xf32>
    %733 = arith.addf %726, %732 : vector<8x256xf32>
    %734 = vector.extract_strided_slice %733 {offsets = [0, 0], sizes = [2, 256], strides = [1, 1]} : vector<8x256xf32> to vector<2x256xf32>
    %c0_558 = arith.constant 0 : index
    %c0_559 = arith.constant 0 : index
    %735 = vector.load %arg27[%c0_558, %c0_559] : memref<2x1xf32, #tpu.memory_space<vmem>>, vector<2x1xf32>
    %736 = vector.broadcast %735 : vector<2x1xf32> to vector<2x256xf32>
    %737 = arith.addf %734, %736 : vector<2x256xf32>
    %738 = vector.shape_cast %737 : vector<2x256xf32> to vector<1x2x256xf32>
    %c0_560 = arith.constant 0 : index
    %c0_561 = arith.constant 0 : index
    %c0_562 = arith.constant 0 : index
    %739 = vector.load %arg28[%c0_560, %c0_561, %c0_562] : memref<1x2x256xf32, #tpu.memory_space<vmem>>, vector<1x2x256xf32>
    tpu.vector_store %arg28[%c0_560, %c0_561, %c0_562], %738 {strides = array<i32>} : memref<1x2x256xf32, #tpu.memory_space<vmem>>, vector<1x2x256xf32>,
    return
  }
  func.func @transform_0(%arg0: i32) -> (i32, i32, i32, i32) {
    %c0_i32 = arith.constant 0 : i32
    %c0_i32_0 = arith.constant 0 : i32
    %c0_i32_1 = arith.constant 0 : i32
    %c0_i32_2 = arith.constant 0 : i32
    return %arg0, %c0_i32, %c0_i32_0, %c0_i32_1 : i32, i32, i32, i32
  }
  func.func @transform_1(%arg0: i32) -> (i32, i32) {
    %c0_i32 = arith.constant 0 : i32
    %c0_i32_0 = arith.constant 0 : i32
    %c0_i32_1 = arith.constant 0 : i32
    return %c0_i32, %c0_i32_0 : i32, i32
  }
  func.func @transform_2(%arg0: i32) -> (i32, i32) {
    %c0_i32 = arith.constant 0 : i32
    %c0_i32_0 = arith.constant 0 : i32
    %c0_i32_1 = arith.constant 0 : i32
    return %c0_i32, %c0_i32_0 : i32, i32
  }
  func.func @transform_3(%arg0: i32) -> (i32, i32) {
    %c0_i32 = arith.constant 0 : i32
    %c0_i32_0 = arith.constant 0 : i32
    %c0_i32_1 = arith.constant 0 : i32
    return %c0_i32, %c0_i32_0 : i32, i32
  }
  func.func @transform_4(%arg0: i32) -> (i32, i32) {
    %c0_i32 = arith.constant 0 : i32
    %c0_i32_0 = arith.constant 0 : i32
    %c0_i32_1 = arith.constant 0 : i32
    return %c0_i32, %c0_i32_0 : i32, i32
  }
  func.func @transform_5(%arg0: i32) -> (i32, i32) {
    %c0_i32 = arith.constant 0 : i32
    %c0_i32_0 = arith.constant 0 : i32
    %c0_i32_1 = arith.constant 0 : i32
    return %c0_i32, %c0_i32_0 : i32, i32
  }
  func.func @transform_6(%arg0: i32) -> (i32, i32) {
    %c0_i32 = arith.constant 0 : i32
    %c0_i32_0 = arith.constant 0 : i32
    %c0_i32_1 = arith.constant 0 : i32
    return %c0_i32, %c0_i32_0 : i32, i32
  }
  func.func @transform_7(%arg0: i32) -> (i32, i32) {
    %c0_i32 = arith.constant 0 : i32
    %c0_i32_0 = arith.constant 0 : i32
    %c0_i32_1 = arith.constant 0 : i32
    return %c0_i32, %c0_i32_0 : i32, i32
  }
  func.func @transform_8(%arg0: i32) -> (i32, i32) {
    %c0_i32 = arith.constant 0 : i32
    %c0_i32_0 = arith.constant 0 : i32
    %c0_i32_1 = arith.constant 0 : i32
    return %c0_i32, %c0_i32_0 : i32, i32
  }
  func.func @transform_9(%arg0: i32) -> (i32, i32) {
    %c0_i32 = arith.constant 0 : i32
    %c0_i32_0 = arith.constant 0 : i32
    %c0_i32_1 = arith.constant 0 : i32
    return %c0_i32, %c0_i32_0 : i32, i32
  }
  func.func @transform_10(%arg0: i32) -> (i32, i32) {
    %c0_i32 = arith.constant 0 : i32
    %c0_i32_0 = arith.constant 0 : i32
    %c0_i32_1 = arith.constant 0 : i32
    return %c0_i32, %c0_i32_0 : i32, i32
  }
  func.func @transform_11(%arg0: i32) -> (i32, i32) {
    %c0_i32 = arith.constant 0 : i32
    %c0_i32_0 = arith.constant 0 : i32
    %c0_i32_1 = arith.constant 0 : i32
    return %c0_i32, %c0_i32_0 : i32, i32
  }
  func.func @transform_12(%arg0: i32) -> (i32, i32) {
    %c0_i32 = arith.constant 0 : i32
    %c0_i32_0 = arith.constant 0 : i32
    %c0_i32_1 = arith.constant 0 : i32
    return %c0_i32, %c0_i32_0 : i32, i32
  }
  func.func @transform_13(%arg0: i32) -> (i32, i32) {
    %c0_i32 = arith.constant 0 : i32
    %c0_i32_0 = arith.constant 0 : i32
    %c0_i32_1 = arith.constant 0 : i32
    return %c0_i32, %c0_i32_0 : i32, i32
  }
  func.func @transform_14(%arg0: i32) -> (i32, i32) {
    %c0_i32 = arith.constant 0 : i32
    %c0_i32_0 = arith.constant 0 : i32
    %c0_i32_1 = arith.constant 0 : i32
    return %c0_i32, %c0_i32_0 : i32, i32
  }
  func.func @transform_15(%arg0: i32) -> (i32, i32) {
    %c0_i32 = arith.constant 0 : i32
    %c0_i32_0 = arith.constant 0 : i32
    %c0_i32_1 = arith.constant 0 : i32
    return %c0_i32, %c0_i32_0 : i32, i32
  }
  func.func @transform_16(%arg0: i32) -> (i32, i32) {
    %c0_i32 = arith.constant 0 : i32
    %c0_i32_0 = arith.constant 0 : i32
    %c0_i32_1 = arith.constant 0 : i32
    return %c0_i32, %c0_i32_0 : i32, i32
  }
  func.func @transform_17(%arg0: i32) -> (i32, i32) {
    %c0_i32 = arith.constant 0 : i32
    %c0_i32_0 = arith.constant 0 : i32
    %c0_i32_1 = arith.constant 0 : i32
    return %c0_i32, %c0_i32_0 : i32, i32
  }
  func.func @transform_18(%arg0: i32) -> (i32, i32) {
    %c0_i32 = arith.constant 0 : i32
    %c0_i32_0 = arith.constant 0 : i32
    %c0_i32_1 = arith.constant 0 : i32
    return %c0_i32, %c0_i32_0 : i32, i32
  }
  func.func @transform_19(%arg0: i32) -> (i32, i32) {
    %c0_i32 = arith.constant 0 : i32
    %c0_i32_0 = arith.constant 0 : i32
    %c0_i32_1 = arith.constant 0 : i32
    return %c0_i32, %c0_i32_0 : i32, i32
  }
  func.func @transform_20(%arg0: i32) -> (i32, i32) {
    %c0_i32 = arith.constant 0 : i32
    %c0_i32_0 = arith.constant 0 : i32
    %c0_i32_1 = arith.constant 0 : i32
    return %c0_i32, %c0_i32_0 : i32, i32
  }
  func.func @transform_21(%arg0: i32) -> (i32, i32) {
    %c0_i32 = arith.constant 0 : i32
    %c0_i32_0 = arith.constant 0 : i32
    %c0_i32_1 = arith.constant 0 : i32
    return %c0_i32, %c0_i32_0 : i32, i32
  }
  func.func @transform_22(%arg0: i32) -> (i32, i32) {
    %c0_i32 = arith.constant 0 : i32
    %c0_i32_0 = arith.constant 0 : i32
    %c0_i32_1 = arith.constant 0 : i32
    return %c0_i32, %c0_i32_0 : i32, i32
  }
  func.func @transform_23(%arg0: i32) -> (i32, i32) {
    %c0_i32 = arith.constant 0 : i32
    %c0_i32_0 = arith.constant 0 : i32
    %c0_i32_1 = arith.constant 0 : i32
    return %c0_i32, %c0_i32_0 : i32, i32
  }
  func.func @transform_24(%arg0: i32) -> (i32, i32) {
    %c0_i32 = arith.constant 0 : i32
    %c0_i32_0 = arith.constant 0 : i32
    %c0_i32_1 = arith.constant 0 : i32
    return %c0_i32, %c0_i32_0 : i32, i32
  }
  func.func @transform_25(%arg0: i32) -> (i32, i32, i32) {
    %c0_i32 = arith.constant 0 : i32
    %c0_i32_0 = arith.constant 0 : i32
    %c0_i32_1 = arith.constant 0 : i32
    %c0_i32_2 = arith.constant 0 : i32
    return %c0_i32, %c0_i32_0, %c0_i32_1 : i32, i32, i32
  }
  func.func @transform_26(%arg0: i32) -> (i32, i32) {
    %c0_i32 = arith.constant 0 : i32
    %c0_i32_0 = arith.constant 0 : i32
    %c0_i32_1 = arith.constant 0 : i32
    return %c0_i32, %c0_i32_0 : i32, i32
  }
  func.func @transform_27(%arg0: i32) -> (i32, i32, i32) {
    %c0_i32 = arith.constant 0 : i32
    %c0_i32_0 = arith.constant 0 : i32
    %c0_i32_1 = arith.constant 0 : i32
    return %arg0, %c0_i32, %c0_i32_0 : i32, i32, i32
  }
}

</mosaic_0001>

<llo_original>
// kernel: optical_flow_estimator_forward.1
$region0: #{optical_flow_estimator_forward.1}
  #allocation0 [shape = 'u32[]', space=smem, size = 0x4, offset = 0x4, fixed_abs, tag = 'smem constant byte address 0x4 - core index']
  #allocation1 [shape = 'u32[72,128]{1,0:T(1,128)}', space=vmem, size = 0x9000, scoped, tag = 'internal scratch']
  #allocation2 [shape = 'f32[18,32,128]{2,1,0:T(8,128)}', space=vmem, size = 0x48000, scoped, tag = 'scratch operand']
  #allocation3 [shape = 'f32[256,128]{1,0:T(8,128)}', space=vmem, size = 0x20000, scoped, tag = 'scratch operand']
  #allocation4 [shape = 'f32[256,128]{1,0:T(8,128)}', space=vmem, size = 0x20000, scoped, tag = 'scratch operand']
  %s0 = inlined_call_operand.vmem [shape: f32[2,16,16,16], index: 0, kind: input, shape index: {}]
  %s1 = inlined_call_operand.vmem [shape: bf16[16,128], index: 1, kind: input, shape index: {}]
  %s2 = inlined_call_operand.vmem [shape: f32[1,128], index: 2, kind: input, shape index: {}]
  %s3 = inlined_call_operand.vmem [shape: f32[9,128], index: 3, kind: input, shape index: {}]
  %s4 = inlined_call_operand.vmem [shape: f32[1,128], index: 4, kind: input, shape index: {}]
  %s5 = inlined_call_operand.vmem [shape: bf16[128,128], index: 5, kind: input, shape index: {}]
  %s6 = inlined_call_operand.vmem [shape: f32[1,128], index: 6, kind: input, shape index: {}]
  %s7 = inlined_call_operand.vmem [shape: bf16[128,128], index: 7, kind: input, shape index: {}]
  %s8 = inlined_call_operand.vmem [shape: f32[1,128], index: 8, kind: input, shape index: {}]
  %s9 = inlined_call_operand.vmem [shape: f32[9,128], index: 9, kind: input, shape index: {}]
  %s10 = inlined_call_operand.vmem [shape: f32[1,128], index: 10, kind: input, shape index: {}]
  %s11 = inlined_call_operand.vmem [shape: bf16[128,128], index: 11, kind: input, shape index: {}]
  %s12 = inlined_call_operand.vmem [shape: f32[1,128], index: 12, kind: input, shape index: {}]
  %s13 = inlined_call_operand.vmem [shape: bf16[128,128], index: 13, kind: input, shape index: {}]
  %s14 = inlined_call_operand.vmem [shape: f32[1,128], index: 14, kind: input, shape index: {}]
  %s15 = inlined_call_operand.vmem [shape: f32[9,128], index: 15, kind: input, shape index: {}]
  %s16 = inlined_call_operand.vmem [shape: f32[1,128], index: 16, kind: input, shape index: {}]
  %s17 = inlined_call_operand.vmem [shape: bf16[128,128], index: 17, kind: input, shape index: {}]
  %s18 = inlined_call_operand.vmem [shape: f32[1,128], index: 18, kind: input, shape index: {}]
  %s19 = inlined_call_operand.vmem [shape: bf16[128,128], index: 19, kind: input, shape index: {}]
  %s20 = inlined_call_operand.vmem [shape: f32[1,128], index: 20, kind: input, shape index: {}]
  %s21 = inlined_call_operand.vmem [shape: f32[9,128], index: 21, kind: input, shape index: {}]
  %s22 = inlined_call_operand.vmem [shape: f32[1,128], index: 22, kind: input, shape index: {}]
  %s23 = inlined_call_operand.vmem [shape: bf16[128,128], index: 23, kind: input, shape index: {}]
  %s24 = inlined_call_operand.vmem [shape: f32[1,128], index: 24, kind: input, shape index: {}]
  %s25 = inlined_call_operand.vmem [shape: bf16[9,8,128], index: 25, kind: input, shape index: {}]
  %s26 = inlined_call_operand.vmem [shape: f32[2,1], index: 26, kind: input, shape index: {}]
  %s27 = inlined_call_operand.vmem [shape: f32[2,2,256], index: 27, kind: output, shape index: {}]
  %s28 = sld [smem:[#allocation0]]
  $region141: #{optical_flow_estimator_forward.1} parent=0
    _
  %s30 = ssub.s32 1, %s28
  %s31 = scalar_select 0, %s30, %s28
  loop: start=0, step=1, limit=4
  $region2: #{optical_flow_estimator_forward.1} parent=0 // loop_pre_header
    _
  $region3: #{optical_flow_estimator_forward.1} parent=0 // loop_header
    %s33 = sphi 0, %s37
    %p34 = scmp.ge.s32.totalorder %s33, 4
    %s43 = sphi 0, %s45
    %s46 = sphi 0, %s43
    %s47 = sphi 0, %s46
    %s63 = sphi 0, %s47
    %s67 = sphi 0, %s67
    %s69 = sphi 0, %s67
    %s70 = sphi 0, %s69
    %s84 = sphi 0, %s70
    %s88 = sphi 0, %s88
    %s90 = sphi 0, %s88
    %s91 = sphi 0, %s90
    %s105 = sphi 0, %s91
    %s109 = sphi 0, %s109
    %s111 = sphi 0, %s109
    %s112 = sphi 0, %s111
    %s126 = sphi 0, %s112
    %s130 = sphi 0, %s130
    %s132 = sphi 0, %s130
    %s133 = sphi 0, %s132
    %s147 = sphi 0, %s133
    %s151 = sphi 0, %s151
    %s153 = sphi 0, %s151
    %s154 = sphi 0, %s153
    %s168 = sphi 0, %s154
    %s172 = sphi 0, %s172
    %s174 = sphi 0, %s172
    %s175 = sphi 0, %s174
    %s189 = sphi 0, %s175
    %s193 = sphi 0, %s193
    %s195 = sphi 0, %s193
    %s196 = sphi 0, %s195
    %s210 = sphi 0, %s196
    %s214 = sphi 0, %s214
    %s216 = sphi 0, %s214
    %s217 = sphi 0, %s216
    %s231 = sphi 0, %s217
    %s235 = sphi 0, %s235
    %s237 = sphi 0, %s235
    %s238 = sphi 0, %s237
    %s252 = sphi 0, %s238
    %s256 = sphi 0, %s256
    %s258 = sphi 0, %s256
    %s259 = sphi 0, %s258
    %s273 = sphi 0, %s259
    %s277 = sphi 0, %s277
    %s279 = sphi 0, %s277
    %s280 = sphi 0, %s279
    %s294 = sphi 0, %s280
    %s298 = sphi 0, %s298
    %s300 = sphi 0, %s298
    %s301 = sphi 0, %s300
    %s315 = sphi 0, %s301
    %s319 = sphi 0, %s319
    %s321 = sphi 0, %s319
    %s322 = sphi 0, %s321
    %s336 = sphi 0, %s322
    %s340 = sphi 0, %s340
    %s342 = sphi 0, %s340
    %s343 = sphi 0, %s342
    %s357 = sphi 0, %s343
    %s361 = sphi 0, %s361
    %s363 = sphi 0, %s361
    %s364 = sphi 0, %s363
    %s378 = sphi 0, %s364
    %s382 = sphi 0, %s382
    %s384 = sphi 0, %s382
    %s385 = sphi 0, %s384
    %s399 = sphi 0, %s385
    %s403 = sphi 0, %s403
    %s405 = sphi 0, %s403
    %s406 = sphi 0, %s405
    %s420 = sphi 0, %s406
    %s424 = sphi 0, %s424
    %s426 = sphi 0, %s424
    %s427 = sphi 0, %s426
    %s441 = sphi 0, %s427
    %s445 = sphi 0, %s445
    %s447 = sphi 0, %s445
    %s448 = sphi 0, %s447
    %s462 = sphi 0, %s448
    %s466 = sphi 0, %s466
    %s468 = sphi 0, %s466
    %s469 = sphi 0, %s468
    %s483 = sphi 0, %s469
    %s487 = sphi 0, %s487
    %s489 = sphi 0, %s487
    %s490 = sphi 0, %s489
    %s504 = sphi 0, %s490
    %s508 = sphi 0, %s508
    %s510 = sphi 0, %s508
    %s511 = sphi 0, %s510
    %s525 = sphi 0, %s511
    %s529 = sphi 0, %s529
    %s531 = sphi 0, %s529
    %s532 = sphi 0, %s531
    %s546 = sphi 0, %s532
    %s550 = sphi 0, %s550
    %s552 = sphi 0, %s550
    %s553 = sphi 0, %s552
    %s567 = sphi 0, %s553
    %s571 = sphi 0, %s571
    %s573 = sphi 0, %s571
    %s574 = sphi 0, %s573
    %s588 = sphi 0, %s574
    %s592 = sphi 0, %s592
    %s594 = sphi 0, %s592
    %s595 = sphi 0, %s594
    %s609 = sphi 0, %s595
    %s615 = sphi 0, %s617
    %s618 = sphi 0, %s615
    %s619 = sphi 0, %s618
    %s635 = sphi 0, %s619
  $region4: #{optical_flow_estimator_forward.1} parent=0 // loop_header_branch
    %36 = sbr.rel (%p34) target = $region8
  $region5: #{optical_flow_estimator_forward.1} parent=0 // loop_body
    %s38 = ssub.s32 %s33, 1
    %s39 = ssub.s32 %s33, 2
    %s40 = sadd.s32 %s33, 1
    %s41 = ssub.s32 %s33, %s40
    %p42 = scmp.eq.s32.totalorder %s41, 0
    %s44 = sadd.s32 %s43, 1
    %s45 = scalar_select %p42, %s43, %s44
    %p48 = pneg %p42
    %p49 = scmp.eq.s32.totalorder %s33, 1
    %p50 = por %p48, %p49
    %p51 = scmp.ne.s32.totalorder %s43, %s46
    %p52 = scmp.eq.s32.totalorder %s33, 0
    %p53 = por %p51, %p52
    %p54 = scmp.ne.s32.totalorder %s43, %s46
    %p55 = scmp.eq.s32.totalorder %s38, 1
    %p56 = por %p54, %p55
    %p57 = scmp.ne.s32.totalorder %s46, %s47
    %p58 = scmp.eq.s32.totalorder %s38, 0
    %p59 = por %p57, %p58
    %p60 = scmp.ne.s32.totalorder %s46, %s47
    %p61 = scmp.eq.s32.totalorder %s39, 1
    %p62 = por %p60, %p61
    %p64 = scmp.ne.s32.totalorder %s47, %s63
    %p65 = scmp.eq.s32.totalorder %s39, 0
    %p66 = por %p64, %p65
    %s68 = sadd.s32 %s67, 1
    %p71 = scmp.eq.s32.totalorder %s33, 1
    %p72 = scmp.ne.s32.totalorder %s67, %s69
    %p73 = scmp.eq.s32.totalorder %s33, 0
    %p74 = por %p72, %p73
    %p75 = scmp.ne.s32.totalorder %s67, %s69
    %p76 = scmp.eq.s32.totalorder %s38, 1
    %p77 = por %p75, %p76
    %p78 = scmp.ne.s32.totalorder %s69, %s70
    %p79 = scmp.eq.s32.totalorder %s38, 0
    %p80 = por %p78, %p79
    %p81 = scmp.ne.s32.totalorder %s69, %s70
    %p82 = scmp.eq.s32.totalorder %s39, 1
    %p83 = por %p81, %p82
    %p85 = scmp.ne.s32.totalorder %s70, %s84
    %p86 = scmp.eq.s32.totalorder %s39, 0
    %p87 = por %p85, %p86
    %s89 = sadd.s32 %s88, 1
    %p92 = scmp.eq.s32.totalorder %s33, 1
    %p93 = scmp.ne.s32.totalorder %s88, %s90
    %p94 = scmp.eq.s32.totalorder %s33, 0
    %p95 = por %p93, %p94
    %p96 = scmp.ne.s32.totalorder %s88, %s90
    %p97 = scmp.eq.s32.totalorder %s38, 1
    %p98 = por %p96, %p97
    %p99 = scmp.ne.s32.totalorder %s90, %s91
    %p100 = scmp.eq.s32.totalorder %s38, 0
    %p101 = por %p99, %p100
    %p102 = scmp.ne.s32.totalorder %s90, %s91
    %p103 = scmp.eq.s32.totalorder %s39, 1
    %p104 = por %p102, %p103
    %p106 = scmp.ne.s32.totalorder %s91, %s105
    %p107 = scmp.eq.s32.totalorder %s39, 0
    %p108 = por %p106, %p107
    %s110 = sadd.s32 %s109, 1
    %p113 = scmp.eq.s32.totalorder %s33, 1
    %p114 = scmp.ne.s32.totalorder %s109, %s111
    %p115 = scmp.eq.s32.totalorder %s33, 0
    %p116 = por %p114, %p115
    %p117 = scmp.ne.s32.totalorder %s109, %s111
    %p118 = scmp.eq.s32.totalorder %s38, 1
    %p119 = por %p117, %p118
    %p120 = scmp.ne.s32.totalorder %s111, %s112
    %p121 = scmp.eq.s32.totalorder %s38, 0
    %p122 = por %p120, %p121
    %p123 = scmp.ne.s32.totalorder %s111, %s112
    %p124 = scmp.eq.s32.totalorder %s39, 1
    %p125 = por %p123, %p124
    %p127 = scmp.ne.s32.totalorder %s112, %s126
    %p128 = scmp.eq.s32.totalorder %s39, 0
    %p129 = por %p127, %p128
    %s131 = sadd.s32 %s130, 1
    %p134 = scmp.eq.s32.totalorder %s33, 1
    %p135 = scmp.ne.s32.totalorder %s130, %s132
    %p136 = scmp.eq.s32.totalorder %s33, 0
    %p137 = por %p135, %p136
    %p138 = scmp.ne.s32.totalorder %s130, %s132
    %p139 = scmp.eq.s32.totalorder %s38, 1
    %p140 = por %p138, %p139
    %p141 = scmp.ne.s32.totalorder %s132, %s133
    %p142 = scmp.eq.s32.totalorder %s38, 0
    %p143 = por %p141, %p142
    %p144 = scmp.ne.s32.totalorder %s132, %s133
    %p145 = scmp.eq.s32.totalorder %s39, 1
    %p146 = por %p144, %p145
    %p148 = scmp.ne.s32.totalorder %s133, %s147
    %p149 = scmp.eq.s32.totalorder %s39, 0
    %p150 = por %p148, %p149
    %s152 = sadd.s32 %s151, 1
    %p155 = scmp.eq.s32.totalorder %s33, 1
    %p156 = scmp.ne.s32.totalorder %s151, %s153
    %p157 = scmp.eq.s32.totalorder %s33, 0
    %p158 = por %p156, %p157
    %p159 = scmp.ne.s32.totalorder %s151, %s153
    %p160 = scmp.eq.s32.totalorder %s38, 1
    %p161 = por %p159, %p160
    %p162 = scmp.ne.s32.totalorder %s153, %s154
    %p163 = scmp.eq.s32.totalorder %s38, 0
    %p164 = por %p162, %p163
    %p165 = scmp.ne.s32.totalorder %s153, %s154
    %p166 = scmp.eq.s32.totalorder %s39, 1
    %p167 = por %p165, %p166
    %p169 = scmp.ne.s32.totalorder %s154, %s168
    %p170 = scmp.eq.s32.totalorder %s39, 0
    %p171 = por %p169, %p170
    %s173 = sadd.s32 %s172, 1
    %p176 = scmp.eq.s32.totalorder %s33, 1
    %p177 = scmp.ne.s32.totalorder %s172, %s174
    %p178 = scmp.eq.s32.totalorder %s33, 0
    %p179 = por %p177, %p178
    %p180 = scmp.ne.s32.totalorder %s172, %s174
    %p181 = scmp.eq.s32.totalorder %s38, 1
    %p182 = por %p180, %p181
    %p183 = scmp.ne.s32.totalorder %s174, %s175
    %p184 = scmp.eq.s32.totalorder %s38, 0
    %p185 = por %p183, %p184
    %p186 = scmp.ne.s32.totalorder %s174, %s175
    %p187 = scmp.eq.s32.totalorder %s39, 1
    %p188 = por %p186, %p187
    %p190 = scmp.ne.s32.totalorder %s175, %s189
    %p191 = scmp.eq.s32.totalorder %s39, 0
    %p192 = por %p190, %p191
    %s194 = sadd.s32 %s193, 1
    %p197 = scmp.eq.s32.totalorder %s33, 1
    %p198 = scmp.ne.s32.totalorder %s193, %s195
    %p199 = scmp.eq.s32.totalorder %s33, 0
    %p200 = por %p198, %p199
    %p201 = scmp.ne.s32.totalorder %s193, %s195
    %p202 = scmp.eq.s32.totalorder %s38, 1
    %p203 = por %p201, %p202
    %p204 = scmp.ne.s32.totalorder %s195, %s196
    %p205 = scmp.eq.s32.totalorder %s38, 0
    %p206 = por %p204, %p205
    %p207 = scmp.ne.s32.totalorder %s195, %s196
    %p208 = scmp.eq.s32.totalorder %s39, 1
    %p209 = por %p207, %p208
    %p211 = scmp.ne.s32.totalorder %s196, %s210
    %p212 = scmp.eq.s32.totalorder %s39, 0
    %p213 = por %p211, %p212
    %s215 = sadd.s32 %s214, 1
    %p218 = scmp.eq.s32.totalorder %s33, 1
    %p219 = scmp.ne.s32.totalorder %s214, %s216
    %p220 = scmp.eq.s32.totalorder %s33, 0
    %p221 = por %p219, %p220
    %p222 = scmp.ne.s32.totalorder %s214, %s216
    %p223 = scmp.eq.s32.totalorder %s38, 1
    %p224 = por %p222, %p223
    %p225 = scmp.ne.s32.totalorder %s216, %s217
    %p226 = scmp.eq.s32.totalorder %s38, 0
    %p227 = por %p225, %p226
    %p228 = scmp.ne.s32.totalorder %s216, %s217
    %p229 = scmp.eq.s32.totalorder %s39, 1
    %p230 = por %p228, %p229
    %p232 = scmp.ne.s32.totalorder %s217, %s231
    %p233 = scmp.eq.s32.totalorder %s39, 0
    %p234 = por %p232, %p233
    %s236 = sadd.s32 %s235, 1
    %p239 = scmp.eq.s32.totalorder %s33, 1
    %p240 = scmp.ne.s32.totalorder %s235, %s237
    %p241 = scmp.eq.s32.totalorder %s33, 0
    %p242 = por %p240, %p241
    %p243 = scmp.ne.s32.totalorder %s235, %s237
    %p244 = scmp.eq.s32.totalorder %s38, 1
    %p245 = por %p243, %p244
    %p246 = scmp.ne.s32.totalorder %s237, %s238
    %p247 = scmp.eq.s32.totalorder %s38, 0
    %p248 = por %p246, %p247
    %p249 = scmp.ne.s32.totalorder %s237, %s238
    %p250 = scmp.eq.s32.totalorder %s39, 1
    %p251 = por %p249, %p250
    %p253 = scmp.ne.s32.totalorder %s238, %s252
    %p254 = scmp.eq.s32.totalorder %s39, 0
    %p255 = por %p253, %p254
    %s257 = sadd.s32 %s256, 1
    %p260 = scmp.eq.s32.totalorder %s33, 1
    %p261 = scmp.ne.s32.totalorder %s256, %s258
    %p262 = scmp.eq.s32.totalorder %s33, 0
    %p263 = por %p261, %p262
    %p264 = scmp.ne.s32.totalorder %s256, %s258
    %p265 = scmp.eq.s32.totalorder %s38, 1
    %p266 = por %p264, %p265
    %p267 = scmp.ne.s32.totalorder %s258, %s259
    %p268 = scmp.eq.s32.totalorder %s38, 0
    %p269 = por %p267, %p268
    %p270 = scmp.ne.s32.totalorder %s258, %s259
    %p271 = scmp.eq.s32.totalorder %s39, 1
    %p272 = por %p270, %p271
    %p274 = scmp.ne.s32.totalorder %s259, %s273
    %p275 = scmp.eq.s32.totalorder %s39, 0
    %p276 = por %p274, %p275
    %s278 = sadd.s32 %s277, 1
    %p281 = scmp.eq.s32.totalorder %s33, 1
    %p282 = scmp.ne.s32.totalorder %s277, %s279
    %p283 = scmp.eq.s32.totalorder %s33, 0
    %p284 = por %p282, %p283
    %p285 = scmp.ne.s32.totalorder %s277, %s279
    %p286 = scmp.eq.s32.totalorder %s38, 1
    %p287 = por %p285, %p286
    %p288 = scmp.ne.s32.totalorder %s279, %s280
    %p289 = scmp.eq.s32.totalorder %s38, 0
    %p290 = por %p288, %p289
    %p291 = scmp.ne.s32.totalorder %s279, %s280
    %p292 = scmp.eq.s32.totalorder %s39, 1
    %p293 = por %p291, %p292
    %p295 = scmp.ne.s32.totalorder %s280, %s294
    %p296 = scmp.eq.s32.totalorder %s39, 0
    %p297 = por %p295, %p296
    %s299 = sadd.s32 %s298, 1
    %p302 = scmp.eq.s32.totalorder %s33, 1
    %p303 = scmp.ne.s32.totalorder %s298, %s300
    %p304 = scmp.eq.s32.totalorder %s33, 0
    %p305 = por %p303, %p304
    %p306 = scmp.ne.s32.totalorder %s298, %s300
    %p307 = scmp.eq.s32.totalorder %s38, 1
    %p308 = por %p306, %p307
    %p309 = scmp.ne.s32.totalorder %s300, %s301
    %p310 = scmp.eq.s32.totalorder %s38, 0
    %p311 = por %p309, %p310
    %p312 = scmp.ne.s32.totalorder %s300, %s301
    %p313 = scmp.eq.s32.totalorder %s39, 1
    %p314 = por %p312, %p313
    %p316 = scmp.ne.s32.totalorder %s301, %s315
    %p317 = scmp.eq.s32.totalorder %s39, 0
    %p318 = por %p316, %p317
    %s320 = sadd.s32 %s319, 1
    %p323 = scmp.eq.s32.totalorder %s33, 1
    %p324 = scmp.ne.s32.totalorder %s319, %s321
    %p325 = scmp.eq.s32.totalorder %s33, 0
    %p326 = por %p324, %p325
    %p327 = scmp.ne.s32.totalorder %s319, %s321
    %p328 = scmp.eq.s32.totalorder %s38, 1
    %p329 = por %p327, %p328
    %p330 = scmp.ne.s32.totalorder %s321, %s322
    %p331 = scmp.eq.s32.totalorder %s38, 0
    %p332 = por %p330, %p331
    %p333 = scmp.ne.s32.totalorder %s321, %s322
    %p334 = scmp.eq.s32.totalorder %s39, 1
    %p335 = por %p333, %p334
    %p337 = scmp.ne.s32.totalorder %s322, %s336
    %p338 = scmp.eq.s32.totalorder %s39, 0
    %p339 = por %p337, %p338
    %s341 = sadd.s32 %s340, 1
    %p344 = scmp.eq.s32.totalorder %s33, 1
    %p345 = scmp.ne.s32.totalorder %s340, %s342
    %p346 = scmp.eq.s32.totalorder %s33, 0
    %p347 = por %p345, %p346
    %p348 = scmp.ne.s32.totalorder %s340, %s342
    %p349 = scmp.eq.s32.totalorder %s38, 1
    %p350 = por %p348, %p349
    %p351 = scmp.ne.s32.totalorder %s342, %s343
    %p352 = scmp.eq.s32.totalorder %s38, 0
    %p353 = por %p351, %p352
    %p354 = scmp.ne.s32.totalorder %s342, %s343
    %p355 = scmp.eq.s32.totalorder %s39, 1
    %p356 = por %p354, %p355
    %p358 = scmp.ne.s32.totalorder %s343, %s357
    %p359 = scmp.eq.s32.totalorder %s39, 0
    %p360 = por %p358, %p359
    %s362 = sadd.s32 %s361, 1
    %p365 = scmp.eq.s32.totalorder %s33, 1
    %p366 = scmp.ne.s32.totalorder %s361, %s363
    %p367 = scmp.eq.s32.totalorder %s33, 0
    %p368 = por %p366, %p367
    %p369 = scmp.ne.s32.totalorder %s361, %s363
    %p370 = scmp.eq.s32.totalorder %s38, 1
    %p371 = por %p369, %p370
    %p372 = scmp.ne.s32.totalorder %s363, %s364
    %p373 = scmp.eq.s32.totalorder %s38, 0
    %p374 = por %p372, %p373
    %p375 = scmp.ne.s32.totalorder %s363, %s364
    %p376 = scmp.eq.s32.totalorder %s39, 1
    %p377 = por %p375, %p376
    %p379 = scmp.ne.s32.totalorder %s364, %s378
    %p380 = scmp.eq.s32.totalorder %s39, 0
    %p381 = por %p379, %p380
    %s383 = sadd.s32 %s382, 1
    %p386 = scmp.eq.s32.totalorder %s33, 1
    %p387 = scmp.ne.s32.totalorder %s382, %s384
    %p388 = scmp.eq.s32.totalorder %s33, 0
    %p389 = por %p387, %p388
    %p390 = scmp.ne.s32.totalorder %s382, %s384
    %p391 = scmp.eq.s32.totalorder %s38, 1
    %p392 = por %p390, %p391
    %p393 = scmp.ne.s32.totalorder %s384, %s385
    %p394 = scmp.eq.s32.totalorder %s38, 0
    %p395 = por %p393, %p394
    %p396 = scmp.ne.s32.totalorder %s384, %s385
    %p397 = scmp.eq.s32.totalorder %s39, 1
    %p398 = por %p396, %p397
    %p400 = scmp.ne.s32.totalorder %s385, %s399
    %p401 = scmp.eq.s32.totalorder %s39, 0
    %p402 = por %p400, %p401
    %s404 = sadd.s32 %s403, 1
    %p407 = scmp.eq.s32.totalorder %s33, 1
    %p408 = scmp.ne.s32.totalorder %s403, %s405
    %p409 = scmp.eq.s32.totalorder %s33, 0
    %p410 = por %p408, %p409
    %p411 = scmp.ne.s32.totalorder %s403, %s405
    %p412 = scmp.eq.s32.totalorder %s38, 1
    %p413 = por %p411, %p412
    %p414 = scmp.ne.s32.totalorder %s405, %s406
    %p415 = scmp.eq.s32.totalorder %s38, 0
    %p416 = por %p414, %p415
    %p417 = scmp.ne.s32.totalorder %s405, %s406
    %p418 = scmp.eq.s32.totalorder %s39, 1
    %p419 = por %p417, %p418
    %p421 = scmp.ne.s32.totalorder %s406, %s420
    %p422 = scmp.eq.s32.totalorder %s39, 0
    %p423 = por %p421, %p422
    %s425 = sadd.s32 %s424, 1
    %p428 = scmp.eq.s32.totalorder %s33, 1
    %p429 = scmp.ne.s32.totalorder %s424, %s426
    %p430 = scmp.eq.s32.totalorder %s33, 0
    %p431 = por %p429, %p430
    %p432 = scmp.ne.s32.totalorder %s424, %s426
    %p433 = scmp.eq.s32.totalorder %s38, 1
    %p434 = por %p432, %p433
    %p435 = scmp.ne.s32.totalorder %s426, %s427
    %p436 = scmp.eq.s32.totalorder %s38, 0
    %p437 = por %p435, %p436
    %p438 = scmp.ne.s32.totalorder %s426, %s427
    %p439 = scmp.eq.s32.totalorder %s39, 1
    %p440 = por %p438, %p439
    %p442 = scmp.ne.s32.totalorder %s427, %s441
    %p443 = scmp.eq.s32.totalorder %s39, 0
    %p444 = por %p442, %p443
    %s446 = sadd.s32 %s445, 1
    %p449 = scmp.eq.s32.totalorder %s33, 1
    %p450 = scmp.ne.s32.totalorder %s445, %s447
    %p451 = scmp.eq.s32.totalorder %s33, 0
    %p452 = por %p450, %p451
    %p453 = scmp.ne.s32.totalorder %s445, %s447
    %p454 = scmp.eq.s32.totalorder %s38, 1
    %p455 = por %p453, %p454
    %p456 = scmp.ne.s32.totalorder %s447, %s448
    %p457 = scmp.eq.s32.totalorder %s38, 0
    %p458 = por %p456, %p457
    %p459 = scmp.ne.s32.totalorder %s447, %s448
    %p460 = scmp.eq.s32.totalorder %s39, 1
    %p461 = por %p459, %p460
    %p463 = scmp.ne.s32.totalorder %s448, %s462
    %p464 = scmp.eq.s32.totalorder %s39, 0
    %p465 = por %p463, %p464
    %s467 = sadd.s32 %s466, 1
    %p470 = scmp.eq.s32.totalorder %s33, 1
    %p471 = scmp.ne.s32.totalorder %s466, %s468
    %p472 = scmp.eq.s32.totalorder %s33, 0
    %p473 = por %p471, %p472
    %p474 = scmp.ne.s32.totalorder %s466, %s468
    %p475 = scmp.eq.s32.totalorder %s38, 1
    %p476 = por %p474, %p475
    %p477 = scmp.ne.s32.totalorder %s468, %s469
    %p478 = scmp.eq.s32.totalorder %s38, 0
    %p479 = por %p477, %p478
    %p480 = scmp.ne.s32.totalorder %s468, %s469
    %p481 = scmp.eq.s32.totalorder %s39, 1
    %p482 = por %p480, %p481
    %p484 = scmp.ne.s32.totalorder %s469, %s483
    %p485 = scmp.eq.s32.totalorder %s39, 0
    %p486 = por %p484, %p485
    %s488 = sadd.s32 %s487, 1
    %p491 = scmp.eq.s32.totalorder %s33, 1
    %p492 = scmp.ne.s32.totalorder %s487, %s489
    %p493 = scmp.eq.s32.totalorder %s33, 0
    %p494 = por %p492, %p493
    %p495 = scmp.ne.s32.totalorder %s487, %s489
    %p496 = scmp.eq.s32.totalorder %s38, 1
    %p497 = por %p495, %p496
    %p498 = scmp.ne.s32.totalorder %s489, %s490
    %p499 = scmp.eq.s32.totalorder %s38, 0
    %p500 = por %p498, %p499
    %p501 = scmp.ne.s32.totalorder %s489, %s490
    %p502 = scmp.eq.s32.totalorder %s39, 1
    %p503 = por %p501, %p502
    %p505 = scmp.ne.s32.totalorder %s490, %s504
    %p506 = scmp.eq.s32.totalorder %s39, 0
    %p507 = por %p505, %p506
    %s509 = sadd.s32 %s508, 1
    %p512 = scmp.eq.s32.totalorder %s33, 1
    %p513 = scmp.ne.s32.totalorder %s508, %s510
    %p514 = scmp.eq.s32.totalorder %s33, 0
    %p515 = por %p513, %p514
    %p516 = scmp.ne.s32.totalorder %s508, %s510
    %p517 = scmp.eq.s32.totalorder %s38, 1
    %p518 = por %p516, %p517
    %p519 = scmp.ne.s32.totalorder %s510, %s511
    %p520 = scmp.eq.s32.totalorder %s38, 0
    %p521 = por %p519, %p520
    %p522 = scmp.ne.s32.totalorder %s510, %s511
    %p523 = scmp.eq.s32.totalorder %s39, 1
    %p524 = por %p522, %p523
    %p526 = scmp.ne.s32.totalorder %s511, %s525
    %p527 = scmp.eq.s32.totalorder %s39, 0
    %p528 = por %p526, %p527
    %s530 = sadd.s32 %s529, 1
    %p533 = scmp.eq.s32.totalorder %s33, 1
    %p534 = scmp.ne.s32.totalorder %s529, %s531
    %p535 = scmp.eq.s32.totalorder %s33, 0
    %p536 = por %p534, %p535
    %p537 = scmp.ne.s32.totalorder %s529, %s531
    %p538 = scmp.eq.s32.totalorder %s38, 1
    %p539 = por %p537, %p538
    %p540 = scmp.ne.s32.totalorder %s531, %s532
    %p541 = scmp.eq.s32.totalorder %s38, 0
    %p542 = por %p540, %p541
    %p543 = scmp.ne.s32.totalorder %s531, %s532
    %p544 = scmp.eq.s32.totalorder %s39, 1
    %p545 = por %p543, %p544
    %p547 = scmp.ne.s32.totalorder %s532, %s546
    %p548 = scmp.eq.s32.totalorder %s39, 0
    %p549 = por %p547, %p548
    %s551 = sadd.s32 %s550, 1
    %p554 = scmp.eq.s32.totalorder %s33, 1
    %p555 = scmp.ne.s32.totalorder %s550, %s552
    %p556 = scmp.eq.s32.totalorder %s33, 0
    %p557 = por %p555, %p556
    %p558 = scmp.ne.s32.totalorder %s550, %s552
    %p559 = scmp.eq.s32.totalorder %s38, 1
    %p560 = por %p558, %p559
    %p561 = scmp.ne.s32.totalorder %s552, %s553
    %p562 = scmp.eq.s32.totalorder %s38, 0
    %p563 = por %p561, %p562
    %p564 = scmp.ne.s32.totalorder %s552, %s553
    %p565 = scmp.eq.s32.totalorder %s39, 1
    %p566 = por %p564, %p565
    %p568 = scmp.ne.s32.totalorder %s553, %s567
    %p569 = scmp.eq.s32.totalorder %s39, 0
    %p570 = por %p568, %p569
    %s572 = sadd.s32 %s571, 1
    %p575 = scmp.eq.s32.totalorder %s33, 1
    %p576 = scmp.ne.s32.totalorder %s571, %s573
    %p577 = scmp.eq.s32.totalorder %s33, 0
    %p578 = por %p576, %p577
    %p579 = scmp.ne.s32.totalorder %s571, %s573
    %p580 = scmp.eq.s32.totalorder %s38, 1
    %p581 = por %p579, %p580
    %p582 = scmp.ne.s32.totalorder %s573, %s574
    %p583 = scmp.eq.s32.totalorder %s38, 0
    %p584 = por %p582, %p583
    %p585 = scmp.ne.s32.totalorder %s573, %s574
    %p586 = scmp.eq.s32.totalorder %s39, 1
    %p587 = por %p585, %p586
    %p589 = scmp.ne.s32.totalorder %s574, %s588
    %p590 = scmp.eq.s32.totalorder %s39, 0
    %p591 = por %p589, %p590
    %s593 = sadd.s32 %s592, 1
    %p596 = scmp.eq.s32.totalorder %s33, 1
    %p597 = scmp.ne.s32.totalorder %s592, %s594
    %p598 = scmp.eq.s32.totalorder %s33, 0
    %p599 = por %p597, %p598
    %p600 = scmp.ne.s32.totalorder %s592, %s594
    %p601 = scmp.eq.s32.totalorder %s38, 1
    %p602 = por %p600, %p601
    %p603 = scmp.ne.s32.totalorder %s594, %s595
    %p604 = scmp.eq.s32.totalorder %s38, 0
    %p605 = por %p603, %p604
    %p606 = scmp.ne.s32.totalorder %s594, %s595
    %p607 = scmp.eq.s32.totalorder %s39, 1
    %p608 = por %p606, %p607
    %p610 = scmp.ne.s32.totalorder %s595, %s609
    %p611 = scmp.eq.s32.totalorder %s39, 0
    %p612 = por %p610, %p611
    %s613 = ssub.s32 %s33, %s40
    %p614 = scmp.eq.s32.totalorder %s613, 0
    %s616 = sadd.s32 %s615, 1
    %s617 = scalar_select %p614, %s615, %s616
    %p620 = pneg %p614
    %p621 = scmp.eq.s32.totalorder %s33, 1
    %p622 = por %p620, %p621
    %p623 = scmp.ne.s32.totalorder %s615, %s618
    %p624 = scmp.eq.s32.totalorder %s33, 0
    %p625 = por %p623, %p624
    %p626 = scmp.ne.s32.totalorder %s615, %s618
    %p627 = scmp.eq.s32.totalorder %s38, 1
    %p628 = por %p626, %p627
    %p629 = scmp.ne.s32.totalorder %s618, %s619
    %p630 = scmp.eq.s32.totalorder %s38, 0
    %p631 = por %p629, %p630
    %p632 = scmp.ne.s32.totalorder %s618, %s619
    %p633 = scmp.eq.s32.totalorder %s39, 1
    %p634 = por %p632, %p633
    %p636 = scmp.ne.s32.totalorder %s619, %s635
    %p637 = scmp.eq.s32.totalorder %s39, 0
    %p638 = por %p636, %p637
    %p639 = scmp.le.s32.totalorder 1, %s33
    %p640 = scmp.lt.s32.totalorder %s33, 3
    %p641 = pnand %p639, %p640
    %p642 = pneg %p641
    // Predicated region
    $region9: #{optical_flow_estimator_forward.1} parent=5 // pred_check
      _
    $region10: #{optical_flow_estimator_forward.1} parent=5 // pred_check_branch
      %644 = sbr.rel (%p641) target = $region12
    $region11: #{optical_flow_estimator_forward.1} parent=5 // pred_region
      %s645 = ssub.s32 %s33, 1
      // Predicated region
      $region13: #{optical_flow_estimator_forward.1} parent=11 // pred_check
        %p646 = pneg %p80
      $region14: #{optical_flow_estimator_forward.1} parent=11 // pred_check_branch
        %648 = sbr.rel (%p646) target = $region16
      $region15: #{optical_flow_estimator_forward.1} parent=11 // pred_region
        _
      $region16: #{optical_flow_estimator_forward.1} parent=11 // pred_fallthru
        _
      // Predicated region
      $region17: #{optical_flow_estimator_forward.1} parent=11 // pred_check
        %p649 = pneg %p101
      $region18: #{optical_flow_estimator_forward.1} parent=11 // pred_check_branch
        %651 = sbr.rel (%p649) target = $region20
      $region19: #{optical_flow_estimator_forward.1} parent=11 // pred_region
        _
      $region20: #{optical_flow_estimator_forward.1} parent=11 // pred_fallthru
        _
      // Predicated region
      $region21: #{optical_flow_estimator_forward.1} parent=11 // pred_check
        %p652 = pneg %p122
      $region22: #{optical_flow_estimator_forward.1} parent=11 // pred_check_branch
        %654 = sbr.rel (%p652) target = $region24
      $region23: #{optical_flow_estimator_forward.1} parent=11 // pred_region
        _
      $region24: #{optical_flow_estimator_forward.1} parent=11 // pred_fallthru
        _
      // Predicated region
      $region25: #{optical_flow_estimator_forward.1} parent=11 // pred_check
        %p655 = pneg %p143
      $region26: #{optical_flow_estimator_forward.1} parent=11 // pred_check_branch
        %657 = sbr.rel (%p655) target = $region28
      $region27: #{optical_flow_estimator_forward.1} parent=11 // pred_region
        _
      $region28: #{optical_flow_estimator_forward.1} parent=11 // pred_fallthru
        _
      // Predicated region
      $region29: #{optical_flow_estimator_forward.1} parent=11 // pred_check
        %p658 = pneg %p164
      $region30: #{optical_flow_estimator_forward.1} parent=11 // pred_check_branch
        %660 = sbr.rel (%p658) target = $region32
      $region31: #{optical_flow_estimator_forward.1} parent=11 // pred_region
        _
      $region32: #{optical_flow_estimator_forward.1} parent=11 // pred_fallthru
        _
      // Predicated region
      $region33: #{optical_flow_estimator_forward.1} parent=11 // pred_check
        %p661 = pneg %p185
      $region34: #{optical_flow_estimator_forward.1} parent=11 // pred_check_branch
        %663 = sbr.rel (%p661) target = $region36
      $region35: #{optical_flow_estimator_forward.1} parent=11 // pred_region
        _
      $region36: #{optical_flow_estimator_forward.1} parent=11 // pred_fallthru
        _
      // Predicated region
      $region37: #{optical_flow_estimator_forward.1} parent=11 // pred_check
        %p664 = pneg %p206
      $region38: #{optical_flow_estimator_forward.1} parent=11 // pred_check_branch
        %666 = sbr.rel (%p664) target = $region40
      $region39: #{optical_flow_estimator_forward.1} parent=11 // pred_region
        _
      $region40: #{optical_flow_estimator_forward.1} parent=11 // pred_fallthru
        _
      // Predicated region
      $region41: #{optical_flow_estimator_forward.1} parent=11 // pred_check
        %p667 = pneg %p227
      $region42: #{optical_flow_estimator_forward.1} parent=11 // pred_check_branch
        %669 = sbr.rel (%p667) target = $region44
      $region43: #{optical_flow_estimator_forward.1} parent=11 // pred_region
        _
      $region44: #{optical_flow_estimator_forward.1} parent=11 // pred_fallthru
        _
      // Predicated region
      $region45: #{optical_flow_estimator_forward.1} parent=11 // pred_check
        %p670 = pneg %p248
      $region46: #{optical_flow_estimator_forward.1} parent=11 // pred_check_branch
        %672 = sbr.rel (%p670) target = $region48
      $region47: #{optical_flow_estimator_forward.1} parent=11 // pred_region
        _
      $region48: #{optical_flow_estimator_forward.1} parent=11 // pred_fallthru
        _
      // Predicated region
      $region49: #{optical_flow_estimator_forward.1} parent=11 // pred_check
        %p673 = pneg %p269
      $region50: #{optical_flow_estimator_forward.1} parent=11 // pred_check_branch
        %675 = sbr.rel (%p673) target = $region52
      $region51: #{optical_flow_estimator_forward.1} parent=11 // pred_region
        _
      $region52: #{optical_flow_estimator_forward.1} parent=11 // pred_fallthru
        _
      // Predicated region
      $region53: #{optical_flow_estimator_forward.1} parent=11 // pred_check
        %p676 = pneg %p290
      $region54: #{optical_flow_estimator_forward.1} parent=11 // pred_check_branch
        %678 = sbr.rel (%p676) target = $region56
      $region55: #{optical_flow_estimator_forward.1} parent=11 // pred_region
        _
      $region56: #{optical_flow_estimator_forward.1} parent=11 // pred_fallthru
        _
      // Predicated region
      $region57: #{optical_flow_estimator_forward.1} parent=11 // pred_check
        %p679 = pneg %p311
      $region58: #{optical_flow_estimator_forward.1} parent=11 // pred_check_branch
        %681 = sbr.rel (%p679) target = $region60
      $region59: #{optical_flow_estimator_forward.1} parent=11 // pred_region
        _
      $region60: #{optical_flow_estimator_forward.1} parent=11 // pred_fallthru
        _
      // Predicated region
      $region61: #{optical_flow_estimator_forward.1} parent=11 // pred_check
        %p682 = pneg %p332
      $region62: #{optical_flow_estimator_forward.1} parent=11 // pred_check_branch
        %684 = sbr.rel (%p682) target = $region64
      $region63: #{optical_flow_estimator_forward.1} parent=11 // pred_region
        _
      $region64: #{optical_flow_estimator_forward.1} parent=11 // pred_fallthru
        _
      // Predicated region
      $region65: #{optical_flow_estimator_forward.1} parent=11 // pred_check
        %p685 = pneg %p353
      $region66: #{optical_flow_estimator_forward.1} parent=11 // pred_check_branch
        %687 = sbr.rel (%p685) target = $region68
      $region67: #{optical_flow_estimator_forward.1} parent=11 // pred_region
        _
      $region68: #{optical_flow_estimator_forward.1} parent=11 // pred_fallthru
        _
      // Predicated region
      $region69: #{optical_flow_estimator_forward.1} parent=11 // pred_check
        %p688 = pneg %p374
      $region70: #{optical_flow_estimator_forward.1} parent=11 // pred_check_branch
        %690 = sbr.rel (%p688) target = $region72
      $region71: #{optical_flow_estimator_forward.1} parent=11 // pred_region
        _
      $region72: #{optical_flow_estimator_forward.1} parent=11 // pred_fallthru
        _
      // Predicated region
      $region73: #{optical_flow_estimator_forward.1} parent=11 // pred_check
        %p691 = pneg %p395
      $region74: #{optical_flow_estimator_forward.1} parent=11 // pred_check_branch
        %693 = sbr.rel (%p691) target = $region76
      $region75: #{optical_flow_estimator_forward.1} parent=11 // pred_region
        _
      $region76: #{optical_flow_estimator_forward.1} parent=11 // pred_fallthru
        _
      // Predicated region
      $region77: #{optical_flow_estimator_forward.1} parent=11 // pred_check
        %p694 = pneg %p416
      $region78: #{optical_flow_estimator_forward.1} parent=11 // pred_check_branch
        %696 = sbr.rel (%p694) target = $region80
      $region79: #{optical_flow_estimator_forward.1} parent=11 // pred_region
        _
      $region80: #{optical_flow_estimator_forward.1} parent=11 // pred_fallthru
        _
      // Predicated region
      $region81: #{optical_flow_estimator_forward.1} parent=11 // pred_check
        %p697 = pneg %p437
      $region82: #{optical_flow_estimator_forward.1} parent=11 // pred_check_branch
        %699 = sbr.rel (%p697) target = $region84
      $region83: #{optical_flow_estimator_forward.1} parent=11 // pred_region
        _
      $region84: #{optical_flow_estimator_forward.1} parent=11 // pred_fallthru
        _
      // Predicated region
      $region85: #{optical_flow_estimator_forward.1} parent=11 // pred_check
        %p700 = pneg %p458
      $region86: #{optical_flow_estimator_forward.1} parent=11 // pred_check_branch
        %702 = sbr.rel (%p700) target = $region88
      $region87: #{optical_flow_estimator_forward.1} parent=11 // pred_region
        _
      $region88: #{optical_flow_estimator_forward.1} parent=11 // pred_fallthru
        _
      // Predicated region
      $region89: #{optical_flow_estimator_forward.1} parent=11 // pred_check
        %p703 = pneg %p479
      $region90: #{optical_flow_estimator_forward.1} parent=11 // pred_check_branch
        %705 = sbr.rel (%p703) target = $region92
      $region91: #{optical_flow_estimator_forward.1} parent=11 // pred_region
        _
      $region92: #{optical_flow_estimator_forward.1} parent=11 // pred_fallthru
        _
      // Predicated region
      $region93: #{optical_flow_estimator_forward.1} parent=11 // pred_check
        %p706 = pneg %p500
      $region94: #{optical_flow_estimator_forward.1} parent=11 // pred_check_branch
        %708 = sbr.rel (%p706) target = $region96
      $region95: #{optical_flow_estimator_forward.1} parent=11 // pred_region
        _
      $region96: #{optical_flow_estimator_forward.1} parent=11 // pred_fallthru
        _
      // Predicated region
      $region97: #{optical_flow_estimator_forward.1} parent=11 // pred_check
        %p709 = pneg %p521
      $region98: #{optical_flow_estimator_forward.1} parent=11 // pred_check_branch
        %711 = sbr.rel (%p709) target = $region100
      $region99: #{optical_flow_estimator_forward.1} parent=11 // pred_region
        _
      $region100: #{optical_flow_estimator_forward.1} parent=11 // pred_fallthru
        _
      // Predicated region
      $region101: #{optical_flow_estimator_forward.1} parent=11 // pred_check
        %p712 = pneg %p542
      $region102: #{optical_flow_estimator_forward.1} parent=11 // pred_check_branch
        %714 = sbr.rel (%p712) target = $region104
      $region103: #{optical_flow_estimator_forward.1} parent=11 // pred_region
        _
      $region104: #{optical_flow_estimator_forward.1} parent=11 // pred_fallthru
        _
      // Predicated region
      $region105: #{optical_flow_estimator_forward.1} parent=11 // pred_check
        %p715 = pneg %p563
      $region106: #{optical_flow_estimator_forward.1} parent=11 // pred_check_branch
        %717 = sbr.rel (%p715) target = $region108
      $region107: #{optical_flow_estimator_forward.1} parent=11 // pred_region
        _
      $region108: #{optical_flow_estimator_forward.1} parent=11 // pred_fallthru
        _
      // Predicated region
      $region109: #{optical_flow_estimator_forward.1} parent=11 // pred_check
        %p718 = pneg %p584
      $region110: #{optical_flow_estimator_forward.1} parent=11 // pred_check_branch
        %720 = sbr.rel (%p718) target = $region112
      $region111: #{optical_flow_estimator_forward.1} parent=11 // pred_region
        _
      $region112: #{optical_flow_estimator_forward.1} parent=11 // pred_fallthru
        _
      // Predicated region
      $region113: #{optical_flow_estimator_forward.1} parent=11 // pred_check
        %p721 = pneg %p605
      $region114: #{optical_flow_estimator_forward.1} parent=11 // pred_check_branch
        %723 = sbr.rel (%p721) target = $region116
      $region115: #{optical_flow_estimator_forward.1} parent=11 // pred_region
        _
      $region116: #{optical_flow_estimator_forward.1} parent=11 // pred_fallthru
        _
    $region12: #{optical_flow_estimator_forward.1} parent=5 // pred_fallthru
      _
    %p724 = scmp.lt.s32.totalorder %s33, 2
    // Predicated region
    $region117: #{optical_flow_estimator_forward.1} parent=5 // pred_check
      %p725 = pneg %p724
    $region118: #{optical_flow_estimator_forward.1} parent=5 // pred_check_branch
      %727 = sbr.rel (%p725) target = $region120
    $region119: #{optical_flow_estimator_forward.1} parent=5 // pred_region
      // Predicated region
      $region121: #{optical_flow_estimator_forward.1} parent=119 // pred_check
        %p728 = pneg %p53
      $region122: #{optical_flow_estimator_forward.1} parent=119 // pred_check_branch
        %730 = sbr.rel (%p728) target = $region124
      $region123: #{optical_flow_estimator_forward.1} parent=119 // pred_region
        %p731 = scmp.lt.s32.totalorder %s33, 1
        %s732 = scalar_select %p731, %s33, 1
        %s733 = smul.addr %s732, 32
        %s734 = smul.addr %s733, 8
        %s735 = scalar_lea.vmem %s0, %s734
      $region124: #{optical_flow_estimator_forward.1} parent=119 // pred_fallthru
        _
    $region120: #{optical_flow_estimator_forward.1} parent=5 // pred_fallthru
      _
    %p736 = scmp.le.s32.totalorder 1, %s33
    %p737 = scmp.lt.s32.totalorder %s33, 3
    %p738 = pnand %p736, %p737
    %p739 = pneg %p738
    // Predicated region
    $region125: #{optical_flow_estimator_forward.1} parent=5 // pred_check
      _
    $region126: #{optical_flow_estimator_forward.1} parent=5 // pred_check_branch
      %741 = sbr.rel (%p738) target = $region128
    $region127: #{optical_flow_estimator_forward.1} parent=5 // pred_region
      %s742 = ssub.s32 %s33, 1
      %p743 = scmp.lt.s32.totalorder %s38, 1
      %s744 = scalar_select %p743, %s38, 1
      %s745 = smul.addr %s744, 32
      %s746 = smul.addr %s745, 8
      %s747 = scalar_lea.vmem %s0, %s746
      %p748 = pneg %p59
      %p749 = pneg %p56
      %p750 = pneg %p80
      %p751 = pneg %p77
      %p752 = pneg %p101
      %p753 = pneg %p98
      %p754 = pneg %p122
      %p755 = pneg %p119
      %p756 = pneg %p143
      %p757 = pneg %p140
      %p758 = pneg %p164
      %p759 = pneg %p161
      %p760 = pneg %p185
      %p761 = pneg %p182
      %p762 = pneg %p206
      %p763 = pneg %p203
      %p764 = pneg %p227
      %p765 = pneg %p224
      %p766 = pneg %p248
      %p767 = pneg %p245
      %p768 = pneg %p269
      %p769 = pneg %p266
      %p770 = pneg %p290
      %p771 = pneg %p287
      %p772 = pneg %p311
      %p773 = pneg %p308
      %p774 = pneg %p332
      %p775 = pneg %p329
      %p776 = pneg %p353
      %p777 = pneg %p350
      %p778 = pneg %p374
      %p779 = pneg %p371
      %p780 = pneg %p395
      %p781 = pneg %p392
      %p782 = pneg %p416
      %p783 = pneg %p413
      %p784 = pneg %p437
      %p785 = pneg %p434
      %p786 = pneg %p458
      %p787 = pneg %p455
      %p788 = pneg %p479
      %p789 = pneg %p476
      %p790 = pneg %p500
      %p791 = pneg %p497
      %p792 = pneg %p521
      %p793 = pneg %p518
      %p794 = pneg %p542
      %p795 = pneg %p539
      %p796 = pneg %p563
      %p797 = pneg %p560
      %p798 = pneg %p584
      %p799 = pneg %p581
      %p800 = pneg %p605
      %p801 = pneg %p602
      %p802 = pneg %p631
      %p803 = pneg %p628
      %p804 = scmp.lt.s32.totalorder %s38, 1
      %s805 = scalar_select %p804, %s38, 1
      %s806 = smul.addr %s805, 2
      %s807 = smul.addr %s806, 2
      %s808 = scalar_lea.vmem %s27, %s807
      %p809 = scmp.lt.s32.totalorder %s38, 1
      %s810 = scalar_select %p809, %s38, 1
      %s811 = smul.addr %s810, 32
      %s812 = smul.addr %s811, 8
      %s813 = scalar_lea.vmem %s0, %s812
      %p814 = scmp.lt.s32.totalorder %s38, 1
      %s815 = scalar_select %p814, %s38, 1
      %s816 = smul.addr %s815, 2
      %s817 = smul.addr %s816, 2
      %s818 = scalar_lea.vmem %s27, %s817
      %820 = vst [vmem:[#allocation2] sm:$0xff] 0.0
      %821 = vst [vmem:[#allocation2 + $0x8] sm:$0xff] 0.0
      %822 = vst [vmem:[#allocation2 + $0x10] sm:$0xff] 0.0
      %823 = vst [vmem:[#allocation2 + $0x18] sm:$0xff] 0.0
      %s824 = scalar_lea.vmem [#allocation2], 544
      %825 = vst [vmem:[%s824] sm:$0xff] 0.0
      %826 = vst [vmem:[%s824 + $0x8] sm:$0xff] 0.0
      %827 = vst [vmem:[%s824 + $0x10] sm:$0xff] 0.0
      %828 = vst [vmem:[%s824 + $0x18] sm:$0xff] 0.0
      %s829 = scalar_lea.vmem [#allocation2], 32
      %830 = vst [vmem:[%s829] sm:$0xff] 0.0
      %831 = vst [vmem:[%s829 + $0x20] sm:$0xff] 0.0
      %832 = vst [vmem:[%s829 + $0x40] sm:$0xff] 0.0
      %833 = vst [vmem:[%s829 + $0x60] sm:$0xff] 0.0
      %834 = vst [vmem:[%s829 + $0x80] sm:$0xff] 0.0
      %835 = vst [vmem:[%s829 + $0xa0] sm:$0xff] 0.0
      %836 = vst [vmem:[%s829 + $0xc0] sm:$0xff] 0.0
      %837 = vst [vmem:[%s829 + $0xe0] sm:$0xff] 0.0
      %838 = vst [vmem:[%s829 + $0x100] sm:$0xff] 0.0
      %839 = vst [vmem:[%s829 + $0x120] sm:$0xff] 0.0
      %840 = vst [vmem:[%s829 + $0x140] sm:$0xff] 0.0
      %841 = vst [vmem:[%s829 + $0x160] sm:$0xff] 0.0
      %842 = vst [vmem:[%s829 + $0x180] sm:$0xff] 0.0
      %843 = vst [vmem:[%s829 + $0x1a0] sm:$0xff] 0.0
      %844 = vst [vmem:[%s829 + $0x1c0] sm:$0xff] 0.0
      %845 = vst [vmem:[%s829 + $0x1e0] sm:$0xff] 0.0
      %846 = vst [vmem:[%s829 + $0x18] sm:$0xff] 0.0
      %847 = vst [vmem:[%s829 + $0x38] sm:$0xff] 0.0
      %848 = vst [vmem:[%s829 + $0x58] sm:$0xff] 0.0
      %849 = vst [vmem:[%s829 + $0x78] sm:$0xff] 0.0
      %850 = vst [vmem:[%s829 + $0x98] sm:$0xff] 0.0
      %851 = vst [vmem:[%s829 + $0xb8] sm:$0xff] 0.0
      %852 = vst [vmem:[%s829 + $0xd8] sm:$0xff] 0.0
      %853 = vst [vmem:[%s829 + $0xf8] sm:$0xff] 0.0
      %854 = vst [vmem:[%s829 + $0x118] sm:$0xff] 0.0
      %855 = vst [vmem:[%s829 + $0x138] sm:$0xff] 0.0
      %856 = vst [vmem:[%s829 + $0x158] sm:$0xff] 0.0
      %857 = vst [vmem:[%s829 + $0x178] sm:$0xff] 0.0
      %858 = vst [vmem:[%s829 + $0x198] sm:$0xff] 0.0
      %859 = vst [vmem:[%s829 + $0x1b8] sm:$0xff] 0.0
      %860 = vst [vmem:[%s829 + $0x1d8] sm:$0xff] 0.0
      %861 = vst [vmem:[%s829 + $0x1f8] sm:$0xff] 0.0
      %v862 = vld [vmem:[%s813] sm:$0xff]
      %v863 = vld [vmem:[%s813 + $0x8] sm:$0xff]
      %v864 = vld [vmem:[%s813 + $0x10] sm:$0xff]
      %v865 = vld [vmem:[%s813 + $0x18] sm:$0xff]
      %v866 = vld [vmem:[%s813 + $0x20] sm:$0xff]
      %v867 = vld [vmem:[%s813 + $0x28] sm:$0xff]
      %v868 = vld [vmem:[%s813 + $0x30] sm:$0xff]
      %v869 = vld [vmem:[%s813 + $0x38] sm:$0xff]
      %v870 = vld [vmem:[%s813 + $0x40] sm:$0xff]
      %v871 = vld [vmem:[%s813 + $0x48] sm:$0xff]
      %v872 = vld [vmem:[%s813 + $0x50] sm:$0xff]
      %v873 = vld [vmem:[%s813 + $0x58] sm:$0xff]
      %v874 = vld [vmem:[%s813 + $0x60] sm:$0xff]
      %v875 = vld [vmem:[%s813 + $0x68] sm:$0xff]
      %v876 = vld [vmem:[%s813 + $0x70] sm:$0xff]
      %v877 = vld [vmem:[%s813 + $0x78] sm:$0xff]
      %v878 = vld [vmem:[%s813 + $0x80] sm:$0xff]
      %v879 = vld [vmem:[%s813 + $0x88] sm:$0xff]
      %v880 = vld [vmem:[%s813 + $0x90] sm:$0xff]
      %v881 = vld [vmem:[%s813 + $0x98] sm:$0xff]
      %v882 = vld [vmem:[%s813 + $0xa0] sm:$0xff]
      %v883 = vld [vmem:[%s813 + $0xa8] sm:$0xff]
      %v884 = vld [vmem:[%s813 + $0xb0] sm:$0xff]
      %v885 = vld [vmem:[%s813 + $0xb8] sm:$0xff]
      %v886 = vld [vmem:[%s813 + $0xc0] sm:$0xff]
      %v887 = vld [vmem:[%s813 + $0xc8] sm:$0xff]
      %v888 = vld [vmem:[%s813 + $0xd0] sm:$0xff]
      %v889 = vld [vmem:[%s813 + $0xd8] sm:$0xff]
      %v890 = vld [vmem:[%s813 + $0xe0] sm:$0xff]
      %v891 = vld [vmem:[%s813 + $0xe8] sm:$0xff]
      %v892 = vld [vmem:[%s813 + $0xf0] sm:$0xff]
      %v893 = vld [vmem:[%s813 + $0xf8] sm:$0xff]
      %v894 = vpack.c.bf16 %v863, %v862
      %v895 = vpack.c.bf16 %v865, %v864
      %v896 = vpack.c.bf16 %v867, %v866
      %v897 = vpack.c.bf16 %v869, %v868
      %v898 = vpack.c.bf16 %v871, %v870
      %v899 = vpack.c.bf16 %v873, %v872
      %v900 = vpack.c.bf16 %v875, %v874
      %v901 = vpack.c.bf16 %v877, %v876
      %v902 = vpack.c.bf16 %v879, %v878
      %v903 = vpack.c.bf16 %v881, %v880
      %v904 = vpack.c.bf16 %v883, %v882
      %v905 = vpack.c.bf16 %v885, %v884
      %v906 = vpack.c.bf16 %v887, %v886
      %v907 = vpack.c.bf16 %v889, %v888
      %v908 = vpack.c.bf16 %v891, %v890
      %v909 = vpack.c.bf16 %v893, %v892
      %v910 = vld [vmem:[%s1] sm:$0xf]
      %v911 = vld [vmem:[%s1 + $0x4] sm:$0xf]
      %v912 = vld [vmem:[%s2] sm:$0x1]
      %v914 = vperm.slane %v912, 0
      %v918 = vunpack.c.l.b16 %v910
      %v919 = vunpack.c.l.b16 %v911
      %v920 = vpack.c.b16 %v919, %v918
      %vm922 = vcmask 130048
      %v924 = vsel %vm922, %v894, 0
      %v927 = vsel %vm922, %v895, 0
      %v930 = vsel %vm922, %v896, 0
      %v933 = vsel %vm922, %v897, 0
      %v936 = vsel %vm922, %v898, 0
      %v939 = vsel %vm922, %v899, 0
      %v942 = vsel %vm922, %v900, 0
      %v945 = vsel %vm922, %v901, 0
      %v948 = vsel %vm922, %v902, 0
      %v951 = vsel %vm922, %v903, 0
      %v954 = vsel %vm922, %v904, 0
      %v957 = vsel %vm922, %v905, 0
      %v960 = vsel %vm922, %v906, 0
      %v963 = vsel %vm922, %v907, 0
      %v966 = vsel %vm922, %v908, 0
      %v969 = vsel %vm922, %v909, 0
      %971 = vmatpush.bf16.msra.mxu0 0
      %972 = vmatpush.bf16.msra.mxu0 0
      %973 = vmatpush.bf16.msra.mxu0 0
      %974 = vmatpush.bf16.msra.mxu0 0
      %975 = vmatpush.bf16.msra.mxu0 0
      %976 = vmatpush.bf16.msra.mxu0 0
      %977 = vmatpush.bf16.msra.mxu0 0
      %978 = vmatpush.bf16.msra.mxu0 %v920
      %979 = vmatmul.bf16.gmra.mxu0 %v924
      %v980 = vpop.f32.mrf.mxu0
      %v981 = vadd.f32 %v914, %v980
      %v982 = vpop.f32.mrf.mxu0
      %v983 = vadd.f32 %v914, %v982
      %984 = vmatmul.bf16.gmra.mxu0 %v927
      %v985 = vpop.f32.mrf.mxu0
      %v986 = vadd.f32 %v914, %v985
      %v987 = vpop.f32.mrf.mxu0
      %v988 = vadd.f32 %v914, %v987
      %989 = vmatmul.bf16.gmra.mxu0 %v930
      %v990 = vpop.f32.mrf.mxu0
      %v991 = vadd.f32 %v914, %v990
      %v992 = vpop.f32.mrf.mxu0
      %v993 = vadd.f32 %v914, %v992
      %994 = vmatmul.bf16.gmra.mxu0 %v933
      %v995 = vpop.f32.mrf.mxu0
      %v996 = vadd.f32 %v914, %v995
      %v997 = vpop.f32.mrf.mxu0
      %v998 = vadd.f32 %v914, %v997
      %999 = vmatmul.bf16.gmra.mxu0 %v936
      %v1000 = vpop.f32.mrf.mxu0
      %v1001 = vadd.f32 %v914, %v1000
      %v1002 = vpop.f32.mrf.mxu0
      %v1003 = vadd.f32 %v914, %v1002
      %1004 = vmatmul.bf16.gmra.mxu0 %v939
      %v1005 = vpop.f32.mrf.mxu0
      %v1006 = vadd.f32 %v914, %v1005
      %v1007 = vpop.f32.mrf.mxu0
      %v1008 = vadd.f32 %v914, %v1007
      %1009 = vmatmul.bf16.gmra.mxu0 %v942
      %v1010 = vpop.f32.mrf.mxu0
      %v1011 = vadd.f32 %v914, %v1010
      %v1012 = vpop.f32.mrf.mxu0
      %v1013 = vadd.f32 %v914, %v1012
      %1014 = vmatmul.bf16.gmra.mxu0 %v945
      %v1015 = vpop.f32.mrf.mxu0
      %v1016 = vadd.f32 %v914, %v1015
      %v1017 = vpop.f32.mrf.mxu0
      %v1018 = vadd.f32 %v914, %v1017
      %1019 = vmatmul.bf16.gmra.mxu0 %v948
      %v1020 = vpop.f32.mrf.mxu0
      %v1021 = vadd.f32 %v914, %v1020
      %v1022 = vpop.f32.mrf.mxu0
      %v1023 = vadd.f32 %v914, %v1022
      %1024 = vmatmul.bf16.gmra.mxu0 %v951
      %v1025 = vpop.f32.mrf.mxu0
      %v1026 = vadd.f32 %v914, %v1025
      %v1027 = vpop.f32.mrf.mxu0
      %v1028 = vadd.f32 %v914, %v1027
      %1029 = vmatmul.bf16.gmra.mxu0 %v954
      %v1030 = vpop.f32.mrf.mxu0
      %v1031 = vadd.f32 %v914, %v1030
      %v1032 = vpop.f32.mrf.mxu0
      %v1033 = vadd.f32 %v914, %v1032
      %1034 = vmatmul.bf16.gmra.mxu0 %v957
      %v1035 = vpop.f32.mrf.mxu0
      %v1036 = vadd.f32 %v914, %v1035
      %v1037 = vpop.f32.mrf.mxu0
      %v1038 = vadd.f32 %v914, %v1037
      %1039 = vmatmul.bf16.gmra.mxu0 %v960
      %v1040 = vpop.f32.mrf.mxu0
      %v1041 = vadd.f32 %v914, %v1040
      %v1042 = vpop.f32.mrf.mxu0
      %v1043 = vadd.f32 %v914, %v1042
      %1044 = vmatmul.bf16.gmra.mxu0 %v963
      %v1045 = vpop.f32.mrf.mxu0
      %v1046 = vadd.f32 %v914, %v1045
      %v1047 = vpop.f32.mrf.mxu0
      %v1048 = vadd.f32 %v914, %v1047
      %1049 = vmatmul.bf16.gmra.mxu0 %v966
      %v1050 = vpop.f32.mrf.mxu0
      %v1051 = vadd.f32 %v914, %v1050
      %v1052 = vpop.f32.mrf.mxu0
      %v1053 = vadd.f32 %v914, %v1052
      %1054 = vmatmul.bf16.gmra.mxu0 %v969
      %v1055 = vpop.f32.mrf.mxu0
      %v1056 = vadd.f32 %v914, %v1055
      %v1057 = vpop.f32.mrf.mxu0
      %v1058 = vadd.f32 %v914, %v1057
      %1059 = vdwg.mxu0
      %v1060 = vmax.f32 %v981, 0.0
      %v1061 = vmax.f32 %v983, 0.0
      %v1062 = vmax.f32 %v986, 0.0
      %v1063 = vmax.f32 %v988, 0.0
      %v1064 = vmax.f32 %v991, 0.0
      %v1065 = vmax.f32 %v993, 0.0
      %v1066 = vmax.f32 %v996, 0.0
      %v1067 = vmax.f32 %v998, 0.0
      %v1068 = vmax.f32 %v1001, 0.0
      %v1069 = vmax.f32 %v1003, 0.0
      %v1070 = vmax.f32 %v1006, 0.0
      %v1071 = vmax.f32 %v1008, 0.0
      %v1072 = vmax.f32 %v1011, 0.0
      %v1073 = vmax.f32 %v1013, 0.0
      %v1074 = vmax.f32 %v1016, 0.0
      %v1075 = vmax.f32 %v1018, 0.0
      %v1076 = vmax.f32 %v1021, 0.0
      %v1077 = vmax.f32 %v1023, 0.0
      %v1078 = vmax.f32 %v1026, 0.0
      %v1079 = vmax.f32 %v1028, 0.0
      %v1080 = vmax.f32 %v1031, 0.0
      %v1081 = vmax.f32 %v1033, 0.0
      %v1082 = vmax.f32 %v1036, 0.0
      %v1083 = vmax.f32 %v1038, 0.0
      %v1084 = vmax.f32 %v1041, 0.0
      %v1085 = vmax.f32 %v1043, 0.0
      %v1086 = vmax.f32 %v1046, 0.0
      %v1087 = vmax.f32 %v1048, 0.0
      %v1088 = vmax.f32 %v1051, 0.0
      %v1089 = vmax.f32 %v1053, 0.0
      %v1090 = vmax.f32 %v1056, 0.0
      %v1091 = vmax.f32 %v1058, 0.0
      %1092 = vst [vmem:[%s829 + $0x8] sm:$0xff] %v1060
      %1093 = vst [vmem:[%s829 + $0x10] sm:$0xff] %v1061
      %1094 = vst [vmem:[%s829 + $0x28] sm:$0xff] %v1062
      %1095 = vst [vmem:[%s829 + $0x30] sm:$0xff] %v1063
      %1096 = vst [vmem:[%s829 + $0x48] sm:$0xff] %v1064
      %1097 = vst [vmem:[%s829 + $0x50] sm:$0xff] %v1065
      %1098 = vst [vmem:[%s829 + $0x68] sm:$0xff] %v1066
      %1099 = vst [vmem:[%s829 + $0x70] sm:$0xff] %v1067
      %1100 = vst [vmem:[%s829 + $0x88] sm:$0xff] %v1068
      %1101 = vst [vmem:[%s829 + $0x90] sm:$0xff] %v1069
      %1102 = vst [vmem:[%s829 + $0xa8] sm:$0xff] %v1070
      %1103 = vst [vmem:[%s829 + $0xb0] sm:$0xff] %v1071
      %1104 = vst [vmem:[%s829 + $0xc8] sm:$0xff] %v1072
      %1105 = vst [vmem:[%s829 + $0xd0] sm:$0xff] %v1073
      %1106 = vst [vmem:[%s829 + $0xe8] sm:$0xff] %v1074
      %1107 = vst [vmem:[%s829 + $0xf0] sm:$0xff] %v1075
      %1108 = vst [vmem:[%s829 + $0x108] sm:$0xff] %v1076
      %1109 = vst [vmem:[%s829 + $0x110] sm:$0xff] %v1077
      %1110 = vst [vmem:[%s829 + $0x128] sm:$0xff] %v1078
      %1111 = vst [vmem:[%s829 + $0x130] sm:$0xff] %v1079
      %1112 = vst [vmem:[%s829 + $0x148] sm:$0xff] %v1080
      %1113 = vst [vmem:[%s829 + $0x150] sm:$0xff] %v1081
      %1114 = vst [vmem:[%s829 + $0x168] sm:$0xff] %v1082
      %1115 = vst [vmem:[%s829 + $0x170] sm:$0xff] %v1083
      %1116 = vst [vmem:[%s829 + $0x188] sm:$0xff] %v1084
      %1117 = vst [vmem:[%s829 + $0x190] sm:$0xff] %v1085
      %1118 = vst [vmem:[%s829 + $0x1a8] sm:$0xff] %v1086
      %1119 = vst [vmem:[%s829 + $0x1b0] sm:$0xff] %v1087
      %1120 = vst [vmem:[%s829 + $0x1c8] sm:$0xff] %v1088
      %1121 = vst [vmem:[%s829 + $0x1d0] sm:$0xff] %v1089
      %1122 = vst [vmem:[%s829 + $0x1e8] sm:$0xff] %v1090
      %1123 = vst [vmem:[%s829 + $0x1f0] sm:$0xff] %v1091
      %v1124 = vld [vmem:[#allocation2 + $0x7] sm:$0xff]
      %v1125 = vld [vmem:[#allocation2 + $0xf] sm:$0xff]
      %v1126 = vld [vmem:[#allocation2 + $0x27] sm:$0xff]
      %v1127 = vld [vmem:[#allocation2 + $0x2f] sm:$0xff]
      %v1128 = vld [vmem:[#allocation2 + $0x47] sm:$0xff]
      %v1129 = vld [vmem:[#allocation2 + $0x4f] sm:$0xff]
      %v1130 = vld [vmem:[#allocation2 + $0x67] sm:$0xff]
      %v1131 = vld [vmem:[#allocation2 + $0x6f] sm:$0xff]
      %v1132 = vld [vmem:[#allocation2 + $0x87] sm:$0xff]
      %v1133 = vld [vmem:[#allocation2 + $0x8f] sm:$0xff]
      %v1134 = vld [vmem:[#allocation2 + $0xa7] sm:$0xff]
      %v1135 = vld [vmem:[#allocation2 + $0xaf] sm:$0xff]
      %v1136 = vld [vmem:[#allocation2 + $0xc7] sm:$0xff]
      %v1137 = vld [vmem:[#allocation2 + $0xcf] sm:$0xff]
      %v1138 = vld [vmem:[#allocation2 + $0xe7] sm:$0xff]
      %v1139 = vld [vmem:[#allocation2 + $0xef] sm:$0xff]
      %v1140 = vld [vmem:[%s3] sm:$0x1]
      %v1141 = vperm.slane %v1140, 0
      %v1142 = vmul.f32 %v1124, %v1141
      %v1143 = vmul.f32 %v1125, %v1141
      %v1144 = vmul.f32 %v1126, %v1141
      %v1145 = vmul.f32 %v1127, %v1141
      %v1146 = vmul.f32 %v1128, %v1141
      %v1147 = vmul.f32 %v1129, %v1141
      %v1148 = vmul.f32 %v1130, %v1141
      %v1149 = vmul.f32 %v1131, %v1141
      %v1150 = vmul.f32 %v1132, %v1141
      %v1151 = vmul.f32 %v1133, %v1141
      %v1152 = vmul.f32 %v1134, %v1141
      %v1153 = vmul.f32 %v1135, %v1141
      %v1154 = vmul.f32 %v1136, %v1141
      %v1155 = vmul.f32 %v1137, %v1141
      %v1156 = vmul.f32 %v1138, %v1141
      %v1157 = vmul.f32 %v1139, %v1141
      %v1158 = vadd.f32 %v1142, 0.0
      %v1159 = vadd.f32 %v1143, 0.0
      %v1160 = vadd.f32 %v1144, 0.0
      %v1161 = vadd.f32 %v1145, 0.0
      %v1162 = vadd.f32 %v1146, 0.0
      %v1163 = vadd.f32 %v1147, 0.0
      %v1164 = vadd.f32 %v1148, 0.0
      %v1165 = vadd.f32 %v1149, 0.0
      %v1166 = vadd.f32 %v1150, 0.0
      %v1167 = vadd.f32 %v1151, 0.0
      %v1168 = vadd.f32 %v1152, 0.0
      %v1169 = vadd.f32 %v1153, 0.0
      %v1170 = vadd.f32 %v1154, 0.0
      %v1171 = vadd.f32 %v1155, 0.0
      %v1172 = vadd.f32 %v1156, 0.0
      %v1173 = vadd.f32 %v1157, 0.0
      %v1174 = vld [vmem:[#allocation2 + $0x8] sm:$0xff]
      %v1175 = vld [vmem:[#allocation2 + $0x10] sm:$0xff]
      %v1176 = vld [vmem:[#allocation2 + $0x28] sm:$0xff]
      %v1177 = vld [vmem:[#allocation2 + $0x30] sm:$0xff]
      %v1178 = vld [vmem:[#allocation2 + $0x48] sm:$0xff]
      %v1179 = vld [vmem:[#allocation2 + $0x50] sm:$0xff]
      %v1180 = vld [vmem:[#allocation2 + $0x68] sm:$0xff]
      %v1181 = vld [vmem:[#allocation2 + $0x70] sm:$0xff]
      %v1182 = vld [vmem:[#allocation2 + $0x88] sm:$0xff]
      %v1183 = vld [vmem:[#allocation2 + $0x90] sm:$0xff]
      %v1184 = vld [vmem:[#allocation2 + $0xa8] sm:$0xff]
      %v1185 = vld [vmem:[#allocation2 + $0xb0] sm:$0xff]
      %v1186 = vld [vmem:[#allocation2 + $0xc8] sm:$0xff]
      %v1187 = vld [vmem:[#allocation2 + $0xd0] sm:$0xff]
      %v1188 = vld [vmem:[#allocation2 + $0xe8] sm:$0xff]
      %v1189 = vld [vmem:[#allocation2 + $0xf0] sm:$0xff]
      %v1190 = vld [vmem:[%s3 + $0x1] sm:$0x1]
      %v1191 = vperm.slane %v1190, 0
      %v1192 = vmul.f32 %v1174, %v1191
      %v1193 = vmul.f32 %v1175, %v1191
      %v1194 = vmul.f32 %v1176, %v1191
      %v1195 = vmul.f32 %v1177, %v1191
      %v1196 = vmul.f32 %v1178, %v1191
      %v1197 = vmul.f32 %v1179, %v1191
      %v1198 = vmul.f32 %v1180, %v1191
      %v1199 = vmul.f32 %v1181, %v1191
      %v1200 = vmul.f32 %v1182, %v1191
      %v1201 = vmul.f32 %v1183, %v1191
      %v1202 = vmul.f32 %v1184, %v1191
      %v1203 = vmul.f32 %v1185, %v1191
      %v1204 = vmul.f32 %v1186, %v1191
      %v1205 = vmul.f32 %v1187, %v1191
      %v1206 = vmul.f32 %v1188, %v1191
      %v1207 = vmul.f32 %v1189, %v1191
      %v1208 = vadd.f32 %v1158, %v1192
      %v1209 = vadd.f32 %v1159, %v1193
      %v1210 = vadd.f32 %v1160, %v1194
      %v1211 = vadd.f32 %v1161, %v1195
      %v1212 = vadd.f32 %v1162, %v1196
      %v1213 = vadd.f32 %v1163, %v1197
      %v1214 = vadd.f32 %v1164, %v1198
      %v1215 = vadd.f32 %v1165, %v1199
      %v1216 = vadd.f32 %v1166, %v1200
      %v1217 = vadd.f32 %v1167, %v1201
      %v1218 = vadd.f32 %v1168, %v1202
      %v1219 = vadd.f32 %v1169, %v1203
      %v1220 = vadd.f32 %v1170, %v1204
      %v1221 = vadd.f32 %v1171, %v1205
      %v1222 = vadd.f32 %v1172, %v1206
      %v1223 = vadd.f32 %v1173, %v1207
      %v1224 = vld [vmem:[#allocation2 + $0x9] sm:$0xff]
      %v1225 = vld [vmem:[#allocation2 + $0x11] sm:$0xff]
      %v1226 = vld [vmem:[#allocation2 + $0x29] sm:$0xff]
      %v1227 = vld [vmem:[#allocation2 + $0x31] sm:$0xff]
      %v1228 = vld [vmem:[#allocation2 + $0x49] sm:$0xff]
      %v1229 = vld [vmem:[#allocation2 + $0x51] sm:$0xff]
      %v1230 = vld [vmem:[#allocation2 + $0x69] sm:$0xff]
      %v1231 = vld [vmem:[#allocation2 + $0x71] sm:$0xff]
      %v1232 = vld [vmem:[#allocation2 + $0x89] sm:$0xff]
      %v1233 = vld [vmem:[#allocation2 + $0x91] sm:$0xff]
      %v1234 = vld [vmem:[#allocation2 + $0xa9] sm:$0xff]
      %v1235 = vld [vmem:[#allocation2 + $0xb1] sm:$0xff]
      %v1236 = vld [vmem:[#allocation2 + $0xc9] sm:$0xff]
      %v1237 = vld [vmem:[#allocation2 + $0xd1] sm:$0xff]
      %v1238 = vld [vmem:[#allocation2 + $0xe9] sm:$0xff]
      %v1239 = vld [vmem:[#allocation2 + $0xf1] sm:$0xff]
      %v1240 = vld [vmem:[%s3 + $0x2] sm:$0x1]
      %v1241 = vperm.slane %v1240, 0
      %v1242 = vmul.f32 %v1224, %v1241
      %v1243 = vmul.f32 %v1225, %v1241
      %v1244 = vmul.f32 %v1226, %v1241
      %v1245 = vmul.f32 %v1227, %v1241
      %v1246 = vmul.f32 %v1228, %v1241
      %v1247 = vmul.f32 %v1229, %v1241
      %v1248 = vmul.f32 %v1230, %v1241
      %v1249 = vmul.f32 %v1231, %v1241
      %v1250 = vmul.f32 %v1232, %v1241
      %v1251 = vmul.f32 %v1233, %v1241
      %v1252 = vmul.f32 %v1234, %v1241
      %v1253 = vmul.f32 %v1235, %v1241
      %v1254 = vmul.f32 %v1236, %v1241
      %v1255 = vmul.f32 %v1237, %v1241
      %v1256 = vmul.f32 %v1238, %v1241
      %v1257 = vmul.f32 %v1239, %v1241
      %v1258 = vadd.f32 %v1208, %v1242
      %v1259 = vadd.f32 %v1209, %v1243
      %v1260 = vadd.f32 %v1210, %v1244
      %v1261 = vadd.f32 %v1211, %v1245
      %v1262 = vadd.f32 %v1212, %v1246
      %v1263 = vadd.f32 %v1213, %v1247
      %v1264 = vadd.f32 %v1214, %v1248
      %v1265 = vadd.f32 %v1215, %v1249
      %v1266 = vadd.f32 %v1216, %v1250
      %v1267 = vadd.f32 %v1217, %v1251
      %v1268 = vadd.f32 %v1218, %v1252
      %v1269 = vadd.f32 %v1219, %v1253
      %v1270 = vadd.f32 %v1220, %v1254
      %v1271 = vadd.f32 %v1221, %v1255
      %v1272 = vadd.f32 %v1222, %v1256
      %v1273 = vadd.f32 %v1223, %v1257
      %v1274 = vld [vmem:[%s829 + $0x7] sm:$0xff]
      %v1275 = vld [vmem:[%s829 + $0xf] sm:$0xff]
      %v1276 = vld [vmem:[%s829 + $0x27] sm:$0xff]
      %v1277 = vld [vmem:[%s829 + $0x2f] sm:$0xff]
      %v1278 = vld [vmem:[%s829 + $0x47] sm:$0xff]
      %v1279 = vld [vmem:[%s829 + $0x4f] sm:$0xff]
      %v1280 = vld [vmem:[%s829 + $0x67] sm:$0xff]
      %v1281 = vld [vmem:[%s829 + $0x6f] sm:$0xff]
      %v1282 = vld [vmem:[%s829 + $0x87] sm:$0xff]
      %v1283 = vld [vmem:[%s829 + $0x8f] sm:$0xff]
      %v1284 = vld [vmem:[%s829 + $0xa7] sm:$0xff]
      %v1285 = vld [vmem:[%s829 + $0xaf] sm:$0xff]
      %v1286 = vld [vmem:[%s829 + $0xc7] sm:$0xff]
      %v1287 = vld [vmem:[%s829 + $0xcf] sm:$0xff]
      %v1288 = vld [vmem:[%s829 + $0xe7] sm:$0xff]
      %v1289 = vld [vmem:[%s829 + $0xef] sm:$0xff]
      %v1290 = vld [vmem:[%s3 + $0x3] sm:$0x1]
      %v1291 = vperm.slane %v1290, 0
      %v1292 = vmul.f32 %v1274, %v1291
      %v1293 = vmul.f32 %v1275, %v1291
      %v1294 = vmul.f32 %v1276, %v1291
      %v1295 = vmul.f32 %v1277, %v1291
      %v1296 = vmul.f32 %v1278, %v1291
      %v1297 = vmul.f32 %v1279, %v1291
      %v1298 = vmul.f32 %v1280, %v1291
      %v1299 = vmul.f32 %v1281, %v1291
      %v1300 = vmul.f32 %v1282, %v1291
      %v1301 = vmul.f32 %v1283, %v1291
      %v1302 = vmul.f32 %v1284, %v1291
      %v1303 = vmul.f32 %v1285, %v1291
      %v1304 = vmul.f32 %v1286, %v1291
      %v1305 = vmul.f32 %v1287, %v1291
      %v1306 = vmul.f32 %v1288, %v1291
      %v1307 = vmul.f32 %v1289, %v1291
      %v1308 = vadd.f32 %v1258, %v1292
      %v1309 = vadd.f32 %v1259, %v1293
      %v1310 = vadd.f32 %v1260, %v1294
      %v1311 = vadd.f32 %v1261, %v1295
      %v1312 = vadd.f32 %v1262, %v1296
      %v1313 = vadd.f32 %v1263, %v1297
      %v1314 = vadd.f32 %v1264, %v1298
      %v1315 = vadd.f32 %v1265, %v1299
      %v1316 = vadd.f32 %v1266, %v1300
      %v1317 = vadd.f32 %v1267, %v1301
      %v1318 = vadd.f32 %v1268, %v1302
      %v1319 = vadd.f32 %v1269, %v1303
      %v1320 = vadd.f32 %v1270, %v1304
      %v1321 = vadd.f32 %v1271, %v1305
      %v1322 = vadd.f32 %v1272, %v1306
      %v1323 = vadd.f32 %v1273, %v1307
      %v1324 = vld [vmem:[%s829 + $0x8] sm:$0xff]
      %v1325 = vld [vmem:[%s829 + $0x10] sm:$0xff]
      %v1326 = vld [vmem:[%s829 + $0x28] sm:$0xff]
      %v1327 = vld [vmem:[%s829 + $0x30] sm:$0xff]
      %v1328 = vld [vmem:[%s829 + $0x48] sm:$0xff]
      %v1329 = vld [vmem:[%s829 + $0x50] sm:$0xff]
      %v1330 = vld [vmem:[%s829 + $0x68] sm:$0xff]
      %v1331 = vld [vmem:[%s829 + $0x70] sm:$0xff]
      %v1332 = vld [vmem:[%s829 + $0x88] sm:$0xff]
      %v1333 = vld [vmem:[%s829 + $0x90] sm:$0xff]
      %v1334 = vld [vmem:[%s829 + $0xa8] sm:$0xff]
      %v1335 = vld [vmem:[%s829 + $0xb0] sm:$0xff]
      %v1336 = vld [vmem:[%s829 + $0xc8] sm:$0xff]
      %v1337 = vld [vmem:[%s829 + $0xd0] sm:$0xff]
      %v1338 = vld [vmem:[%s829 + $0xe8] sm:$0xff]
      %v1339 = vld [vmem:[%s829 + $0xf0] sm:$0xff]
      %v1340 = vld [vmem:[%s3 + $0x4] sm:$0x1]
      %v1341 = vperm.slane %v1340, 0
      %v1342 = vmul.f32 %v1324, %v1341
      %v1343 = vmul.f32 %v1325, %v1341
      %v1344 = vmul.f32 %v1326, %v1341
      %v1345 = vmul.f32 %v1327, %v1341
      %v1346 = vmul.f32 %v1328, %v1341
      %v1347 = vmul.f32 %v1329, %v1341
      %v1348 = vmul.f32 %v1330, %v1341
      %v1349 = vmul.f32 %v1331, %v1341
      %v1350 = vmul.f32 %v1332, %v1341
      %v1351 = vmul.f32 %v1333, %v1341
      %v1352 = vmul.f32 %v1334, %v1341
      %v1353 = vmul.f32 %v1335, %v1341
      %v1354 = vmul.f32 %v1336, %v1341
      %v1355 = vmul.f32 %v1337, %v1341
      %v1356 = vmul.f32 %v1338, %v1341
      %v1357 = vmul.f32 %v1339, %v1341
      %v1358 = vadd.f32 %v1308, %v1342
      %v1359 = vadd.f32 %v1309, %v1343
      %v1360 = vadd.f32 %v1310, %v1344
      %v1361 = vadd.f32 %v1311, %v1345
      %v1362 = vadd.f32 %v1312, %v1346
      %v1363 = vadd.f32 %v1313, %v1347
      %v1364 = vadd.f32 %v1314, %v1348
      %v1365 = vadd.f32 %v1315, %v1349
      %v1366 = vadd.f32 %v1316, %v1350
      %v1367 = vadd.f32 %v1317, %v1351
      %v1368 = vadd.f32 %v1318, %v1352
      %v1369 = vadd.f32 %v1319, %v1353
      %v1370 = vadd.f32 %v1320, %v1354
      %v1371 = vadd.f32 %v1321, %v1355
      %v1372 = vadd.f32 %v1322, %v1356
      %v1373 = vadd.f32 %v1323, %v1357
      %v1374 = vld [vmem:[%s829 + $0x9] sm:$0xff]
      %v1375 = vld [vmem:[%s829 + $0x11] sm:$0xff]
      %v1376 = vld [vmem:[%s829 + $0x29] sm:$0xff]
      %v1377 = vld [vmem:[%s829 + $0x31] sm:$0xff]
      %v1378 = vld [vmem:[%s829 + $0x49] sm:$0xff]
      %v1379 = vld [vmem:[%s829 + $0x51] sm:$0xff]
      %v1380 = vld [vmem:[%s829 + $0x69] sm:$0xff]
      %v1381 = vld [vmem:[%s829 + $0x71] sm:$0xff]
      %v1382 = vld [vmem:[%s829 + $0x89] sm:$0xff]
      %v1383 = vld [vmem:[%s829 + $0x91] sm:$0xff]
      %v1384 = vld [vmem:[%s829 + $0xa9] sm:$0xff]
      %v1385 = vld [vmem:[%s829 + $0xb1] sm:$0xff]
      %v1386 = vld [vmem:[%s829 + $0xc9] sm:$0xff]
      %v1387 = vld [vmem:[%s829 + $0xd1] sm:$0xff]
      %v1388 = vld [vmem:[%s829 + $0xe9] sm:$0xff]
      %v1389 = vld [vmem:[%s829 + $0xf1] sm:$0xff]
      %v1390 = vld [vmem:[%s3 + $0x5] sm:$0x1]
      %v1391 = vperm.slane %v1390, 0
      %v1392 = vmul.f32 %v1374, %v1391
      %v1393 = vmul.f32 %v1375, %v1391
      %v1394 = vmul.f32 %v1376, %v1391
      %v1395 = vmul.f32 %v1377, %v1391
      %v1396 = vmul.f32 %v1378, %v1391
      %v1397 = vmul.f32 %v1379, %v1391
      %v1398 = vmul.f32 %v1380, %v1391
      %v1399 = vmul.f32 %v1381, %v1391
      %v1400 = vmul.f32 %v1382, %v1391
      %v1401 = vmul.f32 %v1383, %v1391
      %v1402 = vmul.f32 %v1384, %v1391
      %v1403 = vmul.f32 %v1385, %v1391
      %v1404 = vmul.f32 %v1386, %v1391
      %v1405 = vmul.f32 %v1387, %v1391
      %v1406 = vmul.f32 %v1388, %v1391
      %v1407 = vmul.f32 %v1389, %v1391
      %v1408 = vadd.f32 %v1358, %v1392
      %v1409 = vadd.f32 %v1359, %v1393
      %v1410 = vadd.f32 %v1360, %v1394
      %v1411 = vadd.f32 %v1361, %v1395
      %v1412 = vadd.f32 %v1362, %v1396
      %v1413 = vadd.f32 %v1363, %v1397
      %v1414 = vadd.f32 %v1364, %v1398
      %v1415 = vadd.f32 %v1365, %v1399
      %v1416 = vadd.f32 %v1366, %v1400
      %v1417 = vadd.f32 %v1367, %v1401
      %v1418 = vadd.f32 %v1368, %v1402
      %v1419 = vadd.f32 %v1369, %v1403
      %v1420 = vadd.f32 %v1370, %v1404
      %v1421 = vadd.f32 %v1371, %v1405
      %v1422 = vadd.f32 %v1372, %v1406
      %v1423 = vadd.f32 %v1373, %v1407
      %s1424 = scalar_lea.vmem [#allocation2], 64
      %v1425 = vld [vmem:[%s1424 + $0x7] sm:$0xff]
      %v1426 = vld [vmem:[%s1424 + $0xf] sm:$0xff]
      %v1427 = vld [vmem:[%s1424 + $0x27] sm:$0xff]
      %v1428 = vld [vmem:[%s1424 + $0x2f] sm:$0xff]
      %v1429 = vld [vmem:[%s1424 + $0x47] sm:$0xff]
      %v1430 = vld [vmem:[%s1424 + $0x4f] sm:$0xff]
      %v1431 = vld [vmem:[%s1424 + $0x67] sm:$0xff]
      %v1432 = vld [vmem:[%s1424 + $0x6f] sm:$0xff]
      %v1433 = vld [vmem:[%s1424 + $0x87] sm:$0xff]
      %v1434 = vld [vmem:[%s1424 + $0x8f] sm:$0xff]
      %v1435 = vld [vmem:[%s1424 + $0xa7] sm:$0xff]
      %v1436 = vld [vmem:[%s1424 + $0xaf] sm:$0xff]
      %v1437 = vld [vmem:[%s1424 + $0xc7] sm:$0xff]
      %v1438 = vld [vmem:[%s1424 + $0xcf] sm:$0xff]
      %v1439 = vld [vmem:[%s1424 + $0xe7] sm:$0xff]
      %v1440 = vld [vmem:[%s1424 + $0xef] sm:$0xff]
      %v1441 = vld [vmem:[%s3 + $0x6] sm:$0x1]
      %v1442 = vperm.slane %v1441, 0
      %v1443 = vmul.f32 %v1425, %v1442
      %v1444 = vmul.f32 %v1426, %v1442
      %v1445 = vmul.f32 %v1427, %v1442
      %v1446 = vmul.f32 %v1428, %v1442
      %v1447 = vmul.f32 %v1429, %v1442
      %v1448 = vmul.f32 %v1430, %v1442
      %v1449 = vmul.f32 %v1431, %v1442
      %v1450 = vmul.f32 %v1432, %v1442
      %v1451 = vmul.f32 %v1433, %v1442
      %v1452 = vmul.f32 %v1434, %v1442
      %v1453 = vmul.f32 %v1435, %v1442
      %v1454 = vmul.f32 %v1436, %v1442
      %v1455 = vmul.f32 %v1437, %v1442
      %v1456 = vmul.f32 %v1438, %v1442
      %v1457 = vmul.f32 %v1439, %v1442
      %v1458 = vmul.f32 %v1440, %v1442
      %v1459 = vadd.f32 %v1408, %v1443
      %v1460 = vadd.f32 %v1409, %v1444
      %v1461 = vadd.f32 %v1410, %v1445
      %v1462 = vadd.f32 %v1411, %v1446
      %v1463 = vadd.f32 %v1412, %v1447
      %v1464 = vadd.f32 %v1413, %v1448
      %v1465 = vadd.f32 %v1414, %v1449
      %v1466 = vadd.f32 %v1415, %v1450
      %v1467 = vadd.f32 %v1416, %v1451
      %v1468 = vadd.f32 %v1417, %v1452
      %v1469 = vadd.f32 %v1418, %v1453
      %v1470 = vadd.f32 %v1419, %v1454
      %v1471 = vadd.f32 %v1420, %v1455
      %v1472 = vadd.f32 %v1421, %v1456
      %v1473 = vadd.f32 %v1422, %v1457
      %v1474 = vadd.f32 %v1423, %v1458
      %v1475 = vld [vmem:[%s1424 + $0x8] sm:$0xff]
      %v1476 = vld [vmem:[%s1424 + $0x10] sm:$0xff]
      %v1477 = vld [vmem:[%s1424 + $0x28] sm:$0xff]
      %v1478 = vld [vmem:[%s1424 + $0x30] sm:$0xff]
      %v1479 = vld [vmem:[%s1424 + $0x48] sm:$0xff]
      %v1480 = vld [vmem:[%s1424 + $0x50] sm:$0xff]
      %v1481 = vld [vmem:[%s1424 + $0x68] sm:$0xff]
      %v1482 = vld [vmem:[%s1424 + $0x70] sm:$0xff]
      %v1483 = vld [vmem:[%s1424 + $0x88] sm:$0xff]
      %v1484 = vld [vmem:[%s1424 + $0x90] sm:$0xff]
      %v1485 = vld [vmem:[%s1424 + $0xa8] sm:$0xff]
      %v1486 = vld [vmem:[%s1424 + $0xb0] sm:$0xff]
      %v1487 = vld [vmem:[%s1424 + $0xc8] sm:$0xff]
      %v1488 = vld [vmem:[%s1424 + $0xd0] sm:$0xff]
      %v1489 = vld [vmem:[%s1424 + $0xe8] sm:$0xff]
      %v1490 = vld [vmem:[%s1424 + $0xf0] sm:$0xff]
      %v1491 = vld [vmem:[%s3 + $0x7] sm:$0x1]
      %v1492 = vperm.slane %v1491, 0
      %v1493 = vmul.f32 %v1475, %v1492
      %v1494 = vmul.f32 %v1476, %v1492
      %v1495 = vmul.f32 %v1477, %v1492
      %v1496 = vmul.f32 %v1478, %v1492
      %v1497 = vmul.f32 %v1479, %v1492
      %v1498 = vmul.f32 %v1480, %v1492
      %v1499 = vmul.f32 %v1481, %v1492
      %v1500 = vmul.f32 %v1482, %v1492
      %v1501 = vmul.f32 %v1483, %v1492
      %v1502 = vmul.f32 %v1484, %v1492
      %v1503 = vmul.f32 %v1485, %v1492
      %v1504 = vmul.f32 %v1486, %v1492
      %v1505 = vmul.f32 %v1487, %v1492
      %v1506 = vmul.f32 %v1488, %v1492
      %v1507 = vmul.f32 %v1489, %v1492
      %v1508 = vmul.f32 %v1490, %v1492
      %v1509 = vadd.f32 %v1459, %v1493
      %v1510 = vadd.f32 %v1460, %v1494
      %v1511 = vadd.f32 %v1461, %v1495
      %v1512 = vadd.f32 %v1462, %v1496
      %v1513 = vadd.f32 %v1463, %v1497
      %v1514 = vadd.f32 %v1464, %v1498
      %v1515 = vadd.f32 %v1465, %v1499
      %v1516 = vadd.f32 %v1466, %v1500
      %v1517 = vadd.f32 %v1467, %v1501
      %v1518 = vadd.f32 %v1468, %v1502
      %v1519 = vadd.f32 %v1469, %v1503
      %v1520 = vadd.f32 %v1470, %v1504
      %v1521 = vadd.f32 %v1471, %v1505
      %v1522 = vadd.f32 %v1472, %v1506
      %v1523 = vadd.f32 %v1473, %v1507
      %v1524 = vadd.f32 %v1474, %v1508
      %v1525 = vld [vmem:[%s1424 + $0x9] sm:$0xff]
      %v1526 = vld [vmem:[%s1424 + $0x11] sm:$0xff]
      %v1527 = vld [vmem:[%s1424 + $0x29] sm:$0xff]
      %v1528 = vld [vmem:[%s1424 + $0x31] sm:$0xff]
      %v1529 = vld [vmem:[%s1424 + $0x49] sm:$0xff]
      %v1530 = vld [vmem:[%s1424 + $0x51] sm:$0xff]
      %v1531 = vld [vmem:[%s1424 + $0x69] sm:$0xff]
      %v1532 = vld [vmem:[%s1424 + $0x71] sm:$0xff]
      %v1533 = vld [vmem:[%s1424 + $0x89] sm:$0xff]
      %v1534 = vld [vmem:[%s1424 + $0x91] sm:$0xff]
      %v1535 = vld [vmem:[%s1424 + $0xa9] sm:$0xff]
      %v1536 = vld [vmem:[%s1424 + $0xb1] sm:$0xff]
      %v1537 = vld [vmem:[%s1424 + $0xc9] sm:$0xff]
      %v1538 = vld [vmem:[%s1424 + $0xd1] sm:$0xff]
      %v1539 = vld [vmem:[%s1424 + $0xe9] sm:$0xff]
      %v1540 = vld [vmem:[%s1424 + $0xf1] sm:$0xff]
      %v1541 = vld [vmem:[%s3 + $0x8] sm:$0x1]
      %v1542 = vperm.slane %v1541, 0
      %v1543 = vmul.f32 %v1525, %v1542
      %v1544 = vmul.f32 %v1526, %v1542
      %v1545 = vmul.f32 %v1527, %v1542
      %v1546 = vmul.f32 %v1528, %v1542
      %v1547 = vmul.f32 %v1529, %v1542
      %v1548 = vmul.f32 %v1530, %v1542
      %v1549 = vmul.f32 %v1531, %v1542
      %v1550 = vmul.f32 %v1532, %v1542
      %v1551 = vmul.f32 %v1533, %v1542
      %v1552 = vmul.f32 %v1534, %v1542
      %v1553 = vmul.f32 %v1535, %v1542
      %v1554 = vmul.f32 %v1536, %v1542
      %v1555 = vmul.f32 %v1537, %v1542
      %v1556 = vmul.f32 %v1538, %v1542
      %v1557 = vmul.f32 %v1539, %v1542
      %v1558 = vmul.f32 %v1540, %v1542
      %v1559 = vadd.f32 %v1509, %v1543
      %v1560 = vadd.f32 %v1510, %v1544
      %v1561 = vadd.f32 %v1511, %v1545
      %v1562 = vadd.f32 %v1512, %v1546
      %v1563 = vadd.f32 %v1513, %v1547
      %v1564 = vadd.f32 %v1514, %v1548
      %v1565 = vadd.f32 %v1515, %v1549
      %v1566 = vadd.f32 %v1516, %v1550
      %v1567 = vadd.f32 %v1517, %v1551
      %v1568 = vadd.f32 %v1518, %v1552
      %v1569 = vadd.f32 %v1519, %v1553
      %v1570 = vadd.f32 %v1520, %v1554
      %v1571 = vadd.f32 %v1521, %v1555
      %v1572 = vadd.f32 %v1522, %v1556
      %v1573 = vadd.f32 %v1523, %v1557
      %v1574 = vadd.f32 %v1524, %v1558
      %v1575 = vld [vmem:[%s4] sm:$0x1]
      %v1577 = vperm.slane %v1575, 0
      %v1579 = vadd.f32 %v1559, %v1577
      %v1580 = vadd.f32 %v1560, %v1577
      %v1581 = vadd.f32 %v1561, %v1577
      %v1582 = vadd.f32 %v1562, %v1577
      %v1583 = vadd.f32 %v1563, %v1577
      %v1584 = vadd.f32 %v1564, %v1577
      %v1585 = vadd.f32 %v1565, %v1577
      %v1586 = vadd.f32 %v1566, %v1577
      %v1587 = vadd.f32 %v1567, %v1577
      %v1588 = vadd.f32 %v1568, %v1577
      %v1589 = vadd.f32 %v1569, %v1577
      %v1590 = vadd.f32 %v1570, %v1577
      %v1591 = vadd.f32 %v1571, %v1577
      %v1592 = vadd.f32 %v1572, %v1577
      %v1593 = vadd.f32 %v1573, %v1577
      %v1594 = vadd.f32 %v1574, %v1577
      %v1595 = vmax.f32 %v1579, 0.0
      %v1596 = vmax.f32 %v1580, 0.0
      %v1597 = vmax.f32 %v1581, 0.0
      %v1598 = vmax.f32 %v1582, 0.0
      %v1599 = vmax.f32 %v1583, 0.0
      %v1600 = vmax.f32 %v1584, 0.0
      %v1601 = vmax.f32 %v1585, 0.0
      %v1602 = vmax.f32 %v1586, 0.0
      %v1603 = vmax.f32 %v1587, 0.0
      %v1604 = vmax.f32 %v1588, 0.0
      %v1605 = vmax.f32 %v1589, 0.0
      %v1606 = vmax.f32 %v1590, 0.0
      %v1607 = vmax.f32 %v1591, 0.0
      %v1608 = vmax.f32 %v1592, 0.0
      %v1609 = vmax.f32 %v1593, 0.0
      %v1610 = vmax.f32 %v1594, 0.0
      %1611 = vst [vmem:[#allocation4] sm:$0xff] %v1595
      %1612 = vst [vmem:[#allocation4 + $0x8] sm:$0xff] %v1596
      %1613 = vst [vmem:[#allocation4 + $0x10] sm:$0xff] %v1597
      %1614 = vst [vmem:[#allocation4 + $0x18] sm:$0xff] %v1598
      %1615 = vst [vmem:[#allocation4 + $0x20] sm:$0xff] %v1599
      %1616 = vst [vmem:[#allocation4 + $0x28] sm:$0xff] %v1600
      %1617 = vst [vmem:[#allocation4 + $0x30] sm:$0xff] %v1601
      %1618 = vst [vmem:[#allocation4 + $0x38] sm:$0xff] %v1602
      %1619 = vst [vmem:[#allocation4 + $0x40] sm:$0xff] %v1603
      %1620 = vst [vmem:[#allocation4 + $0x48] sm:$0xff] %v1604
      %1621 = vst [vmem:[#allocation4 + $0x50] sm:$0xff] %v1605
      %1622 = vst [vmem:[#allocation4 + $0x58] sm:$0xff] %v1606
      %1623 = vst [vmem:[#allocation4 + $0x60] sm:$0xff] %v1607
      %1624 = vst [vmem:[#allocation4 + $0x68] sm:$0xff] %v1608
      %1625 = vst [vmem:[#allocation4 + $0x70] sm:$0xff] %v1609
      %1626 = vst [vmem:[#allocation4 + $0x78] sm:$0xff] %v1610
      %s1627 = scalar_lea.vmem [#allocation2], 256
      %v1628 = vld [vmem:[%s1627 + $0x7] sm:$0xff]
      %v1629 = vld [vmem:[%s1627 + $0xf] sm:$0xff]
      %v1630 = vld [vmem:[%s1627 + $0x27] sm:$0xff]
      %v1631 = vld [vmem:[%s1627 + $0x2f] sm:$0xff]
      %v1632 = vld [vmem:[%s1627 + $0x47] sm:$0xff]
      %v1633 = vld [vmem:[%s1627 + $0x4f] sm:$0xff]
      %v1634 = vld [vmem:[%s1627 + $0x67] sm:$0xff]
      %v1635 = vld [vmem:[%s1627 + $0x6f] sm:$0xff]
      %v1636 = vld [vmem:[%s1627 + $0x87] sm:$0xff]
      %v1637 = vld [vmem:[%s1627 + $0x8f] sm:$0xff]
      %v1638 = vld [vmem:[%s1627 + $0xa7] sm:$0xff]
      %v1639 = vld [vmem:[%s1627 + $0xaf] sm:$0xff]
      %v1640 = vld [vmem:[%s1627 + $0xc7] sm:$0xff]
      %v1641 = vld [vmem:[%s1627 + $0xcf] sm:$0xff]
      %v1642 = vld [vmem:[%s1627 + $0xe7] sm:$0xff]
      %v1643 = vld [vmem:[%s1627 + $0xef] sm:$0xff]
      %v1644 = vld [vmem:[%s3] sm:$0x1]
      %v1645 = vperm.slane %v1644, 0
      %v1646 = vmul.f32 %v1628, %v1645
      %v1647 = vmul.f32 %v1629, %v1645
      %v1648 = vmul.f32 %v1630, %v1645
      %v1649 = vmul.f32 %v1631, %v1645
      %v1650 = vmul.f32 %v1632, %v1645
      %v1651 = vmul.f32 %v1633, %v1645
      %v1652 = vmul.f32 %v1634, %v1645
      %v1653 = vmul.f32 %v1635, %v1645
      %v1654 = vmul.f32 %v1636, %v1645
      %v1655 = vmul.f32 %v1637, %v1645
      %v1656 = vmul.f32 %v1638, %v1645
      %v1657 = vmul.f32 %v1639, %v1645
      %v1658 = vmul.f32 %v1640, %v1645
      %v1659 = vmul.f32 %v1641, %v1645
      %v1660 = vmul.f32 %v1642, %v1645
      %v1661 = vmul.f32 %v1643, %v1645
      %v1662 = vadd.f32 %v1646, 0.0
      %v1663 = vadd.f32 %v1647, 0.0
      %v1664 = vadd.f32 %v1648, 0.0
      %v1665 = vadd.f32 %v1649, 0.0
      %v1666 = vadd.f32 %v1650, 0.0
      %v1667 = vadd.f32 %v1651, 0.0
      %v1668 = vadd.f32 %v1652, 0.0
      %v1669 = vadd.f32 %v1653, 0.0
      %v1670 = vadd.f32 %v1654, 0.0
      %v1671 = vadd.f32 %v1655, 0.0
      %v1672 = vadd.f32 %v1656, 0.0
      %v1673 = vadd.f32 %v1657, 0.0
      %v1674 = vadd.f32 %v1658, 0.0
      %v1675 = vadd.f32 %v1659, 0.0
      %v1676 = vadd.f32 %v1660, 0.0
      %v1677 = vadd.f32 %v1661, 0.0
      %v1678 = vld [vmem:[%s1627 + $0x8] sm:$0xff]
      %v1679 = vld [vmem:[%s1627 + $0x10] sm:$0xff]
      %v1680 = vld [vmem:[%s1627 + $0x28] sm:$0xff]
      %v1681 = vld [vmem:[%s1627 + $0x30] sm:$0xff]
      %v1682 = vld [vmem:[%s1627 + $0x48] sm:$0xff]
      %v1683 = vld [vmem:[%s1627 + $0x50] sm:$0xff]
      %v1684 = vld [vmem:[%s1627 + $0x68] sm:$0xff]
      %v1685 = vld [vmem:[%s1627 + $0x70] sm:$0xff]
      %v1686 = vld [vmem:[%s1627 + $0x88] sm:$0xff]
      %v1687 = vld [vmem:[%s1627 + $0x90] sm:$0xff]
      %v1688 = vld [vmem:[%s1627 + $0xa8] sm:$0xff]
      %v1689 = vld [vmem:[%s1627 + $0xb0] sm:$0xff]
      %v1690 = vld [vmem:[%s1627 + $0xc8] sm:$0xff]
      %v1691 = vld [vmem:[%s1627 + $0xd0] sm:$0xff]
      %v1692 = vld [vmem:[%s1627 + $0xe8] sm:$0xff]
      %v1693 = vld [vmem:[%s1627 + $0xf0] sm:$0xff]
      %v1694 = vld [vmem:[%s3 + $0x1] sm:$0x1]
      %v1695 = vperm.slane %v1694, 0
      %v1696 = vmul.f32 %v1678, %v1695
      %v1697 = vmul.f32 %v1679, %v1695
      %v1698 = vmul.f32 %v1680, %v1695
      %v1699 = vmul.f32 %v1681, %v1695
      %v1700 = vmul.f32 %v1682, %v1695
      %v1701 = vmul.f32 %v1683, %v1695
      %v1702 = vmul.f32 %v1684, %v1695
      %v1703 = vmul.f32 %v1685, %v1695
      %v1704 = vmul.f32 %v1686, %v1695
      %v1705 = vmul.f32 %v1687, %v1695
      %v1706 = vmul.f32 %v1688, %v1695
      %v1707 = vmul.f32 %v1689, %v1695
      %v1708 = vmul.f32 %v1690, %v1695
      %v1709 = vmul.f32 %v1691, %v1695
      %v1710 = vmul.f32 %v1692, %v1695
      %v1711 = vmul.f32 %v1693, %v1695
      %v1712 = vadd.f32 %v1662, %v1696
      %v1713 = vadd.f32 %v1663, %v1697
      %v1714 = vadd.f32 %v1664, %v1698
      %v1715 = vadd.f32 %v1665, %v1699
      %v1716 = vadd.f32 %v1666, %v1700
      %v1717 = vadd.f32 %v1667, %v1701
      %v1718 = vadd.f32 %v1668, %v1702
      %v1719 = vadd.f32 %v1669, %v1703
      %v1720 = vadd.f32 %v1670, %v1704
      %v1721 = vadd.f32 %v1671, %v1705
      %v1722 = vadd.f32 %v1672, %v1706
      %v1723 = vadd.f32 %v1673, %v1707
      %v1724 = vadd.f32 %v1674, %v1708
      %v1725 = vadd.f32 %v1675, %v1709
      %v1726 = vadd.f32 %v1676, %v1710
      %v1727 = vadd.f32 %v1677, %v1711
      %v1728 = vld [vmem:[%s1627 + $0x9] sm:$0xff]
      %v1729 = vld [vmem:[%s1627 + $0x11] sm:$0xff]
      %v1730 = vld [vmem:[%s1627 + $0x29] sm:$0xff]
      %v1731 = vld [vmem:[%s1627 + $0x31] sm:$0xff]
      %v1732 = vld [vmem:[%s1627 + $0x49] sm:$0xff]
      %v1733 = vld [vmem:[%s1627 + $0x51] sm:$0xff]
      %v1734 = vld [vmem:[%s1627 + $0x69] sm:$0xff]
      %v1735 = vld [vmem:[%s1627 + $0x71] sm:$0xff]
      %v1736 = vld [vmem:[%s1627 + $0x89] sm:$0xff]
      %v1737 = vld [vmem:[%s1627 + $0x91] sm:$0xff]
      %v1738 = vld [vmem:[%s1627 + $0xa9] sm:$0xff]
      %v1739 = vld [vmem:[%s1627 + $0xb1] sm:$0xff]
      %v1740 = vld [vmem:[%s1627 + $0xc9] sm:$0xff]
      %v1741 = vld [vmem:[%s1627 + $0xd1] sm:$0xff]
      %v1742 = vld [vmem:[%s1627 + $0xe9] sm:$0xff]
      %v1743 = vld [vmem:[%s1627 + $0xf1] sm:$0xff]
      %v1744 = vld [vmem:[%s3 + $0x2] sm:$0x1]
      %v1745 = vperm.slane %v1744, 0
      %v1746 = vmul.f32 %v1728, %v1745
      %v1747 = vmul.f32 %v1729, %v1745
      %v1748 = vmul.f32 %v1730, %v1745
      %v1749 = vmul.f32 %v1731, %v1745
      %v1750 = vmul.f32 %v1732, %v1745
      %v1751 = vmul.f32 %v1733, %v1745
      %v1752 = vmul.f32 %v1734, %v1745
      %v1753 = vmul.f32 %v1735, %v1745
      %v1754 = vmul.f32 %v1736, %v1745
      %v1755 = vmul.f32 %v1737, %v1745
      %v1756 = vmul.f32 %v1738, %v1745
      %v1757 = vmul.f32 %v1739, %v1745
      %v1758 = vmul.f32 %v1740, %v1745
      %v1759 = vmul.f32 %v1741, %v1745
      %v1760 = vmul.f32 %v1742, %v1745
      %v1761 = vmul.f32 %v1743, %v1745
      %v1762 = vadd.f32 %v1712, %v1746
      %v1763 = vadd.f32 %v1713, %v1747
      %v1764 = vadd.f32 %v1714, %v1748
      %v1765 = vadd.f32 %v1715, %v1749
      %v1766 = vadd.f32 %v1716, %v1750
      %v1767 = vadd.f32 %v1717, %v1751
      %v1768 = vadd.f32 %v1718, %v1752
      %v1769 = vadd.f32 %v1719, %v1753
      %v1770 = vadd.f32 %v1720, %v1754
      %v1771 = vadd.f32 %v1721, %v1755
      %v1772 = vadd.f32 %v1722, %v1756
      %v1773 = vadd.f32 %v1723, %v1757
      %v1774 = vadd.f32 %v1724, %v1758
      %v1775 = vadd.f32 %v1725, %v1759
      %v1776 = vadd.f32 %v1726, %v1760
      %v1777 = vadd.f32 %v1727, %v1761
      %s1778 = scalar_lea.vmem [#allocation2], 288
      %v1779 = vld [vmem:[%s1778 + $0x7] sm:$0xff]
      %v1780 = vld [vmem:[%s1778 + $0xf] sm:$0xff]
      %v1781 = vld [vmem:[%s1778 + $0x27] sm:$0xff]
      %v1782 = vld [vmem:[%s1778 + $0x2f] sm:$0xff]
      %v1783 = vld [vmem:[%s1778 + $0x47] sm:$0xff]
      %v1784 = vld [vmem:[%s1778 + $0x4f] sm:$0xff]
      %v1785 = vld [vmem:[%s1778 + $0x67] sm:$0xff]
      %v1786 = vld [vmem:[%s1778 + $0x6f] sm:$0xff]
      %v1787 = vld [vmem:[%s1778 + $0x87] sm:$0xff]
      %v1788 = vld [vmem:[%s1778 + $0x8f] sm:$0xff]
      %v1789 = vld [vmem:[%s1778 + $0xa7] sm:$0xff]
      %v1790 = vld [vmem:[%s1778 + $0xaf] sm:$0xff]
      %v1791 = vld [vmem:[%s1778 + $0xc7] sm:$0xff]
      %v1792 = vld [vmem:[%s1778 + $0xcf] sm:$0xff]
      %v1793 = vld [vmem:[%s1778 + $0xe7] sm:$0xff]
      %v1794 = vld [vmem:[%s1778 + $0xef] sm:$0xff]
      %v1795 = vld [vmem:[%s3 + $0x3] sm:$0x1]
      %v1796 = vperm.slane %v1795, 0
      %v1797 = vmul.f32 %v1779, %v1796
      %v1798 = vmul.f32 %v1780, %v1796
      %v1799 = vmul.f32 %v1781, %v1796
      %v1800 = vmul.f32 %v1782, %v1796
      %v1801 = vmul.f32 %v1783, %v1796
      %v1802 = vmul.f32 %v1784, %v1796
      %v1803 = vmul.f32 %v1785, %v1796
      %v1804 = vmul.f32 %v1786, %v1796
      %v1805 = vmul.f32 %v1787, %v1796
      %v1806 = vmul.f32 %v1788, %v1796
      %v1807 = vmul.f32 %v1789, %v1796
      %v1808 = vmul.f32 %v1790, %v1796
      %v1809 = vmul.f32 %v1791, %v1796
      %v1810 = vmul.f32 %v1792, %v1796
      %v1811 = vmul.f32 %v1793, %v1796
      %v1812 = vmul.f32 %v1794, %v1796
      %v1813 = vadd.f32 %v1762, %v1797
      %v1814 = vadd.f32 %v1763, %v1798
      %v1815 = vadd.f32 %v1764, %v1799
      %v1816 = vadd.f32 %v1765, %v1800
      %v1817 = vadd.f32 %v1766, %v1801
      %v1818 = vadd.f32 %v1767, %v1802
      %v1819 = vadd.f32 %v1768, %v1803
      %v1820 = vadd.f32 %v1769, %v1804
      %v1821 = vadd.f32 %v1770, %v1805
      %v1822 = vadd.f32 %v1771, %v1806
      %v1823 = vadd.f32 %v1772, %v1807
      %v1824 = vadd.f32 %v1773, %v1808
      %v1825 = vadd.f32 %v1774, %v1809
      %v1826 = vadd.f32 %v1775, %v1810
      %v1827 = vadd.f32 %v1776, %v1811
      %v1828 = vadd.f32 %v1777, %v1812
      %v1829 = vld [vmem:[%s1778 + $0x8] sm:$0xff]
      %v1830 = vld [vmem:[%s1778 + $0x10] sm:$0xff]
      %v1831 = vld [vmem:[%s1778 + $0x28] sm:$0xff]
      %v1832 = vld [vmem:[%s1778 + $0x30] sm:$0xff]
      %v1833 = vld [vmem:[%s1778 + $0x48] sm:$0xff]
      %v1834 = vld [vmem:[%s1778 + $0x50] sm:$0xff]
      %v1835 = vld [vmem:[%s1778 + $0x68] sm:$0xff]
      %v1836 = vld [vmem:[%s1778 + $0x70] sm:$0xff]
      %v1837 = vld [vmem:[%s1778 + $0x88] sm:$0xff]
      %v1838 = vld [vmem:[%s1778 + $0x90] sm:$0xff]
      %v1839 = vld [vmem:[%s1778 + $0xa8] sm:$0xff]
      %v1840 = vld [vmem:[%s1778 + $0xb0] sm:$0xff]
      %v1841 = vld [vmem:[%s1778 + $0xc8] sm:$0xff]
      %v1842 = vld [vmem:[%s1778 + $0xd0] sm:$0xff]
      %v1843 = vld [vmem:[%s1778 + $0xe8] sm:$0xff]
      %v1844 = vld [vmem:[%s1778 + $0xf0] sm:$0xff]
      %v1845 = vld [vmem:[%s3 + $0x4] sm:$0x1]
      %v1846 = vperm.slane %v1845, 0
      %v1847 = vmul.f32 %v1829, %v1846
      %v1848 = vmul.f32 %v1830, %v1846
      %v1849 = vmul.f32 %v1831, %v1846
      %v1850 = vmul.f32 %v1832, %v1846
      %v1851 = vmul.f32 %v1833, %v1846
      %v1852 = vmul.f32 %v1834, %v1846
      %v1853 = vmul.f32 %v1835, %v1846
      %v1854 = vmul.f32 %v1836, %v1846
      %v1855 = vmul.f32 %v1837, %v1846
      %v1856 = vmul.f32 %v1838, %v1846
      %v1857 = vmul.f32 %v1839, %v1846
      %v1858 = vmul.f32 %v1840, %v1846
      %v1859 = vmul.f32 %v1841, %v1846
      %v1860 = vmul.f32 %v1842, %v1846
      %v1861 = vmul.f32 %v1843, %v1846
      %v1862 = vmul.f32 %v1844, %v1846
      %v1863 = vadd.f32 %v1813, %v1847
      %v1864 = vadd.f32 %v1814, %v1848
      %v1865 = vadd.f32 %v1815, %v1849
      %v1866 = vadd.f32 %v1816, %v1850
      %v1867 = vadd.f32 %v1817, %v1851
      %v1868 = vadd.f32 %v1818, %v1852
      %v1869 = vadd.f32 %v1819, %v1853
      %v1870 = vadd.f32 %v1820, %v1854
      %v1871 = vadd.f32 %v1821, %v1855
      %v1872 = vadd.f32 %v1822, %v1856
      %v1873 = vadd.f32 %v1823, %v1857
      %v1874 = vadd.f32 %v1824, %v1858
      %v1875 = vadd.f32 %v1825, %v1859
      %v1876 = vadd.f32 %v1826, %v1860
      %v1877 = vadd.f32 %v1827, %v1861
      %v1878 = vadd.f32 %v1828, %v1862
      %v1879 = vld [vmem:[%s1778 + $0x9] sm:$0xff]
      %v1880 = vld [vmem:[%s1778 + $0x11] sm:$0xff]
      %v1881 = vld [vmem:[%s1778 + $0x29] sm:$0xff]
      %v1882 = vld [vmem:[%s1778 + $0x31] sm:$0xff]
      %v1883 = vld [vmem:[%s1778 + $0x49] sm:$0xff]
      %v1884 = vld [vmem:[%s1778 + $0x51] sm:$0xff]
      %v1885 = vld [vmem:[%s1778 + $0x69] sm:$0xff]
      %v1886 = vld [vmem:[%s1778 + $0x71] sm:$0xff]
      %v1887 = vld [vmem:[%s1778 + $0x89] sm:$0xff]
      %v1888 = vld [vmem:[%s1778 + $0x91] sm:$0xff]
      %v1889 = vld [vmem:[%s1778 + $0xa9] sm:$0xff]
      %v1890 = vld [vmem:[%s1778 + $0xb1] sm:$0xff]
      %v1891 = vld [vmem:[%s1778 + $0xc9] sm:$0xff]
      %v1892 = vld [vmem:[%s1778 + $0xd1] sm:$0xff]
      %v1893 = vld [vmem:[%s1778 + $0xe9] sm:$0xff]
      %v1894 = vld [vmem:[%s1778 + $0xf1] sm:$0xff]
      %v1895 = vld [vmem:[%s3 + $0x5] sm:$0x1]
      %v1896 = vperm.slane %v1895, 0
      %v1897 = vmul.f32 %v1879, %v1896
      %v1898 = vmul.f32 %v1880, %v1896
      %v1899 = vmul.f32 %v1881, %v1896
      %v1900 = vmul.f32 %v1882, %v1896
      %v1901 = vmul.f32 %v1883, %v1896
      %v1902 = vmul.f32 %v1884, %v1896
      %v1903 = vmul.f32 %v1885, %v1896
      %v1904 = vmul.f32 %v1886, %v1896
      %v1905 = vmul.f32 %v1887, %v1896
      %v1906 = vmul.f32 %v1888, %v1896
      %v1907 = vmul.f32 %v1889, %v1896
      %v1908 = vmul.f32 %v1890, %v1896
      %v1909 = vmul.f32 %v1891, %v1896
      %v1910 = vmul.f32 %v1892, %v1896
      %v1911 = vmul.f32 %v1893, %v1896
      %v1912 = vmul.f32 %v1894, %v1896
      %v1913 = vadd.f32 %v1863, %v1897
      %v1914 = vadd.f32 %v1864, %v1898
      %v1915 = vadd.f32 %v1865, %v1899
      %v1916 = vadd.f32 %v1866, %v1900
      %v1917 = vadd.f32 %v1867, %v1901
      %v1918 = vadd.f32 %v1868, %v1902
      %v1919 = vadd.f32 %v1869, %v1903
      %v1920 = vadd.f32 %v1870, %v1904
      %v1921 = vadd.f32 %v1871, %v1905
      %v1922 = vadd.f32 %v1872, %v1906
      %v1923 = vadd.f32 %v1873, %v1907
      %v1924 = vadd.f32 %v1874, %v1908
      %v1925 = vadd.f32 %v1875, %v1909
      %v1926 = vadd.f32 %v1876, %v1910
      %v1927 = vadd.f32 %v1877, %v1911
      %v1928 = vadd.f32 %v1878, %v1912
      %s1929 = scalar_lea.vmem [#allocation2], 320
      %v1930 = vld [vmem:[%s1929 + $0x7] sm:$0xff]
      %v1931 = vld [vmem:[%s1929 + $0xf] sm:$0xff]
      %v1932 = vld [vmem:[%s1929 + $0x27] sm:$0xff]
      %v1933 = vld [vmem:[%s1929 + $0x2f] sm:$0xff]
      %v1934 = vld [vmem:[%s1929 + $0x47] sm:$0xff]
      %v1935 = vld [vmem:[%s1929 + $0x4f] sm:$0xff]
      %v1936 = vld [vmem:[%s1929 + $0x67] sm:$0xff]
      %v1937 = vld [vmem:[%s1929 + $0x6f] sm:$0xff]
      %v1938 = vld [vmem:[%s1929 + $0x87] sm:$0xff]
      %v1939 = vld [vmem:[%s1929 + $0x8f] sm:$0xff]
      %v1940 = vld [vmem:[%s1929 + $0xa7] sm:$0xff]
      %v1941 = vld [vmem:[%s1929 + $0xaf] sm:$0xff]
      %v1942 = vld [vmem:[%s1929 + $0xc7] sm:$0xff]
      %v1943 = vld [vmem:[%s1929 + $0xcf] sm:$0xff]
      %v1944 = vld [vmem:[%s1929 + $0xe7] sm:$0xff]
      %v1945 = vld [vmem:[%s1929 + $0xef] sm:$0xff]
      %v1946 = vld [vmem:[%s3 + $0x6] sm:$0x1]
      %v1947 = vperm.slane %v1946, 0
      %v1948 = vmul.f32 %v1930, %v1947
      %v1949 = vmul.f32 %v1931, %v1947
      %v1950 = vmul.f32 %v1932, %v1947
      %v1951 = vmul.f32 %v1933, %v1947
      %v1952 = vmul.f32 %v1934, %v1947
      %v1953 = vmul.f32 %v1935, %v1947
      %v1954 = vmul.f32 %v1936, %v1947
      %v1955 = vmul.f32 %v1937, %v1947
      %v1956 = vmul.f32 %v1938, %v1947
      %v1957 = vmul.f32 %v1939, %v1947
      %v1958 = vmul.f32 %v1940, %v1947
      %v1959 = vmul.f32 %v1941, %v1947
      %v1960 = vmul.f32 %v1942, %v1947
      %v1961 = vmul.f32 %v1943, %v1947
      %v1962 = vmul.f32 %v1944, %v1947
      %v1963 = vmul.f32 %v1945, %v1947
      %v1964 = vadd.f32 %v1913, %v1948
      %v1965 = vadd.f32 %v1914, %v1949
      %v1966 = vadd.f32 %v1915, %v1950
      %v1967 = vadd.f32 %v1916, %v1951
      %v1968 = vadd.f32 %v1917, %v1952
      %v1969 = vadd.f32 %v1918, %v1953
      %v1970 = vadd.f32 %v1919, %v1954
      %v1971 = vadd.f32 %v1920, %v1955
      %v1972 = vadd.f32 %v1921, %v1956
      %v1973 = vadd.f32 %v1922, %v1957
      %v1974 = vadd.f32 %v1923, %v1958
      %v1975 = vadd.f32 %v1924, %v1959
      %v1976 = vadd.f32 %v1925, %v1960
      %v1977 = vadd.f32 %v1926, %v1961
      %v1978 = vadd.f32 %v1927, %v1962
      %v1979 = vadd.f32 %v1928, %v1963
      %v1980 = vld [vmem:[%s1929 + $0x8] sm:$0xff]
      %v1981 = vld [vmem:[%s1929 + $0x10] sm:$0xff]
      %v1982 = vld [vmem:[%s1929 + $0x28] sm:$0xff]
      %v1983 = vld [vmem:[%s1929 + $0x30] sm:$0xff]
      %v1984 = vld [vmem:[%s1929 + $0x48] sm:$0xff]
      %v1985 = vld [vmem:[%s1929 + $0x50] sm:$0xff]
      %v1986 = vld [vmem:[%s1929 + $0x68] sm:$0xff]
      %v1987 = vld [vmem:[%s1929 + $0x70] sm:$0xff]
      %v1988 = vld [vmem:[%s1929 + $0x88] sm:$0xff]
      %v1989 = vld [vmem:[%s1929 + $0x90] sm:$0xff]
      %v1990 = vld [vmem:[%s1929 + $0xa8] sm:$0xff]
      %v1991 = vld [vmem:[%s1929 + $0xb0] sm:$0xff]
      %v1992 = vld [vmem:[%s1929 + $0xc8] sm:$0xff]
      %v1993 = vld [vmem:[%s1929 + $0xd0] sm:$0xff]
      %v1994 = vld [vmem:[%s1929 + $0xe8] sm:$0xff]
      %v1995 = vld [vmem:[%s1929 + $0xf0] sm:$0xff]
      %v1996 = vld [vmem:[%s3 + $0x7] sm:$0x1]
      %v1997 = vperm.slane %v1996, 0
      %v1998 = vmul.f32 %v1980, %v1997
      %v1999 = vmul.f32 %v1981, %v1997
      %v2000 = vmul.f32 %v1982, %v1997
      %v2001 = vmul.f32 %v1983, %v1997
      %v2002 = vmul.f32 %v1984, %v1997
      %v2003 = vmul.f32 %v1985, %v1997
      %v2004 = vmul.f32 %v1986, %v1997
      %v2005 = vmul.f32 %v1987, %v1997
      %v2006 = vmul.f32 %v1988, %v1997
      %v2007 = vmul.f32 %v1989, %v1997
      %v2008 = vmul.f32 %v1990, %v1997
      %v2009 = vmul.f32 %v1991, %v1997
      %v2010 = vmul.f32 %v1992, %v1997
      %v2011 = vmul.f32 %v1993, %v1997
      %v2012 = vmul.f32 %v1994, %v1997
      %v2013 = vmul.f32 %v1995, %v1997
      %v2014 = vadd.f32 %v1964, %v1998
      %v2015 = vadd.f32 %v1965, %v1999
      %v2016 = vadd.f32 %v1966, %v2000
      %v2017 = vadd.f32 %v1967, %v2001
      %v2018 = vadd.f32 %v1968, %v2002
      %v2019 = vadd.f32 %v1969, %v2003
      %v2020 = vadd.f32 %v1970, %v2004
      %v2021 = vadd.f32 %v1971, %v2005
      %v2022 = vadd.f32 %v1972, %v2006
      %v2023 = vadd.f32 %v1973, %v2007
      %v2024 = vadd.f32 %v1974, %v2008
      %v2025 = vadd.f32 %v1975, %v2009
      %v2026 = vadd.f32 %v1976, %v2010
      %v2027 = vadd.f32 %v1977, %v2011
      %v2028 = vadd.f32 %v1978, %v2012
      %v2029 = vadd.f32 %v1979, %v2013
      %v2030 = vld [vmem:[%s1929 + $0x9] sm:$0xff]
      %v2031 = vld [vmem:[%s1929 + $0x11] sm:$0xff]
      %v2032 = vld [vmem:[%s1929 + $0x29] sm:$0xff]
      %v2033 = vld [vmem:[%s1929 + $0x31] sm:$0xff]
      %v2034 = vld [vmem:[%s1929 + $0x49] sm:$0xff]
      %v2035 = vld [vmem:[%s1929 + $0x51] sm:$0xff]
      %v2036 = vld [vmem:[%s1929 + $0x69] sm:$0xff]
      %v2037 = vld [vmem:[%s1929 + $0x71] sm:$0xff]
      %v2038 = vld [vmem:[%s1929 + $0x89] sm:$0xff]
      %v2039 = vld [vmem:[%s1929 + $0x91] sm:$0xff]
      %v2040 = vld [vmem:[%s1929 + $0xa9] sm:$0xff]
      %v2041 = vld [vmem:[%s1929 + $0xb1] sm:$0xff]
      %v2042 = vld [vmem:[%s1929 + $0xc9] sm:$0xff]
      %v2043 = vld [vmem:[%s1929 + $0xd1] sm:$0xff]
      %v2044 = vld [vmem:[%s1929 + $0xe9] sm:$0xff]
      %v2045 = vld [vmem:[%s1929 + $0xf1] sm:$0xff]
      %v2046 = vld [vmem:[%s3 + $0x8] sm:$0x1]
      %v2047 = vperm.slane %v2046, 0
      %v2048 = vmul.f32 %v2030, %v2047
      %v2049 = vmul.f32 %v2031, %v2047
      %v2050 = vmul.f32 %v2032, %v2047
      %v2051 = vmul.f32 %v2033, %v2047
      %v2052 = vmul.f32 %v2034, %v2047
      %v2053 = vmul.f32 %v2035, %v2047
      %v2054 = vmul.f32 %v2036, %v2047
      %v2055 = vmul.f32 %v2037, %v2047
      %v2056 = vmul.f32 %v2038, %v2047
      %v2057 = vmul.f32 %v2039, %v2047
      %v2058 = vmul.f32 %v2040, %v2047
      %v2059 = vmul.f32 %v2041, %v2047
      %v2060 = vmul.f32 %v2042, %v2047
      %v2061 = vmul.f32 %v2043, %v2047
      %v2062 = vmul.f32 %v2044, %v2047
      %v2063 = vmul.f32 %v2045, %v2047
      %v2064 = vadd.f32 %v2014, %v2048
      %v2065 = vadd.f32 %v2015, %v2049
      %v2066 = vadd.f32 %v2016, %v2050
      %v2067 = vadd.f32 %v2017, %v2051
      %v2068 = vadd.f32 %v2018, %v2052
      %v2069 = vadd.f32 %v2019, %v2053
      %v2070 = vadd.f32 %v2020, %v2054
      %v2071 = vadd.f32 %v2021, %v2055
      %v2072 = vadd.f32 %v2022, %v2056
      %v2073 = vadd.f32 %v2023, %v2057
      %v2074 = vadd.f32 %v2024, %v2058
      %v2075 = vadd.f32 %v2025, %v2059
      %v2076 = vadd.f32 %v2026, %v2060
      %v2077 = vadd.f32 %v2027, %v2061
      %v2078 = vadd.f32 %v2028, %v2062
      %v2079 = vadd.f32 %v2029, %v2063
      %v2080 = vld [vmem:[%s4] sm:$0x1]
      %v2082 = vperm.slane %v2080, 0
      %v2084 = vadd.f32 %v2064, %v2082
      %v2085 = vadd.f32 %v2065, %v2082
      %v2086 = vadd.f32 %v2066, %v2082
      %v2087 = vadd.f32 %v2067, %v2082
      %v2088 = vadd.f32 %v2068, %v2082
      %v2089 = vadd.f32 %v2069, %v2082
      %v2090 = vadd.f32 %v2070, %v2082
      %v2091 = vadd.f32 %v2071, %v2082
      %v2092 = vadd.f32 %v2072, %v2082
      %v2093 = vadd.f32 %v2073, %v2082
      %v2094 = vadd.f32 %v2074, %v2082
      %v2095 = vadd.f32 %v2075, %v2082
      %v2096 = vadd.f32 %v2076, %v2082
      %v2097 = vadd.f32 %v2077, %v2082
      %v2098 = vadd.f32 %v2078, %v2082
      %v2099 = vadd.f32 %v2079, %v2082
      %v2100 = vmax.f32 %v2084, 0.0
      %v2101 = vmax.f32 %v2085, 0.0
      %v2102 = vmax.f32 %v2086, 0.0
      %v2103 = vmax.f32 %v2087, 0.0
      %v2104 = vmax.f32 %v2088, 0.0
      %v2105 = vmax.f32 %v2089, 0.0
      %v2106 = vmax.f32 %v2090, 0.0
      %v2107 = vmax.f32 %v2091, 0.0
      %v2108 = vmax.f32 %v2092, 0.0
      %v2109 = vmax.f32 %v2093, 0.0
      %v2110 = vmax.f32 %v2094, 0.0
      %v2111 = vmax.f32 %v2095, 0.0
      %v2112 = vmax.f32 %v2096, 0.0
      %v2113 = vmax.f32 %v2097, 0.0
      %v2114 = vmax.f32 %v2098, 0.0
      %v2115 = vmax.f32 %v2099, 0.0
      %2116 = vst [vmem:[#allocation4 + $0x80] sm:$0xff] %v2100
      %2117 = vst [vmem:[#allocation4 + $0x88] sm:$0xff] %v2101
      %2118 = vst [vmem:[#allocation4 + $0x90] sm:$0xff] %v2102
      %2119 = vst [vmem:[#allocation4 + $0x98] sm:$0xff] %v2103
      %2120 = vst [vmem:[#allocation4 + $0xa0] sm:$0xff] %v2104
      %2121 = vst [vmem:[#allocation4 + $0xa8] sm:$0xff] %v2105
      %2122 = vst [vmem:[#allocation4 + $0xb0] sm:$0xff] %v2106
      %2123 = vst [vmem:[#allocation4 + $0xb8] sm:$0xff] %v2107
      %2124 = vst [vmem:[#allocation4 + $0xc0] sm:$0xff] %v2108
      %2125 = vst [vmem:[#allocation4 + $0xc8] sm:$0xff] %v2109
      %2126 = vst [vmem:[#allocation4 + $0xd0] sm:$0xff] %v2110
      %2127 = vst [vmem:[#allocation4 + $0xd8] sm:$0xff] %v2111
      %2128 = vst [vmem:[#allocation4 + $0xe0] sm:$0xff] %v2112
      %2129 = vst [vmem:[#allocation4 + $0xe8] sm:$0xff] %v2113
      %2130 = vst [vmem:[#allocation4 + $0xf0] sm:$0xff] %v2114
      %2131 = vst [vmem:[#allocation4 + $0xf8] sm:$0xff] %v2115
      %v2132 = vld [vmem:[#allocation4] sm:$0xff]
      %v2133 = vld [vmem:[#allocation4 + $0x8] sm:$0xff]
      %v2134 = vld [vmem:[#allocation4 + $0x10] sm:$0xff]
      %v2135 = vld [vmem:[#allocation4 + $0x18] sm:$0xff]
      %v2136 = vld [vmem:[#allocation4 + $0x20] sm:$0xff]
      %v2137 = vld [vmem:[#allocation4 + $0x28] sm:$0xff]
      %v2138 = vld [vmem:[#allocation4 + $0x30] sm:$0xff]
      %v2139 = vld [vmem:[#allocation4 + $0x38] sm:$0xff]
      %v2140 = vld [vmem:[#allocation4 + $0x40] sm:$0xff]
      %v2141 = vld [vmem:[#allocation4 + $0x48] sm:$0xff]
      %v2142 = vld [vmem:[#allocation4 + $0x50] sm:$0xff]
      %v2143 = vld [vmem:[#allocation4 + $0x58] sm:$0xff]
      %v2144 = vld [vmem:[#allocation4 + $0x60] sm:$0xff]
      %v2145 = vld [vmem:[#allocation4 + $0x68] sm:$0xff]
      %v2146 = vld [vmem:[#allocation4 + $0x70] sm:$0xff]
      %v2147 = vld [vmem:[#allocation4 + $0x78] sm:$0xff]
      %v2148 = vld [vmem:[#allocation4 + $0x80] sm:$0xff]
      %v2149 = vld [vmem:[#allocation4 + $0x88] sm:$0xff]
      %v2150 = vld [vmem:[#allocation4 + $0x90] sm:$0xff]
      %v2151 = vld [vmem:[#allocation4 + $0x98] sm:$0xff]
      %v2152 = vld [vmem:[#allocation4 + $0xa0] sm:$0xff]
      %v2153 = vld [vmem:[#allocation4 + $0xa8] sm:$0xff]
      %v2154 = vld [vmem:[#allocation4 + $0xb0] sm:$0xff]
      %v2155 = vld [vmem:[#allocation4 + $0xb8] sm:$0xff]
      %v2156 = vld [vmem:[#allocation4 + $0xc0] sm:$0xff]
      %v2157 = vld [vmem:[#allocation4 + $0xc8] sm:$0xff]
      %v2158 = vld [vmem:[#allocation4 + $0xd0] sm:$0xff]
      %v2159 = vld [vmem:[#allocation4 + $0xd8] sm:$0xff]
      %v2160 = vld [vmem:[#allocation4 + $0xe0] sm:$0xff]
      %v2161 = vld [vmem:[#allocation4 + $0xe8] sm:$0xff]
      %v2162 = vld [vmem:[#allocation4 + $0xf0] sm:$0xff]
      %v2163 = vld [vmem:[#allocation4 + $0xf8] sm:$0xff]
      %v2164 = vpack.c.bf16 %v2133, %v2132
      %v2165 = vpack.c.bf16 %v2135, %v2134
      %v2166 = vpack.c.bf16 %v2137, %v2136
      %v2167 = vpack.c.bf16 %v2139, %v2138
      %v2168 = vpack.c.bf16 %v2141, %v2140
      %v2169 = vpack.c.bf16 %v2143, %v2142
      %v2170 = vpack.c.bf16 %v2145, %v2144
      %v2171 = vpack.c.bf16 %v2147, %v2146
      %v2172 = vpack.c.bf16 %v2149, %v2148
      %v2173 = vpack.c.bf16 %v2151, %v2150
      %v2174 = vpack.c.bf16 %v2153, %v2152
      %v2175 = vpack.c.bf16 %v2155, %v2154
      %v2176 = vpack.c.bf16 %v2157, %v2156
      %v2177 = vpack.c.bf16 %v2159, %v2158
      %v2178 = vpack.c.bf16 %v2161, %v2160
      %v2179 = vpack.c.bf16 %v2163, %v2162
      %v2180 = vld [vmem:[%s5] sm:$0xf]
      %v2181 = vld [vmem:[%s5 + $0x4] sm:$0xf]
      %v2182 = vld [vmem:[%s5 + $0x8] sm:$0xf]
      %v2183 = vld [vmem:[%s5 + $0xc] sm:$0xf]
      %v2184 = vld [vmem:[%s5 + $0x10] sm:$0xf]
      %v2185 = vld [vmem:[%s5 + $0x14] sm:$0xf]
      %v2186 = vld [vmem:[%s5 + $0x18] sm:$0xf]
      %v2187 = vld [vmem:[%s5 + $0x1c] sm:$0xf]
      %v2188 = vld [vmem:[%s5 + $0x20] sm:$0xf]
      %v2189 = vld [vmem:[%s5 + $0x24] sm:$0xf]
      %v2190 = vld [vmem:[%s5 + $0x28] sm:$0xf]
      %v2191 = vld [vmem:[%s5 + $0x2c] sm:$0xf]
      %v2192 = vld [vmem:[%s5 + $0x30] sm:$0xf]
      %v2193 = vld [vmem:[%s5 + $0x34] sm:$0xf]
      %v2194 = vld [vmem:[%s5 + $0x38] sm:$0xf]
      %v2195 = vld [vmem:[%s5 + $0x3c] sm:$0xf]
      %v2196 = vld [vmem:[%s6] sm:$0x1]
      %v2198 = vperm.slane %v2196, 0
      %v2216 = vunpack.c.l.b16 %v2180
      %v2217 = vunpack.c.l.b16 %v2181
      %v2218 = vunpack.c.l.b16 %v2182
      %v2219 = vunpack.c.l.b16 %v2183
      %v2220 = vunpack.c.l.b16 %v2184
      %v2221 = vunpack.c.l.b16 %v2185
      %v2222 = vunpack.c.l.b16 %v2186
      %v2223 = vunpack.c.l.b16 %v2187
      %v2224 = vunpack.c.l.b16 %v2188
      %v2225 = vunpack.c.l.b16 %v2189
      %v2226 = vunpack.c.l.b16 %v2190
      %v2227 = vunpack.c.l.b16 %v2191
      %v2228 = vunpack.c.l.b16 %v2192
      %v2229 = vunpack.c.l.b16 %v2193
      %v2230 = vunpack.c.l.b16 %v2194
      %v2231 = vunpack.c.l.b16 %v2195
      %v2232 = vpack.c.b16 %v2217, %v2216
      %v2233 = vpack.c.b16 %v2219, %v2218
      %v2234 = vpack.c.b16 %v2221, %v2220
      %v2235 = vpack.c.b16 %v2223, %v2222
      %v2236 = vpack.c.b16 %v2225, %v2224
      %v2237 = vpack.c.b16 %v2227, %v2226
      %v2238 = vpack.c.b16 %v2229, %v2228
      %v2239 = vpack.c.b16 %v2231, %v2230
      %2248 = vmatpush.bf16.msra.mxu0 %v2239
      %2249 = vmatpush.bf16.msra.mxu0 %v2238
      %2250 = vmatpush.bf16.msra.mxu0 %v2237
      %2251 = vmatpush.bf16.msra.mxu0 %v2236
      %2252 = vmatpush.bf16.msra.mxu0 %v2235
      %2253 = vmatpush.bf16.msra.mxu0 %v2234
      %2254 = vmatpush.bf16.msra.mxu0 %v2233
      %2255 = vmatpush.bf16.msra.mxu0 %v2232
      %2256 = vmatmul.bf16.gmra.mxu0 %v2164
      %v2257 = vpop.f32.mrf.mxu0
      %v2258 = vadd.f32 %v2198, %v2257
      %v2259 = vpop.f32.mrf.mxu0
      %v2260 = vadd.f32 %v2198, %v2259
      %2261 = vmatmul.bf16.gmra.mxu0 %v2165
      %v2262 = vpop.f32.mrf.mxu0
      %v2263 = vadd.f32 %v2198, %v2262
      %v2264 = vpop.f32.mrf.mxu0
      %v2265 = vadd.f32 %v2198, %v2264
      %2266 = vmatmul.bf16.gmra.mxu0 %v2166
      %v2267 = vpop.f32.mrf.mxu0
      %v2268 = vadd.f32 %v2198, %v2267
      %v2269 = vpop.f32.mrf.mxu0
      %v2270 = vadd.f32 %v2198, %v2269
      %2271 = vmatmul.bf16.gmra.mxu0 %v2167
      %v2272 = vpop.f32.mrf.mxu0
      %v2273 = vadd.f32 %v2198, %v2272
      %v2274 = vpop.f32.mrf.mxu0
      %v2275 = vadd.f32 %v2198, %v2274
      %2276 = vmatmul.bf16.gmra.mxu0 %v2168
      %v2277 = vpop.f32.mrf.mxu0
      %v2278 = vadd.f32 %v2198, %v2277
      %v2279 = vpop.f32.mrf.mxu0
      %v2280 = vadd.f32 %v2198, %v2279
      %2281 = vmatmul.bf16.gmra.mxu0 %v2169
      %v2282 = vpop.f32.mrf.mxu0
      %v2283 = vadd.f32 %v2198, %v2282
      %v2284 = vpop.f32.mrf.mxu0
      %v2285 = vadd.f32 %v2198, %v2284
      %2286 = vmatmul.bf16.gmra.mxu0 %v2170
      %v2287 = vpop.f32.mrf.mxu0
      %v2288 = vadd.f32 %v2198, %v2287
      %v2289 = vpop.f32.mrf.mxu0
      %v2290 = vadd.f32 %v2198, %v2289
      %2291 = vmatmul.bf16.gmra.mxu0 %v2171
      %v2292 = vpop.f32.mrf.mxu0
      %v2293 = vadd.f32 %v2198, %v2292
      %v2294 = vpop.f32.mrf.mxu0
      %v2295 = vadd.f32 %v2198, %v2294
      %2296 = vmatmul.bf16.gmra.mxu0 %v2172
      %v2297 = vpop.f32.mrf.mxu0
      %v2298 = vadd.f32 %v2198, %v2297
      %v2299 = vpop.f32.mrf.mxu0
      %v2300 = vadd.f32 %v2198, %v2299
      %2301 = vmatmul.bf16.gmra.mxu0 %v2173
      %v2302 = vpop.f32.mrf.mxu0
      %v2303 = vadd.f32 %v2198, %v2302
      %v2304 = vpop.f32.mrf.mxu0
      %v2305 = vadd.f32 %v2198, %v2304
      %2306 = vmatmul.bf16.gmra.mxu0 %v2174
      %v2307 = vpop.f32.mrf.mxu0
      %v2308 = vadd.f32 %v2198, %v2307
      %v2309 = vpop.f32.mrf.mxu0
      %v2310 = vadd.f32 %v2198, %v2309
      %2311 = vmatmul.bf16.gmra.mxu0 %v2175
      %v2312 = vpop.f32.mrf.mxu0
      %v2313 = vadd.f32 %v2198, %v2312
      %v2314 = vpop.f32.mrf.mxu0
      %v2315 = vadd.f32 %v2198, %v2314
      %2316 = vmatmul.bf16.gmra.mxu0 %v2176
      %v2317 = vpop.f32.mrf.mxu0
      %v2318 = vadd.f32 %v2198, %v2317
      %v2319 = vpop.f32.mrf.mxu0
      %v2320 = vadd.f32 %v2198, %v2319
      %2321 = vmatmul.bf16.gmra.mxu0 %v2177
      %v2322 = vpop.f32.mrf.mxu0
      %v2323 = vadd.f32 %v2198, %v2322
      %v2324 = vpop.f32.mrf.mxu0
      %v2325 = vadd.f32 %v2198, %v2324
      %2326 = vmatmul.bf16.gmra.mxu0 %v2178
      %v2327 = vpop.f32.mrf.mxu0
      %v2328 = vadd.f32 %v2198, %v2327
      %v2329 = vpop.f32.mrf.mxu0
      %v2330 = vadd.f32 %v2198, %v2329
      %2331 = vmatmul.bf16.gmra.mxu0 %v2179
      %v2332 = vpop.f32.mrf.mxu0
      %v2333 = vadd.f32 %v2198, %v2332
      %v2334 = vpop.f32.mrf.mxu0
      %v2335 = vadd.f32 %v2198, %v2334
      %2336 = vdwg.mxu0
      %2337 = vst [vmem:[#allocation3] sm:$0xff] %v2258
      %2338 = vst [vmem:[#allocation3 + $0x8] sm:$0xff] %v2260
      %2339 = vst [vmem:[#allocation3 + $0x10] sm:$0xff] %v2263
      %2340 = vst [vmem:[#allocation3 + $0x18] sm:$0xff] %v2265
      %2341 = vst [vmem:[#allocation3 + $0x20] sm:$0xff] %v2268
      %2342 = vst [vmem:[#allocation3 + $0x28] sm:$0xff] %v2270
      %2343 = vst [vmem:[#allocation3 + $0x30] sm:$0xff] %v2273
      %2344 = vst [vmem:[#allocation3 + $0x38] sm:$0xff] %v2275
      %2345 = vst [vmem:[#allocation3 + $0x40] sm:$0xff] %v2278
      %2346 = vst [vmem:[#allocation3 + $0x48] sm:$0xff] %v2280
      %2347 = vst [vmem:[#allocation3 + $0x50] sm:$0xff] %v2283
      %2348 = vst [vmem:[#allocation3 + $0x58] sm:$0xff] %v2285
      %2349 = vst [vmem:[#allocation3 + $0x60] sm:$0xff] %v2288
      %2350 = vst [vmem:[#allocation3 + $0x68] sm:$0xff] %v2290
      %2351 = vst [vmem:[#allocation3 + $0x70] sm:$0xff] %v2293
      %2352 = vst [vmem:[#allocation3 + $0x78] sm:$0xff] %v2295
      %2353 = vst [vmem:[#allocation3 + $0x80] sm:$0xff] %v2298
      %2354 = vst [vmem:[#allocation3 + $0x88] sm:$0xff] %v2300
      %2355 = vst [vmem:[#allocation3 + $0x90] sm:$0xff] %v2303
      %2356 = vst [vmem:[#allocation3 + $0x98] sm:$0xff] %v2305
      %2357 = vst [vmem:[#allocation3 + $0xa0] sm:$0xff] %v2308
      %2358 = vst [vmem:[#allocation3 + $0xa8] sm:$0xff] %v2310
      %2359 = vst [vmem:[#allocation3 + $0xb0] sm:$0xff] %v2313
      %2360 = vst [vmem:[#allocation3 + $0xb8] sm:$0xff] %v2315
      %2361 = vst [vmem:[#allocation3 + $0xc0] sm:$0xff] %v2318
      %2362 = vst [vmem:[#allocation3 + $0xc8] sm:$0xff] %v2320
      %2363 = vst [vmem:[#allocation3 + $0xd0] sm:$0xff] %v2323
      %2364 = vst [vmem:[#allocation3 + $0xd8] sm:$0xff] %v2325
      %2365 = vst [vmem:[#allocation3 + $0xe0] sm:$0xff] %v2328
      %2366 = vst [vmem:[#allocation3 + $0xe8] sm:$0xff] %v2330
      %2367 = vst [vmem:[#allocation3 + $0xf0] sm:$0xff] %v2333
      %2368 = vst [vmem:[#allocation3 + $0xf8] sm:$0xff] %v2335
      %v2369 = vld [vmem:[#allocation3] sm:$0xff]
      %v2370 = vld [vmem:[#allocation3 + $0x8] sm:$0xff]
      %v2371 = vld [vmem:[#allocation3 + $0x10] sm:$0xff]
      %v2372 = vld [vmem:[#allocation3 + $0x18] sm:$0xff]
      %v2373 = vld [vmem:[#allocation3 + $0x20] sm:$0xff]
      %v2374 = vld [vmem:[#allocation3 + $0x28] sm:$0xff]
      %v2375 = vld [vmem:[#allocation3 + $0x30] sm:$0xff]
      %v2376 = vld [vmem:[#allocation3 + $0x38] sm:$0xff]
      %v2377 = vld [vmem:[#allocation3 + $0x40] sm:$0xff]
      %v2378 = vld [vmem:[#allocation3 + $0x48] sm:$0xff]
      %v2379 = vld [vmem:[#allocation3 + $0x50] sm:$0xff]
      %v2380 = vld [vmem:[#allocation3 + $0x58] sm:$0xff]
      %v2381 = vld [vmem:[#allocation3 + $0x60] sm:$0xff]
      %v2382 = vld [vmem:[#allocation3 + $0x68] sm:$0xff]
      %v2383 = vld [vmem:[#allocation3 + $0x70] sm:$0xff]
      %v2384 = vld [vmem:[#allocation3 + $0x78] sm:$0xff]
      %v2385 = vld [vmem:[#allocation3 + $0x80] sm:$0xff]
      %v2386 = vld [vmem:[#allocation3 + $0x88] sm:$0xff]
      %v2387 = vld [vmem:[#allocation3 + $0x90] sm:$0xff]
      %v2388 = vld [vmem:[#allocation3 + $0x98] sm:$0xff]
      %v2389 = vld [vmem:[#allocation3 + $0xa0] sm:$0xff]
      %v2390 = vld [vmem:[#allocation3 + $0xa8] sm:$0xff]
      %v2391 = vld [vmem:[#allocation3 + $0xb0] sm:$0xff]
      %v2392 = vld [vmem:[#allocation3 + $0xb8] sm:$0xff]
      %v2393 = vld [vmem:[#allocation3 + $0xc0] sm:$0xff]
      %v2394 = vld [vmem:[#allocation3 + $0xc8] sm:$0xff]
      %v2395 = vld [vmem:[#allocation3 + $0xd0] sm:$0xff]
      %v2396 = vld [vmem:[#allocation3 + $0xd8] sm:$0xff]
      %v2397 = vld [vmem:[#allocation3 + $0xe0] sm:$0xff]
      %v2398 = vld [vmem:[#allocation3 + $0xe8] sm:$0xff]
      %v2399 = vld [vmem:[#allocation3 + $0xf0] sm:$0xff]
      %v2400 = vld [vmem:[#allocation3 + $0xf8] sm:$0xff]
      %v2401 = vpack.c.bf16 %v2370, %v2369
      %v2402 = vpack.c.bf16 %v2372, %v2371
      %v2403 = vpack.c.bf16 %v2374, %v2373
      %v2404 = vpack.c.bf16 %v2376, %v2375
      %v2405 = vpack.c.bf16 %v2378, %v2377
      %v2406 = vpack.c.bf16 %v2380, %v2379
      %v2407 = vpack.c.bf16 %v2382, %v2381
      %v2408 = vpack.c.bf16 %v2384, %v2383
      %v2409 = vpack.c.bf16 %v2386, %v2385
      %v2410 = vpack.c.bf16 %v2388, %v2387
      %v2411 = vpack.c.bf16 %v2390, %v2389
      %v2412 = vpack.c.bf16 %v2392, %v2391
      %v2413 = vpack.c.bf16 %v2394, %v2393
      %v2414 = vpack.c.bf16 %v2396, %v2395
      %v2415 = vpack.c.bf16 %v2398, %v2397
      %v2416 = vpack.c.bf16 %v2400, %v2399
      %v2417 = vld [vmem:[%s7] sm:$0xf]
      %v2418 = vld [vmem:[%s7 + $0x4] sm:$0xf]
      %v2419 = vld [vmem:[%s7 + $0x8] sm:$0xf]
      %v2420 = vld [vmem:[%s7 + $0xc] sm:$0xf]
      %v2421 = vld [vmem:[%s7 + $0x10] sm:$0xf]
      %v2422 = vld [vmem:[%s7 + $0x14] sm:$0xf]
      %v2423 = vld [vmem:[%s7 + $0x18] sm:$0xf]
      %v2424 = vld [vmem:[%s7 + $0x1c] sm:$0xf]
      %v2425 = vld [vmem:[%s7 + $0x20] sm:$0xf]
      %v2426 = vld [vmem:[%s7 + $0x24] sm:$0xf]
      %v2427 = vld [vmem:[%s7 + $0x28] sm:$0xf]
      %v2428 = vld [vmem:[%s7 + $0x2c] sm:$0xf]
      %v2429 = vld [vmem:[%s7 + $0x30] sm:$0xf]
      %v2430 = vld [vmem:[%s7 + $0x34] sm:$0xf]
      %v2431 = vld [vmem:[%s7 + $0x38] sm:$0xf]
      %v2432 = vld [vmem:[%s7 + $0x3c] sm:$0xf]
      %v2433 = vld [vmem:[%s8] sm:$0x1]
      %v2435 = vperm.slane %v2433, 0
      %v2453 = vunpack.c.l.b16 %v2417
      %v2454 = vunpack.c.l.b16 %v2418
      %v2455 = vunpack.c.l.b16 %v2419
      %v2456 = vunpack.c.l.b16 %v2420
      %v2457 = vunpack.c.l.b16 %v2421
      %v2458 = vunpack.c.l.b16 %v2422
      %v2459 = vunpack.c.l.b16 %v2423
      %v2460 = vunpack.c.l.b16 %v2424
      %v2461 = vunpack.c.l.b16 %v2425
      %v2462 = vunpack.c.l.b16 %v2426
      %v2463 = vunpack.c.l.b16 %v2427
      %v2464 = vunpack.c.l.b16 %v2428
      %v2465 = vunpack.c.l.b16 %v2429
      %v2466 = vunpack.c.l.b16 %v2430
      %v2467 = vunpack.c.l.b16 %v2431
      %v2468 = vunpack.c.l.b16 %v2432
      %v2469 = vpack.c.b16 %v2454, %v2453
      %v2470 = vpack.c.b16 %v2456, %v2455
      %v2471 = vpack.c.b16 %v2458, %v2457
      %v2472 = vpack.c.b16 %v2460, %v2459
      %v2473 = vpack.c.b16 %v2462, %v2461
      %v2474 = vpack.c.b16 %v2464, %v2463
      %v2475 = vpack.c.b16 %v2466, %v2465
      %v2476 = vpack.c.b16 %v2468, %v2467
      %2485 = vmatpush.bf16.msra.mxu0 %v2476
      %2486 = vmatpush.bf16.msra.mxu0 %v2475
      %2487 = vmatpush.bf16.msra.mxu0 %v2474
      %2488 = vmatpush.bf16.msra.mxu0 %v2473
      %2489 = vmatpush.bf16.msra.mxu0 %v2472
      %2490 = vmatpush.bf16.msra.mxu0 %v2471
      %2491 = vmatpush.bf16.msra.mxu0 %v2470
      %2492 = vmatpush.bf16.msra.mxu0 %v2469
      %2493 = vmatmul.bf16.gmra.mxu0 %v2401
      %v2494 = vpop.f32.mrf.mxu0
      %v2495 = vadd.f32 %v2435, %v2494
      %v2496 = vpop.f32.mrf.mxu0
      %v2497 = vadd.f32 %v2435, %v2496
      %2498 = vmatmul.bf16.gmra.mxu0 %v2402
      %v2499 = vpop.f32.mrf.mxu0
      %v2500 = vadd.f32 %v2435, %v2499
      %v2501 = vpop.f32.mrf.mxu0
      %v2502 = vadd.f32 %v2435, %v2501
      %2503 = vmatmul.bf16.gmra.mxu0 %v2403
      %v2504 = vpop.f32.mrf.mxu0
      %v2505 = vadd.f32 %v2435, %v2504
      %v2506 = vpop.f32.mrf.mxu0
      %v2507 = vadd.f32 %v2435, %v2506
      %2508 = vmatmul.bf16.gmra.mxu0 %v2404
      %v2509 = vpop.f32.mrf.mxu0
      %v2510 = vadd.f32 %v2435, %v2509
      %v2511 = vpop.f32.mrf.mxu0
      %v2512 = vadd.f32 %v2435, %v2511
      %2513 = vmatmul.bf16.gmra.mxu0 %v2405
      %v2514 = vpop.f32.mrf.mxu0
      %v2515 = vadd.f32 %v2435, %v2514
      %v2516 = vpop.f32.mrf.mxu0
      %v2517 = vadd.f32 %v2435, %v2516
      %2518 = vmatmul.bf16.gmra.mxu0 %v2406
      %v2519 = vpop.f32.mrf.mxu0
      %v2520 = vadd.f32 %v2435, %v2519
      %v2521 = vpop.f32.mrf.mxu0
      %v2522 = vadd.f32 %v2435, %v2521
      %2523 = vmatmul.bf16.gmra.mxu0 %v2407
      %v2524 = vpop.f32.mrf.mxu0
      %v2525 = vadd.f32 %v2435, %v2524
      %v2526 = vpop.f32.mrf.mxu0
      %v2527 = vadd.f32 %v2435, %v2526
      %2528 = vmatmul.bf16.gmra.mxu0 %v2408
      %v2529 = vpop.f32.mrf.mxu0
      %v2530 = vadd.f32 %v2435, %v2529
      %v2531 = vpop.f32.mrf.mxu0
      %v2532 = vadd.f32 %v2435, %v2531
      %2533 = vmatmul.bf16.gmra.mxu0 %v2409
      %v2534 = vpop.f32.mrf.mxu0
      %v2535 = vadd.f32 %v2435, %v2534
      %v2536 = vpop.f32.mrf.mxu0
      %v2537 = vadd.f32 %v2435, %v2536
      %2538 = vmatmul.bf16.gmra.mxu0 %v2410
      %v2539 = vpop.f32.mrf.mxu0
      %v2540 = vadd.f32 %v2435, %v2539
      %v2541 = vpop.f32.mrf.mxu0
      %v2542 = vadd.f32 %v2435, %v2541
      %2543 = vmatmul.bf16.gmra.mxu0 %v2411
      %v2544 = vpop.f32.mrf.mxu0
      %v2545 = vadd.f32 %v2435, %v2544
      %v2546 = vpop.f32.mrf.mxu0
      %v2547 = vadd.f32 %v2435, %v2546
      %2548 = vmatmul.bf16.gmra.mxu0 %v2412
      %v2549 = vpop.f32.mrf.mxu0
      %v2550 = vadd.f32 %v2435, %v2549
      %v2551 = vpop.f32.mrf.mxu0
      %v2552 = vadd.f32 %v2435, %v2551
      %2553 = vmatmul.bf16.gmra.mxu0 %v2413
      %v2554 = vpop.f32.mrf.mxu0
      %v2555 = vadd.f32 %v2435, %v2554
      %v2556 = vpop.f32.mrf.mxu0
      %v2557 = vadd.f32 %v2435, %v2556
      %2558 = vmatmul.bf16.gmra.mxu0 %v2414
      %v2559 = vpop.f32.mrf.mxu0
      %v2560 = vadd.f32 %v2435, %v2559
      %v2561 = vpop.f32.mrf.mxu0
      %v2562 = vadd.f32 %v2435, %v2561
      %2563 = vmatmul.bf16.gmra.mxu0 %v2415
      %v2564 = vpop.f32.mrf.mxu0
      %v2565 = vadd.f32 %v2435, %v2564
      %v2566 = vpop.f32.mrf.mxu0
      %v2567 = vadd.f32 %v2435, %v2566
      %2568 = vmatmul.bf16.gmra.mxu0 %v2416
      %v2569 = vpop.f32.mrf.mxu0
      %v2570 = vadd.f32 %v2435, %v2569
      %v2571 = vpop.f32.mrf.mxu0
      %v2572 = vadd.f32 %v2435, %v2571
      %2573 = vdwg.mxu0
      %v2574 = vmax.f32 %v2495, 0.0
      %v2575 = vmax.f32 %v2497, 0.0
      %v2576 = vmax.f32 %v2500, 0.0
      %v2577 = vmax.f32 %v2502, 0.0
      %v2578 = vmax.f32 %v2505, 0.0
      %v2579 = vmax.f32 %v2507, 0.0
      %v2580 = vmax.f32 %v2510, 0.0
      %v2581 = vmax.f32 %v2512, 0.0
      %v2582 = vmax.f32 %v2515, 0.0
      %v2583 = vmax.f32 %v2517, 0.0
      %v2584 = vmax.f32 %v2520, 0.0
      %v2585 = vmax.f32 %v2522, 0.0
      %v2586 = vmax.f32 %v2525, 0.0
      %v2587 = vmax.f32 %v2527, 0.0
      %v2588 = vmax.f32 %v2530, 0.0
      %v2589 = vmax.f32 %v2532, 0.0
      %v2590 = vmax.f32 %v2535, 0.0
      %v2591 = vmax.f32 %v2537, 0.0
      %v2592 = vmax.f32 %v2540, 0.0
      %v2593 = vmax.f32 %v2542, 0.0
      %v2594 = vmax.f32 %v2545, 0.0
      %v2595 = vmax.f32 %v2547, 0.0
      %v2596 = vmax.f32 %v2550, 0.0
      %v2597 = vmax.f32 %v2552, 0.0
      %v2598 = vmax.f32 %v2555, 0.0
      %v2599 = vmax.f32 %v2557, 0.0
      %v2600 = vmax.f32 %v2560, 0.0
      %v2601 = vmax.f32 %v2562, 0.0
      %v2602 = vmax.f32 %v2565, 0.0
      %v2603 = vmax.f32 %v2567, 0.0
      %v2604 = vmax.f32 %v2570, 0.0
      %v2605 = vmax.f32 %v2572, 0.0
      %2606 = vst [vmem:[%s829 + $0x8] sm:$0xff] %v2574
      %2607 = vst [vmem:[%s829 + $0x10] sm:$0xff] %v2575
      %2608 = vst [vmem:[%s829 + $0x28] sm:$0xff] %v2576
      %2609 = vst [vmem:[%s829 + $0x30] sm:$0xff] %v2577
      %2610 = vst [vmem:[%s829 + $0x48] sm:$0xff] %v2578
      %2611 = vst [vmem:[%s829 + $0x50] sm:$0xff] %v2579
      %2612 = vst [vmem:[%s829 + $0x68] sm:$0xff] %v2580
      %2613 = vst [vmem:[%s829 + $0x70] sm:$0xff] %v2581
      %2614 = vst [vmem:[%s829 + $0x88] sm:$0xff] %v2582
      %2615 = vst [vmem:[%s829 + $0x90] sm:$0xff] %v2583
      %2616 = vst [vmem:[%s829 + $0xa8] sm:$0xff] %v2584
      %2617 = vst [vmem:[%s829 + $0xb0] sm:$0xff] %v2585
      %2618 = vst [vmem:[%s829 + $0xc8] sm:$0xff] %v2586
      %2619 = vst [vmem:[%s829 + $0xd0] sm:$0xff] %v2587
      %2620 = vst [vmem:[%s829 + $0xe8] sm:$0xff] %v2588
      %2621 = vst [vmem:[%s829 + $0xf0] sm:$0xff] %v2589
      %2622 = vst [vmem:[%s829 + $0x108] sm:$0xff] %v2590
      %2623 = vst [vmem:[%s829 + $0x110] sm:$0xff] %v2591
      %2624 = vst [vmem:[%s829 + $0x128] sm:$0xff] %v2592
      %2625 = vst [vmem:[%s829 + $0x130] sm:$0xff] %v2593
      %2626 = vst [vmem:[%s829 + $0x148] sm:$0xff] %v2594
      %2627 = vst [vmem:[%s829 + $0x150] sm:$0xff] %v2595
      %2628 = vst [vmem:[%s829 + $0x168] sm:$0xff] %v2596
      %2629 = vst [vmem:[%s829 + $0x170] sm:$0xff] %v2597
      %2630 = vst [vmem:[%s829 + $0x188] sm:$0xff] %v2598
      %2631 = vst [vmem:[%s829 + $0x190] sm:$0xff] %v2599
      %2632 = vst [vmem:[%s829 + $0x1a8] sm:$0xff] %v2600
      %2633 = vst [vmem:[%s829 + $0x1b0] sm:$0xff] %v2601
      %2634 = vst [vmem:[%s829 + $0x1c8] sm:$0xff] %v2602
      %2635 = vst [vmem:[%s829 + $0x1d0] sm:$0xff] %v2603
      %2636 = vst [vmem:[%s829 + $0x1e8] sm:$0xff] %v2604
      %2637 = vst [vmem:[%s829 + $0x1f0] sm:$0xff] %v2605
      %v2638 = vld [vmem:[#allocation2 + $0x7] sm:$0xff]
      %v2639 = vld [vmem:[#allocation2 + $0xf] sm:$0xff]
      %v2640 = vld [vmem:[#allocation2 + $0x27] sm:$0xff]
      %v2641 = vld [vmem:[#allocation2 + $0x2f] sm:$0xff]
      %v2642 = vld [vmem:[#allocation2 + $0x47] sm:$0xff]
      %v2643 = vld [vmem:[#allocation2 + $0x4f] sm:$0xff]
      %v2644 = vld [vmem:[#allocation2 + $0x67] sm:$0xff]
      %v2645 = vld [vmem:[#allocation2 + $0x6f] sm:$0xff]
      %v2646 = vld [vmem:[#allocation2 + $0x87] sm:$0xff]
      %v2647 = vld [vmem:[#allocation2 + $0x8f] sm:$0xff]
      %v2648 = vld [vmem:[#allocation2 + $0xa7] sm:$0xff]
      %v2649 = vld [vmem:[#allocation2 + $0xaf] sm:$0xff]
      %v2650 = vld [vmem:[#allocation2 + $0xc7] sm:$0xff]
      %v2651 = vld [vmem:[#allocation2 + $0xcf] sm:$0xff]
      %v2652 = vld [vmem:[#allocation2 + $0xe7] sm:$0xff]
      %v2653 = vld [vmem:[#allocation2 + $0xef] sm:$0xff]
      %v2654 = vld [vmem:[%s9] sm:$0x1]
      %v2655 = vperm.slane %v2654, 0
      %v2656 = vmul.f32 %v2638, %v2655
      %v2657 = vmul.f32 %v2639, %v2655
      %v2658 = vmul.f32 %v2640, %v2655
      %v2659 = vmul.f32 %v2641, %v2655
      %v2660 = vmul.f32 %v2642, %v2655
      %v2661 = vmul.f32 %v2643, %v2655
      %v2662 = vmul.f32 %v2644, %v2655
      %v2663 = vmul.f32 %v2645, %v2655
      %v2664 = vmul.f32 %v2646, %v2655
      %v2665 = vmul.f32 %v2647, %v2655
      %v2666 = vmul.f32 %v2648, %v2655
      %v2667 = vmul.f32 %v2649, %v2655
      %v2668 = vmul.f32 %v2650, %v2655
      %v2669 = vmul.f32 %v2651, %v2655
      %v2670 = vmul.f32 %v2652, %v2655
      %v2671 = vmul.f32 %v2653, %v2655
      %v2672 = vadd.f32 %v2656, 0.0
      %v2673 = vadd.f32 %v2657, 0.0
      %v2674 = vadd.f32 %v2658, 0.0
      %v2675 = vadd.f32 %v2659, 0.0
      %v2676 = vadd.f32 %v2660, 0.0
      %v2677 = vadd.f32 %v2661, 0.0
      %v2678 = vadd.f32 %v2662, 0.0
      %v2679 = vadd.f32 %v2663, 0.0
      %v2680 = vadd.f32 %v2664, 0.0
      %v2681 = vadd.f32 %v2665, 0.0
      %v2682 = vadd.f32 %v2666, 0.0
      %v2683 = vadd.f32 %v2667, 0.0
      %v2684 = vadd.f32 %v2668, 0.0
      %v2685 = vadd.f32 %v2669, 0.0
      %v2686 = vadd.f32 %v2670, 0.0
      %v2687 = vadd.f32 %v2671, 0.0
      %v2688 = vld [vmem:[#allocation2 + $0x8] sm:$0xff]
      %v2689 = vld [vmem:[#allocation2 + $0x10] sm:$0xff]
      %v2690 = vld [vmem:[#allocation2 + $0x28] sm:$0xff]
      %v2691 = vld [vmem:[#allocation2 + $0x30] sm:$0xff]
      %v2692 = vld [vmem:[#allocation2 + $0x48] sm:$0xff]
      %v2693 = vld [vmem:[#allocation2 + $0x50] sm:$0xff]
      %v2694 = vld [vmem:[#allocation2 + $0x68] sm:$0xff]
      %v2695 = vld [vmem:[#allocation2 + $0x70] sm:$0xff]
      %v2696 = vld [vmem:[#allocation2 + $0x88] sm:$0xff]
      %v2697 = vld [vmem:[#allocation2 + $0x90] sm:$0xff]
      %v2698 = vld [vmem:[#allocation2 + $0xa8] sm:$0xff]
      %v2699 = vld [vmem:[#allocation2 + $0xb0] sm:$0xff]
      %v2700 = vld [vmem:[#allocation2 + $0xc8] sm:$0xff]
      %v2701 = vld [vmem:[#allocation2 + $0xd0] sm:$0xff]
      %v2702 = vld [vmem:[#allocation2 + $0xe8] sm:$0xff]
      %v2703 = vld [vmem:[#allocation2 + $0xf0] sm:$0xff]
      %v2704 = vld [vmem:[%s9 + $0x1] sm:$0x1]
      %v2705 = vperm.slane %v2704, 0
      %v2706 = vmul.f32 %v2688, %v2705
      %v2707 = vmul.f32 %v2689, %v2705
      %v2708 = vmul.f32 %v2690, %v2705
      %v2709 = vmul.f32 %v2691, %v2705
      %v2710 = vmul.f32 %v2692, %v2705
      %v2711 = vmul.f32 %v2693, %v2705
      %v2712 = vmul.f32 %v2694, %v2705
      %v2713 = vmul.f32 %v2695, %v2705
      %v2714 = vmul.f32 %v2696, %v2705
      %v2715 = vmul.f32 %v2697, %v2705
      %v2716 = vmul.f32 %v2698, %v2705
      %v2717 = vmul.f32 %v2699, %v2705
      %v2718 = vmul.f32 %v2700, %v2705
      %v2719 = vmul.f32 %v2701, %v2705
      %v2720 = vmul.f32 %v2702, %v2705
      %v2721 = vmul.f32 %v2703, %v2705
      %v2722 = vadd.f32 %v2672, %v2706
      %v2723 = vadd.f32 %v2673, %v2707
      %v2724 = vadd.f32 %v2674, %v2708
      %v2725 = vadd.f32 %v2675, %v2709
      %v2726 = vadd.f32 %v2676, %v2710
      %v2727 = vadd.f32 %v2677, %v2711
      %v2728 = vadd.f32 %v2678, %v2712
      %v2729 = vadd.f32 %v2679, %v2713
      %v2730 = vadd.f32 %v2680, %v2714
      %v2731 = vadd.f32 %v2681, %v2715
      %v2732 = vadd.f32 %v2682, %v2716
      %v2733 = vadd.f32 %v2683, %v2717
      %v2734 = vadd.f32 %v2684, %v2718
      %v2735 = vadd.f32 %v2685, %v2719
      %v2736 = vadd.f32 %v2686, %v2720
      %v2737 = vadd.f32 %v2687, %v2721
      %v2738 = vld [vmem:[#allocation2 + $0x9] sm:$0xff]
      %v2739 = vld [vmem:[#allocation2 + $0x11] sm:$0xff]
      %v2740 = vld [vmem:[#allocation2 + $0x29] sm:$0xff]
      %v2741 = vld [vmem:[#allocation2 + $0x31] sm:$0xff]
      %v2742 = vld [vmem:[#allocation2 + $0x49] sm:$0xff]
      %v2743 = vld [vmem:[#allocation2 + $0x51] sm:$0xff]
      %v2744 = vld [vmem:[#allocation2 + $0x69] sm:$0xff]
      %v2745 = vld [vmem:[#allocation2 + $0x71] sm:$0xff]
      %v2746 = vld [vmem:[#allocation2 + $0x89] sm:$0xff]
      %v2747 = vld [vmem:[#allocation2 + $0x91] sm:$0xff]
      %v2748 = vld [vmem:[#allocation2 + $0xa9] sm:$0xff]
      %v2749 = vld [vmem:[#allocation2 + $0xb1] sm:$0xff]
      %v2750 = vld [vmem:[#allocation2 + $0xc9] sm:$0xff]
      %v2751 = vld [vmem:[#allocation2 + $0xd1] sm:$0xff]
      %v2752 = vld [vmem:[#allocation2 + $0xe9] sm:$0xff]
      %v2753 = vld [vmem:[#allocation2 + $0xf1] sm:$0xff]
      %v2754 = vld [vmem:[%s9 + $0x2] sm:$0x1]
      %v2755 = vperm.slane %v2754, 0
      %v2756 = vmul.f32 %v2738, %v2755
      %v2757 = vmul.f32 %v2739, %v2755
      %v2758 = vmul.f32 %v2740, %v2755
      %v2759 = vmul.f32 %v2741, %v2755
      %v2760 = vmul.f32 %v2742, %v2755
      %v2761 = vmul.f32 %v2743, %v2755
      %v2762 = vmul.f32 %v2744, %v2755
      %v2763 = vmul.f32 %v2745, %v2755
      %v2764 = vmul.f32 %v2746, %v2755
      %v2765 = vmul.f32 %v2747, %v2755
      %v2766 = vmul.f32 %v2748, %v2755
      %v2767 = vmul.f32 %v2749, %v2755
      %v2768 = vmul.f32 %v2750, %v2755
      %v2769 = vmul.f32 %v2751, %v2755
      %v2770 = vmul.f32 %v2752, %v2755
      %v2771 = vmul.f32 %v2753, %v2755
      %v2772 = vadd.f32 %v2722, %v2756
      %v2773 = vadd.f32 %v2723, %v2757
      %v2774 = vadd.f32 %v2724, %v2758
      %v2775 = vadd.f32 %v2725, %v2759
      %v2776 = vadd.f32 %v2726, %v2760
      %v2777 = vadd.f32 %v2727, %v2761
      %v2778 = vadd.f32 %v2728, %v2762
      %v2779 = vadd.f32 %v2729, %v2763
      %v2780 = vadd.f32 %v2730, %v2764
      %v2781 = vadd.f32 %v2731, %v2765
      %v2782 = vadd.f32 %v2732, %v2766
      %v2783 = vadd.f32 %v2733, %v2767
      %v2784 = vadd.f32 %v2734, %v2768
      %v2785 = vadd.f32 %v2735, %v2769
      %v2786 = vadd.f32 %v2736, %v2770
      %v2787 = vadd.f32 %v2737, %v2771
      %v2788 = vld [vmem:[%s829 + $0x7] sm:$0xff]
      %v2789 = vld [vmem:[%s829 + $0xf] sm:$0xff]
      %v2790 = vld [vmem:[%s829 + $0x27] sm:$0xff]
      %v2791 = vld [vmem:[%s829 + $0x2f] sm:$0xff]
      %v2792 = vld [vmem:[%s829 + $0x47] sm:$0xff]
      %v2793 = vld [vmem:[%s829 + $0x4f] sm:$0xff]
      %v2794 = vld [vmem:[%s829 + $0x67] sm:$0xff]
      %v2795 = vld [vmem:[%s829 + $0x6f] sm:$0xff]
      %v2796 = vld [vmem:[%s829 + $0x87] sm:$0xff]
      %v2797 = vld [vmem:[%s829 + $0x8f] sm:$0xff]
      %v2798 = vld [vmem:[%s829 + $0xa7] sm:$0xff]
      %v2799 = vld [vmem:[%s829 + $0xaf] sm:$0xff]
      %v2800 = vld [vmem:[%s829 + $0xc7] sm:$0xff]
      %v2801 = vld [vmem:[%s829 + $0xcf] sm:$0xff]
      %v2802 = vld [vmem:[%s829 + $0xe7] sm:$0xff]
      %v2803 = vld [vmem:[%s829 + $0xef] sm:$0xff]
      %v2804 = vld [vmem:[%s9 + $0x3] sm:$0x1]
      %v2805 = vperm.slane %v2804, 0
      %v2806 = vmul.f32 %v2788, %v2805
      %v2807 = vmul.f32 %v2789, %v2805
      %v2808 = vmul.f32 %v2790, %v2805
      %v2809 = vmul.f32 %v2791, %v2805
      %v2810 = vmul.f32 %v2792, %v2805
      %v2811 = vmul.f32 %v2793, %v2805
      %v2812 = vmul.f32 %v2794, %v2805
      %v2813 = vmul.f32 %v2795, %v2805
      %v2814 = vmul.f32 %v2796, %v2805
      %v2815 = vmul.f32 %v2797, %v2805
      %v2816 = vmul.f32 %v2798, %v2805
      %v2817 = vmul.f32 %v2799, %v2805
      %v2818 = vmul.f32 %v2800, %v2805
      %v2819 = vmul.f32 %v2801, %v2805
      %v2820 = vmul.f32 %v2802, %v2805
      %v2821 = vmul.f32 %v2803, %v2805
      %v2822 = vadd.f32 %v2772, %v2806
      %v2823 = vadd.f32 %v2773, %v2807
      %v2824 = vadd.f32 %v2774, %v2808
      %v2825 = vadd.f32 %v2775, %v2809
      %v2826 = vadd.f32 %v2776, %v2810
      %v2827 = vadd.f32 %v2777, %v2811
      %v2828 = vadd.f32 %v2778, %v2812
      %v2829 = vadd.f32 %v2779, %v2813
      %v2830 = vadd.f32 %v2780, %v2814
      %v2831 = vadd.f32 %v2781, %v2815
      %v2832 = vadd.f32 %v2782, %v2816
      %v2833 = vadd.f32 %v2783, %v2817
      %v2834 = vadd.f32 %v2784, %v2818
      %v2835 = vadd.f32 %v2785, %v2819
      %v2836 = vadd.f32 %v2786, %v2820
      %v2837 = vadd.f32 %v2787, %v2821
      %v2838 = vld [vmem:[%s829 + $0x8] sm:$0xff]
      %v2839 = vld [vmem:[%s829 + $0x10] sm:$0xff]
      %v2840 = vld [vmem:[%s829 + $0x28] sm:$0xff]
      %v2841 = vld [vmem:[%s829 + $0x30] sm:$0xff]
      %v2842 = vld [vmem:[%s829 + $0x48] sm:$0xff]
      %v2843 = vld [vmem:[%s829 + $0x50] sm:$0xff]
      %v2844 = vld [vmem:[%s829 + $0x68] sm:$0xff]
      %v2845 = vld [vmem:[%s829 + $0x70] sm:$0xff]
      %v2846 = vld [vmem:[%s829 + $0x88] sm:$0xff]
      %v2847 = vld [vmem:[%s829 + $0x90] sm:$0xff]
      %v2848 = vld [vmem:[%s829 + $0xa8] sm:$0xff]
      %v2849 = vld [vmem:[%s829 + $0xb0] sm:$0xff]
      %v2850 = vld [vmem:[%s829 + $0xc8] sm:$0xff]
      %v2851 = vld [vmem:[%s829 + $0xd0] sm:$0xff]
      %v2852 = vld [vmem:[%s829 + $0xe8] sm:$0xff]
      %v2853 = vld [vmem:[%s829 + $0xf0] sm:$0xff]
      %v2854 = vld [vmem:[%s9 + $0x4] sm:$0x1]
      %v2855 = vperm.slane %v2854, 0
      %v2856 = vmul.f32 %v2838, %v2855
      %v2857 = vmul.f32 %v2839, %v2855
      %v2858 = vmul.f32 %v2840, %v2855
      %v2859 = vmul.f32 %v2841, %v2855
      %v2860 = vmul.f32 %v2842, %v2855
      %v2861 = vmul.f32 %v2843, %v2855
      %v2862 = vmul.f32 %v2844, %v2855
      %v2863 = vmul.f32 %v2845, %v2855
      %v2864 = vmul.f32 %v2846, %v2855
      %v2865 = vmul.f32 %v2847, %v2855
      %v2866 = vmul.f32 %v2848, %v2855
      %v2867 = vmul.f32 %v2849, %v2855
      %v2868 = vmul.f32 %v2850, %v2855
      %v2869 = vmul.f32 %v2851, %v2855
      %v2870 = vmul.f32 %v2852, %v2855
      %v2871 = vmul.f32 %v2853, %v2855
      %v2872 = vadd.f32 %v2822, %v2856
      %v2873 = vadd.f32 %v2823, %v2857
      %v2874 = vadd.f32 %v2824, %v2858
      %v2875 = vadd.f32 %v2825, %v2859
      %v2876 = vadd.f32 %v2826, %v2860
      %v2877 = vadd.f32 %v2827, %v2861
      %v2878 = vadd.f32 %v2828, %v2862
      %v2879 = vadd.f32 %v2829, %v2863
      %v2880 = vadd.f32 %v2830, %v2864
      %v2881 = vadd.f32 %v2831, %v2865
      %v2882 = vadd.f32 %v2832, %v2866
      %v2883 = vadd.f32 %v2833, %v2867
      %v2884 = vadd.f32 %v2834, %v2868
      %v2885 = vadd.f32 %v2835, %v2869
      %v2886 = vadd.f32 %v2836, %v2870
      %v2887 = vadd.f32 %v2837, %v2871
      %v2888 = vld [vmem:[%s829 + $0x9] sm:$0xff]
      %v2889 = vld [vmem:[%s829 + $0x11] sm:$0xff]
      %v2890 = vld [vmem:[%s829 + $0x29] sm:$0xff]
      %v2891 = vld [vmem:[%s829 + $0x31] sm:$0xff]
      %v2892 = vld [vmem:[%s829 + $0x49] sm:$0xff]
      %v2893 = vld [vmem:[%s829 + $0x51] sm:$0xff]
      %v2894 = vld [vmem:[%s829 + $0x69] sm:$0xff]
      %v2895 = vld [vmem:[%s829 + $0x71] sm:$0xff]
      %v2896 = vld [vmem:[%s829 + $0x89] sm:$0xff]
      %v2897 = vld [vmem:[%s829 + $0x91] sm:$0xff]
      %v2898 = vld [vmem:[%s829 + $0xa9] sm:$0xff]
      %v2899 = vld [vmem:[%s829 + $0xb1] sm:$0xff]
      %v2900 = vld [vmem:[%s829 + $0xc9] sm:$0xff]
      %v2901 = vld [vmem:[%s829 + $0xd1] sm:$0xff]
      %v2902 = vld [vmem:[%s829 + $0xe9] sm:$0xff]
      %v2903 = vld [vmem:[%s829 + $0xf1] sm:$0xff]
      %v2904 = vld [vmem:[%s9 + $0x5] sm:$0x1]
      %v2905 = vperm.slane %v2904, 0
      %v2906 = vmul.f32 %v2888, %v2905
      %v2907 = vmul.f32 %v2889, %v2905
      %v2908 = vmul.f32 %v2890, %v2905
      %v2909 = vmul.f32 %v2891, %v2905
      %v2910 = vmul.f32 %v2892, %v2905
      %v2911 = vmul.f32 %v2893, %v2905
      %v2912 = vmul.f32 %v2894, %v2905
      %v2913 = vmul.f32 %v2895, %v2905
      %v2914 = vmul.f32 %v2896, %v2905
      %v2915 = vmul.f32 %v2897, %v2905
      %v2916 = vmul.f32 %v2898, %v2905
      %v2917 = vmul.f32 %v2899, %v2905
      %v2918 = vmul.f32 %v2900, %v2905
      %v2919 = vmul.f32 %v2901, %v2905
      %v2920 = vmul.f32 %v2902, %v2905
      %v2921 = vmul.f32 %v2903, %v2905
      %v2922 = vadd.f32 %v2872, %v2906
      %v2923 = vadd.f32 %v2873, %v2907
      %v2924 = vadd.f32 %v2874, %v2908
      %v2925 = vadd.f32 %v2875, %v2909
      %v2926 = vadd.f32 %v2876, %v2910
      %v2927 = vadd.f32 %v2877, %v2911
      %v2928 = vadd.f32 %v2878, %v2912
      %v2929 = vadd.f32 %v2879, %v2913
      %v2930 = vadd.f32 %v2880, %v2914
      %v2931 = vadd.f32 %v2881, %v2915
      %v2932 = vadd.f32 %v2882, %v2916
      %v2933 = vadd.f32 %v2883, %v2917
      %v2934 = vadd.f32 %v2884, %v2918
      %v2935 = vadd.f32 %v2885, %v2919
      %v2936 = vadd.f32 %v2886, %v2920
      %v2937 = vadd.f32 %v2887, %v2921
      %v2938 = vld [vmem:[%s1424 + $0x7] sm:$0xff]
      %v2939 = vld [vmem:[%s1424 + $0xf] sm:$0xff]
      %v2940 = vld [vmem:[%s1424 + $0x27] sm:$0xff]
      %v2941 = vld [vmem:[%s1424 + $0x2f] sm:$0xff]
      %v2942 = vld [vmem:[%s1424 + $0x47] sm:$0xff]
      %v2943 = vld [vmem:[%s1424 + $0x4f] sm:$0xff]
      %v2944 = vld [vmem:[%s1424 + $0x67] sm:$0xff]
      %v2945 = vld [vmem:[%s1424 + $0x6f] sm:$0xff]
      %v2946 = vld [vmem:[%s1424 + $0x87] sm:$0xff]
      %v2947 = vld [vmem:[%s1424 + $0x8f] sm:$0xff]
      %v2948 = vld [vmem:[%s1424 + $0xa7] sm:$0xff]
      %v2949 = vld [vmem:[%s1424 + $0xaf] sm:$0xff]
      %v2950 = vld [vmem:[%s1424 + $0xc7] sm:$0xff]
      %v2951 = vld [vmem:[%s1424 + $0xcf] sm:$0xff]
      %v2952 = vld [vmem:[%s1424 + $0xe7] sm:$0xff]
      %v2953 = vld [vmem:[%s1424 + $0xef] sm:$0xff]
      %v2954 = vld [vmem:[%s9 + $0x6] sm:$0x1]
      %v2955 = vperm.slane %v2954, 0
      %v2956 = vmul.f32 %v2938, %v2955
      %v2957 = vmul.f32 %v2939, %v2955
      %v2958 = vmul.f32 %v2940, %v2955
      %v2959 = vmul.f32 %v2941, %v2955
      %v2960 = vmul.f32 %v2942, %v2955
      %v2961 = vmul.f32 %v2943, %v2955
      %v2962 = vmul.f32 %v2944, %v2955
      %v2963 = vmul.f32 %v2945, %v2955
      %v2964 = vmul.f32 %v2946, %v2955
      %v2965 = vmul.f32 %v2947, %v2955
      %v2966 = vmul.f32 %v2948, %v2955
      %v2967 = vmul.f32 %v2949, %v2955
      %v2968 = vmul.f32 %v2950, %v2955
      %v2969 = vmul.f32 %v2951, %v2955
      %v2970 = vmul.f32 %v2952, %v2955
      %v2971 = vmul.f32 %v2953, %v2955
      %v2972 = vadd.f32 %v2922, %v2956
      %v2973 = vadd.f32 %v2923, %v2957
      %v2974 = vadd.f32 %v2924, %v2958
      %v2975 = vadd.f32 %v2925, %v2959
      %v2976 = vadd.f32 %v2926, %v2960
      %v2977 = vadd.f32 %v2927, %v2961
      %v2978 = vadd.f32 %v2928, %v2962
      %v2979 = vadd.f32 %v2929, %v2963
      %v2980 = vadd.f32 %v2930, %v2964
      %v2981 = vadd.f32 %v2931, %v2965
      %v2982 = vadd.f32 %v2932, %v2966
      %v2983 = vadd.f32 %v2933, %v2967
      %v2984 = vadd.f32 %v2934, %v2968
      %v2985 = vadd.f32 %v2935, %v2969
      %v2986 = vadd.f32 %v2936, %v2970
      %v2987 = vadd.f32 %v2937, %v2971
      %v2988 = vld [vmem:[%s1424 + $0x8] sm:$0xff]
      %v2989 = vld [vmem:[%s1424 + $0x10] sm:$0xff]
      %v2990 = vld [vmem:[%s1424 + $0x28] sm:$0xff]
      %v2991 = vld [vmem:[%s1424 + $0x30] sm:$0xff]
      %v2992 = vld [vmem:[%s1424 + $0x48] sm:$0xff]
      %v2993 = vld [vmem:[%s1424 + $0x50] sm:$0xff]
      %v2994 = vld [vmem:[%s1424 + $0x68] sm:$0xff]
      %v2995 = vld [vmem:[%s1424 + $0x70] sm:$0xff]
      %v2996 = vld [vmem:[%s1424 + $0x88] sm:$0xff]
      %v2997 = vld [vmem:[%s1424 + $0x90] sm:$0xff]
      %v2998 = vld [vmem:[%s1424 + $0xa8] sm:$0xff]
      %v2999 = vld [vmem:[%s1424 + $0xb0] sm:$0xff]
      %v3000 = vld [vmem:[%s1424 + $0xc8] sm:$0xff]
      %v3001 = vld [vmem:[%s1424 + $0xd0] sm:$0xff]
      %v3002 = vld [vmem:[%s1424 + $0xe8] sm:$0xff]
      %v3003 = vld [vmem:[%s1424 + $0xf0] sm:$0xff]
      %v3004 = vld [vmem:[%s9 + $0x7] sm:$0x1]
      %v3005 = vperm.slane %v3004, 0
      %v3006 = vmul.f32 %v2988, %v3005
      %v3007 = vmul.f32 %v2989, %v3005
      %v3008 = vmul.f32 %v2990, %v3005
      %v3009 = vmul.f32 %v2991, %v3005
      %v3010 = vmul.f32 %v2992, %v3005
      %v3011 = vmul.f32 %v2993, %v3005
      %v3012 = vmul.f32 %v2994, %v3005
      %v3013 = vmul.f32 %v2995, %v3005
      %v3014 = vmul.f32 %v2996, %v3005
      %v3015 = vmul.f32 %v2997, %v3005
      %v3016 = vmul.f32 %v2998, %v3005
      %v3017 = vmul.f32 %v2999, %v3005
      %v3018 = vmul.f32 %v3000, %v3005
      %v3019 = vmul.f32 %v3001, %v3005
      %v3020 = vmul.f32 %v3002, %v3005
      %v3021 = vmul.f32 %v3003, %v3005
      %v3022 = vadd.f32 %v2972, %v3006
      %v3023 = vadd.f32 %v2973, %v3007
      %v3024 = vadd.f32 %v2974, %v3008
      %v3025 = vadd.f32 %v2975, %v3009
      %v3026 = vadd.f32 %v2976, %v3010
      %v3027 = vadd.f32 %v2977, %v3011
      %v3028 = vadd.f32 %v2978, %v3012
      %v3029 = vadd.f32 %v2979, %v3013
      %v3030 = vadd.f32 %v2980, %v3014
      %v3031 = vadd.f32 %v2981, %v3015
      %v3032 = vadd.f32 %v2982, %v3016
      %v3033 = vadd.f32 %v2983, %v3017
      %v3034 = vadd.f32 %v2984, %v3018
      %v3035 = vadd.f32 %v2985, %v3019
      %v3036 = vadd.f32 %v2986, %v3020
      %v3037 = vadd.f32 %v2987, %v3021
      %v3038 = vld [vmem:[%s1424 + $0x9] sm:$0xff]
      %v3039 = vld [vmem:[%s1424 + $0x11] sm:$0xff]
      %v3040 = vld [vmem:[%s1424 + $0x29] sm:$0xff]
      %v3041 = vld [vmem:[%s1424 + $0x31] sm:$0xff]
      %v3042 = vld [vmem:[%s1424 + $0x49] sm:$0xff]
      %v3043 = vld [vmem:[%s1424 + $0x51] sm:$0xff]
      %v3044 = vld [vmem:[%s1424 + $0x69] sm:$0xff]
      %v3045 = vld [vmem:[%s1424 + $0x71] sm:$0xff]
      %v3046 = vld [vmem:[%s1424 + $0x89] sm:$0xff]
      %v3047 = vld [vmem:[%s1424 + $0x91] sm:$0xff]
      %v3048 = vld [vmem:[%s1424 + $0xa9] sm:$0xff]
      %v3049 = vld [vmem:[%s1424 + $0xb1] sm:$0xff]
      %v3050 = vld [vmem:[%s1424 + $0xc9] sm:$0xff]
      %v3051 = vld [vmem:[%s1424 + $0xd1] sm:$0xff]
      %v3052 = vld [vmem:[%s1424 + $0xe9] sm:$0xff]
      %v3053 = vld [vmem:[%s1424 + $0xf1] sm:$0xff]
      %v3054 = vld [vmem:[%s9 + $0x8] sm:$0x1]
      %v3055 = vperm.slane %v3054, 0
      %v3056 = vmul.f32 %v3038, %v3055
      %v3057 = vmul.f32 %v3039, %v3055
      %v3058 = vmul.f32 %v3040, %v3055
      %v3059 = vmul.f32 %v3041, %v3055
      %v3060 = vmul.f32 %v3042, %v3055
      %v3061 = vmul.f32 %v3043, %v3055
      %v3062 = vmul.f32 %v3044, %v3055
      %v3063 = vmul.f32 %v3045, %v3055
      %v3064 = vmul.f32 %v3046, %v3055
      %v3065 = vmul.f32 %v3047, %v3055
      %v3066 = vmul.f32 %v3048, %v3055
      %v3067 = vmul.f32 %v3049, %v3055
      %v3068 = vmul.f32 %v3050, %v3055
      %v3069 = vmul.f32 %v3051, %v3055
      %v3070 = vmul.f32 %v3052, %v3055
      %v3071 = vmul.f32 %v3053, %v3055
      %v3072 = vadd.f32 %v3022, %v3056
      %v3073 = vadd.f32 %v3023, %v3057
      %v3074 = vadd.f32 %v3024, %v3058
      %v3075 = vadd.f32 %v3025, %v3059
      %v3076 = vadd.f32 %v3026, %v3060
      %v3077 = vadd.f32 %v3027, %v3061
      %v3078 = vadd.f32 %v3028, %v3062
      %v3079 = vadd.f32 %v3029, %v3063
      %v3080 = vadd.f32 %v3030, %v3064
      %v3081 = vadd.f32 %v3031, %v3065
      %v3082 = vadd.f32 %v3032, %v3066
      %v3083 = vadd.f32 %v3033, %v3067
      %v3084 = vadd.f32 %v3034, %v3068
      %v3085 = vadd.f32 %v3035, %v3069
      %v3086 = vadd.f32 %v3036, %v3070
      %v3087 = vadd.f32 %v3037, %v3071
      %v3088 = vld [vmem:[%s10] sm:$0x1]
      %v3090 = vperm.slane %v3088, 0
      %v3092 = vadd.f32 %v3072, %v3090
      %v3093 = vadd.f32 %v3073, %v3090
      %v3094 = vadd.f32 %v3074, %v3090
      %v3095 = vadd.f32 %v3075, %v3090
      %v3096 = vadd.f32 %v3076, %v3090
      %v3097 = vadd.f32 %v3077, %v3090
      %v3098 = vadd.f32 %v3078, %v3090
      %v3099 = vadd.f32 %v3079, %v3090
      %v3100 = vadd.f32 %v3080, %v3090
      %v3101 = vadd.f32 %v3081, %v3090
      %v3102 = vadd.f32 %v3082, %v3090
      %v3103 = vadd.f32 %v3083, %v3090
      %v3104 = vadd.f32 %v3084, %v3090
      %v3105 = vadd.f32 %v3085, %v3090
      %v3106 = vadd.f32 %v3086, %v3090
      %v3107 = vadd.f32 %v3087, %v3090
      %v3108 = vmax.f32 %v3092, 0.0
      %v3109 = vmax.f32 %v3093, 0.0
      %v3110 = vmax.f32 %v3094, 0.0
      %v3111 = vmax.f32 %v3095, 0.0
      %v3112 = vmax.f32 %v3096, 0.0
      %v3113 = vmax.f32 %v3097, 0.0
      %v3114 = vmax.f32 %v3098, 0.0
      %v3115 = vmax.f32 %v3099, 0.0
      %v3116 = vmax.f32 %v3100, 0.0
      %v3117 = vmax.f32 %v3101, 0.0
      %v3118 = vmax.f32 %v3102, 0.0
      %v3119 = vmax.f32 %v3103, 0.0
      %v3120 = vmax.f32 %v3104, 0.0
      %v3121 = vmax.f32 %v3105, 0.0
      %v3122 = vmax.f32 %v3106, 0.0
      %v3123 = vmax.f32 %v3107, 0.0
      %3124 = vst [vmem:[#allocation4] sm:$0xff] %v3108
      %3125 = vst [vmem:[#allocation4 + $0x8] sm:$0xff] %v3109
      %3126 = vst [vmem:[#allocation4 + $0x10] sm:$0xff] %v3110
      %3127 = vst [vmem:[#allocation4 + $0x18] sm:$0xff] %v3111
      %3128 = vst [vmem:[#allocation4 + $0x20] sm:$0xff] %v3112
      %3129 = vst [vmem:[#allocation4 + $0x28] sm:$0xff] %v3113
      %3130 = vst [vmem:[#allocation4 + $0x30] sm:$0xff] %v3114
      %3131 = vst [vmem:[#allocation4 + $0x38] sm:$0xff] %v3115
      %3132 = vst [vmem:[#allocation4 + $0x40] sm:$0xff] %v3116
      %3133 = vst [vmem:[#allocation4 + $0x48] sm:$0xff] %v3117
      %3134 = vst [vmem:[#allocation4 + $0x50] sm:$0xff] %v3118
      %3135 = vst [vmem:[#allocation4 + $0x58] sm:$0xff] %v3119
      %3136 = vst [vmem:[#allocation4 + $0x60] sm:$0xff] %v3120
      %3137 = vst [vmem:[#allocation4 + $0x68] sm:$0xff] %v3121
      %3138 = vst [vmem:[#allocation4 + $0x70] sm:$0xff] %v3122
      %3139 = vst [vmem:[#allocation4 + $0x78] sm:$0xff] %v3123
      %v3140 = vld [vmem:[%s1627 + $0x7] sm:$0xff]
      %v3141 = vld [vmem:[%s1627 + $0xf] sm:$0xff]
      %v3142 = vld [vmem:[%s1627 + $0x27] sm:$0xff]
      %v3143 = vld [vmem:[%s1627 + $0x2f] sm:$0xff]
      %v3144 = vld [vmem:[%s1627 + $0x47] sm:$0xff]
      %v3145 = vld [vmem:[%s1627 + $0x4f] sm:$0xff]
      %v3146 = vld [vmem:[%s1627 + $0x67] sm:$0xff]
      %v3147 = vld [vmem:[%s1627 + $0x6f] sm:$0xff]
      %v3148 = vld [vmem:[%s1627 + $0x87] sm:$0xff]
      %v3149 = vld [vmem:[%s1627 + $0x8f] sm:$0xff]
      %v3150 = vld [vmem:[%s1627 + $0xa7] sm:$0xff]
      %v3151 = vld [vmem:[%s1627 + $0xaf] sm:$0xff]
      %v3152 = vld [vmem:[%s1627 + $0xc7] sm:$0xff]
      %v3153 = vld [vmem:[%s1627 + $0xcf] sm:$0xff]
      %v3154 = vld [vmem:[%s1627 + $0xe7] sm:$0xff]
      %v3155 = vld [vmem:[%s1627 + $0xef] sm:$0xff]
      %v3156 = vld [vmem:[%s9] sm:$0x1]
      %v3157 = vperm.slane %v3156, 0
      %v3158 = vmul.f32 %v3140, %v3157
      %v3159 = vmul.f32 %v3141, %v3157
      %v3160 = vmul.f32 %v3142, %v3157
      %v3161 = vmul.f32 %v3143, %v3157
      %v3162 = vmul.f32 %v3144, %v3157
      %v3163 = vmul.f32 %v3145, %v3157
      %v3164 = vmul.f32 %v3146, %v3157
      %v3165 = vmul.f32 %v3147, %v3157
      %v3166 = vmul.f32 %v3148, %v3157
      %v3167 = vmul.f32 %v3149, %v3157
      %v3168 = vmul.f32 %v3150, %v3157
      %v3169 = vmul.f32 %v3151, %v3157
      %v3170 = vmul.f32 %v3152, %v3157
      %v3171 = vmul.f32 %v3153, %v3157
      %v3172 = vmul.f32 %v3154, %v3157
      %v3173 = vmul.f32 %v3155, %v3157
      %v3174 = vadd.f32 %v3158, 0.0
      %v3175 = vadd.f32 %v3159, 0.0
      %v3176 = vadd.f32 %v3160, 0.0
      %v3177 = vadd.f32 %v3161, 0.0
      %v3178 = vadd.f32 %v3162, 0.0
      %v3179 = vadd.f32 %v3163, 0.0
      %v3180 = vadd.f32 %v3164, 0.0
      %v3181 = vadd.f32 %v3165, 0.0
      %v3182 = vadd.f32 %v3166, 0.0
      %v3183 = vadd.f32 %v3167, 0.0
      %v3184 = vadd.f32 %v3168, 0.0
      %v3185 = vadd.f32 %v3169, 0.0
      %v3186 = vadd.f32 %v3170, 0.0
      %v3187 = vadd.f32 %v3171, 0.0
      %v3188 = vadd.f32 %v3172, 0.0
      %v3189 = vadd.f32 %v3173, 0.0
      %v3190 = vld [vmem:[%s1627 + $0x8] sm:$0xff]
      %v3191 = vld [vmem:[%s1627 + $0x10] sm:$0xff]
      %v3192 = vld [vmem:[%s1627 + $0x28] sm:$0xff]
      %v3193 = vld [vmem:[%s1627 + $0x30] sm:$0xff]
      %v3194 = vld [vmem:[%s1627 + $0x48] sm:$0xff]
      %v3195 = vld [vmem:[%s1627 + $0x50] sm:$0xff]
      %v3196 = vld [vmem:[%s1627 + $0x68] sm:$0xff]
      %v3197 = vld [vmem:[%s1627 + $0x70] sm:$0xff]
      %v3198 = vld [vmem:[%s1627 + $0x88] sm:$0xff]
      %v3199 = vld [vmem:[%s1627 + $0x90] sm:$0xff]
      %v3200 = vld [vmem:[%s1627 + $0xa8] sm:$0xff]
      %v3201 = vld [vmem:[%s1627 + $0xb0] sm:$0xff]
      %v3202 = vld [vmem:[%s1627 + $0xc8] sm:$0xff]
      %v3203 = vld [vmem:[%s1627 + $0xd0] sm:$0xff]
      %v3204 = vld [vmem:[%s1627 + $0xe8] sm:$0xff]
      %v3205 = vld [vmem:[%s1627 + $0xf0] sm:$0xff]
      %v3206 = vld [vmem:[%s9 + $0x1] sm:$0x1]
      %v3207 = vperm.slane %v3206, 0
      %v3208 = vmul.f32 %v3190, %v3207
      %v3209 = vmul.f32 %v3191, %v3207
      %v3210 = vmul.f32 %v3192, %v3207
      %v3211 = vmul.f32 %v3193, %v3207
      %v3212 = vmul.f32 %v3194, %v3207
      %v3213 = vmul.f32 %v3195, %v3207
      %v3214 = vmul.f32 %v3196, %v3207
      %v3215 = vmul.f32 %v3197, %v3207
      %v3216 = vmul.f32 %v3198, %v3207
      %v3217 = vmul.f32 %v3199, %v3207
      %v3218 = vmul.f32 %v3200, %v3207
      %v3219 = vmul.f32 %v3201, %v3207
      %v3220 = vmul.f32 %v3202, %v3207
      %v3221 = vmul.f32 %v3203, %v3207
      %v3222 = vmul.f32 %v3204, %v3207
      %v3223 = vmul.f32 %v3205, %v3207
      %v3224 = vadd.f32 %v3174, %v3208
      %v3225 = vadd.f32 %v3175, %v3209
      %v3226 = vadd.f32 %v3176, %v3210
      %v3227 = vadd.f32 %v3177, %v3211
      %v3228 = vadd.f32 %v3178, %v3212
      %v3229 = vadd.f32 %v3179, %v3213
      %v3230 = vadd.f32 %v3180, %v3214
      %v3231 = vadd.f32 %v3181, %v3215
      %v3232 = vadd.f32 %v3182, %v3216
      %v3233 = vadd.f32 %v3183, %v3217
      %v3234 = vadd.f32 %v3184, %v3218
      %v3235 = vadd.f32 %v3185, %v3219
      %v3236 = vadd.f32 %v3186, %v3220
      %v3237 = vadd.f32 %v3187, %v3221
      %v3238 = vadd.f32 %v3188, %v3222
      %v3239 = vadd.f32 %v3189, %v3223
      %v3240 = vld [vmem:[%s1627 + $0x9] sm:$0xff]
      %v3241 = vld [vmem:[%s1627 + $0x11] sm:$0xff]
      %v3242 = vld [vmem:[%s1627 + $0x29] sm:$0xff]
      %v3243 = vld [vmem:[%s1627 + $0x31] sm:$0xff]
      %v3244 = vld [vmem:[%s1627 + $0x49] sm:$0xff]
      %v3245 = vld [vmem:[%s1627 + $0x51] sm:$0xff]
      %v3246 = vld [vmem:[%s1627 + $0x69] sm:$0xff]
      %v3247 = vld [vmem:[%s1627 + $0x71] sm:$0xff]
      %v3248 = vld [vmem:[%s1627 + $0x89] sm:$0xff]
      %v3249 = vld [vmem:[%s1627 + $0x91] sm:$0xff]
      %v3250 = vld [vmem:[%s1627 + $0xa9] sm:$0xff]
      %v3251 = vld [vmem:[%s1627 + $0xb1] sm:$0xff]
      %v3252 = vld [vmem:[%s1627 + $0xc9] sm:$0xff]
      %v3253 = vld [vmem:[%s1627 + $0xd1] sm:$0xff]
      %v3254 = vld [vmem:[%s1627 + $0xe9] sm:$0xff]
      %v3255 = vld [vmem:[%s1627 + $0xf1] sm:$0xff]
      %v3256 = vld [vmem:[%s9 + $0x2] sm:$0x1]
      %v3257 = vperm.slane %v3256, 0
      %v3258 = vmul.f32 %v3240, %v3257
      %v3259 = vmul.f32 %v3241, %v3257
      %v3260 = vmul.f32 %v3242, %v3257
      %v3261 = vmul.f32 %v3243, %v3257
      %v3262 = vmul.f32 %v3244, %v3257
      %v3263 = vmul.f32 %v3245, %v3257
      %v3264 = vmul.f32 %v3246, %v3257
      %v3265 = vmul.f32 %v3247, %v3257
      %v3266 = vmul.f32 %v3248, %v3257
      %v3267 = vmul.f32 %v3249, %v3257
      %v3268 = vmul.f32 %v3250, %v3257
      %v3269 = vmul.f32 %v3251, %v3257
      %v3270 = vmul.f32 %v3252, %v3257
      %v3271 = vmul.f32 %v3253, %v3257
      %v3272 = vmul.f32 %v3254, %v3257
      %v3273 = vmul.f32 %v3255, %v3257
      %v3274 = vadd.f32 %v3224, %v3258
      %v3275 = vadd.f32 %v3225, %v3259
      %v3276 = vadd.f32 %v3226, %v3260
      %v3277 = vadd.f32 %v3227, %v3261
      %v3278 = vadd.f32 %v3228, %v3262
      %v3279 = vadd.f32 %v3229, %v3263
      %v3280 = vadd.f32 %v3230, %v3264
      %v3281 = vadd.f32 %v3231, %v3265
      %v3282 = vadd.f32 %v3232, %v3266
      %v3283 = vadd.f32 %v3233, %v3267
      %v3284 = vadd.f32 %v3234, %v3268
      %v3285 = vadd.f32 %v3235, %v3269
      %v3286 = vadd.f32 %v3236, %v3270
      %v3287 = vadd.f32 %v3237, %v3271
      %v3288 = vadd.f32 %v3238, %v3272
      %v3289 = vadd.f32 %v3239, %v3273
      %v3290 = vld [vmem:[%s1778 + $0x7] sm:$0xff]
      %v3291 = vld [vmem:[%s1778 + $0xf] sm:$0xff]
      %v3292 = vld [vmem:[%s1778 + $0x27] sm:$0xff]
      %v3293 = vld [vmem:[%s1778 + $0x2f] sm:$0xff]
      %v3294 = vld [vmem:[%s1778 + $0x47] sm:$0xff]
      %v3295 = vld [vmem:[%s1778 + $0x4f] sm:$0xff]
      %v3296 = vld [vmem:[%s1778 + $0x67] sm:$0xff]
      %v3297 = vld [vmem:[%s1778 + $0x6f] sm:$0xff]
      %v3298 = vld [vmem:[%s1778 + $0x87] sm:$0xff]
      %v3299 = vld [vmem:[%s1778 + $0x8f] sm:$0xff]
      %v3300 = vld [vmem:[%s1778 + $0xa7] sm:$0xff]
      %v3301 = vld [vmem:[%s1778 + $0xaf] sm:$0xff]
      %v3302 = vld [vmem:[%s1778 + $0xc7] sm:$0xff]
      %v3303 = vld [vmem:[%s1778 + $0xcf] sm:$0xff]
      %v3304 = vld [vmem:[%s1778 + $0xe7] sm:$0xff]
      %v3305 = vld [vmem:[%s1778 + $0xef] sm:$0xff]
      %v3306 = vld [vmem:[%s9 + $0x3] sm:$0x1]
      %v3307 = vperm.slane %v3306, 0
      %v3308 = vmul.f32 %v3290, %v3307
      %v3309 = vmul.f32 %v3291, %v3307
      %v3310 = vmul.f32 %v3292, %v3307
      %v3311 = vmul.f32 %v3293, %v3307
      %v3312 = vmul.f32 %v3294, %v3307
      %v3313 = vmul.f32 %v3295, %v3307
      %v3314 = vmul.f32 %v3296, %v3307
      %v3315 = vmul.f32 %v3297, %v3307
      %v3316 = vmul.f32 %v3298, %v3307
      %v3317 = vmul.f32 %v3299, %v3307
      %v3318 = vmul.f32 %v3300, %v3307
      %v3319 = vmul.f32 %v3301, %v3307
      %v3320 = vmul.f32 %v3302, %v3307
      %v3321 = vmul.f32 %v3303, %v3307
      %v3322 = vmul.f32 %v3304, %v3307
      %v3323 = vmul.f32 %v3305, %v3307
      %v3324 = vadd.f32 %v3274, %v3308
      %v3325 = vadd.f32 %v3275, %v3309
      %v3326 = vadd.f32 %v3276, %v3310
      %v3327 = vadd.f32 %v3277, %v3311
      %v3328 = vadd.f32 %v3278, %v3312
      %v3329 = vadd.f32 %v3279, %v3313
      %v3330 = vadd.f32 %v3280, %v3314
      %v3331 = vadd.f32 %v3281, %v3315
      %v3332 = vadd.f32 %v3282, %v3316
      %v3333 = vadd.f32 %v3283, %v3317
      %v3334 = vadd.f32 %v3284, %v3318
      %v3335 = vadd.f32 %v3285, %v3319
      %v3336 = vadd.f32 %v3286, %v3320
      %v3337 = vadd.f32 %v3287, %v3321
      %v3338 = vadd.f32 %v3288, %v3322
      %v3339 = vadd.f32 %v3289, %v3323
      %v3340 = vld [vmem:[%s1778 + $0x8] sm:$0xff]
      %v3341 = vld [vmem:[%s1778 + $0x10] sm:$0xff]
      %v3342 = vld [vmem:[%s1778 + $0x28] sm:$0xff]
      %v3343 = vld [vmem:[%s1778 + $0x30] sm:$0xff]
      %v3344 = vld [vmem:[%s1778 + $0x48] sm:$0xff]
      %v3345 = vld [vmem:[%s1778 + $0x50] sm:$0xff]
      %v3346 = vld [vmem:[%s1778 + $0x68] sm:$0xff]
      %v3347 = vld [vmem:[%s1778 + $0x70] sm:$0xff]
      %v3348 = vld [vmem:[%s1778 + $0x88] sm:$0xff]
      %v3349 = vld [vmem:[%s1778 + $0x90] sm:$0xff]
      %v3350 = vld [vmem:[%s1778 + $0xa8] sm:$0xff]
      %v3351 = vld [vmem:[%s1778 + $0xb0] sm:$0xff]
      %v3352 = vld [vmem:[%s1778 + $0xc8] sm:$0xff]
      %v3353 = vld [vmem:[%s1778 + $0xd0] sm:$0xff]
      %v3354 = vld [vmem:[%s1778 + $0xe8] sm:$0xff]
      %v3355 = vld [vmem:[%s1778 + $0xf0] sm:$0xff]
      %v3356 = vld [vmem:[%s9 + $0x4] sm:$0x1]
      %v3357 = vperm.slane %v3356, 0
      %v3358 = vmul.f32 %v3340, %v3357
      %v3359 = vmul.f32 %v3341, %v3357
      %v3360 = vmul.f32 %v3342, %v3357
      %v3361 = vmul.f32 %v3343, %v3357
      %v3362 = vmul.f32 %v3344, %v3357
      %v3363 = vmul.f32 %v3345, %v3357
      %v3364 = vmul.f32 %v3346, %v3357
      %v3365 = vmul.f32 %v3347, %v3357
      %v3366 = vmul.f32 %v3348, %v3357
      %v3367 = vmul.f32 %v3349, %v3357
      %v3368 = vmul.f32 %v3350, %v3357
      %v3369 = vmul.f32 %v3351, %v3357
      %v3370 = vmul.f32 %v3352, %v3357
      %v3371 = vmul.f32 %v3353, %v3357
      %v3372 = vmul.f32 %v3354, %v3357
      %v3373 = vmul.f32 %v3355, %v3357
      %v3374 = vadd.f32 %v3324, %v3358
      %v3375 = vadd.f32 %v3325, %v3359
      %v3376 = vadd.f32 %v3326, %v3360
      %v3377 = vadd.f32 %v3327, %v3361
      %v3378 = vadd.f32 %v3328, %v3362
      %v3379 = vadd.f32 %v3329, %v3363
      %v3380 = vadd.f32 %v3330, %v3364
      %v3381 = vadd.f32 %v3331, %v3365
      %v3382 = vadd.f32 %v3332, %v3366
      %v3383 = vadd.f32 %v3333, %v3367
      %v3384 = vadd.f32 %v3334, %v3368
      %v3385 = vadd.f32 %v3335, %v3369
      %v3386 = vadd.f32 %v3336, %v3370
      %v3387 = vadd.f32 %v3337, %v3371
      %v3388 = vadd.f32 %v3338, %v3372
      %v3389 = vadd.f32 %v3339, %v3373
      %v3390 = vld [vmem:[%s1778 + $0x9] sm:$0xff]
      %v3391 = vld [vmem:[%s1778 + $0x11] sm:$0xff]
      %v3392 = vld [vmem:[%s1778 + $0x29] sm:$0xff]
      %v3393 = vld [vmem:[%s1778 + $0x31] sm:$0xff]
      %v3394 = vld [vmem:[%s1778 + $0x49] sm:$0xff]
      %v3395 = vld [vmem:[%s1778 + $0x51] sm:$0xff]
      %v3396 = vld [vmem:[%s1778 + $0x69] sm:$0xff]
      %v3397 = vld [vmem:[%s1778 + $0x71] sm:$0xff]
      %v3398 = vld [vmem:[%s1778 + $0x89] sm:$0xff]
      %v3399 = vld [vmem:[%s1778 + $0x91] sm:$0xff]
      %v3400 = vld [vmem:[%s1778 + $0xa9] sm:$0xff]
      %v3401 = vld [vmem:[%s1778 + $0xb1] sm:$0xff]
      %v3402 = vld [vmem:[%s1778 + $0xc9] sm:$0xff]
      %v3403 = vld [vmem:[%s1778 + $0xd1] sm:$0xff]
      %v3404 = vld [vmem:[%s1778 + $0xe9] sm:$0xff]
      %v3405 = vld [vmem:[%s1778 + $0xf1] sm:$0xff]
      %v3406 = vld [vmem:[%s9 + $0x5] sm:$0x1]
      %v3407 = vperm.slane %v3406, 0
      %v3408 = vmul.f32 %v3390, %v3407
      %v3409 = vmul.f32 %v3391, %v3407
      %v3410 = vmul.f32 %v3392, %v3407
      %v3411 = vmul.f32 %v3393, %v3407
      %v3412 = vmul.f32 %v3394, %v3407
      %v3413 = vmul.f32 %v3395, %v3407
      %v3414 = vmul.f32 %v3396, %v3407
      %v3415 = vmul.f32 %v3397, %v3407
      %v3416 = vmul.f32 %v3398, %v3407
      %v3417 = vmul.f32 %v3399, %v3407
      %v3418 = vmul.f32 %v3400, %v3407
      %v3419 = vmul.f32 %v3401, %v3407
      %v3420 = vmul.f32 %v3402, %v3407
      %v3421 = vmul.f32 %v3403, %v3407
      %v3422 = vmul.f32 %v3404, %v3407
      %v3423 = vmul.f32 %v3405, %v3407
      %v3424 = vadd.f32 %v3374, %v3408
      %v3425 = vadd.f32 %v3375, %v3409
      %v3426 = vadd.f32 %v3376, %v3410
      %v3427 = vadd.f32 %v3377, %v3411
      %v3428 = vadd.f32 %v3378, %v3412
      %v3429 = vadd.f32 %v3379, %v3413
      %v3430 = vadd.f32 %v3380, %v3414
      %v3431 = vadd.f32 %v3381, %v3415
      %v3432 = vadd.f32 %v3382, %v3416
      %v3433 = vadd.f32 %v3383, %v3417
      %v3434 = vadd.f32 %v3384, %v3418
      %v3435 = vadd.f32 %v3385, %v3419
      %v3436 = vadd.f32 %v3386, %v3420
      %v3437 = vadd.f32 %v3387, %v3421
      %v3438 = vadd.f32 %v3388, %v3422
      %v3439 = vadd.f32 %v3389, %v3423
      %v3440 = vld [vmem:[%s1929 + $0x7] sm:$0xff]
      %v3441 = vld [vmem:[%s1929 + $0xf] sm:$0xff]
      %v3442 = vld [vmem:[%s1929 + $0x27] sm:$0xff]
      %v3443 = vld [vmem:[%s1929 + $0x2f] sm:$0xff]
      %v3444 = vld [vmem:[%s1929 + $0x47] sm:$0xff]
      %v3445 = vld [vmem:[%s1929 + $0x4f] sm:$0xff]
      %v3446 = vld [vmem:[%s1929 + $0x67] sm:$0xff]
      %v3447 = vld [vmem:[%s1929 + $0x6f] sm:$0xff]
      %v3448 = vld [vmem:[%s1929 + $0x87] sm:$0xff]
      %v3449 = vld [vmem:[%s1929 + $0x8f] sm:$0xff]
      %v3450 = vld [vmem:[%s1929 + $0xa7] sm:$0xff]
      %v3451 = vld [vmem:[%s1929 + $0xaf] sm:$0xff]
      %v3452 = vld [vmem:[%s1929 + $0xc7] sm:$0xff]
      %v3453 = vld [vmem:[%s1929 + $0xcf] sm:$0xff]
      %v3454 = vld [vmem:[%s1929 + $0xe7] sm:$0xff]
      %v3455 = vld [vmem:[%s1929 + $0xef] sm:$0xff]
      %v3456 = vld [vmem:[%s9 + $0x6] sm:$0x1]
      %v3457 = vperm.slane %v3456, 0
      %v3458 = vmul.f32 %v3440, %v3457
      %v3459 = vmul.f32 %v3441, %v3457
      %v3460 = vmul.f32 %v3442, %v3457
      %v3461 = vmul.f32 %v3443, %v3457
      %v3462 = vmul.f32 %v3444, %v3457
      %v3463 = vmul.f32 %v3445, %v3457
      %v3464 = vmul.f32 %v3446, %v3457
      %v3465 = vmul.f32 %v3447, %v3457
      %v3466 = vmul.f32 %v3448, %v3457
      %v3467 = vmul.f32 %v3449, %v3457
      %v3468 = vmul.f32 %v3450, %v3457
      %v3469 = vmul.f32 %v3451, %v3457
      %v3470 = vmul.f32 %v3452, %v3457
      %v3471 = vmul.f32 %v3453, %v3457
      %v3472 = vmul.f32 %v3454, %v3457
      %v3473 = vmul.f32 %v3455, %v3457
      %v3474 = vadd.f32 %v3424, %v3458
      %v3475 = vadd.f32 %v3425, %v3459
      %v3476 = vadd.f32 %v3426, %v3460
      %v3477 = vadd.f32 %v3427, %v3461
      %v3478 = vadd.f32 %v3428, %v3462
      %v3479 = vadd.f32 %v3429, %v3463
      %v3480 = vadd.f32 %v3430, %v3464
      %v3481 = vadd.f32 %v3431, %v3465
      %v3482 = vadd.f32 %v3432, %v3466
      %v3483 = vadd.f32 %v3433, %v3467
      %v3484 = vadd.f32 %v3434, %v3468
      %v3485 = vadd.f32 %v3435, %v3469
      %v3486 = vadd.f32 %v3436, %v3470
      %v3487 = vadd.f32 %v3437, %v3471
      %v3488 = vadd.f32 %v3438, %v3472
      %v3489 = vadd.f32 %v3439, %v3473
      %v3490 = vld [vmem:[%s1929 + $0x8] sm:$0xff]
      %v3491 = vld [vmem:[%s1929 + $0x10] sm:$0xff]
      %v3492 = vld [vmem:[%s1929 + $0x28] sm:$0xff]
      %v3493 = vld [vmem:[%s1929 + $0x30] sm:$0xff]
      %v3494 = vld [vmem:[%s1929 + $0x48] sm:$0xff]
      %v3495 = vld [vmem:[%s1929 + $0x50] sm:$0xff]
      %v3496 = vld [vmem:[%s1929 + $0x68] sm:$0xff]
      %v3497 = vld [vmem:[%s1929 + $0x70] sm:$0xff]
      %v3498 = vld [vmem:[%s1929 + $0x88] sm:$0xff]
      %v3499 = vld [vmem:[%s1929 + $0x90] sm:$0xff]
      %v3500 = vld [vmem:[%s1929 + $0xa8] sm:$0xff]
      %v3501 = vld [vmem:[%s1929 + $0xb0] sm:$0xff]
      %v3502 = vld [vmem:[%s1929 + $0xc8] sm:$0xff]
      %v3503 = vld [vmem:[%s1929 + $0xd0] sm:$0xff]
      %v3504 = vld [vmem:[%s1929 + $0xe8] sm:$0xff]
      %v3505 = vld [vmem:[%s1929 + $0xf0] sm:$0xff]
      %v3506 = vld [vmem:[%s9 + $0x7] sm:$0x1]
      %v3507 = vperm.slane %v3506, 0
      %v3508 = vmul.f32 %v3490, %v3507
      %v3509 = vmul.f32 %v3491, %v3507
      %v3510 = vmul.f32 %v3492, %v3507
      %v3511 = vmul.f32 %v3493, %v3507
      %v3512 = vmul.f32 %v3494, %v3507
      %v3513 = vmul.f32 %v3495, %v3507
      %v3514 = vmul.f32 %v3496, %v3507
      %v3515 = vmul.f32 %v3497, %v3507
      %v3516 = vmul.f32 %v3498, %v3507
      %v3517 = vmul.f32 %v3499, %v3507
      %v3518 = vmul.f32 %v3500, %v3507
      %v3519 = vmul.f32 %v3501, %v3507
      %v3520 = vmul.f32 %v3502, %v3507
      %v3521 = vmul.f32 %v3503, %v3507
      %v3522 = vmul.f32 %v3504, %v3507
      %v3523 = vmul.f32 %v3505, %v3507
      %v3524 = vadd.f32 %v3474, %v3508
      %v3525 = vadd.f32 %v3475, %v3509
      %v3526 = vadd.f32 %v3476, %v3510
      %v3527 = vadd.f32 %v3477, %v3511
      %v3528 = vadd.f32 %v3478, %v3512
      %v3529 = vadd.f32 %v3479, %v3513
      %v3530 = vadd.f32 %v3480, %v3514
      %v3531 = vadd.f32 %v3481, %v3515
      %v3532 = vadd.f32 %v3482, %v3516
      %v3533 = vadd.f32 %v3483, %v3517
      %v3534 = vadd.f32 %v3484, %v3518
      %v3535 = vadd.f32 %v3485, %v3519
      %v3536 = vadd.f32 %v3486, %v3520
      %v3537 = vadd.f32 %v3487, %v3521
      %v3538 = vadd.f32 %v3488, %v3522
      %v3539 = vadd.f32 %v3489, %v3523
      %v3540 = vld [vmem:[%s1929 + $0x9] sm:$0xff]
      %v3541 = vld [vmem:[%s1929 + $0x11] sm:$0xff]
      %v3542 = vld [vmem:[%s1929 + $0x29] sm:$0xff]
      %v3543 = vld [vmem:[%s1929 + $0x31] sm:$0xff]
      %v3544 = vld [vmem:[%s1929 + $0x49] sm:$0xff]
      %v3545 = vld [vmem:[%s1929 + $0x51] sm:$0xff]
      %v3546 = vld [vmem:[%s1929 + $0x69] sm:$0xff]
      %v3547 = vld [vmem:[%s1929 + $0x71] sm:$0xff]
      %v3548 = vld [vmem:[%s1929 + $0x89] sm:$0xff]
      %v3549 = vld [vmem:[%s1929 + $0x91] sm:$0xff]
      %v3550 = vld [vmem:[%s1929 + $0xa9] sm:$0xff]
      %v3551 = vld [vmem:[%s1929 + $0xb1] sm:$0xff]
      %v3552 = vld [vmem:[%s1929 + $0xc9] sm:$0xff]
      %v3553 = vld [vmem:[%s1929 + $0xd1] sm:$0xff]
      %v3554 = vld [vmem:[%s1929 + $0xe9] sm:$0xff]
      %v3555 = vld [vmem:[%s1929 + $0xf1] sm:$0xff]
      %v3556 = vld [vmem:[%s9 + $0x8] sm:$0x1]
      %v3557 = vperm.slane %v3556, 0
      %v3558 = vmul.f32 %v3540, %v3557
      %v3559 = vmul.f32 %v3541, %v3557
      %v3560 = vmul.f32 %v3542, %v3557
      %v3561 = vmul.f32 %v3543, %v3557
      %v3562 = vmul.f32 %v3544, %v3557
      %v3563 = vmul.f32 %v3545, %v3557
      %v3564 = vmul.f32 %v3546, %v3557
      %v3565 = vmul.f32 %v3547, %v3557
      %v3566 = vmul.f32 %v3548, %v3557
      %v3567 = vmul.f32 %v3549, %v3557
      %v3568 = vmul.f32 %v3550, %v3557
      %v3569 = vmul.f32 %v3551, %v3557
      %v3570 = vmul.f32 %v3552, %v3557
      %v3571 = vmul.f32 %v3553, %v3557
      %v3572 = vmul.f32 %v3554, %v3557
      %v3573 = vmul.f32 %v3555, %v3557
      %v3574 = vadd.f32 %v3524, %v3558
      %v3575 = vadd.f32 %v3525, %v3559
      %v3576 = vadd.f32 %v3526, %v3560
      %v3577 = vadd.f32 %v3527, %v3561
      %v3578 = vadd.f32 %v3528, %v3562
      %v3579 = vadd.f32 %v3529, %v3563
      %v3580 = vadd.f32 %v3530, %v3564
      %v3581 = vadd.f32 %v3531, %v3565
      %v3582 = vadd.f32 %v3532, %v3566
      %v3583 = vadd.f32 %v3533, %v3567
      %v3584 = vadd.f32 %v3534, %v3568
      %v3585 = vadd.f32 %v3535, %v3569
      %v3586 = vadd.f32 %v3536, %v3570
      %v3587 = vadd.f32 %v3537, %v3571
      %v3588 = vadd.f32 %v3538, %v3572
      %v3589 = vadd.f32 %v3539, %v3573
      %v3590 = vld [vmem:[%s10] sm:$0x1]
      %v3592 = vperm.slane %v3590, 0
      %v3594 = vadd.f32 %v3574, %v3592
      %v3595 = vadd.f32 %v3575, %v3592
      %v3596 = vadd.f32 %v3576, %v3592
      %v3597 = vadd.f32 %v3577, %v3592
      %v3598 = vadd.f32 %v3578, %v3592
      %v3599 = vadd.f32 %v3579, %v3592
      %v3600 = vadd.f32 %v3580, %v3592
      %v3601 = vadd.f32 %v3581, %v3592
      %v3602 = vadd.f32 %v3582, %v3592
      %v3603 = vadd.f32 %v3583, %v3592
      %v3604 = vadd.f32 %v3584, %v3592
      %v3605 = vadd.f32 %v3585, %v3592
      %v3606 = vadd.f32 %v3586, %v3592
      %v3607 = vadd.f32 %v3587, %v3592
      %v3608 = vadd.f32 %v3588, %v3592
      %v3609 = vadd.f32 %v3589, %v3592
      %v3610 = vmax.f32 %v3594, 0.0
      %v3611 = vmax.f32 %v3595, 0.0
      %v3612 = vmax.f32 %v3596, 0.0
      %v3613 = vmax.f32 %v3597, 0.0
      %v3614 = vmax.f32 %v3598, 0.0
      %v3615 = vmax.f32 %v3599, 0.0
      %v3616 = vmax.f32 %v3600, 0.0
      %v3617 = vmax.f32 %v3601, 0.0
      %v3618 = vmax.f32 %v3602, 0.0
      %v3619 = vmax.f32 %v3603, 0.0
      %v3620 = vmax.f32 %v3604, 0.0
      %v3621 = vmax.f32 %v3605, 0.0
      %v3622 = vmax.f32 %v3606, 0.0
      %v3623 = vmax.f32 %v3607, 0.0
      %v3624 = vmax.f32 %v3608, 0.0
      %v3625 = vmax.f32 %v3609, 0.0
      %3626 = vst [vmem:[#allocation4 + $0x80] sm:$0xff] %v3610
      %3627 = vst [vmem:[#allocation4 + $0x88] sm:$0xff] %v3611
      %3628 = vst [vmem:[#allocation4 + $0x90] sm:$0xff] %v3612
      %3629 = vst [vmem:[#allocation4 + $0x98] sm:$0xff] %v3613
      %3630 = vst [vmem:[#allocation4 + $0xa0] sm:$0xff] %v3614
      %3631 = vst [vmem:[#allocation4 + $0xa8] sm:$0xff] %v3615
      %3632 = vst [vmem:[#allocation4 + $0xb0] sm:$0xff] %v3616
      %3633 = vst [vmem:[#allocation4 + $0xb8] sm:$0xff] %v3617
      %3634 = vst [vmem:[#allocation4 + $0xc0] sm:$0xff] %v3618
      %3635 = vst [vmem:[#allocation4 + $0xc8] sm:$0xff] %v3619
      %3636 = vst [vmem:[#allocation4 + $0xd0] sm:$0xff] %v3620
      %3637 = vst [vmem:[#allocation4 + $0xd8] sm:$0xff] %v3621
      %3638 = vst [vmem:[#allocation4 + $0xe0] sm:$0xff] %v3622
      %3639 = vst [vmem:[#allocation4 + $0xe8] sm:$0xff] %v3623
      %3640 = vst [vmem:[#allocation4 + $0xf0] sm:$0xff] %v3624
      %3641 = vst [vmem:[#allocation4 + $0xf8] sm:$0xff] %v3625
      %v3642 = vld [vmem:[#allocation4] sm:$0xff]
      %v3643 = vld [vmem:[#allocation4 + $0x8] sm:$0xff]
      %v3644 = vld [vmem:[#allocation4 + $0x10] sm:$0xff]
      %v3645 = vld [vmem:[#allocation4 + $0x18] sm:$0xff]
      %v3646 = vld [vmem:[#allocation4 + $0x20] sm:$0xff]
      %v3647 = vld [vmem:[#allocation4 + $0x28] sm:$0xff]
      %v3648 = vld [vmem:[#allocation4 + $0x30] sm:$0xff]
      %v3649 = vld [vmem:[#allocation4 + $0x38] sm:$0xff]
      %v3650 = vld [vmem:[#allocation4 + $0x40] sm:$0xff]
      %v3651 = vld [vmem:[#allocation4 + $0x48] sm:$0xff]
      %v3652 = vld [vmem:[#allocation4 + $0x50] sm:$0xff]
      %v3653 = vld [vmem:[#allocation4 + $0x58] sm:$0xff]
      %v3654 = vld [vmem:[#allocation4 + $0x60] sm:$0xff]
      %v3655 = vld [vmem:[#allocation4 + $0x68] sm:$0xff]
      %v3656 = vld [vmem:[#allocation4 + $0x70] sm:$0xff]
      %v3657 = vld [vmem:[#allocation4 + $0x78] sm:$0xff]
      %v3658 = vld [vmem:[#allocation4 + $0x80] sm:$0xff]
      %v3659 = vld [vmem:[#allocation4 + $0x88] sm:$0xff]
      %v3660 = vld [vmem:[#allocation4 + $0x90] sm:$0xff]
      %v3661 = vld [vmem:[#allocation4 + $0x98] sm:$0xff]
      %v3662 = vld [vmem:[#allocation4 + $0xa0] sm:$0xff]
      %v3663 = vld [vmem:[#allocation4 + $0xa8] sm:$0xff]
      %v3664 = vld [vmem:[#allocation4 + $0xb0] sm:$0xff]
      %v3665 = vld [vmem:[#allocation4 + $0xb8] sm:$0xff]
      %v3666 = vld [vmem:[#allocation4 + $0xc0] sm:$0xff]
      %v3667 = vld [vmem:[#allocation4 + $0xc8] sm:$0xff]
      %v3668 = vld [vmem:[#allocation4 + $0xd0] sm:$0xff]
      %v3669 = vld [vmem:[#allocation4 + $0xd8] sm:$0xff]
      %v3670 = vld [vmem:[#allocation4 + $0xe0] sm:$0xff]
      %v3671 = vld [vmem:[#allocation4 + $0xe8] sm:$0xff]
      %v3672 = vld [vmem:[#allocation4 + $0xf0] sm:$0xff]
      %v3673 = vld [vmem:[#allocation4 + $0xf8] sm:$0xff]
      %v3674 = vpack.c.bf16 %v3643, %v3642
      %v3675 = vpack.c.bf16 %v3645, %v3644
      %v3676 = vpack.c.bf16 %v3647, %v3646
      %v3677 = vpack.c.bf16 %v3649, %v3648
      %v3678 = vpack.c.bf16 %v3651, %v3650
      %v3679 = vpack.c.bf16 %v3653, %v3652
      %v3680 = vpack.c.bf16 %v3655, %v3654
      %v3681 = vpack.c.bf16 %v3657, %v3656
      %v3682 = vpack.c.bf16 %v3659, %v3658
      %v3683 = vpack.c.bf16 %v3661, %v3660
      %v3684 = vpack.c.bf16 %v3663, %v3662
      %v3685 = vpack.c.bf16 %v3665, %v3664
      %v3686 = vpack.c.bf16 %v3667, %v3666
      %v3687 = vpack.c.bf16 %v3669, %v3668
      %v3688 = vpack.c.bf16 %v3671, %v3670
      %v3689 = vpack.c.bf16 %v3673, %v3672
      %v3690 = vld [vmem:[%s11] sm:$0xf]
      %v3691 = vld [vmem:[%s11 + $0x4] sm:$0xf]
      %v3692 = vld [vmem:[%s11 + $0x8] sm:$0xf]
      %v3693 = vld [vmem:[%s11 + $0xc] sm:$0xf]
      %v3694 = vld [vmem:[%s11 + $0x10] sm:$0xf]
      %v3695 = vld [vmem:[%s11 + $0x14] sm:$0xf]
      %v3696 = vld [vmem:[%s11 + $0x18] sm:$0xf]
      %v3697 = vld [vmem:[%s11 + $0x1c] sm:$0xf]
      %v3698 = vld [vmem:[%s11 + $0x20] sm:$0xf]
      %v3699 = vld [vmem:[%s11 + $0x24] sm:$0xf]
      %v3700 = vld [vmem:[%s11 + $0x28] sm:$0xf]
      %v3701 = vld [vmem:[%s11 + $0x2c] sm:$0xf]
      %v3702 = vld [vmem:[%s11 + $0x30] sm:$0xf]
      %v3703 = vld [vmem:[%s11 + $0x34] sm:$0xf]
      %v3704 = vld [vmem:[%s11 + $0x38] sm:$0xf]
      %v3705 = vld [vmem:[%s11 + $0x3c] sm:$0xf]
      %v3706 = vld [vmem:[%s12] sm:$0x1]
      %v3708 = vperm.slane %v3706, 0
      %v3726 = vunpack.c.l.b16 %v3690
      %v3727 = vunpack.c.l.b16 %v3691
      %v3728 = vunpack.c.l.b16 %v3692
      %v3729 = vunpack.c.l.b16 %v3693
      %v3730 = vunpack.c.l.b16 %v3694
      %v3731 = vunpack.c.l.b16 %v3695
      %v3732 = vunpack.c.l.b16 %v3696
      %v3733 = vunpack.c.l.b16 %v3697
      %v3734 = vunpack.c.l.b16 %v3698
      %v3735 = vunpack.c.l.b16 %v3699
      %v3736 = vunpack.c.l.b16 %v3700
      %v3737 = vunpack.c.l.b16 %v3701
      %v3738 = vunpack.c.l.b16 %v3702
      %v3739 = vunpack.c.l.b16 %v3703
      %v3740 = vunpack.c.l.b16 %v3704
      %v3741 = vunpack.c.l.b16 %v3705
      %v3742 = vpack.c.b16 %v3727, %v3726
      %v3743 = vpack.c.b16 %v3729, %v3728
      %v3744 = vpack.c.b16 %v3731, %v3730
      %v3745 = vpack.c.b16 %v3733, %v3732
      %v3746 = vpack.c.b16 %v3735, %v3734
      %v3747 = vpack.c.b16 %v3737, %v3736
      %v3748 = vpack.c.b16 %v3739, %v3738
      %v3749 = vpack.c.b16 %v3741, %v3740
      %3758 = vmatpush.bf16.msra.mxu0 %v3749
      %3759 = vmatpush.bf16.msra.mxu0 %v3748
      %3760 = vmatpush.bf16.msra.mxu0 %v3747
      %3761 = vmatpush.bf16.msra.mxu0 %v3746
      %3762 = vmatpush.bf16.msra.mxu0 %v3745
      %3763 = vmatpush.bf16.msra.mxu0 %v3744
      %3764 = vmatpush.bf16.msra.mxu0 %v3743
      %3765 = vmatpush.bf16.msra.mxu0 %v3742
      %3766 = vmatmul.bf16.gmra.mxu0 %v3674
      %v3767 = vpop.f32.mrf.mxu0
      %v3768 = vadd.f32 %v3708, %v3767
      %v3769 = vpop.f32.mrf.mxu0
      %v3770 = vadd.f32 %v3708, %v3769
      %3771 = vmatmul.bf16.gmra.mxu0 %v3675
      %v3772 = vpop.f32.mrf.mxu0
      %v3773 = vadd.f32 %v3708, %v3772
      %v3774 = vpop.f32.mrf.mxu0
      %v3775 = vadd.f32 %v3708, %v3774
      %3776 = vmatmul.bf16.gmra.mxu0 %v3676
      %v3777 = vpop.f32.mrf.mxu0
      %v3778 = vadd.f32 %v3708, %v3777
      %v3779 = vpop.f32.mrf.mxu0
      %v3780 = vadd.f32 %v3708, %v3779
      %3781 = vmatmul.bf16.gmra.mxu0 %v3677
      %v3782 = vpop.f32.mrf.mxu0
      %v3783 = vadd.f32 %v3708, %v3782
      %v3784 = vpop.f32.mrf.mxu0
      %v3785 = vadd.f32 %v3708, %v3784
      %3786 = vmatmul.bf16.gmra.mxu0 %v3678
      %v3787 = vpop.f32.mrf.mxu0
      %v3788 = vadd.f32 %v3708, %v3787
      %v3789 = vpop.f32.mrf.mxu0
      %v3790 = vadd.f32 %v3708, %v3789
      %3791 = vmatmul.bf16.gmra.mxu0 %v3679
      %v3792 = vpop.f32.mrf.mxu0
      %v3793 = vadd.f32 %v3708, %v3792
      %v3794 = vpop.f32.mrf.mxu0
      %v3795 = vadd.f32 %v3708, %v3794
      %3796 = vmatmul.bf16.gmra.mxu0 %v3680
      %v3797 = vpop.f32.mrf.mxu0
      %v3798 = vadd.f32 %v3708, %v3797
      %v3799 = vpop.f32.mrf.mxu0
      %v3800 = vadd.f32 %v3708, %v3799
      %3801 = vmatmul.bf16.gmra.mxu0 %v3681
      %v3802 = vpop.f32.mrf.mxu0
      %v3803 = vadd.f32 %v3708, %v3802
      %v3804 = vpop.f32.mrf.mxu0
      %v3805 = vadd.f32 %v3708, %v3804
      %3806 = vmatmul.bf16.gmra.mxu0 %v3682
      %v3807 = vpop.f32.mrf.mxu0
      %v3808 = vadd.f32 %v3708, %v3807
      %v3809 = vpop.f32.mrf.mxu0
      %v3810 = vadd.f32 %v3708, %v3809
      %3811 = vmatmul.bf16.gmra.mxu0 %v3683
      %v3812 = vpop.f32.mrf.mxu0
      %v3813 = vadd.f32 %v3708, %v3812
      %v3814 = vpop.f32.mrf.mxu0
      %v3815 = vadd.f32 %v3708, %v3814
      %3816 = vmatmul.bf16.gmra.mxu0 %v3684
      %v3817 = vpop.f32.mrf.mxu0
      %v3818 = vadd.f32 %v3708, %v3817
      %v3819 = vpop.f32.mrf.mxu0
      %v3820 = vadd.f32 %v3708, %v3819
      %3821 = vmatmul.bf16.gmra.mxu0 %v3685
      %v3822 = vpop.f32.mrf.mxu0
      %v3823 = vadd.f32 %v3708, %v3822
      %v3824 = vpop.f32.mrf.mxu0
      %v3825 = vadd.f32 %v3708, %v3824
      %3826 = vmatmul.bf16.gmra.mxu0 %v3686
      %v3827 = vpop.f32.mrf.mxu0
      %v3828 = vadd.f32 %v3708, %v3827
      %v3829 = vpop.f32.mrf.mxu0
      %v3830 = vadd.f32 %v3708, %v3829
      %3831 = vmatmul.bf16.gmra.mxu0 %v3687
      %v3832 = vpop.f32.mrf.mxu0
      %v3833 = vadd.f32 %v3708, %v3832
      %v3834 = vpop.f32.mrf.mxu0
      %v3835 = vadd.f32 %v3708, %v3834
      %3836 = vmatmul.bf16.gmra.mxu0 %v3688
      %v3837 = vpop.f32.mrf.mxu0
      %v3838 = vadd.f32 %v3708, %v3837
      %v3839 = vpop.f32.mrf.mxu0
      %v3840 = vadd.f32 %v3708, %v3839
      %3841 = vmatmul.bf16.gmra.mxu0 %v3689
      %v3842 = vpop.f32.mrf.mxu0
      %v3843 = vadd.f32 %v3708, %v3842
      %v3844 = vpop.f32.mrf.mxu0
      %v3845 = vadd.f32 %v3708, %v3844
      %3846 = vdwg.mxu0
      %3847 = vst [vmem:[#allocation3] sm:$0xff] %v3768
      %3848 = vst [vmem:[#allocation3 + $0x8] sm:$0xff] %v3770
      %3849 = vst [vmem:[#allocation3 + $0x10] sm:$0xff] %v3773
      %3850 = vst [vmem:[#allocation3 + $0x18] sm:$0xff] %v3775
      %3851 = vst [vmem:[#allocation3 + $0x20] sm:$0xff] %v3778
      %3852 = vst [vmem:[#allocation3 + $0x28] sm:$0xff] %v3780
      %3853 = vst [vmem:[#allocation3 + $0x30] sm:$0xff] %v3783
      %3854 = vst [vmem:[#allocation3 + $0x38] sm:$0xff] %v3785
      %3855 = vst [vmem:[#allocation3 + $0x40] sm:$0xff] %v3788
      %3856 = vst [vmem:[#allocation3 + $0x48] sm:$0xff] %v3790
      %3857 = vst [vmem:[#allocation3 + $0x50] sm:$0xff] %v3793
      %3858 = vst [vmem:[#allocation3 + $0x58] sm:$0xff] %v3795
      %3859 = vst [vmem:[#allocation3 + $0x60] sm:$0xff] %v3798
      %3860 = vst [vmem:[#allocation3 + $0x68] sm:$0xff] %v3800
      %3861 = vst [vmem:[#allocation3 + $0x70] sm:$0xff] %v3803
      %3862 = vst [vmem:[#allocation3 + $0x78] sm:$0xff] %v3805
      %3863 = vst [vmem:[#allocation3 + $0x80] sm:$0xff] %v3808
      %3864 = vst [vmem:[#allocation3 + $0x88] sm:$0xff] %v3810
      %3865 = vst [vmem:[#allocation3 + $0x90] sm:$0xff] %v3813
      %3866 = vst [vmem:[#allocation3 + $0x98] sm:$0xff] %v3815
      %3867 = vst [vmem:[#allocation3 + $0xa0] sm:$0xff] %v3818
      %3868 = vst [vmem:[#allocation3 + $0xa8] sm:$0xff] %v3820
      %3869 = vst [vmem:[#allocation3 + $0xb0] sm:$0xff] %v3823
      %3870 = vst [vmem:[#allocation3 + $0xb8] sm:$0xff] %v3825
      %3871 = vst [vmem:[#allocation3 + $0xc0] sm:$0xff] %v3828
      %3872 = vst [vmem:[#allocation3 + $0xc8] sm:$0xff] %v3830
      %3873 = vst [vmem:[#allocation3 + $0xd0] sm:$0xff] %v3833
      %3874 = vst [vmem:[#allocation3 + $0xd8] sm:$0xff] %v3835
      %3875 = vst [vmem:[#allocation3 + $0xe0] sm:$0xff] %v3838
      %3876 = vst [vmem:[#allocation3 + $0xe8] sm:$0xff] %v3840
      %3877 = vst [vmem:[#allocation3 + $0xf0] sm:$0xff] %v3843
      %3878 = vst [vmem:[#allocation3 + $0xf8] sm:$0xff] %v3845
      %v3879 = vld [vmem:[#allocation3] sm:$0xff]
      %v3880 = vld [vmem:[#allocation3 + $0x8] sm:$0xff]
      %v3881 = vld [vmem:[#allocation3 + $0x10] sm:$0xff]
      %v3882 = vld [vmem:[#allocation3 + $0x18] sm:$0xff]
      %v3883 = vld [vmem:[#allocation3 + $0x20] sm:$0xff]
      %v3884 = vld [vmem:[#allocation3 + $0x28] sm:$0xff]
      %v3885 = vld [vmem:[#allocation3 + $0x30] sm:$0xff]
      %v3886 = vld [vmem:[#allocation3 + $0x38] sm:$0xff]
      %v3887 = vld [vmem:[#allocation3 + $0x40] sm:$0xff]
      %v3888 = vld [vmem:[#allocation3 + $0x48] sm:$0xff]
      %v3889 = vld [vmem:[#allocation3 + $0x50] sm:$0xff]
      %v3890 = vld [vmem:[#allocation3 + $0x58] sm:$0xff]
      %v3891 = vld [vmem:[#allocation3 + $0x60] sm:$0xff]
      %v3892 = vld [vmem:[#allocation3 + $0x68] sm:$0xff]
      %v3893 = vld [vmem:[#allocation3 + $0x70] sm:$0xff]
      %v3894 = vld [vmem:[#allocation3 + $0x78] sm:$0xff]
      %v3895 = vld [vmem:[#allocation3 + $0x80] sm:$0xff]
      %v3896 = vld [vmem:[#allocation3 + $0x88] sm:$0xff]
      %v3897 = vld [vmem:[#allocation3 + $0x90] sm:$0xff]
      %v3898 = vld [vmem:[#allocation3 + $0x98] sm:$0xff]
      %v3899 = vld [vmem:[#allocation3 + $0xa0] sm:$0xff]
      %v3900 = vld [vmem:[#allocation3 + $0xa8] sm:$0xff]
      %v3901 = vld [vmem:[#allocation3 + $0xb0] sm:$0xff]
      %v3902 = vld [vmem:[#allocation3 + $0xb8] sm:$0xff]
      %v3903 = vld [vmem:[#allocation3 + $0xc0] sm:$0xff]
      %v3904 = vld [vmem:[#allocation3 + $0xc8] sm:$0xff]
      %v3905 = vld [vmem:[#allocation3 + $0xd0] sm:$0xff]
      %v3906 = vld [vmem:[#allocation3 + $0xd8] sm:$0xff]
      %v3907 = vld [vmem:[#allocation3 + $0xe0] sm:$0xff]
      %v3908 = vld [vmem:[#allocation3 + $0xe8] sm:$0xff]
      %v3909 = vld [vmem:[#allocation3 + $0xf0] sm:$0xff]
      %v3910 = vld [vmem:[#allocation3 + $0xf8] sm:$0xff]
      %v3911 = vpack.c.bf16 %v3880, %v3879
      %v3912 = vpack.c.bf16 %v3882, %v3881
      %v3913 = vpack.c.bf16 %v3884, %v3883
      %v3914 = vpack.c.bf16 %v3886, %v3885
      %v3915 = vpack.c.bf16 %v3888, %v3887
      %v3916 = vpack.c.bf16 %v3890, %v3889
      %v3917 = vpack.c.bf16 %v3892, %v3891
      %v3918 = vpack.c.bf16 %v3894, %v3893
      %v3919 = vpack.c.bf16 %v3896, %v3895
      %v3920 = vpack.c.bf16 %v3898, %v3897
      %v3921 = vpack.c.bf16 %v3900, %v3899
      %v3922 = vpack.c.bf16 %v3902, %v3901
      %v3923 = vpack.c.bf16 %v3904, %v3903
      %v3924 = vpack.c.bf16 %v3906, %v3905
      %v3925 = vpack.c.bf16 %v3908, %v3907
      %v3926 = vpack.c.bf16 %v3910, %v3909
      %v3927 = vld [vmem:[%s13] sm:$0xf]
      %v3928 = vld [vmem:[%s13 + $0x4] sm:$0xf]
      %v3929 = vld [vmem:[%s13 + $0x8] sm:$0xf]
      %v3930 = vld [vmem:[%s13 + $0xc] sm:$0xf]
      %v3931 = vld [vmem:[%s13 + $0x10] sm:$0xf]
      %v3932 = vld [vmem:[%s13 + $0x14] sm:$0xf]
      %v3933 = vld [vmem:[%s13 + $0x18] sm:$0xf]
      %v3934 = vld [vmem:[%s13 + $0x1c] sm:$0xf]
      %v3935 = vld [vmem:[%s13 + $0x20] sm:$0xf]
      %v3936 = vld [vmem:[%s13 + $0x24] sm:$0xf]
      %v3937 = vld [vmem:[%s13 + $0x28] sm:$0xf]
      %v3938 = vld [vmem:[%s13 + $0x2c] sm:$0xf]
      %v3939 = vld [vmem:[%s13 + $0x30] sm:$0xf]
      %v3940 = vld [vmem:[%s13 + $0x34] sm:$0xf]
      %v3941 = vld [vmem:[%s13 + $0x38] sm:$0xf]
      %v3942 = vld [vmem:[%s13 + $0x3c] sm:$0xf]
      %v3943 = vld [vmem:[%s14] sm:$0x1]
      %v3945 = vperm.slane %v3943, 0
      %v3963 = vunpack.c.l.b16 %v3927
      %v3964 = vunpack.c.l.b16 %v3928
      %v3965 = vunpack.c.l.b16 %v3929
      %v3966 = vunpack.c.l.b16 %v3930
      %v3967 = vunpack.c.l.b16 %v3931
      %v3968 = vunpack.c.l.b16 %v3932
      %v3969 = vunpack.c.l.b16 %v3933
      %v3970 = vunpack.c.l.b16 %v3934
      %v3971 = vunpack.c.l.b16 %v3935
      %v3972 = vunpack.c.l.b16 %v3936
      %v3973 = vunpack.c.l.b16 %v3937
      %v3974 = vunpack.c.l.b16 %v3938
      %v3975 = vunpack.c.l.b16 %v3939
      %v3976 = vunpack.c.l.b16 %v3940
      %v3977 = vunpack.c.l.b16 %v3941
      %v3978 = vunpack.c.l.b16 %v3942
      %v3979 = vpack.c.b16 %v3964, %v3963
      %v3980 = vpack.c.b16 %v3966, %v3965
      %v3981 = vpack.c.b16 %v3968, %v3967
      %v3982 = vpack.c.b16 %v3970, %v3969
      %v3983 = vpack.c.b16 %v3972, %v3971
      %v3984 = vpack.c.b16 %v3974, %v3973
      %v3985 = vpack.c.b16 %v3976, %v3975
      %v3986 = vpack.c.b16 %v3978, %v3977
      %3995 = vmatpush.bf16.msra.mxu0 %v3986
      %3996 = vmatpush.bf16.msra.mxu0 %v3985
      %3997 = vmatpush.bf16.msra.mxu0 %v3984
      %3998 = vmatpush.bf16.msra.mxu0 %v3983
      %3999 = vmatpush.bf16.msra.mxu0 %v3982
      %4000 = vmatpush.bf16.msra.mxu0 %v3981
      %4001 = vmatpush.bf16.msra.mxu0 %v3980
      %4002 = vmatpush.bf16.msra.mxu0 %v3979
      %4003 = vmatmul.bf16.gmra.mxu0 %v3911
      %v4004 = vpop.f32.mrf.mxu0
      %v4005 = vadd.f32 %v3945, %v4004
      %v4006 = vpop.f32.mrf.mxu0
      %v4007 = vadd.f32 %v3945, %v4006
      %4008 = vmatmul.bf16.gmra.mxu0 %v3912
      %v4009 = vpop.f32.mrf.mxu0
      %v4010 = vadd.f32 %v3945, %v4009
      %v4011 = vpop.f32.mrf.mxu0
      %v4012 = vadd.f32 %v3945, %v4011
      %4013 = vmatmul.bf16.gmra.mxu0 %v3913
      %v4014 = vpop.f32.mrf.mxu0
      %v4015 = vadd.f32 %v3945, %v4014
      %v4016 = vpop.f32.mrf.mxu0
      %v4017 = vadd.f32 %v3945, %v4016
      %4018 = vmatmul.bf16.gmra.mxu0 %v3914
      %v4019 = vpop.f32.mrf.mxu0
      %v4020 = vadd.f32 %v3945, %v4019
      %v4021 = vpop.f32.mrf.mxu0
      %v4022 = vadd.f32 %v3945, %v4021
      %4023 = vmatmul.bf16.gmra.mxu0 %v3915
      %v4024 = vpop.f32.mrf.mxu0
      %v4025 = vadd.f32 %v3945, %v4024
      %v4026 = vpop.f32.mrf.mxu0
      %v4027 = vadd.f32 %v3945, %v4026
      %4028 = vmatmul.bf16.gmra.mxu0 %v3916
      %v4029 = vpop.f32.mrf.mxu0
      %v4030 = vadd.f32 %v3945, %v4029
      %v4031 = vpop.f32.mrf.mxu0
      %v4032 = vadd.f32 %v3945, %v4031
      %4033 = vmatmul.bf16.gmra.mxu0 %v3917
      %v4034 = vpop.f32.mrf.mxu0
      %v4035 = vadd.f32 %v3945, %v4034
      %v4036 = vpop.f32.mrf.mxu0
      %v4037 = vadd.f32 %v3945, %v4036
      %4038 = vmatmul.bf16.gmra.mxu0 %v3918
      %v4039 = vpop.f32.mrf.mxu0
      %v4040 = vadd.f32 %v3945, %v4039
      %v4041 = vpop.f32.mrf.mxu0
      %v4042 = vadd.f32 %v3945, %v4041
      %4043 = vmatmul.bf16.gmra.mxu0 %v3919
      %v4044 = vpop.f32.mrf.mxu0
      %v4045 = vadd.f32 %v3945, %v4044
      %v4046 = vpop.f32.mrf.mxu0
      %v4047 = vadd.f32 %v3945, %v4046
      %4048 = vmatmul.bf16.gmra.mxu0 %v3920
      %v4049 = vpop.f32.mrf.mxu0
      %v4050 = vadd.f32 %v3945, %v4049
      %v4051 = vpop.f32.mrf.mxu0
      %v4052 = vadd.f32 %v3945, %v4051
      %4053 = vmatmul.bf16.gmra.mxu0 %v3921
      %v4054 = vpop.f32.mrf.mxu0
      %v4055 = vadd.f32 %v3945, %v4054
      %v4056 = vpop.f32.mrf.mxu0
      %v4057 = vadd.f32 %v3945, %v4056
      %4058 = vmatmul.bf16.gmra.mxu0 %v3922
      %v4059 = vpop.f32.mrf.mxu0
      %v4060 = vadd.f32 %v3945, %v4059
      %v4061 = vpop.f32.mrf.mxu0
      %v4062 = vadd.f32 %v3945, %v4061
      %4063 = vmatmul.bf16.gmra.mxu0 %v3923
      %v4064 = vpop.f32.mrf.mxu0
      %v4065 = vadd.f32 %v3945, %v4064
      %v4066 = vpop.f32.mrf.mxu0
      %v4067 = vadd.f32 %v3945, %v4066
      %4068 = vmatmul.bf16.gmra.mxu0 %v3924
      %v4069 = vpop.f32.mrf.mxu0
      %v4070 = vadd.f32 %v3945, %v4069
      %v4071 = vpop.f32.mrf.mxu0
      %v4072 = vadd.f32 %v3945, %v4071
      %4073 = vmatmul.bf16.gmra.mxu0 %v3925
      %v4074 = vpop.f32.mrf.mxu0
      %v4075 = vadd.f32 %v3945, %v4074
      %v4076 = vpop.f32.mrf.mxu0
      %v4077 = vadd.f32 %v3945, %v4076
      %4078 = vmatmul.bf16.gmra.mxu0 %v3926
      %v4079 = vpop.f32.mrf.mxu0
      %v4080 = vadd.f32 %v3945, %v4079
      %v4081 = vpop.f32.mrf.mxu0
      %v4082 = vadd.f32 %v3945, %v4081
      %4083 = vdwg.mxu0
      %v4084 = vmax.f32 %v4005, 0.0
      %v4085 = vmax.f32 %v4007, 0.0
      %v4086 = vmax.f32 %v4010, 0.0
      %v4087 = vmax.f32 %v4012, 0.0
      %v4088 = vmax.f32 %v4015, 0.0
      %v4089 = vmax.f32 %v4017, 0.0
      %v4090 = vmax.f32 %v4020, 0.0
      %v4091 = vmax.f32 %v4022, 0.0
      %v4092 = vmax.f32 %v4025, 0.0
      %v4093 = vmax.f32 %v4027, 0.0
      %v4094 = vmax.f32 %v4030, 0.0
      %v4095 = vmax.f32 %v4032, 0.0
      %v4096 = vmax.f32 %v4035, 0.0
      %v4097 = vmax.f32 %v4037, 0.0
      %v4098 = vmax.f32 %v4040, 0.0
      %v4099 = vmax.f32 %v4042, 0.0
      %v4100 = vmax.f32 %v4045, 0.0
      %v4101 = vmax.f32 %v4047, 0.0
      %v4102 = vmax.f32 %v4050, 0.0
      %v4103 = vmax.f32 %v4052, 0.0
      %v4104 = vmax.f32 %v4055, 0.0
      %v4105 = vmax.f32 %v4057, 0.0
      %v4106 = vmax.f32 %v4060, 0.0
      %v4107 = vmax.f32 %v4062, 0.0
      %v4108 = vmax.f32 %v4065, 0.0
      %v4109 = vmax.f32 %v4067, 0.0
      %v4110 = vmax.f32 %v4070, 0.0
      %v4111 = vmax.f32 %v4072, 0.0
      %v4112 = vmax.f32 %v4075, 0.0
      %v4113 = vmax.f32 %v4077, 0.0
      %v4114 = vmax.f32 %v4080, 0.0
      %v4115 = vmax.f32 %v4082, 0.0
      %4116 = vst [vmem:[%s829 + $0x8] sm:$0xff] %v4084
      %4117 = vst [vmem:[%s829 + $0x10] sm:$0xff] %v4085
      %4118 = vst [vmem:[%s829 + $0x28] sm:$0xff] %v4086
      %4119 = vst [vmem:[%s829 + $0x30] sm:$0xff] %v4087
      %4120 = vst [vmem:[%s829 + $0x48] sm:$0xff] %v4088
      %4121 = vst [vmem:[%s829 + $0x50] sm:$0xff] %v4089
      %4122 = vst [vmem:[%s829 + $0x68] sm:$0xff] %v4090
      %4123 = vst [vmem:[%s829 + $0x70] sm:$0xff] %v4091
      %4124 = vst [vmem:[%s829 + $0x88] sm:$0xff] %v4092
      %4125 = vst [vmem:[%s829 + $0x90] sm:$0xff] %v4093
      %4126 = vst [vmem:[%s829 + $0xa8] sm:$0xff] %v4094
      %4127 = vst [vmem:[%s829 + $0xb0] sm:$0xff] %v4095
      %4128 = vst [vmem:[%s829 + $0xc8] sm:$0xff] %v4096
      %4129 = vst [vmem:[%s829 + $0xd0] sm:$0xff] %v4097
      %4130 = vst [vmem:[%s829 + $0xe8] sm:$0xff] %v4098
      %4131 = vst [vmem:[%s829 + $0xf0] sm:$0xff] %v4099
      %4132 = vst [vmem:[%s829 + $0x108] sm:$0xff] %v4100
      %4133 = vst [vmem:[%s829 + $0x110] sm:$0xff] %v4101
      %4134 = vst [vmem:[%s829 + $0x128] sm:$0xff] %v4102
      %4135 = vst [vmem:[%s829 + $0x130] sm:$0xff] %v4103
      %4136 = vst [vmem:[%s829 + $0x148] sm:$0xff] %v4104
      %4137 = vst [vmem:[%s829 + $0x150] sm:$0xff] %v4105
      %4138 = vst [vmem:[%s829 + $0x168] sm:$0xff] %v4106
      %4139 = vst [vmem:[%s829 + $0x170] sm:$0xff] %v4107
      %4140 = vst [vmem:[%s829 + $0x188] sm:$0xff] %v4108
      %4141 = vst [vmem:[%s829 + $0x190] sm:$0xff] %v4109
      %4142 = vst [vmem:[%s829 + $0x1a8] sm:$0xff] %v4110
      %4143 = vst [vmem:[%s829 + $0x1b0] sm:$0xff] %v4111
      %4144 = vst [vmem:[%s829 + $0x1c8] sm:$0xff] %v4112
      %4145 = vst [vmem:[%s829 + $0x1d0] sm:$0xff] %v4113
      %4146 = vst [vmem:[%s829 + $0x1e8] sm:$0xff] %v4114
      %4147 = vst [vmem:[%s829 + $0x1f0] sm:$0xff] %v4115
      %v4148 = vld [vmem:[#allocation2 + $0x7] sm:$0xff]
      %v4149 = vld [vmem:[#allocation2 + $0xf] sm:$0xff]
      %v4150 = vld [vmem:[#allocation2 + $0x27] sm:$0xff]
      %v4151 = vld [vmem:[#allocation2 + $0x2f] sm:$0xff]
      %v4152 = vld [vmem:[#allocation2 + $0x47] sm:$0xff]
      %v4153 = vld [vmem:[#allocation2 + $0x4f] sm:$0xff]
      %v4154 = vld [vmem:[#allocation2 + $0x67] sm:$0xff]
      %v4155 = vld [vmem:[#allocation2 + $0x6f] sm:$0xff]
      %v4156 = vld [vmem:[#allocation2 + $0x87] sm:$0xff]
      %v4157 = vld [vmem:[#allocation2 + $0x8f] sm:$0xff]
      %v4158 = vld [vmem:[#allocation2 + $0xa7] sm:$0xff]
      %v4159 = vld [vmem:[#allocation2 + $0xaf] sm:$0xff]
      %v4160 = vld [vmem:[#allocation2 + $0xc7] sm:$0xff]
      %v4161 = vld [vmem:[#allocation2 + $0xcf] sm:$0xff]
      %v4162 = vld [vmem:[#allocation2 + $0xe7] sm:$0xff]
      %v4163 = vld [vmem:[#allocation2 + $0xef] sm:$0xff]
      %v4164 = vld [vmem:[%s15] sm:$0x1]
      %v4165 = vperm.slane %v4164, 0
      %v4166 = vmul.f32 %v4148, %v4165
      %v4167 = vmul.f32 %v4149, %v4165
      %v4168 = vmul.f32 %v4150, %v4165
      %v4169 = vmul.f32 %v4151, %v4165
      %v4170 = vmul.f32 %v4152, %v4165
      %v4171 = vmul.f32 %v4153, %v4165
      %v4172 = vmul.f32 %v4154, %v4165
      %v4173 = vmul.f32 %v4155, %v4165
      %v4174 = vmul.f32 %v4156, %v4165
      %v4175 = vmul.f32 %v4157, %v4165
      %v4176 = vmul.f32 %v4158, %v4165
      %v4177 = vmul.f32 %v4159, %v4165
      %v4178 = vmul.f32 %v4160, %v4165
      %v4179 = vmul.f32 %v4161, %v4165
      %v4180 = vmul.f32 %v4162, %v4165
      %v4181 = vmul.f32 %v4163, %v4165
      %v4182 = vadd.f32 %v4166, 0.0
      %v4183 = vadd.f32 %v4167, 0.0
      %v4184 = vadd.f32 %v4168, 0.0
      %v4185 = vadd.f32 %v4169, 0.0
      %v4186 = vadd.f32 %v4170, 0.0
      %v4187 = vadd.f32 %v4171, 0.0
      %v4188 = vadd.f32 %v4172, 0.0
      %v4189 = vadd.f32 %v4173, 0.0
      %v4190 = vadd.f32 %v4174, 0.0
      %v4191 = vadd.f32 %v4175, 0.0
      %v4192 = vadd.f32 %v4176, 0.0
      %v4193 = vadd.f32 %v4177, 0.0
      %v4194 = vadd.f32 %v4178, 0.0
      %v4195 = vadd.f32 %v4179, 0.0
      %v4196 = vadd.f32 %v4180, 0.0
      %v4197 = vadd.f32 %v4181, 0.0
      %v4198 = vld [vmem:[#allocation2 + $0x8] sm:$0xff]
      %v4199 = vld [vmem:[#allocation2 + $0x10] sm:$0xff]
      %v4200 = vld [vmem:[#allocation2 + $0x28] sm:$0xff]
      %v4201 = vld [vmem:[#allocation2 + $0x30] sm:$0xff]
      %v4202 = vld [vmem:[#allocation2 + $0x48] sm:$0xff]
      %v4203 = vld [vmem:[#allocation2 + $0x50] sm:$0xff]
      %v4204 = vld [vmem:[#allocation2 + $0x68] sm:$0xff]
      %v4205 = vld [vmem:[#allocation2 + $0x70] sm:$0xff]
      %v4206 = vld [vmem:[#allocation2 + $0x88] sm:$0xff]
      %v4207 = vld [vmem:[#allocation2 + $0x90] sm:$0xff]
      %v4208 = vld [vmem:[#allocation2 + $0xa8] sm:$0xff]
      %v4209 = vld [vmem:[#allocation2 + $0xb0] sm:$0xff]
      %v4210 = vld [vmem:[#allocation2 + $0xc8] sm:$0xff]
      %v4211 = vld [vmem:[#allocation2 + $0xd0] sm:$0xff]
      %v4212 = vld [vmem:[#allocation2 + $0xe8] sm:$0xff]
      %v4213 = vld [vmem:[#allocation2 + $0xf0] sm:$0xff]
      %v4214 = vld [vmem:[%s15 + $0x1] sm:$0x1]
      %v4215 = vperm.slane %v4214, 0
      %v4216 = vmul.f32 %v4198, %v4215
      %v4217 = vmul.f32 %v4199, %v4215
      %v4218 = vmul.f32 %v4200, %v4215
      %v4219 = vmul.f32 %v4201, %v4215
      %v4220 = vmul.f32 %v4202, %v4215
      %v4221 = vmul.f32 %v4203, %v4215
      %v4222 = vmul.f32 %v4204, %v4215
      %v4223 = vmul.f32 %v4205, %v4215
      %v4224 = vmul.f32 %v4206, %v4215
      %v4225 = vmul.f32 %v4207, %v4215
      %v4226 = vmul.f32 %v4208, %v4215
      %v4227 = vmul.f32 %v4209, %v4215
      %v4228 = vmul.f32 %v4210, %v4215
      %v4229 = vmul.f32 %v4211, %v4215
      %v4230 = vmul.f32 %v4212, %v4215
      %v4231 = vmul.f32 %v4213, %v4215
      %v4232 = vadd.f32 %v4182, %v4216
      %v4233 = vadd.f32 %v4183, %v4217
      %v4234 = vadd.f32 %v4184, %v4218
      %v4235 = vadd.f32 %v4185, %v4219
      %v4236 = vadd.f32 %v4186, %v4220
      %v4237 = vadd.f32 %v4187, %v4221
      %v4238 = vadd.f32 %v4188, %v4222
      %v4239 = vadd.f32 %v4189, %v4223
      %v4240 = vadd.f32 %v4190, %v4224
      %v4241 = vadd.f32 %v4191, %v4225
      %v4242 = vadd.f32 %v4192, %v4226
      %v4243 = vadd.f32 %v4193, %v4227
      %v4244 = vadd.f32 %v4194, %v4228
      %v4245 = vadd.f32 %v4195, %v4229
      %v4246 = vadd.f32 %v4196, %v4230
      %v4247 = vadd.f32 %v4197, %v4231
      %v4248 = vld [vmem:[#allocation2 + $0x9] sm:$0xff]
      %v4249 = vld [vmem:[#allocation2 + $0x11] sm:$0xff]
      %v4250 = vld [vmem:[#allocation2 + $0x29] sm:$0xff]
      %v4251 = vld [vmem:[#allocation2 + $0x31] sm:$0xff]
      %v4252 = vld [vmem:[#allocation2 + $0x49] sm:$0xff]
      %v4253 = vld [vmem:[#allocation2 + $0x51] sm:$0xff]
      %v4254 = vld [vmem:[#allocation2 + $0x69] sm:$0xff]
      %v4255 = vld [vmem:[#allocation2 + $0x71] sm:$0xff]
      %v4256 = vld [vmem:[#allocation2 + $0x89] sm:$0xff]
      %v4257 = vld [vmem:[#allocation2 + $0x91] sm:$0xff]
      %v4258 = vld [vmem:[#allocation2 + $0xa9] sm:$0xff]
      %v4259 = vld [vmem:[#allocation2 + $0xb1] sm:$0xff]
      %v4260 = vld [vmem:[#allocation2 + $0xc9] sm:$0xff]
      %v4261 = vld [vmem:[#allocation2 + $0xd1] sm:$0xff]
      %v4262 = vld [vmem:[#allocation2 + $0xe9] sm:$0xff]
      %v4263 = vld [vmem:[#allocation2 + $0xf1] sm:$0xff]
      %v4264 = vld [vmem:[%s15 + $0x2] sm:$0x1]
      %v4265 = vperm.slane %v4264, 0
      %v4266 = vmul.f32 %v4248, %v4265
      %v4267 = vmul.f32 %v4249, %v4265
      %v4268 = vmul.f32 %v4250, %v4265
      %v4269 = vmul.f32 %v4251, %v4265
      %v4270 = vmul.f32 %v4252, %v4265
      %v4271 = vmul.f32 %v4253, %v4265
      %v4272 = vmul.f32 %v4254, %v4265
      %v4273 = vmul.f32 %v4255, %v4265
      %v4274 = vmul.f32 %v4256, %v4265
      %v4275 = vmul.f32 %v4257, %v4265
      %v4276 = vmul.f32 %v4258, %v4265
      %v4277 = vmul.f32 %v4259, %v4265
      %v4278 = vmul.f32 %v4260, %v4265
      %v4279 = vmul.f32 %v4261, %v4265
      %v4280 = vmul.f32 %v4262, %v4265
      %v4281 = vmul.f32 %v4263, %v4265
      %v4282 = vadd.f32 %v4232, %v4266
      %v4283 = vadd.f32 %v4233, %v4267
      %v4284 = vadd.f32 %v4234, %v4268
      %v4285 = vadd.f32 %v4235, %v4269
      %v4286 = vadd.f32 %v4236, %v4270
      %v4287 = vadd.f32 %v4237, %v4271
      %v4288 = vadd.f32 %v4238, %v4272
      %v4289 = vadd.f32 %v4239, %v4273
      %v4290 = vadd.f32 %v4240, %v4274
      %v4291 = vadd.f32 %v4241, %v4275
      %v4292 = vadd.f32 %v4242, %v4276
      %v4293 = vadd.f32 %v4243, %v4277
      %v4294 = vadd.f32 %v4244, %v4278
      %v4295 = vadd.f32 %v4245, %v4279
      %v4296 = vadd.f32 %v4246, %v4280
      %v4297 = vadd.f32 %v4247, %v4281
      %v4298 = vld [vmem:[%s829 + $0x7] sm:$0xff]
      %v4299 = vld [vmem:[%s829 + $0xf] sm:$0xff]
      %v4300 = vld [vmem:[%s829 + $0x27] sm:$0xff]
      %v4301 = vld [vmem:[%s829 + $0x2f] sm:$0xff]
      %v4302 = vld [vmem:[%s829 + $0x47] sm:$0xff]
      %v4303 = vld [vmem:[%s829 + $0x4f] sm:$0xff]
      %v4304 = vld [vmem:[%s829 + $0x67] sm:$0xff]
      %v4305 = vld [vmem:[%s829 + $0x6f] sm:$0xff]
      %v4306 = vld [vmem:[%s829 + $0x87] sm:$0xff]
      %v4307 = vld [vmem:[%s829 + $0x8f] sm:$0xff]
      %v4308 = vld [vmem:[%s829 + $0xa7] sm:$0xff]
      %v4309 = vld [vmem:[%s829 + $0xaf] sm:$0xff]
      %v4310 = vld [vmem:[%s829 + $0xc7] sm:$0xff]
      %v4311 = vld [vmem:[%s829 + $0xcf] sm:$0xff]
      %v4312 = vld [vmem:[%s829 + $0xe7] sm:$0xff]
      %v4313 = vld [vmem:[%s829 + $0xef] sm:$0xff]
      %v4314 = vld [vmem:[%s15 + $0x3] sm:$0x1]
      %v4315 = vperm.slane %v4314, 0
      %v4316 = vmul.f32 %v4298, %v4315
      %v4317 = vmul.f32 %v4299, %v4315
      %v4318 = vmul.f32 %v4300, %v4315
      %v4319 = vmul.f32 %v4301, %v4315
      %v4320 = vmul.f32 %v4302, %v4315
      %v4321 = vmul.f32 %v4303, %v4315
      %v4322 = vmul.f32 %v4304, %v4315
      %v4323 = vmul.f32 %v4305, %v4315
      %v4324 = vmul.f32 %v4306, %v4315
      %v4325 = vmul.f32 %v4307, %v4315
      %v4326 = vmul.f32 %v4308, %v4315
      %v4327 = vmul.f32 %v4309, %v4315
      %v4328 = vmul.f32 %v4310, %v4315
      %v4329 = vmul.f32 %v4311, %v4315
      %v4330 = vmul.f32 %v4312, %v4315
      %v4331 = vmul.f32 %v4313, %v4315
      %v4332 = vadd.f32 %v4282, %v4316
      %v4333 = vadd.f32 %v4283, %v4317
      %v4334 = vadd.f32 %v4284, %v4318
      %v4335 = vadd.f32 %v4285, %v4319
      %v4336 = vadd.f32 %v4286, %v4320
      %v4337 = vadd.f32 %v4287, %v4321
      %v4338 = vadd.f32 %v4288, %v4322
      %v4339 = vadd.f32 %v4289, %v4323
      %v4340 = vadd.f32 %v4290, %v4324
      %v4341 = vadd.f32 %v4291, %v4325
      %v4342 = vadd.f32 %v4292, %v4326
      %v4343 = vadd.f32 %v4293, %v4327
      %v4344 = vadd.f32 %v4294, %v4328
      %v4345 = vadd.f32 %v4295, %v4329
      %v4346 = vadd.f32 %v4296, %v4330
      %v4347 = vadd.f32 %v4297, %v4331
      %v4348 = vld [vmem:[%s829 + $0x8] sm:$0xff]
      %v4349 = vld [vmem:[%s829 + $0x10] sm:$0xff]
      %v4350 = vld [vmem:[%s829 + $0x28] sm:$0xff]
      %v4351 = vld [vmem:[%s829 + $0x30] sm:$0xff]
      %v4352 = vld [vmem:[%s829 + $0x48] sm:$0xff]
      %v4353 = vld [vmem:[%s829 + $0x50] sm:$0xff]
      %v4354 = vld [vmem:[%s829 + $0x68] sm:$0xff]
      %v4355 = vld [vmem:[%s829 + $0x70] sm:$0xff]
      %v4356 = vld [vmem:[%s829 + $0x88] sm:$0xff]
      %v4357 = vld [vmem:[%s829 + $0x90] sm:$0xff]
      %v4358 = vld [vmem:[%s829 + $0xa8] sm:$0xff]
      %v4359 = vld [vmem:[%s829 + $0xb0] sm:$0xff]
      %v4360 = vld [vmem:[%s829 + $0xc8] sm:$0xff]
      %v4361 = vld [vmem:[%s829 + $0xd0] sm:$0xff]
      %v4362 = vld [vmem:[%s829 + $0xe8] sm:$0xff]
      %v4363 = vld [vmem:[%s829 + $0xf0] sm:$0xff]
      %v4364 = vld [vmem:[%s15 + $0x4] sm:$0x1]
      %v4365 = vperm.slane %v4364, 0
      %v4366 = vmul.f32 %v4348, %v4365
      %v4367 = vmul.f32 %v4349, %v4365
      %v4368 = vmul.f32 %v4350, %v4365
      %v4369 = vmul.f32 %v4351, %v4365
      %v4370 = vmul.f32 %v4352, %v4365
      %v4371 = vmul.f32 %v4353, %v4365
      %v4372 = vmul.f32 %v4354, %v4365
      %v4373 = vmul.f32 %v4355, %v4365
      %v4374 = vmul.f32 %v4356, %v4365
      %v4375 = vmul.f32 %v4357, %v4365
      %v4376 = vmul.f32 %v4358, %v4365
      %v4377 = vmul.f32 %v4359, %v4365
      %v4378 = vmul.f32 %v4360, %v4365
      %v4379 = vmul.f32 %v4361, %v4365
      %v4380 = vmul.f32 %v4362, %v4365
      %v4381 = vmul.f32 %v4363, %v4365
      %v4382 = vadd.f32 %v4332, %v4366
      %v4383 = vadd.f32 %v4333, %v4367
      %v4384 = vadd.f32 %v4334, %v4368
      %v4385 = vadd.f32 %v4335, %v4369
      %v4386 = vadd.f32 %v4336, %v4370
      %v4387 = vadd.f32 %v4337, %v4371
      %v4388 = vadd.f32 %v4338, %v4372
      %v4389 = vadd.f32 %v4339, %v4373
      %v4390 = vadd.f32 %v4340, %v4374
      %v4391 = vadd.f32 %v4341, %v4375
      %v4392 = vadd.f32 %v4342, %v4376
      %v4393 = vadd.f32 %v4343, %v4377
      %v4394 = vadd.f32 %v4344, %v4378
      %v4395 = vadd.f32 %v4345, %v4379
      %v4396 = vadd.f32 %v4346, %v4380
      %v4397 = vadd.f32 %v4347, %v4381
      %v4398 = vld [vmem:[%s829 + $0x9] sm:$0xff]
      %v4399 = vld [vmem:[%s829 + $0x11] sm:$0xff]
      %v4400 = vld [vmem:[%s829 + $0x29] sm:$0xff]
      %v4401 = vld [vmem:[%s829 + $0x31] sm:$0xff]
      %v4402 = vld [vmem:[%s829 + $0x49] sm:$0xff]
      %v4403 = vld [vmem:[%s829 + $0x51] sm:$0xff]
      %v4404 = vld [vmem:[%s829 + $0x69] sm:$0xff]
      %v4405 = vld [vmem:[%s829 + $0x71] sm:$0xff]
      %v4406 = vld [vmem:[%s829 + $0x89] sm:$0xff]
      %v4407 = vld [vmem:[%s829 + $0x91] sm:$0xff]
      %v4408 = vld [vmem:[%s829 + $0xa9] sm:$0xff]
      %v4409 = vld [vmem:[%s829 + $0xb1] sm:$0xff]
      %v4410 = vld [vmem:[%s829 + $0xc9] sm:$0xff]
      %v4411 = vld [vmem:[%s829 + $0xd1] sm:$0xff]
      %v4412 = vld [vmem:[%s829 + $0xe9] sm:$0xff]
      %v4413 = vld [vmem:[%s829 + $0xf1] sm:$0xff]
      %v4414 = vld [vmem:[%s15 + $0x5] sm:$0x1]
      %v4415 = vperm.slane %v4414, 0
      %v4416 = vmul.f32 %v4398, %v4415
      %v4417 = vmul.f32 %v4399, %v4415
      %v4418 = vmul.f32 %v4400, %v4415
      %v4419 = vmul.f32 %v4401, %v4415
      %v4420 = vmul.f32 %v4402, %v4415
      %v4421 = vmul.f32 %v4403, %v4415
      %v4422 = vmul.f32 %v4404, %v4415
      %v4423 = vmul.f32 %v4405, %v4415
      %v4424 = vmul.f32 %v4406, %v4415
      %v4425 = vmul.f32 %v4407, %v4415
      %v4426 = vmul.f32 %v4408, %v4415
      %v4427 = vmul.f32 %v4409, %v4415
      %v4428 = vmul.f32 %v4410, %v4415
      %v4429 = vmul.f32 %v4411, %v4415
      %v4430 = vmul.f32 %v4412, %v4415
      %v4431 = vmul.f32 %v4413, %v4415
      %v4432 = vadd.f32 %v4382, %v4416
      %v4433 = vadd.f32 %v4383, %v4417
      %v4434 = vadd.f32 %v4384, %v4418
      %v4435 = vadd.f32 %v4385, %v4419
      %v4436 = vadd.f32 %v4386, %v4420
      %v4437 = vadd.f32 %v4387, %v4421
      %v4438 = vadd.f32 %v4388, %v4422
      %v4439 = vadd.f32 %v4389, %v4423
      %v4440 = vadd.f32 %v4390, %v4424
      %v4441 = vadd.f32 %v4391, %v4425
      %v4442 = vadd.f32 %v4392, %v4426
      %v4443 = vadd.f32 %v4393, %v4427
      %v4444 = vadd.f32 %v4394, %v4428
      %v4445 = vadd.f32 %v4395, %v4429
      %v4446 = vadd.f32 %v4396, %v4430
      %v4447 = vadd.f32 %v4397, %v4431
      %v4448 = vld [vmem:[%s1424 + $0x7] sm:$0xff]
      %v4449 = vld [vmem:[%s1424 + $0xf] sm:$0xff]
      %v4450 = vld [vmem:[%s1424 + $0x27] sm:$0xff]
      %v4451 = vld [vmem:[%s1424 + $0x2f] sm:$0xff]
      %v4452 = vld [vmem:[%s1424 + $0x47] sm:$0xff]
      %v4453 = vld [vmem:[%s1424 + $0x4f] sm:$0xff]
      %v4454 = vld [vmem:[%s1424 + $0x67] sm:$0xff]
      %v4455 = vld [vmem:[%s1424 + $0x6f] sm:$0xff]
      %v4456 = vld [vmem:[%s1424 + $0x87] sm:$0xff]
      %v4457 = vld [vmem:[%s1424 + $0x8f] sm:$0xff]
      %v4458 = vld [vmem:[%s1424 + $0xa7] sm:$0xff]
      %v4459 = vld [vmem:[%s1424 + $0xaf] sm:$0xff]
      %v4460 = vld [vmem:[%s1424 + $0xc7] sm:$0xff]
      %v4461 = vld [vmem:[%s1424 + $0xcf] sm:$0xff]
      %v4462 = vld [vmem:[%s1424 + $0xe7] sm:$0xff]
      %v4463 = vld [vmem:[%s1424 + $0xef] sm:$0xff]
      %v4464 = vld [vmem:[%s15 + $0x6] sm:$0x1]
      %v4465 = vperm.slane %v4464, 0
      %v4466 = vmul.f32 %v4448, %v4465
      %v4467 = vmul.f32 %v4449, %v4465
      %v4468 = vmul.f32 %v4450, %v4465
      %v4469 = vmul.f32 %v4451, %v4465
      %v4470 = vmul.f32 %v4452, %v4465
      %v4471 = vmul.f32 %v4453, %v4465
      %v4472 = vmul.f32 %v4454, %v4465
      %v4473 = vmul.f32 %v4455, %v4465
      %v4474 = vmul.f32 %v4456, %v4465
      %v4475 = vmul.f32 %v4457, %v4465
      %v4476 = vmul.f32 %v4458, %v4465
      %v4477 = vmul.f32 %v4459, %v4465
      %v4478 = vmul.f32 %v4460, %v4465
      %v4479 = vmul.f32 %v4461, %v4465
      %v4480 = vmul.f32 %v4462, %v4465
      %v4481 = vmul.f32 %v4463, %v4465
      %v4482 = vadd.f32 %v4432, %v4466
      %v4483 = vadd.f32 %v4433, %v4467
      %v4484 = vadd.f32 %v4434, %v4468
      %v4485 = vadd.f32 %v4435, %v4469
      %v4486 = vadd.f32 %v4436, %v4470
      %v4487 = vadd.f32 %v4437, %v4471
      %v4488 = vadd.f32 %v4438, %v4472
      %v4489 = vadd.f32 %v4439, %v4473
      %v4490 = vadd.f32 %v4440, %v4474
      %v4491 = vadd.f32 %v4441, %v4475
      %v4492 = vadd.f32 %v4442, %v4476
      %v4493 = vadd.f32 %v4443, %v4477
      %v4494 = vadd.f32 %v4444, %v4478
      %v4495 = vadd.f32 %v4445, %v4479
      %v4496 = vadd.f32 %v4446, %v4480
      %v4497 = vadd.f32 %v4447, %v4481
      %v4498 = vld [vmem:[%s1424 + $0x8] sm:$0xff]
      %v4499 = vld [vmem:[%s1424 + $0x10] sm:$0xff]
      %v4500 = vld [vmem:[%s1424 + $0x28] sm:$0xff]
      %v4501 = vld [vmem:[%s1424 + $0x30] sm:$0xff]
      %v4502 = vld [vmem:[%s1424 + $0x48] sm:$0xff]
      %v4503 = vld [vmem:[%s1424 + $0x50] sm:$0xff]
      %v4504 = vld [vmem:[%s1424 + $0x68] sm:$0xff]
      %v4505 = vld [vmem:[%s1424 + $0x70] sm:$0xff]
      %v4506 = vld [vmem:[%s1424 + $0x88] sm:$0xff]
      %v4507 = vld [vmem:[%s1424 + $0x90] sm:$0xff]
      %v4508 = vld [vmem:[%s1424 + $0xa8] sm:$0xff]
      %v4509 = vld [vmem:[%s1424 + $0xb0] sm:$0xff]
      %v4510 = vld [vmem:[%s1424 + $0xc8] sm:$0xff]
      %v4511 = vld [vmem:[%s1424 + $0xd0] sm:$0xff]
      %v4512 = vld [vmem:[%s1424 + $0xe8] sm:$0xff]
      %v4513 = vld [vmem:[%s1424 + $0xf0] sm:$0xff]
      %v4514 = vld [vmem:[%s15 + $0x7] sm:$0x1]
      %v4515 = vperm.slane %v4514, 0
      %v4516 = vmul.f32 %v4498, %v4515
      %v4517 = vmul.f32 %v4499, %v4515
      %v4518 = vmul.f32 %v4500, %v4515
      %v4519 = vmul.f32 %v4501, %v4515
      %v4520 = vmul.f32 %v4502, %v4515
      %v4521 = vmul.f32 %v4503, %v4515
      %v4522 = vmul.f32 %v4504, %v4515
      %v4523 = vmul.f32 %v4505, %v4515
      %v4524 = vmul.f32 %v4506, %v4515
      %v4525 = vmul.f32 %v4507, %v4515
      %v4526 = vmul.f32 %v4508, %v4515
      %v4527 = vmul.f32 %v4509, %v4515
      %v4528 = vmul.f32 %v4510, %v4515
      %v4529 = vmul.f32 %v4511, %v4515
      %v4530 = vmul.f32 %v4512, %v4515
      %v4531 = vmul.f32 %v4513, %v4515
      %v4532 = vadd.f32 %v4482, %v4516
      %v4533 = vadd.f32 %v4483, %v4517
      %v4534 = vadd.f32 %v4484, %v4518
      %v4535 = vadd.f32 %v4485, %v4519
      %v4536 = vadd.f32 %v4486, %v4520
      %v4537 = vadd.f32 %v4487, %v4521
      %v4538 = vadd.f32 %v4488, %v4522
      %v4539 = vadd.f32 %v4489, %v4523
      %v4540 = vadd.f32 %v4490, %v4524
      %v4541 = vadd.f32 %v4491, %v4525
      %v4542 = vadd.f32 %v4492, %v4526
      %v4543 = vadd.f32 %v4493, %v4527
      %v4544 = vadd.f32 %v4494, %v4528
      %v4545 = vadd.f32 %v4495, %v4529
      %v4546 = vadd.f32 %v4496, %v4530
      %v4547 = vadd.f32 %v4497, %v4531
      %v4548 = vld [vmem:[%s1424 + $0x9] sm:$0xff]
      %v4549 = vld [vmem:[%s1424 + $0x11] sm:$0xff]
      %v4550 = vld [vmem:[%s1424 + $0x29] sm:$0xff]
      %v4551 = vld [vmem:[%s1424 + $0x31] sm:$0xff]
      %v4552 = vld [vmem:[%s1424 + $0x49] sm:$0xff]
      %v4553 = vld [vmem:[%s1424 + $0x51] sm:$0xff]
      %v4554 = vld [vmem:[%s1424 + $0x69] sm:$0xff]
      %v4555 = vld [vmem:[%s1424 + $0x71] sm:$0xff]
      %v4556 = vld [vmem:[%s1424 + $0x89] sm:$0xff]
      %v4557 = vld [vmem:[%s1424 + $0x91] sm:$0xff]
      %v4558 = vld [vmem:[%s1424 + $0xa9] sm:$0xff]
      %v4559 = vld [vmem:[%s1424 + $0xb1] sm:$0xff]
      %v4560 = vld [vmem:[%s1424 + $0xc9] sm:$0xff]
      %v4561 = vld [vmem:[%s1424 + $0xd1] sm:$0xff]
      %v4562 = vld [vmem:[%s1424 + $0xe9] sm:$0xff]
      %v4563 = vld [vmem:[%s1424 + $0xf1] sm:$0xff]
      %v4564 = vld [vmem:[%s15 + $0x8] sm:$0x1]
      %v4565 = vperm.slane %v4564, 0
      %v4566 = vmul.f32 %v4548, %v4565
      %v4567 = vmul.f32 %v4549, %v4565
      %v4568 = vmul.f32 %v4550, %v4565
      %v4569 = vmul.f32 %v4551, %v4565
      %v4570 = vmul.f32 %v4552, %v4565
      %v4571 = vmul.f32 %v4553, %v4565
      %v4572 = vmul.f32 %v4554, %v4565
      %v4573 = vmul.f32 %v4555, %v4565
      %v4574 = vmul.f32 %v4556, %v4565
      %v4575 = vmul.f32 %v4557, %v4565
      %v4576 = vmul.f32 %v4558, %v4565
      %v4577 = vmul.f32 %v4559, %v4565
      %v4578 = vmul.f32 %v4560, %v4565
      %v4579 = vmul.f32 %v4561, %v4565
      %v4580 = vmul.f32 %v4562, %v4565
      %v4581 = vmul.f32 %v4563, %v4565
      %v4582 = vadd.f32 %v4532, %v4566
      %v4583 = vadd.f32 %v4533, %v4567
      %v4584 = vadd.f32 %v4534, %v4568
      %v4585 = vadd.f32 %v4535, %v4569
      %v4586 = vadd.f32 %v4536, %v4570
      %v4587 = vadd.f32 %v4537, %v4571
      %v4588 = vadd.f32 %v4538, %v4572
      %v4589 = vadd.f32 %v4539, %v4573
      %v4590 = vadd.f32 %v4540, %v4574
      %v4591 = vadd.f32 %v4541, %v4575
      %v4592 = vadd.f32 %v4542, %v4576
      %v4593 = vadd.f32 %v4543, %v4577
      %v4594 = vadd.f32 %v4544, %v4578
      %v4595 = vadd.f32 %v4545, %v4579
      %v4596 = vadd.f32 %v4546, %v4580
      %v4597 = vadd.f32 %v4547, %v4581
      %v4598 = vld [vmem:[%s16] sm:$0x1]
      %v4600 = vperm.slane %v4598, 0
      %v4602 = vadd.f32 %v4582, %v4600
      %v4603 = vadd.f32 %v4583, %v4600
      %v4604 = vadd.f32 %v4584, %v4600
      %v4605 = vadd.f32 %v4585, %v4600
      %v4606 = vadd.f32 %v4586, %v4600
      %v4607 = vadd.f32 %v4587, %v4600
      %v4608 = vadd.f32 %v4588, %v4600
      %v4609 = vadd.f32 %v4589, %v4600
      %v4610 = vadd.f32 %v4590, %v4600
      %v4611 = vadd.f32 %v4591, %v4600
      %v4612 = vadd.f32 %v4592, %v4600
      %v4613 = vadd.f32 %v4593, %v4600
      %v4614 = vadd.f32 %v4594, %v4600
      %v4615 = vadd.f32 %v4595, %v4600
      %v4616 = vadd.f32 %v4596, %v4600
      %v4617 = vadd.f32 %v4597, %v4600
      %v4618 = vmax.f32 %v4602, 0.0
      %v4619 = vmax.f32 %v4603, 0.0
      %v4620 = vmax.f32 %v4604, 0.0
      %v4621 = vmax.f32 %v4605, 0.0
      %v4622 = vmax.f32 %v4606, 0.0
      %v4623 = vmax.f32 %v4607, 0.0
      %v4624 = vmax.f32 %v4608, 0.0
      %v4625 = vmax.f32 %v4609, 0.0
      %v4626 = vmax.f32 %v4610, 0.0
      %v4627 = vmax.f32 %v4611, 0.0
      %v4628 = vmax.f32 %v4612, 0.0
      %v4629 = vmax.f32 %v4613, 0.0
      %v4630 = vmax.f32 %v4614, 0.0
      %v4631 = vmax.f32 %v4615, 0.0
      %v4632 = vmax.f32 %v4616, 0.0
      %v4633 = vmax.f32 %v4617, 0.0
      %4634 = vst [vmem:[#allocation4] sm:$0xff] %v4618
      %4635 = vst [vmem:[#allocation4 + $0x8] sm:$0xff] %v4619
      %4636 = vst [vmem:[#allocation4 + $0x10] sm:$0xff] %v4620
      %4637 = vst [vmem:[#allocation4 + $0x18] sm:$0xff] %v4621
      %4638 = vst [vmem:[#allocation4 + $0x20] sm:$0xff] %v4622
      %4639 = vst [vmem:[#allocation4 + $0x28] sm:$0xff] %v4623
      %4640 = vst [vmem:[#allocation4 + $0x30] sm:$0xff] %v4624
      %4641 = vst [vmem:[#allocation4 + $0x38] sm:$0xff] %v4625
      %4642 = vst [vmem:[#allocation4 + $0x40] sm:$0xff] %v4626
      %4643 = vst [vmem:[#allocation4 + $0x48] sm:$0xff] %v4627
      %4644 = vst [vmem:[#allocation4 + $0x50] sm:$0xff] %v4628
      %4645 = vst [vmem:[#allocation4 + $0x58] sm:$0xff] %v4629
      %4646 = vst [vmem:[#allocation4 + $0x60] sm:$0xff] %v4630
      %4647 = vst [vmem:[#allocation4 + $0x68] sm:$0xff] %v4631
      %4648 = vst [vmem:[#allocation4 + $0x70] sm:$0xff] %v4632
      %4649 = vst [vmem:[#allocation4 + $0x78] sm:$0xff] %v4633
      %v4650 = vld [vmem:[%s1627 + $0x7] sm:$0xff]
      %v4651 = vld [vmem:[%s1627 + $0xf] sm:$0xff]
      %v4652 = vld [vmem:[%s1627 + $0x27] sm:$0xff]
      %v4653 = vld [vmem:[%s1627 + $0x2f] sm:$0xff]
      %v4654 = vld [vmem:[%s1627 + $0x47] sm:$0xff]
      %v4655 = vld [vmem:[%s1627 + $0x4f] sm:$0xff]
      %v4656 = vld [vmem:[%s1627 + $0x67] sm:$0xff]
      %v4657 = vld [vmem:[%s1627 + $0x6f] sm:$0xff]
      %v4658 = vld [vmem:[%s1627 + $0x87] sm:$0xff]
      %v4659 = vld [vmem:[%s1627 + $0x8f] sm:$0xff]
      %v4660 = vld [vmem:[%s1627 + $0xa7] sm:$0xff]
      %v4661 = vld [vmem:[%s1627 + $0xaf] sm:$0xff]
      %v4662 = vld [vmem:[%s1627 + $0xc7] sm:$0xff]
      %v4663 = vld [vmem:[%s1627 + $0xcf] sm:$0xff]
      %v4664 = vld [vmem:[%s1627 + $0xe7] sm:$0xff]
      %v4665 = vld [vmem:[%s1627 + $0xef] sm:$0xff]
      %v4666 = vld [vmem:[%s15] sm:$0x1]
      %v4667 = vperm.slane %v4666, 0
      %v4668 = vmul.f32 %v4650, %v4667
      %v4669 = vmul.f32 %v4651, %v4667
      %v4670 = vmul.f32 %v4652, %v4667
      %v4671 = vmul.f32 %v4653, %v4667
      %v4672 = vmul.f32 %v4654, %v4667
      %v4673 = vmul.f32 %v4655, %v4667
      %v4674 = vmul.f32 %v4656, %v4667
      %v4675 = vmul.f32 %v4657, %v4667
      %v4676 = vmul.f32 %v4658, %v4667
      %v4677 = vmul.f32 %v4659, %v4667
      %v4678 = vmul.f32 %v4660, %v4667
      %v4679 = vmul.f32 %v4661, %v4667
      %v4680 = vmul.f32 %v4662, %v4667
      %v4681 = vmul.f32 %v4663, %v4667
      %v4682 = vmul.f32 %v4664, %v4667
      %v4683 = vmul.f32 %v4665, %v4667
      %v4684 = vadd.f32 %v4668, 0.0
      %v4685 = vadd.f32 %v4669, 0.0
      %v4686 = vadd.f32 %v4670, 0.0
      %v4687 = vadd.f32 %v4671, 0.0
      %v4688 = vadd.f32 %v4672, 0.0
      %v4689 = vadd.f32 %v4673, 0.0
      %v4690 = vadd.f32 %v4674, 0.0
      %v4691 = vadd.f32 %v4675, 0.0
      %v4692 = vadd.f32 %v4676, 0.0
      %v4693 = vadd.f32 %v4677, 0.0
      %v4694 = vadd.f32 %v4678, 0.0
      %v4695 = vadd.f32 %v4679, 0.0
      %v4696 = vadd.f32 %v4680, 0.0
      %v4697 = vadd.f32 %v4681, 0.0
      %v4698 = vadd.f32 %v4682, 0.0
      %v4699 = vadd.f32 %v4683, 0.0
      %v4700 = vld [vmem:[%s1627 + $0x8] sm:$0xff]
      %v4701 = vld [vmem:[%s1627 + $0x10] sm:$0xff]
      %v4702 = vld [vmem:[%s1627 + $0x28] sm:$0xff]
      %v4703 = vld [vmem:[%s1627 + $0x30] sm:$0xff]
      %v4704 = vld [vmem:[%s1627 + $0x48] sm:$0xff]
      %v4705 = vld [vmem:[%s1627 + $0x50] sm:$0xff]
      %v4706 = vld [vmem:[%s1627 + $0x68] sm:$0xff]
      %v4707 = vld [vmem:[%s1627 + $0x70] sm:$0xff]
      %v4708 = vld [vmem:[%s1627 + $0x88] sm:$0xff]
      %v4709 = vld [vmem:[%s1627 + $0x90] sm:$0xff]
      %v4710 = vld [vmem:[%s1627 + $0xa8] sm:$0xff]
      %v4711 = vld [vmem:[%s1627 + $0xb0] sm:$0xff]
      %v4712 = vld [vmem:[%s1627 + $0xc8] sm:$0xff]
      %v4713 = vld [vmem:[%s1627 + $0xd0] sm:$0xff]
      %v4714 = vld [vmem:[%s1627 + $0xe8] sm:$0xff]
      %v4715 = vld [vmem:[%s1627 + $0xf0] sm:$0xff]
      %v4716 = vld [vmem:[%s15 + $0x1] sm:$0x1]
      %v4717 = vperm.slane %v4716, 0
      %v4718 = vmul.f32 %v4700, %v4717
      %v4719 = vmul.f32 %v4701, %v4717
      %v4720 = vmul.f32 %v4702, %v4717
      %v4721 = vmul.f32 %v4703, %v4717
      %v4722 = vmul.f32 %v4704, %v4717
      %v4723 = vmul.f32 %v4705, %v4717
      %v4724 = vmul.f32 %v4706, %v4717
      %v4725 = vmul.f32 %v4707, %v4717
      %v4726 = vmul.f32 %v4708, %v4717
      %v4727 = vmul.f32 %v4709, %v4717
      %v4728 = vmul.f32 %v4710, %v4717
      %v4729 = vmul.f32 %v4711, %v4717
      %v4730 = vmul.f32 %v4712, %v4717
      %v4731 = vmul.f32 %v4713, %v4717
      %v4732 = vmul.f32 %v4714, %v4717
      %v4733 = vmul.f32 %v4715, %v4717
      %v4734 = vadd.f32 %v4684, %v4718
      %v4735 = vadd.f32 %v4685, %v4719
      %v4736 = vadd.f32 %v4686, %v4720
      %v4737 = vadd.f32 %v4687, %v4721
      %v4738 = vadd.f32 %v4688, %v4722
      %v4739 = vadd.f32 %v4689, %v4723
      %v4740 = vadd.f32 %v4690, %v4724
      %v4741 = vadd.f32 %v4691, %v4725
      %v4742 = vadd.f32 %v4692, %v4726
      %v4743 = vadd.f32 %v4693, %v4727
      %v4744 = vadd.f32 %v4694, %v4728
      %v4745 = vadd.f32 %v4695, %v4729
      %v4746 = vadd.f32 %v4696, %v4730
      %v4747 = vadd.f32 %v4697, %v4731
      %v4748 = vadd.f32 %v4698, %v4732
      %v4749 = vadd.f32 %v4699, %v4733
      %v4750 = vld [vmem:[%s1627 + $0x9] sm:$0xff]
      %v4751 = vld [vmem:[%s1627 + $0x11] sm:$0xff]
      %v4752 = vld [vmem:[%s1627 + $0x29] sm:$0xff]
      %v4753 = vld [vmem:[%s1627 + $0x31] sm:$0xff]
      %v4754 = vld [vmem:[%s1627 + $0x49] sm:$0xff]
      %v4755 = vld [vmem:[%s1627 + $0x51] sm:$0xff]
      %v4756 = vld [vmem:[%s1627 + $0x69] sm:$0xff]
      %v4757 = vld [vmem:[%s1627 + $0x71] sm:$0xff]
      %v4758 = vld [vmem:[%s1627 + $0x89] sm:$0xff]
      %v4759 = vld [vmem:[%s1627 + $0x91] sm:$0xff]
      %v4760 = vld [vmem:[%s1627 + $0xa9] sm:$0xff]
      %v4761 = vld [vmem:[%s1627 + $0xb1] sm:$0xff]
      %v4762 = vld [vmem:[%s1627 + $0xc9] sm:$0xff]
      %v4763 = vld [vmem:[%s1627 + $0xd1] sm:$0xff]
      %v4764 = vld [vmem:[%s1627 + $0xe9] sm:$0xff]
      %v4765 = vld [vmem:[%s1627 + $0xf1] sm:$0xff]
      %v4766 = vld [vmem:[%s15 + $0x2] sm:$0x1]
      %v4767 = vperm.slane %v4766, 0
      %v4768 = vmul.f32 %v4750, %v4767
      %v4769 = vmul.f32 %v4751, %v4767
      %v4770 = vmul.f32 %v4752, %v4767
      %v4771 = vmul.f32 %v4753, %v4767
      %v4772 = vmul.f32 %v4754, %v4767
      %v4773 = vmul.f32 %v4755, %v4767
      %v4774 = vmul.f32 %v4756, %v4767
      %v4775 = vmul.f32 %v4757, %v4767
      %v4776 = vmul.f32 %v4758, %v4767
      %v4777 = vmul.f32 %v4759, %v4767
      %v4778 = vmul.f32 %v4760, %v4767
      %v4779 = vmul.f32 %v4761, %v4767
      %v4780 = vmul.f32 %v4762, %v4767
      %v4781 = vmul.f32 %v4763, %v4767
      %v4782 = vmul.f32 %v4764, %v4767
      %v4783 = vmul.f32 %v4765, %v4767
      %v4784 = vadd.f32 %v4734, %v4768
      %v4785 = vadd.f32 %v4735, %v4769
      %v4786 = vadd.f32 %v4736, %v4770
      %v4787 = vadd.f32 %v4737, %v4771
      %v4788 = vadd.f32 %v4738, %v4772
      %v4789 = vadd.f32 %v4739, %v4773
      %v4790 = vadd.f32 %v4740, %v4774
      %v4791 = vadd.f32 %v4741, %v4775
      %v4792 = vadd.f32 %v4742, %v4776
      %v4793 = vadd.f32 %v4743, %v4777
      %v4794 = vadd.f32 %v4744, %v4778
      %v4795 = vadd.f32 %v4745, %v4779
      %v4796 = vadd.f32 %v4746, %v4780
      %v4797 = vadd.f32 %v4747, %v4781
      %v4798 = vadd.f32 %v4748, %v4782
      %v4799 = vadd.f32 %v4749, %v4783
      %v4800 = vld [vmem:[%s1778 + $0x7] sm:$0xff]
      %v4801 = vld [vmem:[%s1778 + $0xf] sm:$0xff]
      %v4802 = vld [vmem:[%s1778 + $0x27] sm:$0xff]
      %v4803 = vld [vmem:[%s1778 + $0x2f] sm:$0xff]
      %v4804 = vld [vmem:[%s1778 + $0x47] sm:$0xff]
      %v4805 = vld [vmem:[%s1778 + $0x4f] sm:$0xff]
      %v4806 = vld [vmem:[%s1778 + $0x67] sm:$0xff]
      %v4807 = vld [vmem:[%s1778 + $0x6f] sm:$0xff]
      %v4808 = vld [vmem:[%s1778 + $0x87] sm:$0xff]
      %v4809 = vld [vmem:[%s1778 + $0x8f] sm:$0xff]
      %v4810 = vld [vmem:[%s1778 + $0xa7] sm:$0xff]
      %v4811 = vld [vmem:[%s1778 + $0xaf] sm:$0xff]
      %v4812 = vld [vmem:[%s1778 + $0xc7] sm:$0xff]
      %v4813 = vld [vmem:[%s1778 + $0xcf] sm:$0xff]
      %v4814 = vld [vmem:[%s1778 + $0xe7] sm:$0xff]
      %v4815 = vld [vmem:[%s1778 + $0xef] sm:$0xff]
      %v4816 = vld [vmem:[%s15 + $0x3] sm:$0x1]
      %v4817 = vperm.slane %v4816, 0
      %v4818 = vmul.f32 %v4800, %v4817
      %v4819 = vmul.f32 %v4801, %v4817
      %v4820 = vmul.f32 %v4802, %v4817
      %v4821 = vmul.f32 %v4803, %v4817
      %v4822 = vmul.f32 %v4804, %v4817
      %v4823 = vmul.f32 %v4805, %v4817
      %v4824 = vmul.f32 %v4806, %v4817
      %v4825 = vmul.f32 %v4807, %v4817
      %v4826 = vmul.f32 %v4808, %v4817
      %v4827 = vmul.f32 %v4809, %v4817
      %v4828 = vmul.f32 %v4810, %v4817
      %v4829 = vmul.f32 %v4811, %v4817
      %v4830 = vmul.f32 %v4812, %v4817
      %v4831 = vmul.f32 %v4813, %v4817
      %v4832 = vmul.f32 %v4814, %v4817
      %v4833 = vmul.f32 %v4815, %v4817
      %v4834 = vadd.f32 %v4784, %v4818
      %v4835 = vadd.f32 %v4785, %v4819
      %v4836 = vadd.f32 %v4786, %v4820
      %v4837 = vadd.f32 %v4787, %v4821
      %v4838 = vadd.f32 %v4788, %v4822
      %v4839 = vadd.f32 %v4789, %v4823
      %v4840 = vadd.f32 %v4790, %v4824
      %v4841 = vadd.f32 %v4791, %v4825
      %v4842 = vadd.f32 %v4792, %v4826
      %v4843 = vadd.f32 %v4793, %v4827
      %v4844 = vadd.f32 %v4794, %v4828
      %v4845 = vadd.f32 %v4795, %v4829
      %v4846 = vadd.f32 %v4796, %v4830
      %v4847 = vadd.f32 %v4797, %v4831
      %v4848 = vadd.f32 %v4798, %v4832
      %v4849 = vadd.f32 %v4799, %v4833
      %v4850 = vld [vmem:[%s1778 + $0x8] sm:$0xff]
      %v4851 = vld [vmem:[%s1778 + $0x10] sm:$0xff]
      %v4852 = vld [vmem:[%s1778 + $0x28] sm:$0xff]
      %v4853 = vld [vmem:[%s1778 + $0x30] sm:$0xff]
      %v4854 = vld [vmem:[%s1778 + $0x48] sm:$0xff]
      %v4855 = vld [vmem:[%s1778 + $0x50] sm:$0xff]
      %v4856 = vld [vmem:[%s1778 + $0x68] sm:$0xff]
      %v4857 = vld [vmem:[%s1778 + $0x70] sm:$0xff]
      %v4858 = vld [vmem:[%s1778 + $0x88] sm:$0xff]
      %v4859 = vld [vmem:[%s1778 + $0x90] sm:$0xff]
      %v4860 = vld [vmem:[%s1778 + $0xa8] sm:$0xff]
      %v4861 = vld [vmem:[%s1778 + $0xb0] sm:$0xff]
      %v4862 = vld [vmem:[%s1778 + $0xc8] sm:$0xff]
      %v4863 = vld [vmem:[%s1778 + $0xd0] sm:$0xff]
      %v4864 = vld [vmem:[%s1778 + $0xe8] sm:$0xff]
      %v4865 = vld [vmem:[%s1778 + $0xf0] sm:$0xff]
      %v4866 = vld [vmem:[%s15 + $0x4] sm:$0x1]
      %v4867 = vperm.slane %v4866, 0
      %v4868 = vmul.f32 %v4850, %v4867
      %v4869 = vmul.f32 %v4851, %v4867
      %v4870 = vmul.f32 %v4852, %v4867
      %v4871 = vmul.f32 %v4853, %v4867
      %v4872 = vmul.f32 %v4854, %v4867
      %v4873 = vmul.f32 %v4855, %v4867
      %v4874 = vmul.f32 %v4856, %v4867
      %v4875 = vmul.f32 %v4857, %v4867
      %v4876 = vmul.f32 %v4858, %v4867
      %v4877 = vmul.f32 %v4859, %v4867
      %v4878 = vmul.f32 %v4860, %v4867
      %v4879 = vmul.f32 %v4861, %v4867
      %v4880 = vmul.f32 %v4862, %v4867
      %v4881 = vmul.f32 %v4863, %v4867
      %v4882 = vmul.f32 %v4864, %v4867
      %v4883 = vmul.f32 %v4865, %v4867
      %v4884 = vadd.f32 %v4834, %v4868
      %v4885 = vadd.f32 %v4835, %v4869
      %v4886 = vadd.f32 %v4836, %v4870
      %v4887 = vadd.f32 %v4837, %v4871
      %v4888 = vadd.f32 %v4838, %v4872
      %v4889 = vadd.f32 %v4839, %v4873
      %v4890 = vadd.f32 %v4840, %v4874
      %v4891 = vadd.f32 %v4841, %v4875
      %v4892 = vadd.f32 %v4842, %v4876
      %v4893 = vadd.f32 %v4843, %v4877
      %v4894 = vadd.f32 %v4844, %v4878
      %v4895 = vadd.f32 %v4845, %v4879
      %v4896 = vadd.f32 %v4846, %v4880
      %v4897 = vadd.f32 %v4847, %v4881
      %v4898 = vadd.f32 %v4848, %v4882
      %v4899 = vadd.f32 %v4849, %v4883
      %v4900 = vld [vmem:[%s1778 + $0x9] sm:$0xff]
      %v4901 = vld [vmem:[%s1778 + $0x11] sm:$0xff]
      %v4902 = vld [vmem:[%s1778 + $0x29] sm:$0xff]
      %v4903 = vld [vmem:[%s1778 + $0x31] sm:$0xff]
      %v4904 = vld [vmem:[%s1778 + $0x49] sm:$0xff]
      %v4905 = vld [vmem:[%s1778 + $0x51] sm:$0xff]
      %v4906 = vld [vmem:[%s1778 + $0x69] sm:$0xff]
      %v4907 = vld [vmem:[%s1778 + $0x71] sm:$0xff]
      %v4908 = vld [vmem:[%s1778 + $0x89] sm:$0xff]
      %v4909 = vld [vmem:[%s1778 + $0x91] sm:$0xff]
      %v4910 = vld [vmem:[%s1778 + $0xa9] sm:$0xff]
      %v4911 = vld [vmem:[%s1778 + $0xb1] sm:$0xff]
      %v4912 = vld [vmem:[%s1778 + $0xc9] sm:$0xff]
      %v4913 = vld [vmem:[%s1778 + $0xd1] sm:$0xff]
      %v4914 = vld [vmem:[%s1778 + $0xe9] sm:$0xff]
      %v4915 = vld [vmem:[%s1778 + $0xf1] sm:$0xff]
      %v4916 = vld [vmem:[%s15 + $0x5] sm:$0x1]
      %v4917 = vperm.slane %v4916, 0
      %v4918 = vmul.f32 %v4900, %v4917
      %v4919 = vmul.f32 %v4901, %v4917
      %v4920 = vmul.f32 %v4902, %v4917
      %v4921 = vmul.f32 %v4903, %v4917
      %v4922 = vmul.f32 %v4904, %v4917
      %v4923 = vmul.f32 %v4905, %v4917
      %v4924 = vmul.f32 %v4906, %v4917
      %v4925 = vmul.f32 %v4907, %v4917
      %v4926 = vmul.f32 %v4908, %v4917
      %v4927 = vmul.f32 %v4909, %v4917
      %v4928 = vmul.f32 %v4910, %v4917
      %v4929 = vmul.f32 %v4911, %v4917
      %v4930 = vmul.f32 %v4912, %v4917
      %v4931 = vmul.f32 %v4913, %v4917
      %v4932 = vmul.f32 %v4914, %v4917
      %v4933 = vmul.f32 %v4915, %v4917
      %v4934 = vadd.f32 %v4884, %v4918
      %v4935 = vadd.f32 %v4885, %v4919
      %v4936 = vadd.f32 %v4886, %v4920
      %v4937 = vadd.f32 %v4887, %v4921
      %v4938 = vadd.f32 %v4888, %v4922
      %v4939 = vadd.f32 %v4889, %v4923
      %v4940 = vadd.f32 %v4890, %v4924
      %v4941 = vadd.f32 %v4891, %v4925
      %v4942 = vadd.f32 %v4892, %v4926
      %v4943 = vadd.f32 %v4893, %v4927
      %v4944 = vadd.f32 %v4894, %v4928
      %v4945 = vadd.f32 %v4895, %v4929
      %v4946 = vadd.f32 %v4896, %v4930
      %v4947 = vadd.f32 %v4897, %v4931
      %v4948 = vadd.f32 %v4898, %v4932
      %v4949 = vadd.f32 %v4899, %v4933
      %v4950 = vld [vmem:[%s1929 + $0x7] sm:$0xff]
      %v4951 = vld [vmem:[%s1929 + $0xf] sm:$0xff]
      %v4952 = vld [vmem:[%s1929 + $0x27] sm:$0xff]
      %v4953 = vld [vmem:[%s1929 + $0x2f] sm:$0xff]
      %v4954 = vld [vmem:[%s1929 + $0x47] sm:$0xff]
      %v4955 = vld [vmem:[%s1929 + $0x4f] sm:$0xff]
      %v4956 = vld [vmem:[%s1929 + $0x67] sm:$0xff]
      %v4957 = vld [vmem:[%s1929 + $0x6f] sm:$0xff]
      %v4958 = vld [vmem:[%s1929 + $0x87] sm:$0xff]
      %v4959 = vld [vmem:[%s1929 + $0x8f] sm:$0xff]
      %v4960 = vld [vmem:[%s1929 + $0xa7] sm:$0xff]
      %v4961 = vld [vmem:[%s1929 + $0xaf] sm:$0xff]
      %v4962 = vld [vmem:[%s1929 + $0xc7] sm:$0xff]
      %v4963 = vld [vmem:[%s1929 + $0xcf] sm:$0xff]
      %v4964 = vld [vmem:[%s1929 + $0xe7] sm:$0xff]
      %v4965 = vld [vmem:[%s1929 + $0xef] sm:$0xff]
      %v4966 = vld [vmem:[%s15 + $0x6] sm:$0x1]
      %v4967 = vperm.slane %v4966, 0
      %v4968 = vmul.f32 %v4950, %v4967
      %v4969 = vmul.f32 %v4951, %v4967
      %v4970 = vmul.f32 %v4952, %v4967
      %v4971 = vmul.f32 %v4953, %v4967
      %v4972 = vmul.f32 %v4954, %v4967
      %v4973 = vmul.f32 %v4955, %v4967
      %v4974 = vmul.f32 %v4956, %v4967
      %v4975 = vmul.f32 %v4957, %v4967
      %v4976 = vmul.f32 %v4958, %v4967
      %v4977 = vmul.f32 %v4959, %v4967
      %v4978 = vmul.f32 %v4960, %v4967
      %v4979 = vmul.f32 %v4961, %v4967
      %v4980 = vmul.f32 %v4962, %v4967
      %v4981 = vmul.f32 %v4963, %v4967
      %v4982 = vmul.f32 %v4964, %v4967
      %v4983 = vmul.f32 %v4965, %v4967
      %v4984 = vadd.f32 %v4934, %v4968
      %v4985 = vadd.f32 %v4935, %v4969
      %v4986 = vadd.f32 %v4936, %v4970
      %v4987 = vadd.f32 %v4937, %v4971
      %v4988 = vadd.f32 %v4938, %v4972
      %v4989 = vadd.f32 %v4939, %v4973
      %v4990 = vadd.f32 %v4940, %v4974
      %v4991 = vadd.f32 %v4941, %v4975
      %v4992 = vadd.f32 %v4942, %v4976
      %v4993 = vadd.f32 %v4943, %v4977
      %v4994 = vadd.f32 %v4944, %v4978
      %v4995 = vadd.f32 %v4945, %v4979
      %v4996 = vadd.f32 %v4946, %v4980
      %v4997 = vadd.f32 %v4947, %v4981
      %v4998 = vadd.f32 %v4948, %v4982
      %v4999 = vadd.f32 %v4949, %v4983
      %v5000 = vld [vmem:[%s1929 + $0x8] sm:$0xff]
      %v5001 = vld [vmem:[%s1929 + $0x10] sm:$0xff]
      %v5002 = vld [vmem:[%s1929 + $0x28] sm:$0xff]
      %v5003 = vld [vmem:[%s1929 + $0x30] sm:$0xff]
      %v5004 = vld [vmem:[%s1929 + $0x48] sm:$0xff]
      %v5005 = vld [vmem:[%s1929 + $0x50] sm:$0xff]
      %v5006 = vld [vmem:[%s1929 + $0x68] sm:$0xff]
      %v5007 = vld [vmem:[%s1929 + $0x70] sm:$0xff]
      %v5008 = vld [vmem:[%s1929 + $0x88] sm:$0xff]
      %v5009 = vld [vmem:[%s1929 + $0x90] sm:$0xff]
      %v5010 = vld [vmem:[%s1929 + $0xa8] sm:$0xff]
      %v5011 = vld [vmem:[%s1929 + $0xb0] sm:$0xff]
      %v5012 = vld [vmem:[%s1929 + $0xc8] sm:$0xff]
      %v5013 = vld [vmem:[%s1929 + $0xd0] sm:$0xff]
      %v5014 = vld [vmem:[%s1929 + $0xe8] sm:$0xff]
      %v5015 = vld [vmem:[%s1929 + $0xf0] sm:$0xff]
      %v5016 = vld [vmem:[%s15 + $0x7] sm:$0x1]
      %v5017 = vperm.slane %v5016, 0
      %v5018 = vmul.f32 %v5000, %v5017
      %v5019 = vmul.f32 %v5001, %v5017
      %v5020 = vmul.f32 %v5002, %v5017
      %v5021 = vmul.f32 %v5003, %v5017
      %v5022 = vmul.f32 %v5004, %v5017
      %v5023 = vmul.f32 %v5005, %v5017
      %v5024 = vmul.f32 %v5006, %v5017
      %v5025 = vmul.f32 %v5007, %v5017
      %v5026 = vmul.f32 %v5008, %v5017
      %v5027 = vmul.f32 %v5009, %v5017
      %v5028 = vmul.f32 %v5010, %v5017
      %v5029 = vmul.f32 %v5011, %v5017
      %v5030 = vmul.f32 %v5012, %v5017
      %v5031 = vmul.f32 %v5013, %v5017
      %v5032 = vmul.f32 %v5014, %v5017
      %v5033 = vmul.f32 %v5015, %v5017
      %v5034 = vadd.f32 %v4984, %v5018
      %v5035 = vadd.f32 %v4985, %v5019
      %v5036 = vadd.f32 %v4986, %v5020
      %v5037 = vadd.f32 %v4987, %v5021
      %v5038 = vadd.f32 %v4988, %v5022
      %v5039 = vadd.f32 %v4989, %v5023
      %v5040 = vadd.f32 %v4990, %v5024
      %v5041 = vadd.f32 %v4991, %v5025
      %v5042 = vadd.f32 %v4992, %v5026
      %v5043 = vadd.f32 %v4993, %v5027
      %v5044 = vadd.f32 %v4994, %v5028
      %v5045 = vadd.f32 %v4995, %v5029
      %v5046 = vadd.f32 %v4996, %v5030
      %v5047 = vadd.f32 %v4997, %v5031
      %v5048 = vadd.f32 %v4998, %v5032
      %v5049 = vadd.f32 %v4999, %v5033
      %v5050 = vld [vmem:[%s1929 + $0x9] sm:$0xff]
      %v5051 = vld [vmem:[%s1929 + $0x11] sm:$0xff]
      %v5052 = vld [vmem:[%s1929 + $0x29] sm:$0xff]
      %v5053 = vld [vmem:[%s1929 + $0x31] sm:$0xff]
      %v5054 = vld [vmem:[%s1929 + $0x49] sm:$0xff]
      %v5055 = vld [vmem:[%s1929 + $0x51] sm:$0xff]
      %v5056 = vld [vmem:[%s1929 + $0x69] sm:$0xff]
      %v5057 = vld [vmem:[%s1929 + $0x71] sm:$0xff]
      %v5058 = vld [vmem:[%s1929 + $0x89] sm:$0xff]
      %v5059 = vld [vmem:[%s1929 + $0x91] sm:$0xff]
      %v5060 = vld [vmem:[%s1929 + $0xa9] sm:$0xff]
      %v5061 = vld [vmem:[%s1929 + $0xb1] sm:$0xff]
      %v5062 = vld [vmem:[%s1929 + $0xc9] sm:$0xff]
      %v5063 = vld [vmem:[%s1929 + $0xd1] sm:$0xff]
      %v5064 = vld [vmem:[%s1929 + $0xe9] sm:$0xff]
      %v5065 = vld [vmem:[%s1929 + $0xf1] sm:$0xff]
      %v5066 = vld [vmem:[%s15 + $0x8] sm:$0x1]
      %v5067 = vperm.slane %v5066, 0
      %v5068 = vmul.f32 %v5050, %v5067
      %v5069 = vmul.f32 %v5051, %v5067
      %v5070 = vmul.f32 %v5052, %v5067
      %v5071 = vmul.f32 %v5053, %v5067
      %v5072 = vmul.f32 %v5054, %v5067
      %v5073 = vmul.f32 %v5055, %v5067
      %v5074 = vmul.f32 %v5056, %v5067
      %v5075 = vmul.f32 %v5057, %v5067
      %v5076 = vmul.f32 %v5058, %v5067
      %v5077 = vmul.f32 %v5059, %v5067
      %v5078 = vmul.f32 %v5060, %v5067
      %v5079 = vmul.f32 %v5061, %v5067
      %v5080 = vmul.f32 %v5062, %v5067
      %v5081 = vmul.f32 %v5063, %v5067
      %v5082 = vmul.f32 %v5064, %v5067
      %v5083 = vmul.f32 %v5065, %v5067
      %v5084 = vadd.f32 %v5034, %v5068
      %v5085 = vadd.f32 %v5035, %v5069
      %v5086 = vadd.f32 %v5036, %v5070
      %v5087 = vadd.f32 %v5037, %v5071
      %v5088 = vadd.f32 %v5038, %v5072
      %v5089 = vadd.f32 %v5039, %v5073
      %v5090 = vadd.f32 %v5040, %v5074
      %v5091 = vadd.f32 %v5041, %v5075
      %v5092 = vadd.f32 %v5042, %v5076
      %v5093 = vadd.f32 %v5043, %v5077
      %v5094 = vadd.f32 %v5044, %v5078
      %v5095 = vadd.f32 %v5045, %v5079
      %v5096 = vadd.f32 %v5046, %v5080
      %v5097 = vadd.f32 %v5047, %v5081
      %v5098 = vadd.f32 %v5048, %v5082
      %v5099 = vadd.f32 %v5049, %v5083
      %v5100 = vld [vmem:[%s16] sm:$0x1]
      %v5102 = vperm.slane %v5100, 0
      %v5104 = vadd.f32 %v5084, %v5102
      %v5105 = vadd.f32 %v5085, %v5102
      %v5106 = vadd.f32 %v5086, %v5102
      %v5107 = vadd.f32 %v5087, %v5102
      %v5108 = vadd.f32 %v5088, %v5102
      %v5109 = vadd.f32 %v5089, %v5102
      %v5110 = vadd.f32 %v5090, %v5102
      %v5111 = vadd.f32 %v5091, %v5102
      %v5112 = vadd.f32 %v5092, %v5102
      %v5113 = vadd.f32 %v5093, %v5102
      %v5114 = vadd.f32 %v5094, %v5102
      %v5115 = vadd.f32 %v5095, %v5102
      %v5116 = vadd.f32 %v5096, %v5102
      %v5117 = vadd.f32 %v5097, %v5102
      %v5118 = vadd.f32 %v5098, %v5102
      %v5119 = vadd.f32 %v5099, %v5102
      %v5120 = vmax.f32 %v5104, 0.0
      %v5121 = vmax.f32 %v5105, 0.0
      %v5122 = vmax.f32 %v5106, 0.0
      %v5123 = vmax.f32 %v5107, 0.0
      %v5124 = vmax.f32 %v5108, 0.0
      %v5125 = vmax.f32 %v5109, 0.0
      %v5126 = vmax.f32 %v5110, 0.0
      %v5127 = vmax.f32 %v5111, 0.0
      %v5128 = vmax.f32 %v5112, 0.0
      %v5129 = vmax.f32 %v5113, 0.0
      %v5130 = vmax.f32 %v5114, 0.0
      %v5131 = vmax.f32 %v5115, 0.0
      %v5132 = vmax.f32 %v5116, 0.0
      %v5133 = vmax.f32 %v5117, 0.0
      %v5134 = vmax.f32 %v5118, 0.0
      %v5135 = vmax.f32 %v5119, 0.0
      %5136 = vst [vmem:[#allocation4 + $0x80] sm:$0xff] %v5120
      %5137 = vst [vmem:[#allocation4 + $0x88] sm:$0xff] %v5121
      %5138 = vst [vmem:[#allocation4 + $0x90] sm:$0xff] %v5122
      %5139 = vst [vmem:[#allocation4 + $0x98] sm:$0xff] %v5123
      %5140 = vst [vmem:[#allocation4 + $0xa0] sm:$0xff] %v5124
      %5141 = vst [vmem:[#allocation4 + $0xa8] sm:$0xff] %v5125
      %5142 = vst [vmem:[#allocation4 + $0xb0] sm:$0xff] %v5126
      %5143 = vst [vmem:[#allocation4 + $0xb8] sm:$0xff] %v5127
      %5144 = vst [vmem:[#allocation4 + $0xc0] sm:$0xff] %v5128
      %5145 = vst [vmem:[#allocation4 + $0xc8] sm:$0xff] %v5129
      %5146 = vst [vmem:[#allocation4 + $0xd0] sm:$0xff] %v5130
      %5147 = vst [vmem:[#allocation4 + $0xd8] sm:$0xff] %v5131
      %5148 = vst [vmem:[#allocation4 + $0xe0] sm:$0xff] %v5132
      %5149 = vst [vmem:[#allocation4 + $0xe8] sm:$0xff] %v5133
      %5150 = vst [vmem:[#allocation4 + $0xf0] sm:$0xff] %v5134
      %5151 = vst [vmem:[#allocation4 + $0xf8] sm:$0xff] %v5135
      %v5152 = vld [vmem:[#allocation4] sm:$0xff]
      %v5153 = vld [vmem:[#allocation4 + $0x8] sm:$0xff]
      %v5154 = vld [vmem:[#allocation4 + $0x10] sm:$0xff]
      %v5155 = vld [vmem:[#allocation4 + $0x18] sm:$0xff]
      %v5156 = vld [vmem:[#allocation4 + $0x20] sm:$0xff]
      %v5157 = vld [vmem:[#allocation4 + $0x28] sm:$0xff]
      %v5158 = vld [vmem:[#allocation4 + $0x30] sm:$0xff]
      %v5159 = vld [vmem:[#allocation4 + $0x38] sm:$0xff]
      %v5160 = vld [vmem:[#allocation4 + $0x40] sm:$0xff]
      %v5161 = vld [vmem:[#allocation4 + $0x48] sm:$0xff]
      %v5162 = vld [vmem:[#allocation4 + $0x50] sm:$0xff]
      %v5163 = vld [vmem:[#allocation4 + $0x58] sm:$0xff]
      %v5164 = vld [vmem:[#allocation4 + $0x60] sm:$0xff]
      %v5165 = vld [vmem:[#allocation4 + $0x68] sm:$0xff]
      %v5166 = vld [vmem:[#allocation4 + $0x70] sm:$0xff]
      %v5167 = vld [vmem:[#allocation4 + $0x78] sm:$0xff]
      %v5168 = vld [vmem:[#allocation4 + $0x80] sm:$0xff]
      %v5169 = vld [vmem:[#allocation4 + $0x88] sm:$0xff]
      %v5170 = vld [vmem:[#allocation4 + $0x90] sm:$0xff]
      %v5171 = vld [vmem:[#allocation4 + $0x98] sm:$0xff]
      %v5172 = vld [vmem:[#allocation4 + $0xa0] sm:$0xff]
      %v5173 = vld [vmem:[#allocation4 + $0xa8] sm:$0xff]
      %v5174 = vld [vmem:[#allocation4 + $0xb0] sm:$0xff]
      %v5175 = vld [vmem:[#allocation4 + $0xb8] sm:$0xff]
      %v5176 = vld [vmem:[#allocation4 + $0xc0] sm:$0xff]
      %v5177 = vld [vmem:[#allocation4 + $0xc8] sm:$0xff]
      %v5178 = vld [vmem:[#allocation4 + $0xd0] sm:$0xff]
      %v5179 = vld [vmem:[#allocation4 + $0xd8] sm:$0xff]
      %v5180 = vld [vmem:[#allocation4 + $0xe0] sm:$0xff]
      %v5181 = vld [vmem:[#allocation4 + $0xe8] sm:$0xff]
      %v5182 = vld [vmem:[#allocation4 + $0xf0] sm:$0xff]
      %v5183 = vld [vmem:[#allocation4 + $0xf8] sm:$0xff]
      %v5184 = vpack.c.bf16 %v5153, %v5152
      %v5185 = vpack.c.bf16 %v5155, %v5154
      %v5186 = vpack.c.bf16 %v5157, %v5156
      %v5187 = vpack.c.bf16 %v5159, %v5158
      %v5188 = vpack.c.bf16 %v5161, %v5160
      %v5189 = vpack.c.bf16 %v5163, %v5162
      %v5190 = vpack.c.bf16 %v5165, %v5164
      %v5191 = vpack.c.bf16 %v5167, %v5166
      %v5192 = vpack.c.bf16 %v5169, %v5168
      %v5193 = vpack.c.bf16 %v5171, %v5170
      %v5194 = vpack.c.bf16 %v5173, %v5172
      %v5195 = vpack.c.bf16 %v5175, %v5174
      %v5196 = vpack.c.bf16 %v5177, %v5176
      %v5197 = vpack.c.bf16 %v5179, %v5178
      %v5198 = vpack.c.bf16 %v5181, %v5180
      %v5199 = vpack.c.bf16 %v5183, %v5182
      %v5200 = vld [vmem:[%s17] sm:$0xf]
      %v5201 = vld [vmem:[%s17 + $0x4] sm:$0xf]
      %v5202 = vld [vmem:[%s17 + $0x8] sm:$0xf]
      %v5203 = vld [vmem:[%s17 + $0xc] sm:$0xf]
      %v5204 = vld [vmem:[%s17 + $0x10] sm:$0xf]
      %v5205 = vld [vmem:[%s17 + $0x14] sm:$0xf]
      %v5206 = vld [vmem:[%s17 + $0x18] sm:$0xf]
      %v5207 = vld [vmem:[%s17 + $0x1c] sm:$0xf]
      %v5208 = vld [vmem:[%s17 + $0x20] sm:$0xf]
      %v5209 = vld [vmem:[%s17 + $0x24] sm:$0xf]
      %v5210 = vld [vmem:[%s17 + $0x28] sm:$0xf]
      %v5211 = vld [vmem:[%s17 + $0x2c] sm:$0xf]
      %v5212 = vld [vmem:[%s17 + $0x30] sm:$0xf]
      %v5213 = vld [vmem:[%s17 + $0x34] sm:$0xf]
      %v5214 = vld [vmem:[%s17 + $0x38] sm:$0xf]
      %v5215 = vld [vmem:[%s17 + $0x3c] sm:$0xf]
      %v5216 = vld [vmem:[%s18] sm:$0x1]
      %v5218 = vperm.slane %v5216, 0
      %v5236 = vunpack.c.l.b16 %v5200
      %v5237 = vunpack.c.l.b16 %v5201
      %v5238 = vunpack.c.l.b16 %v5202
      %v5239 = vunpack.c.l.b16 %v5203
      %v5240 = vunpack.c.l.b16 %v5204
      %v5241 = vunpack.c.l.b16 %v5205
      %v5242 = vunpack.c.l.b16 %v5206
      %v5243 = vunpack.c.l.b16 %v5207
      %v5244 = vunpack.c.l.b16 %v5208
      %v5245 = vunpack.c.l.b16 %v5209
      %v5246 = vunpack.c.l.b16 %v5210
      %v5247 = vunpack.c.l.b16 %v5211
      %v5248 = vunpack.c.l.b16 %v5212
      %v5249 = vunpack.c.l.b16 %v5213
      %v5250 = vunpack.c.l.b16 %v5214
      %v5251 = vunpack.c.l.b16 %v5215
      %v5252 = vpack.c.b16 %v5237, %v5236
      %v5253 = vpack.c.b16 %v5239, %v5238
      %v5254 = vpack.c.b16 %v5241, %v5240
      %v5255 = vpack.c.b16 %v5243, %v5242
      %v5256 = vpack.c.b16 %v5245, %v5244
      %v5257 = vpack.c.b16 %v5247, %v5246
      %v5258 = vpack.c.b16 %v5249, %v5248
      %v5259 = vpack.c.b16 %v5251, %v5250
      %5268 = vmatpush.bf16.msra.mxu0 %v5259
      %5269 = vmatpush.bf16.msra.mxu0 %v5258
      %5270 = vmatpush.bf16.msra.mxu0 %v5257
      %5271 = vmatpush.bf16.msra.mxu0 %v5256
      %5272 = vmatpush.bf16.msra.mxu0 %v5255
      %5273 = vmatpush.bf16.msra.mxu0 %v5254
      %5274 = vmatpush.bf16.msra.mxu0 %v5253
      %5275 = vmatpush.bf16.msra.mxu0 %v5252
      %5276 = vmatmul.bf16.gmra.mxu0 %v5184
      %v5277 = vpop.f32.mrf.mxu0
      %v5278 = vadd.f32 %v5218, %v5277
      %v5279 = vpop.f32.mrf.mxu0
      %v5280 = vadd.f32 %v5218, %v5279
      %5281 = vmatmul.bf16.gmra.mxu0 %v5185
      %v5282 = vpop.f32.mrf.mxu0
      %v5283 = vadd.f32 %v5218, %v5282
      %v5284 = vpop.f32.mrf.mxu0
      %v5285 = vadd.f32 %v5218, %v5284
      %5286 = vmatmul.bf16.gmra.mxu0 %v5186
      %v5287 = vpop.f32.mrf.mxu0
      %v5288 = vadd.f32 %v5218, %v5287
      %v5289 = vpop.f32.mrf.mxu0
      %v5290 = vadd.f32 %v5218, %v5289
      %5291 = vmatmul.bf16.gmra.mxu0 %v5187
      %v5292 = vpop.f32.mrf.mxu0
      %v5293 = vadd.f32 %v5218, %v5292
      %v5294 = vpop.f32.mrf.mxu0
      %v5295 = vadd.f32 %v5218, %v5294
      %5296 = vmatmul.bf16.gmra.mxu0 %v5188
      %v5297 = vpop.f32.mrf.mxu0
      %v5298 = vadd.f32 %v5218, %v5297
      %v5299 = vpop.f32.mrf.mxu0
      %v5300 = vadd.f32 %v5218, %v5299
      %5301 = vmatmul.bf16.gmra.mxu0 %v5189
      %v5302 = vpop.f32.mrf.mxu0
      %v5303 = vadd.f32 %v5218, %v5302
      %v5304 = vpop.f32.mrf.mxu0
      %v5305 = vadd.f32 %v5218, %v5304
      %5306 = vmatmul.bf16.gmra.mxu0 %v5190
      %v5307 = vpop.f32.mrf.mxu0
      %v5308 = vadd.f32 %v5218, %v5307
      %v5309 = vpop.f32.mrf.mxu0
      %v5310 = vadd.f32 %v5218, %v5309
      %5311 = vmatmul.bf16.gmra.mxu0 %v5191
      %v5312 = vpop.f32.mrf.mxu0
      %v5313 = vadd.f32 %v5218, %v5312
      %v5314 = vpop.f32.mrf.mxu0
      %v5315 = vadd.f32 %v5218, %v5314
      %5316 = vmatmul.bf16.gmra.mxu0 %v5192
      %v5317 = vpop.f32.mrf.mxu0
      %v5318 = vadd.f32 %v5218, %v5317
      %v5319 = vpop.f32.mrf.mxu0
      %v5320 = vadd.f32 %v5218, %v5319
      %5321 = vmatmul.bf16.gmra.mxu0 %v5193
      %v5322 = vpop.f32.mrf.mxu0
      %v5323 = vadd.f32 %v5218, %v5322
      %v5324 = vpop.f32.mrf.mxu0
      %v5325 = vadd.f32 %v5218, %v5324
      %5326 = vmatmul.bf16.gmra.mxu0 %v5194
      %v5327 = vpop.f32.mrf.mxu0
      %v5328 = vadd.f32 %v5218, %v5327
      %v5329 = vpop.f32.mrf.mxu0
      %v5330 = vadd.f32 %v5218, %v5329
      %5331 = vmatmul.bf16.gmra.mxu0 %v5195
      %v5332 = vpop.f32.mrf.mxu0
      %v5333 = vadd.f32 %v5218, %v5332
      %v5334 = vpop.f32.mrf.mxu0
      %v5335 = vadd.f32 %v5218, %v5334
      %5336 = vmatmul.bf16.gmra.mxu0 %v5196
      %v5337 = vpop.f32.mrf.mxu0
      %v5338 = vadd.f32 %v5218, %v5337
      %v5339 = vpop.f32.mrf.mxu0
      %v5340 = vadd.f32 %v5218, %v5339
      %5341 = vmatmul.bf16.gmra.mxu0 %v5197
      %v5342 = vpop.f32.mrf.mxu0
      %v5343 = vadd.f32 %v5218, %v5342
      %v5344 = vpop.f32.mrf.mxu0
      %v5345 = vadd.f32 %v5218, %v5344
      %5346 = vmatmul.bf16.gmra.mxu0 %v5198
      %v5347 = vpop.f32.mrf.mxu0
      %v5348 = vadd.f32 %v5218, %v5347
      %v5349 = vpop.f32.mrf.mxu0
      %v5350 = vadd.f32 %v5218, %v5349
      %5351 = vmatmul.bf16.gmra.mxu0 %v5199
      %v5352 = vpop.f32.mrf.mxu0
      %v5353 = vadd.f32 %v5218, %v5352
      %v5354 = vpop.f32.mrf.mxu0
      %v5355 = vadd.f32 %v5218, %v5354
      %5356 = vdwg.mxu0
      %5357 = vst [vmem:[#allocation3] sm:$0xff] %v5278
      %5358 = vst [vmem:[#allocation3 + $0x8] sm:$0xff] %v5280
      %5359 = vst [vmem:[#allocation3 + $0x10] sm:$0xff] %v5283
      %5360 = vst [vmem:[#allocation3 + $0x18] sm:$0xff] %v5285
      %5361 = vst [vmem:[#allocation3 + $0x20] sm:$0xff] %v5288
      %5362 = vst [vmem:[#allocation3 + $0x28] sm:$0xff] %v5290
      %5363 = vst [vmem:[#allocation3 + $0x30] sm:$0xff] %v5293
      %5364 = vst [vmem:[#allocation3 + $0x38] sm:$0xff] %v5295
      %5365 = vst [vmem:[#allocation3 + $0x40] sm:$0xff] %v5298
      %5366 = vst [vmem:[#allocation3 + $0x48] sm:$0xff] %v5300
      %5367 = vst [vmem:[#allocation3 + $0x50] sm:$0xff] %v5303
      %5368 = vst [vmem:[#allocation3 + $0x58] sm:$0xff] %v5305
      %5369 = vst [vmem:[#allocation3 + $0x60] sm:$0xff] %v5308
      %5370 = vst [vmem:[#allocation3 + $0x68] sm:$0xff] %v5310
      %5371 = vst [vmem:[#allocation3 + $0x70] sm:$0xff] %v5313
      %5372 = vst [vmem:[#allocation3 + $0x78] sm:$0xff] %v5315
      %5373 = vst [vmem:[#allocation3 + $0x80] sm:$0xff] %v5318
      %5374 = vst [vmem:[#allocation3 + $0x88] sm:$0xff] %v5320
      %5375 = vst [vmem:[#allocation3 + $0x90] sm:$0xff] %v5323
      %5376 = vst [vmem:[#allocation3 + $0x98] sm:$0xff] %v5325
      %5377 = vst [vmem:[#allocation3 + $0xa0] sm:$0xff] %v5328
      %5378 = vst [vmem:[#allocation3 + $0xa8] sm:$0xff] %v5330
      %5379 = vst [vmem:[#allocation3 + $0xb0] sm:$0xff] %v5333
      %5380 = vst [vmem:[#allocation3 + $0xb8] sm:$0xff] %v5335
      %5381 = vst [vmem:[#allocation3 + $0xc0] sm:$0xff] %v5338
      %5382 = vst [vmem:[#allocation3 + $0xc8] sm:$0xff] %v5340
      %5383 = vst [vmem:[#allocation3 + $0xd0] sm:$0xff] %v5343
      %5384 = vst [vmem:[#allocation3 + $0xd8] sm:$0xff] %v5345
      %5385 = vst [vmem:[#allocation3 + $0xe0] sm:$0xff] %v5348
      %5386 = vst [vmem:[#allocation3 + $0xe8] sm:$0xff] %v5350
      %5387 = vst [vmem:[#allocation3 + $0xf0] sm:$0xff] %v5353
      %5388 = vst [vmem:[#allocation3 + $0xf8] sm:$0xff] %v5355
      %v5389 = vld [vmem:[#allocation3] sm:$0xff]
      %v5390 = vld [vmem:[#allocation3 + $0x8] sm:$0xff]
      %v5391 = vld [vmem:[#allocation3 + $0x10] sm:$0xff]
      %v5392 = vld [vmem:[#allocation3 + $0x18] sm:$0xff]
      %v5393 = vld [vmem:[#allocation3 + $0x20] sm:$0xff]
      %v5394 = vld [vmem:[#allocation3 + $0x28] sm:$0xff]
      %v5395 = vld [vmem:[#allocation3 + $0x30] sm:$0xff]
      %v5396 = vld [vmem:[#allocation3 + $0x38] sm:$0xff]
      %v5397 = vld [vmem:[#allocation3 + $0x40] sm:$0xff]
      %v5398 = vld [vmem:[#allocation3 + $0x48] sm:$0xff]
      %v5399 = vld [vmem:[#allocation3 + $0x50] sm:$0xff]
      %v5400 = vld [vmem:[#allocation3 + $0x58] sm:$0xff]
      %v5401 = vld [vmem:[#allocation3 + $0x60] sm:$0xff]
      %v5402 = vld [vmem:[#allocation3 + $0x68] sm:$0xff]
      %v5403 = vld [vmem:[#allocation3 + $0x70] sm:$0xff]
      %v5404 = vld [vmem:[#allocation3 + $0x78] sm:$0xff]
      %v5405 = vld [vmem:[#allocation3 + $0x80] sm:$0xff]
      %v5406 = vld [vmem:[#allocation3 + $0x88] sm:$0xff]
      %v5407 = vld [vmem:[#allocation3 + $0x90] sm:$0xff]
      %v5408 = vld [vmem:[#allocation3 + $0x98] sm:$0xff]
      %v5409 = vld [vmem:[#allocation3 + $0xa0] sm:$0xff]
      %v5410 = vld [vmem:[#allocation3 + $0xa8] sm:$0xff]
      %v5411 = vld [vmem:[#allocation3 + $0xb0] sm:$0xff]
      %v5412 = vld [vmem:[#allocation3 + $0xb8] sm:$0xff]
      %v5413 = vld [vmem:[#allocation3 + $0xc0] sm:$0xff]
      %v5414 = vld [vmem:[#allocation3 + $0xc8] sm:$0xff]
      %v5415 = vld [vmem:[#allocation3 + $0xd0] sm:$0xff]
      %v5416 = vld [vmem:[#allocation3 + $0xd8] sm:$0xff]
      %v5417 = vld [vmem:[#allocation3 + $0xe0] sm:$0xff]
      %v5418 = vld [vmem:[#allocation3 + $0xe8] sm:$0xff]
      %v5419 = vld [vmem:[#allocation3 + $0xf0] sm:$0xff]
      %v5420 = vld [vmem:[#allocation3 + $0xf8] sm:$0xff]
      %v5421 = vpack.c.bf16 %v5390, %v5389
      %v5422 = vpack.c.bf16 %v5392, %v5391
      %v5423 = vpack.c.bf16 %v5394, %v5393
      %v5424 = vpack.c.bf16 %v5396, %v5395
      %v5425 = vpack.c.bf16 %v5398, %v5397
      %v5426 = vpack.c.bf16 %v5400, %v5399
      %v5427 = vpack.c.bf16 %v5402, %v5401
      %v5428 = vpack.c.bf16 %v5404, %v5403
      %v5429 = vpack.c.bf16 %v5406, %v5405
      %v5430 = vpack.c.bf16 %v5408, %v5407
      %v5431 = vpack.c.bf16 %v5410, %v5409
      %v5432 = vpack.c.bf16 %v5412, %v5411
      %v5433 = vpack.c.bf16 %v5414, %v5413
      %v5434 = vpack.c.bf16 %v5416, %v5415
      %v5435 = vpack.c.bf16 %v5418, %v5417
      %v5436 = vpack.c.bf16 %v5420, %v5419
      %v5437 = vld [vmem:[%s19] sm:$0xf]
      %v5438 = vld [vmem:[%s19 + $0x4] sm:$0xf]
      %v5439 = vld [vmem:[%s19 + $0x8] sm:$0xf]
      %v5440 = vld [vmem:[%s19 + $0xc] sm:$0xf]
      %v5441 = vld [vmem:[%s19 + $0x10] sm:$0xf]
      %v5442 = vld [vmem:[%s19 + $0x14] sm:$0xf]
      %v5443 = vld [vmem:[%s19 + $0x18] sm:$0xf]
      %v5444 = vld [vmem:[%s19 + $0x1c] sm:$0xf]
      %v5445 = vld [vmem:[%s19 + $0x20] sm:$0xf]
      %v5446 = vld [vmem:[%s19 + $0x24] sm:$0xf]
      %v5447 = vld [vmem:[%s19 + $0x28] sm:$0xf]
      %v5448 = vld [vmem:[%s19 + $0x2c] sm:$0xf]
      %v5449 = vld [vmem:[%s19 + $0x30] sm:$0xf]
      %v5450 = vld [vmem:[%s19 + $0x34] sm:$0xf]
      %v5451 = vld [vmem:[%s19 + $0x38] sm:$0xf]
      %v5452 = vld [vmem:[%s19 + $0x3c] sm:$0xf]
      %v5453 = vld [vmem:[%s20] sm:$0x1]
      %v5455 = vperm.slane %v5453, 0
      %v5473 = vunpack.c.l.b16 %v5437
      %v5474 = vunpack.c.l.b16 %v5438
      %v5475 = vunpack.c.l.b16 %v5439
      %v5476 = vunpack.c.l.b16 %v5440
      %v5477 = vunpack.c.l.b16 %v5441
      %v5478 = vunpack.c.l.b16 %v5442
      %v5479 = vunpack.c.l.b16 %v5443
      %v5480 = vunpack.c.l.b16 %v5444
      %v5481 = vunpack.c.l.b16 %v5445
      %v5482 = vunpack.c.l.b16 %v5446
      %v5483 = vunpack.c.l.b16 %v5447
      %v5484 = vunpack.c.l.b16 %v5448
      %v5485 = vunpack.c.l.b16 %v5449
      %v5486 = vunpack.c.l.b16 %v5450
      %v5487 = vunpack.c.l.b16 %v5451
      %v5488 = vunpack.c.l.b16 %v5452
      %v5489 = vpack.c.b16 %v5474, %v5473
      %v5490 = vpack.c.b16 %v5476, %v5475
      %v5491 = vpack.c.b16 %v5478, %v5477
      %v5492 = vpack.c.b16 %v5480, %v5479
      %v5493 = vpack.c.b16 %v5482, %v5481
      %v5494 = vpack.c.b16 %v5484, %v5483
      %v5495 = vpack.c.b16 %v5486, %v5485
      %v5496 = vpack.c.b16 %v5488, %v5487
      %5505 = vmatpush.bf16.msra.mxu0 %v5496
      %5506 = vmatpush.bf16.msra.mxu0 %v5495
      %5507 = vmatpush.bf16.msra.mxu0 %v5494
      %5508 = vmatpush.bf16.msra.mxu0 %v5493
      %5509 = vmatpush.bf16.msra.mxu0 %v5492
      %5510 = vmatpush.bf16.msra.mxu0 %v5491
      %5511 = vmatpush.bf16.msra.mxu0 %v5490
      %5512 = vmatpush.bf16.msra.mxu0 %v5489
      %5513 = vmatmul.bf16.gmra.mxu0 %v5421
      %v5514 = vpop.f32.mrf.mxu0
      %v5515 = vadd.f32 %v5455, %v5514
      %v5516 = vpop.f32.mrf.mxu0
      %v5517 = vadd.f32 %v5455, %v5516
      %5518 = vmatmul.bf16.gmra.mxu0 %v5422
      %v5519 = vpop.f32.mrf.mxu0
      %v5520 = vadd.f32 %v5455, %v5519
      %v5521 = vpop.f32.mrf.mxu0
      %v5522 = vadd.f32 %v5455, %v5521
      %5523 = vmatmul.bf16.gmra.mxu0 %v5423
      %v5524 = vpop.f32.mrf.mxu0
      %v5525 = vadd.f32 %v5455, %v5524
      %v5526 = vpop.f32.mrf.mxu0
      %v5527 = vadd.f32 %v5455, %v5526
      %5528 = vmatmul.bf16.gmra.mxu0 %v5424
      %v5529 = vpop.f32.mrf.mxu0
      %v5530 = vadd.f32 %v5455, %v5529
      %v5531 = vpop.f32.mrf.mxu0
      %v5532 = vadd.f32 %v5455, %v5531
      %5533 = vmatmul.bf16.gmra.mxu0 %v5425
      %v5534 = vpop.f32.mrf.mxu0
      %v5535 = vadd.f32 %v5455, %v5534
      %v5536 = vpop.f32.mrf.mxu0
      %v5537 = vadd.f32 %v5455, %v5536
      %5538 = vmatmul.bf16.gmra.mxu0 %v5426
      %v5539 = vpop.f32.mrf.mxu0
      %v5540 = vadd.f32 %v5455, %v5539
      %v5541 = vpop.f32.mrf.mxu0
      %v5542 = vadd.f32 %v5455, %v5541
      %5543 = vmatmul.bf16.gmra.mxu0 %v5427
      %v5544 = vpop.f32.mrf.mxu0
      %v5545 = vadd.f32 %v5455, %v5544
      %v5546 = vpop.f32.mrf.mxu0
      %v5547 = vadd.f32 %v5455, %v5546
      %5548 = vmatmul.bf16.gmra.mxu0 %v5428
      %v5549 = vpop.f32.mrf.mxu0
      %v5550 = vadd.f32 %v5455, %v5549
      %v5551 = vpop.f32.mrf.mxu0
      %v5552 = vadd.f32 %v5455, %v5551
      %5553 = vmatmul.bf16.gmra.mxu0 %v5429
      %v5554 = vpop.f32.mrf.mxu0
      %v5555 = vadd.f32 %v5455, %v5554
      %v5556 = vpop.f32.mrf.mxu0
      %v5557 = vadd.f32 %v5455, %v5556
      %5558 = vmatmul.bf16.gmra.mxu0 %v5430
      %v5559 = vpop.f32.mrf.mxu0
      %v5560 = vadd.f32 %v5455, %v5559
      %v5561 = vpop.f32.mrf.mxu0
      %v5562 = vadd.f32 %v5455, %v5561
      %5563 = vmatmul.bf16.gmra.mxu0 %v5431
      %v5564 = vpop.f32.mrf.mxu0
      %v5565 = vadd.f32 %v5455, %v5564
      %v5566 = vpop.f32.mrf.mxu0
      %v5567 = vadd.f32 %v5455, %v5566
      %5568 = vmatmul.bf16.gmra.mxu0 %v5432
      %v5569 = vpop.f32.mrf.mxu0
      %v5570 = vadd.f32 %v5455, %v5569
      %v5571 = vpop.f32.mrf.mxu0
      %v5572 = vadd.f32 %v5455, %v5571
      %5573 = vmatmul.bf16.gmra.mxu0 %v5433
      %v5574 = vpop.f32.mrf.mxu0
      %v5575 = vadd.f32 %v5455, %v5574
      %v5576 = vpop.f32.mrf.mxu0
      %v5577 = vadd.f32 %v5455, %v5576
      %5578 = vmatmul.bf16.gmra.mxu0 %v5434
      %v5579 = vpop.f32.mrf.mxu0
      %v5580 = vadd.f32 %v5455, %v5579
      %v5581 = vpop.f32.mrf.mxu0
      %v5582 = vadd.f32 %v5455, %v5581
      %5583 = vmatmul.bf16.gmra.mxu0 %v5435
      %v5584 = vpop.f32.mrf.mxu0
      %v5585 = vadd.f32 %v5455, %v5584
      %v5586 = vpop.f32.mrf.mxu0
      %v5587 = vadd.f32 %v5455, %v5586
      %5588 = vmatmul.bf16.gmra.mxu0 %v5436
      %v5589 = vpop.f32.mrf.mxu0
      %v5590 = vadd.f32 %v5455, %v5589
      %v5591 = vpop.f32.mrf.mxu0
      %v5592 = vadd.f32 %v5455, %v5591
      %5593 = vdwg.mxu0
      %v5594 = vmax.f32 %v5515, 0.0
      %v5595 = vmax.f32 %v5517, 0.0
      %v5596 = vmax.f32 %v5520, 0.0
      %v5597 = vmax.f32 %v5522, 0.0
      %v5598 = vmax.f32 %v5525, 0.0
      %v5599 = vmax.f32 %v5527, 0.0
      %v5600 = vmax.f32 %v5530, 0.0
      %v5601 = vmax.f32 %v5532, 0.0
      %v5602 = vmax.f32 %v5535, 0.0
      %v5603 = vmax.f32 %v5537, 0.0
      %v5604 = vmax.f32 %v5540, 0.0
      %v5605 = vmax.f32 %v5542, 0.0
      %v5606 = vmax.f32 %v5545, 0.0
      %v5607 = vmax.f32 %v5547, 0.0
      %v5608 = vmax.f32 %v5550, 0.0
      %v5609 = vmax.f32 %v5552, 0.0
      %v5610 = vmax.f32 %v5555, 0.0
      %v5611 = vmax.f32 %v5557, 0.0
      %v5612 = vmax.f32 %v5560, 0.0
      %v5613 = vmax.f32 %v5562, 0.0
      %v5614 = vmax.f32 %v5565, 0.0
      %v5615 = vmax.f32 %v5567, 0.0
      %v5616 = vmax.f32 %v5570, 0.0
      %v5617 = vmax.f32 %v5572, 0.0
      %v5618 = vmax.f32 %v5575, 0.0
      %v5619 = vmax.f32 %v5577, 0.0
      %v5620 = vmax.f32 %v5580, 0.0
      %v5621 = vmax.f32 %v5582, 0.0
      %v5622 = vmax.f32 %v5585, 0.0
      %v5623 = vmax.f32 %v5587, 0.0
      %v5624 = vmax.f32 %v5590, 0.0
      %v5625 = vmax.f32 %v5592, 0.0
      %5626 = vst [vmem:[%s829 + $0x8] sm:$0xff] %v5594
      %5627 = vst [vmem:[%s829 + $0x10] sm:$0xff] %v5595
      %5628 = vst [vmem:[%s829 + $0x28] sm:$0xff] %v5596
      %5629 = vst [vmem:[%s829 + $0x30] sm:$0xff] %v5597
      %5630 = vst [vmem:[%s829 + $0x48] sm:$0xff] %v5598
      %5631 = vst [vmem:[%s829 + $0x50] sm:$0xff] %v5599
      %5632 = vst [vmem:[%s829 + $0x68] sm:$0xff] %v5600
      %5633 = vst [vmem:[%s829 + $0x70] sm:$0xff] %v5601
      %5634 = vst [vmem:[%s829 + $0x88] sm:$0xff] %v5602
      %5635 = vst [vmem:[%s829 + $0x90] sm:$0xff] %v5603
      %5636 = vst [vmem:[%s829 + $0xa8] sm:$0xff] %v5604
      %5637 = vst [vmem:[%s829 + $0xb0] sm:$0xff] %v5605
      %5638 = vst [vmem:[%s829 + $0xc8] sm:$0xff] %v5606
      %5639 = vst [vmem:[%s829 + $0xd0] sm:$0xff] %v5607
      %5640 = vst [vmem:[%s829 + $0xe8] sm:$0xff] %v5608
      %5641 = vst [vmem:[%s829 + $0xf0] sm:$0xff] %v5609
      %5642 = vst [vmem:[%s829 + $0x108] sm:$0xff] %v5610
      %5643 = vst [vmem:[%s829 + $0x110] sm:$0xff] %v5611
      %5644 = vst [vmem:[%s829 + $0x128] sm:$0xff] %v5612
      %5645 = vst [vmem:[%s829 + $0x130] sm:$0xff] %v5613
      %5646 = vst [vmem:[%s829 + $0x148] sm:$0xff] %v5614
      %5647 = vst [vmem:[%s829 + $0x150] sm:$0xff] %v5615
      %5648 = vst [vmem:[%s829 + $0x168] sm:$0xff] %v5616
      %5649 = vst [vmem:[%s829 + $0x170] sm:$0xff] %v5617
      %5650 = vst [vmem:[%s829 + $0x188] sm:$0xff] %v5618
      %5651 = vst [vmem:[%s829 + $0x190] sm:$0xff] %v5619
      %5652 = vst [vmem:[%s829 + $0x1a8] sm:$0xff] %v5620
      %5653 = vst [vmem:[%s829 + $0x1b0] sm:$0xff] %v5621
      %5654 = vst [vmem:[%s829 + $0x1c8] sm:$0xff] %v5622
      %5655 = vst [vmem:[%s829 + $0x1d0] sm:$0xff] %v5623
      %5656 = vst [vmem:[%s829 + $0x1e8] sm:$0xff] %v5624
      %5657 = vst [vmem:[%s829 + $0x1f0] sm:$0xff] %v5625
      %v5658 = vld [vmem:[#allocation2 + $0x7] sm:$0xff]
      %v5659 = vld [vmem:[#allocation2 + $0xf] sm:$0xff]
      %v5660 = vld [vmem:[#allocation2 + $0x27] sm:$0xff]
      %v5661 = vld [vmem:[#allocation2 + $0x2f] sm:$0xff]
      %v5662 = vld [vmem:[#allocation2 + $0x47] sm:$0xff]
      %v5663 = vld [vmem:[#allocation2 + $0x4f] sm:$0xff]
      %v5664 = vld [vmem:[#allocation2 + $0x67] sm:$0xff]
      %v5665 = vld [vmem:[#allocation2 + $0x6f] sm:$0xff]
      %v5666 = vld [vmem:[#allocation2 + $0x87] sm:$0xff]
      %v5667 = vld [vmem:[#allocation2 + $0x8f] sm:$0xff]
      %v5668 = vld [vmem:[#allocation2 + $0xa7] sm:$0xff]
      %v5669 = vld [vmem:[#allocation2 + $0xaf] sm:$0xff]
      %v5670 = vld [vmem:[#allocation2 + $0xc7] sm:$0xff]
      %v5671 = vld [vmem:[#allocation2 + $0xcf] sm:$0xff]
      %v5672 = vld [vmem:[#allocation2 + $0xe7] sm:$0xff]
      %v5673 = vld [vmem:[#allocation2 + $0xef] sm:$0xff]
      %v5674 = vld [vmem:[%s21] sm:$0x1]
      %v5675 = vperm.slane %v5674, 0
      %v5676 = vmul.f32 %v5658, %v5675
      %v5677 = vmul.f32 %v5659, %v5675
      %v5678 = vmul.f32 %v5660, %v5675
      %v5679 = vmul.f32 %v5661, %v5675
      %v5680 = vmul.f32 %v5662, %v5675
      %v5681 = vmul.f32 %v5663, %v5675
      %v5682 = vmul.f32 %v5664, %v5675
      %v5683 = vmul.f32 %v5665, %v5675
      %v5684 = vmul.f32 %v5666, %v5675
      %v5685 = vmul.f32 %v5667, %v5675
      %v5686 = vmul.f32 %v5668, %v5675
      %v5687 = vmul.f32 %v5669, %v5675
      %v5688 = vmul.f32 %v5670, %v5675
      %v5689 = vmul.f32 %v5671, %v5675
      %v5690 = vmul.f32 %v5672, %v5675
      %v5691 = vmul.f32 %v5673, %v5675
      %v5692 = vadd.f32 %v5676, 0.0
      %v5693 = vadd.f32 %v5677, 0.0
      %v5694 = vadd.f32 %v5678, 0.0
      %v5695 = vadd.f32 %v5679, 0.0
      %v5696 = vadd.f32 %v5680, 0.0
      %v5697 = vadd.f32 %v5681, 0.0
      %v5698 = vadd.f32 %v5682, 0.0
      %v5699 = vadd.f32 %v5683, 0.0
      %v5700 = vadd.f32 %v5684, 0.0
      %v5701 = vadd.f32 %v5685, 0.0
      %v5702 = vadd.f32 %v5686, 0.0
      %v5703 = vadd.f32 %v5687, 0.0
      %v5704 = vadd.f32 %v5688, 0.0
      %v5705 = vadd.f32 %v5689, 0.0
      %v5706 = vadd.f32 %v5690, 0.0
      %v5707 = vadd.f32 %v5691, 0.0
      %v5708 = vld [vmem:[#allocation2 + $0x8] sm:$0xff]
      %v5709 = vld [vmem:[#allocation2 + $0x10] sm:$0xff]
      %v5710 = vld [vmem:[#allocation2 + $0x28] sm:$0xff]
      %v5711 = vld [vmem:[#allocation2 + $0x30] sm:$0xff]
      %v5712 = vld [vmem:[#allocation2 + $0x48] sm:$0xff]
      %v5713 = vld [vmem:[#allocation2 + $0x50] sm:$0xff]
      %v5714 = vld [vmem:[#allocation2 + $0x68] sm:$0xff]
      %v5715 = vld [vmem:[#allocation2 + $0x70] sm:$0xff]
      %v5716 = vld [vmem:[#allocation2 + $0x88] sm:$0xff]
      %v5717 = vld [vmem:[#allocation2 + $0x90] sm:$0xff]
      %v5718 = vld [vmem:[#allocation2 + $0xa8] sm:$0xff]
      %v5719 = vld [vmem:[#allocation2 + $0xb0] sm:$0xff]
      %v5720 = vld [vmem:[#allocation2 + $0xc8] sm:$0xff]
      %v5721 = vld [vmem:[#allocation2 + $0xd0] sm:$0xff]
      %v5722 = vld [vmem:[#allocation2 + $0xe8] sm:$0xff]
      %v5723 = vld [vmem:[#allocation2 + $0xf0] sm:$0xff]
      %v5724 = vld [vmem:[%s21 + $0x1] sm:$0x1]
      %v5725 = vperm.slane %v5724, 0
      %v5726 = vmul.f32 %v5708, %v5725
      %v5727 = vmul.f32 %v5709, %v5725
      %v5728 = vmul.f32 %v5710, %v5725
      %v5729 = vmul.f32 %v5711, %v5725
      %v5730 = vmul.f32 %v5712, %v5725
      %v5731 = vmul.f32 %v5713, %v5725
      %v5732 = vmul.f32 %v5714, %v5725
      %v5733 = vmul.f32 %v5715, %v5725
      %v5734 = vmul.f32 %v5716, %v5725
      %v5735 = vmul.f32 %v5717, %v5725
      %v5736 = vmul.f32 %v5718, %v5725
      %v5737 = vmul.f32 %v5719, %v5725
      %v5738 = vmul.f32 %v5720, %v5725
      %v5739 = vmul.f32 %v5721, %v5725
      %v5740 = vmul.f32 %v5722, %v5725
      %v5741 = vmul.f32 %v5723, %v5725
      %v5742 = vadd.f32 %v5692, %v5726
      %v5743 = vadd.f32 %v5693, %v5727
      %v5744 = vadd.f32 %v5694, %v5728
      %v5745 = vadd.f32 %v5695, %v5729
      %v5746 = vadd.f32 %v5696, %v5730
      %v5747 = vadd.f32 %v5697, %v5731
      %v5748 = vadd.f32 %v5698, %v5732
      %v5749 = vadd.f32 %v5699, %v5733
      %v5750 = vadd.f32 %v5700, %v5734
      %v5751 = vadd.f32 %v5701, %v5735
      %v5752 = vadd.f32 %v5702, %v5736
      %v5753 = vadd.f32 %v5703, %v5737
      %v5754 = vadd.f32 %v5704, %v5738
      %v5755 = vadd.f32 %v5705, %v5739
      %v5756 = vadd.f32 %v5706, %v5740
      %v5757 = vadd.f32 %v5707, %v5741
      %v5758 = vld [vmem:[#allocation2 + $0x9] sm:$0xff]
      %v5759 = vld [vmem:[#allocation2 + $0x11] sm:$0xff]
      %v5760 = vld [vmem:[#allocation2 + $0x29] sm:$0xff]
      %v5761 = vld [vmem:[#allocation2 + $0x31] sm:$0xff]
      %v5762 = vld [vmem:[#allocation2 + $0x49] sm:$0xff]
      %v5763 = vld [vmem:[#allocation2 + $0x51] sm:$0xff]
      %v5764 = vld [vmem:[#allocation2 + $0x69] sm:$0xff]
      %v5765 = vld [vmem:[#allocation2 + $0x71] sm:$0xff]
      %v5766 = vld [vmem:[#allocation2 + $0x89] sm:$0xff]
      %v5767 = vld [vmem:[#allocation2 + $0x91] sm:$0xff]
      %v5768 = vld [vmem:[#allocation2 + $0xa9] sm:$0xff]
      %v5769 = vld [vmem:[#allocation2 + $0xb1] sm:$0xff]
      %v5770 = vld [vmem:[#allocation2 + $0xc9] sm:$0xff]
      %v5771 = vld [vmem:[#allocation2 + $0xd1] sm:$0xff]
      %v5772 = vld [vmem:[#allocation2 + $0xe9] sm:$0xff]
      %v5773 = vld [vmem:[#allocation2 + $0xf1] sm:$0xff]
      %v5774 = vld [vmem:[%s21 + $0x2] sm:$0x1]
      %v5775 = vperm.slane %v5774, 0
      %v5776 = vmul.f32 %v5758, %v5775
      %v5777 = vmul.f32 %v5759, %v5775
      %v5778 = vmul.f32 %v5760, %v5775
      %v5779 = vmul.f32 %v5761, %v5775
      %v5780 = vmul.f32 %v5762, %v5775
      %v5781 = vmul.f32 %v5763, %v5775
      %v5782 = vmul.f32 %v5764, %v5775
      %v5783 = vmul.f32 %v5765, %v5775
      %v5784 = vmul.f32 %v5766, %v5775
      %v5785 = vmul.f32 %v5767, %v5775
      %v5786 = vmul.f32 %v5768, %v5775
      %v5787 = vmul.f32 %v5769, %v5775
      %v5788 = vmul.f32 %v5770, %v5775
      %v5789 = vmul.f32 %v5771, %v5775
      %v5790 = vmul.f32 %v5772, %v5775
      %v5791 = vmul.f32 %v5773, %v5775
      %v5792 = vadd.f32 %v5742, %v5776
      %v5793 = vadd.f32 %v5743, %v5777
      %v5794 = vadd.f32 %v5744, %v5778
      %v5795 = vadd.f32 %v5745, %v5779
      %v5796 = vadd.f32 %v5746, %v5780
      %v5797 = vadd.f32 %v5747, %v5781
      %v5798 = vadd.f32 %v5748, %v5782
      %v5799 = vadd.f32 %v5749, %v5783
      %v5800 = vadd.f32 %v5750, %v5784
      %v5801 = vadd.f32 %v5751, %v5785
      %v5802 = vadd.f32 %v5752, %v5786
      %v5803 = vadd.f32 %v5753, %v5787
      %v5804 = vadd.f32 %v5754, %v5788
      %v5805 = vadd.f32 %v5755, %v5789
      %v5806 = vadd.f32 %v5756, %v5790
      %v5807 = vadd.f32 %v5757, %v5791
      %v5808 = vld [vmem:[%s829 + $0x7] sm:$0xff]
      %v5809 = vld [vmem:[%s829 + $0xf] sm:$0xff]
      %v5810 = vld [vmem:[%s829 + $0x27] sm:$0xff]
      %v5811 = vld [vmem:[%s829 + $0x2f] sm:$0xff]
      %v5812 = vld [vmem:[%s829 + $0x47] sm:$0xff]
      %v5813 = vld [vmem:[%s829 + $0x4f] sm:$0xff]
      %v5814 = vld [vmem:[%s829 + $0x67] sm:$0xff]
      %v5815 = vld [vmem:[%s829 + $0x6f] sm:$0xff]
      %v5816 = vld [vmem:[%s829 + $0x87] sm:$0xff]
      %v5817 = vld [vmem:[%s829 + $0x8f] sm:$0xff]
      %v5818 = vld [vmem:[%s829 + $0xa7] sm:$0xff]
      %v5819 = vld [vmem:[%s829 + $0xaf] sm:$0xff]
      %v5820 = vld [vmem:[%s829 + $0xc7] sm:$0xff]
      %v5821 = vld [vmem:[%s829 + $0xcf] sm:$0xff]
      %v5822 = vld [vmem:[%s829 + $0xe7] sm:$0xff]
      %v5823 = vld [vmem:[%s829 + $0xef] sm:$0xff]
      %v5824 = vld [vmem:[%s21 + $0x3] sm:$0x1]
      %v5825 = vperm.slane %v5824, 0
      %v5826 = vmul.f32 %v5808, %v5825
      %v5827 = vmul.f32 %v5809, %v5825
      %v5828 = vmul.f32 %v5810, %v5825
      %v5829 = vmul.f32 %v5811, %v5825
      %v5830 = vmul.f32 %v5812, %v5825
      %v5831 = vmul.f32 %v5813, %v5825
      %v5832 = vmul.f32 %v5814, %v5825
      %v5833 = vmul.f32 %v5815, %v5825
      %v5834 = vmul.f32 %v5816, %v5825
      %v5835 = vmul.f32 %v5817, %v5825
      %v5836 = vmul.f32 %v5818, %v5825
      %v5837 = vmul.f32 %v5819, %v5825
      %v5838 = vmul.f32 %v5820, %v5825
      %v5839 = vmul.f32 %v5821, %v5825
      %v5840 = vmul.f32 %v5822, %v5825
      %v5841 = vmul.f32 %v5823, %v5825
      %v5842 = vadd.f32 %v5792, %v5826
      %v5843 = vadd.f32 %v5793, %v5827
      %v5844 = vadd.f32 %v5794, %v5828
      %v5845 = vadd.f32 %v5795, %v5829
      %v5846 = vadd.f32 %v5796, %v5830
      %v5847 = vadd.f32 %v5797, %v5831
      %v5848 = vadd.f32 %v5798, %v5832
      %v5849 = vadd.f32 %v5799, %v5833
      %v5850 = vadd.f32 %v5800, %v5834
      %v5851 = vadd.f32 %v5801, %v5835
      %v5852 = vadd.f32 %v5802, %v5836
      %v5853 = vadd.f32 %v5803, %v5837
      %v5854 = vadd.f32 %v5804, %v5838
      %v5855 = vadd.f32 %v5805, %v5839
      %v5856 = vadd.f32 %v5806, %v5840
      %v5857 = vadd.f32 %v5807, %v5841
      %v5858 = vld [vmem:[%s829 + $0x8] sm:$0xff]
      %v5859 = vld [vmem:[%s829 + $0x10] sm:$0xff]
      %v5860 = vld [vmem:[%s829 + $0x28] sm:$0xff]
      %v5861 = vld [vmem:[%s829 + $0x30] sm:$0xff]
      %v5862 = vld [vmem:[%s829 + $0x48] sm:$0xff]
      %v5863 = vld [vmem:[%s829 + $0x50] sm:$0xff]
      %v5864 = vld [vmem:[%s829 + $0x68] sm:$0xff]
      %v5865 = vld [vmem:[%s829 + $0x70] sm:$0xff]
      %v5866 = vld [vmem:[%s829 + $0x88] sm:$0xff]
      %v5867 = vld [vmem:[%s829 + $0x90] sm:$0xff]
      %v5868 = vld [vmem:[%s829 + $0xa8] sm:$0xff]
      %v5869 = vld [vmem:[%s829 + $0xb0] sm:$0xff]
      %v5870 = vld [vmem:[%s829 + $0xc8] sm:$0xff]
      %v5871 = vld [vmem:[%s829 + $0xd0] sm:$0xff]
      %v5872 = vld [vmem:[%s829 + $0xe8] sm:$0xff]
      %v5873 = vld [vmem:[%s829 + $0xf0] sm:$0xff]
      %v5874 = vld [vmem:[%s21 + $0x4] sm:$0x1]
      %v5875 = vperm.slane %v5874, 0
      %v5876 = vmul.f32 %v5858, %v5875
      %v5877 = vmul.f32 %v5859, %v5875
      %v5878 = vmul.f32 %v5860, %v5875
      %v5879 = vmul.f32 %v5861, %v5875
      %v5880 = vmul.f32 %v5862, %v5875
      %v5881 = vmul.f32 %v5863, %v5875
      %v5882 = vmul.f32 %v5864, %v5875
      %v5883 = vmul.f32 %v5865, %v5875
      %v5884 = vmul.f32 %v5866, %v5875
      %v5885 = vmul.f32 %v5867, %v5875
      %v5886 = vmul.f32 %v5868, %v5875
      %v5887 = vmul.f32 %v5869, %v5875
      %v5888 = vmul.f32 %v5870, %v5875
      %v5889 = vmul.f32 %v5871, %v5875
      %v5890 = vmul.f32 %v5872, %v5875
      %v5891 = vmul.f32 %v5873, %v5875
      %v5892 = vadd.f32 %v5842, %v5876
      %v5893 = vadd.f32 %v5843, %v5877
      %v5894 = vadd.f32 %v5844, %v5878
      %v5895 = vadd.f32 %v5845, %v5879
      %v5896 = vadd.f32 %v5846, %v5880
      %v5897 = vadd.f32 %v5847, %v5881
      %v5898 = vadd.f32 %v5848, %v5882
      %v5899 = vadd.f32 %v5849, %v5883
      %v5900 = vadd.f32 %v5850, %v5884
      %v5901 = vadd.f32 %v5851, %v5885
      %v5902 = vadd.f32 %v5852, %v5886
      %v5903 = vadd.f32 %v5853, %v5887
      %v5904 = vadd.f32 %v5854, %v5888
      %v5905 = vadd.f32 %v5855, %v5889
      %v5906 = vadd.f32 %v5856, %v5890
      %v5907 = vadd.f32 %v5857, %v5891
      %v5908 = vld [vmem:[%s829 + $0x9] sm:$0xff]
      %v5909 = vld [vmem:[%s829 + $0x11] sm:$0xff]
      %v5910 = vld [vmem:[%s829 + $0x29] sm:$0xff]
      %v5911 = vld [vmem:[%s829 + $0x31] sm:$0xff]
      %v5912 = vld [vmem:[%s829 + $0x49] sm:$0xff]
      %v5913 = vld [vmem:[%s829 + $0x51] sm:$0xff]
      %v5914 = vld [vmem:[%s829 + $0x69] sm:$0xff]
      %v5915 = vld [vmem:[%s829 + $0x71] sm:$0xff]
      %v5916 = vld [vmem:[%s829 + $0x89] sm:$0xff]
      %v5917 = vld [vmem:[%s829 + $0x91] sm:$0xff]
      %v5918 = vld [vmem:[%s829 + $0xa9] sm:$0xff]
      %v5919 = vld [vmem:[%s829 + $0xb1] sm:$0xff]
      %v5920 = vld [vmem:[%s829 + $0xc9] sm:$0xff]
      %v5921 = vld [vmem:[%s829 + $0xd1] sm:$0xff]
      %v5922 = vld [vmem:[%s829 + $0xe9] sm:$0xff]
      %v5923 = vld [vmem:[%s829 + $0xf1] sm:$0xff]
      %v5924 = vld [vmem:[%s21 + $0x5] sm:$0x1]
      %v5925 = vperm.slane %v5924, 0
      %v5926 = vmul.f32 %v5908, %v5925
      %v5927 = vmul.f32 %v5909, %v5925
      %v5928 = vmul.f32 %v5910, %v5925
      %v5929 = vmul.f32 %v5911, %v5925
      %v5930 = vmul.f32 %v5912, %v5925
      %v5931 = vmul.f32 %v5913, %v5925
      %v5932 = vmul.f32 %v5914, %v5925
      %v5933 = vmul.f32 %v5915, %v5925
      %v5934 = vmul.f32 %v5916, %v5925
      %v5935 = vmul.f32 %v5917, %v5925
      %v5936 = vmul.f32 %v5918, %v5925
      %v5937 = vmul.f32 %v5919, %v5925
      %v5938 = vmul.f32 %v5920, %v5925
      %v5939 = vmul.f32 %v5921, %v5925
      %v5940 = vmul.f32 %v5922, %v5925
      %v5941 = vmul.f32 %v5923, %v5925
      %v5942 = vadd.f32 %v5892, %v5926
      %v5943 = vadd.f32 %v5893, %v5927
      %v5944 = vadd.f32 %v5894, %v5928
      %v5945 = vadd.f32 %v5895, %v5929
      %v5946 = vadd.f32 %v5896, %v5930
      %v5947 = vadd.f32 %v5897, %v5931
      %v5948 = vadd.f32 %v5898, %v5932
      %v5949 = vadd.f32 %v5899, %v5933
      %v5950 = vadd.f32 %v5900, %v5934
      %v5951 = vadd.f32 %v5901, %v5935
      %v5952 = vadd.f32 %v5902, %v5936
      %v5953 = vadd.f32 %v5903, %v5937
      %v5954 = vadd.f32 %v5904, %v5938
      %v5955 = vadd.f32 %v5905, %v5939
      %v5956 = vadd.f32 %v5906, %v5940
      %v5957 = vadd.f32 %v5907, %v5941
      %v5958 = vld [vmem:[%s1424 + $0x7] sm:$0xff]
      %v5959 = vld [vmem:[%s1424 + $0xf] sm:$0xff]
      %v5960 = vld [vmem:[%s1424 + $0x27] sm:$0xff]
      %v5961 = vld [vmem:[%s1424 + $0x2f] sm:$0xff]
      %v5962 = vld [vmem:[%s1424 + $0x47] sm:$0xff]
      %v5963 = vld [vmem:[%s1424 + $0x4f] sm:$0xff]
      %v5964 = vld [vmem:[%s1424 + $0x67] sm:$0xff]
      %v5965 = vld [vmem:[%s1424 + $0x6f] sm:$0xff]
      %v5966 = vld [vmem:[%s1424 + $0x87] sm:$0xff]
      %v5967 = vld [vmem:[%s1424 + $0x8f] sm:$0xff]
      %v5968 = vld [vmem:[%s1424 + $0xa7] sm:$0xff]
      %v5969 = vld [vmem:[%s1424 + $0xaf] sm:$0xff]
      %v5970 = vld [vmem:[%s1424 + $0xc7] sm:$0xff]
      %v5971 = vld [vmem:[%s1424 + $0xcf] sm:$0xff]
      %v5972 = vld [vmem:[%s1424 + $0xe7] sm:$0xff]
      %v5973 = vld [vmem:[%s1424 + $0xef] sm:$0xff]
      %v5974 = vld [vmem:[%s21 + $0x6] sm:$0x1]
      %v5975 = vperm.slane %v5974, 0
      %v5976 = vmul.f32 %v5958, %v5975
      %v5977 = vmul.f32 %v5959, %v5975
      %v5978 = vmul.f32 %v5960, %v5975
      %v5979 = vmul.f32 %v5961, %v5975
      %v5980 = vmul.f32 %v5962, %v5975
      %v5981 = vmul.f32 %v5963, %v5975
      %v5982 = vmul.f32 %v5964, %v5975
      %v5983 = vmul.f32 %v5965, %v5975
      %v5984 = vmul.f32 %v5966, %v5975
      %v5985 = vmul.f32 %v5967, %v5975
      %v5986 = vmul.f32 %v5968, %v5975
      %v5987 = vmul.f32 %v5969, %v5975
      %v5988 = vmul.f32 %v5970, %v5975
      %v5989 = vmul.f32 %v5971, %v5975
      %v5990 = vmul.f32 %v5972, %v5975
      %v5991 = vmul.f32 %v5973, %v5975
      %v5992 = vadd.f32 %v5942, %v5976
      %v5993 = vadd.f32 %v5943, %v5977
      %v5994 = vadd.f32 %v5944, %v5978
      %v5995 = vadd.f32 %v5945, %v5979
      %v5996 = vadd.f32 %v5946, %v5980
      %v5997 = vadd.f32 %v5947, %v5981
      %v5998 = vadd.f32 %v5948, %v5982
      %v5999 = vadd.f32 %v5949, %v5983
      %v6000 = vadd.f32 %v5950, %v5984
      %v6001 = vadd.f32 %v5951, %v5985
      %v6002 = vadd.f32 %v5952, %v5986
      %v6003 = vadd.f32 %v5953, %v5987
      %v6004 = vadd.f32 %v5954, %v5988
      %v6005 = vadd.f32 %v5955, %v5989
      %v6006 = vadd.f32 %v5956, %v5990
      %v6007 = vadd.f32 %v5957, %v5991
      %v6008 = vld [vmem:[%s1424 + $0x8] sm:$0xff]
      %v6009 = vld [vmem:[%s1424 + $0x10] sm:$0xff]
      %v6010 = vld [vmem:[%s1424 + $0x28] sm:$0xff]
      %v6011 = vld [vmem:[%s1424 + $0x30] sm:$0xff]
      %v6012 = vld [vmem:[%s1424 + $0x48] sm:$0xff]
      %v6013 = vld [vmem:[%s1424 + $0x50] sm:$0xff]
      %v6014 = vld [vmem:[%s1424 + $0x68] sm:$0xff]
      %v6015 = vld [vmem:[%s1424 + $0x70] sm:$0xff]
      %v6016 = vld [vmem:[%s1424 + $0x88] sm:$0xff]
      %v6017 = vld [vmem:[%s1424 + $0x90] sm:$0xff]
      %v6018 = vld [vmem:[%s1424 + $0xa8] sm:$0xff]
      %v6019 = vld [vmem:[%s1424 + $0xb0] sm:$0xff]
      %v6020 = vld [vmem:[%s1424 + $0xc8] sm:$0xff]
      %v6021 = vld [vmem:[%s1424 + $0xd0] sm:$0xff]
      %v6022 = vld [vmem:[%s1424 + $0xe8] sm:$0xff]
      %v6023 = vld [vmem:[%s1424 + $0xf0] sm:$0xff]
      %v6024 = vld [vmem:[%s21 + $0x7] sm:$0x1]
      %v6025 = vperm.slane %v6024, 0
      %v6026 = vmul.f32 %v6008, %v6025
      %v6027 = vmul.f32 %v6009, %v6025
      %v6028 = vmul.f32 %v6010, %v6025
      %v6029 = vmul.f32 %v6011, %v6025
      %v6030 = vmul.f32 %v6012, %v6025
      %v6031 = vmul.f32 %v6013, %v6025
      %v6032 = vmul.f32 %v6014, %v6025
      %v6033 = vmul.f32 %v6015, %v6025
      %v6034 = vmul.f32 %v6016, %v6025
      %v6035 = vmul.f32 %v6017, %v6025
      %v6036 = vmul.f32 %v6018, %v6025
      %v6037 = vmul.f32 %v6019, %v6025
      %v6038 = vmul.f32 %v6020, %v6025
      %v6039 = vmul.f32 %v6021, %v6025
      %v6040 = vmul.f32 %v6022, %v6025
      %v6041 = vmul.f32 %v6023, %v6025
      %v6042 = vadd.f32 %v5992, %v6026
      %v6043 = vadd.f32 %v5993, %v6027
      %v6044 = vadd.f32 %v5994, %v6028
      %v6045 = vadd.f32 %v5995, %v6029
      %v6046 = vadd.f32 %v5996, %v6030
      %v6047 = vadd.f32 %v5997, %v6031
      %v6048 = vadd.f32 %v5998, %v6032
      %v6049 = vadd.f32 %v5999, %v6033
      %v6050 = vadd.f32 %v6000, %v6034
      %v6051 = vadd.f32 %v6001, %v6035
      %v6052 = vadd.f32 %v6002, %v6036
      %v6053 = vadd.f32 %v6003, %v6037
      %v6054 = vadd.f32 %v6004, %v6038
      %v6055 = vadd.f32 %v6005, %v6039
      %v6056 = vadd.f32 %v6006, %v6040
      %v6057 = vadd.f32 %v6007, %v6041
      %v6058 = vld [vmem:[%s1424 + $0x9] sm:$0xff]
      %v6059 = vld [vmem:[%s1424 + $0x11] sm:$0xff]
      %v6060 = vld [vmem:[%s1424 + $0x29] sm:$0xff]
      %v6061 = vld [vmem:[%s1424 + $0x31] sm:$0xff]
      %v6062 = vld [vmem:[%s1424 + $0x49] sm:$0xff]
      %v6063 = vld [vmem:[%s1424 + $0x51] sm:$0xff]
      %v6064 = vld [vmem:[%s1424 + $0x69] sm:$0xff]
      %v6065 = vld [vmem:[%s1424 + $0x71] sm:$0xff]
      %v6066 = vld [vmem:[%s1424 + $0x89] sm:$0xff]
      %v6067 = vld [vmem:[%s1424 + $0x91] sm:$0xff]
      %v6068 = vld [vmem:[%s1424 + $0xa9] sm:$0xff]
      %v6069 = vld [vmem:[%s1424 + $0xb1] sm:$0xff]
      %v6070 = vld [vmem:[%s1424 + $0xc9] sm:$0xff]
      %v6071 = vld [vmem:[%s1424 + $0xd1] sm:$0xff]
      %v6072 = vld [vmem:[%s1424 + $0xe9] sm:$0xff]
      %v6073 = vld [vmem:[%s1424 + $0xf1] sm:$0xff]
      %v6074 = vld [vmem:[%s21 + $0x8] sm:$0x1]
      %v6075 = vperm.slane %v6074, 0
      %v6076 = vmul.f32 %v6058, %v6075
      %v6077 = vmul.f32 %v6059, %v6075
      %v6078 = vmul.f32 %v6060, %v6075
      %v6079 = vmul.f32 %v6061, %v6075
      %v6080 = vmul.f32 %v6062, %v6075
      %v6081 = vmul.f32 %v6063, %v6075
      %v6082 = vmul.f32 %v6064, %v6075
      %v6083 = vmul.f32 %v6065, %v6075
      %v6084 = vmul.f32 %v6066, %v6075
      %v6085 = vmul.f32 %v6067, %v6075
      %v6086 = vmul.f32 %v6068, %v6075
      %v6087 = vmul.f32 %v6069, %v6075
      %v6088 = vmul.f32 %v6070, %v6075
      %v6089 = vmul.f32 %v6071, %v6075
      %v6090 = vmul.f32 %v6072, %v6075
      %v6091 = vmul.f32 %v6073, %v6075
      %v6092 = vadd.f32 %v6042, %v6076
      %v6093 = vadd.f32 %v6043, %v6077
      %v6094 = vadd.f32 %v6044, %v6078
      %v6095 = vadd.f32 %v6045, %v6079
      %v6096 = vadd.f32 %v6046, %v6080
      %v6097 = vadd.f32 %v6047, %v6081
      %v6098 = vadd.f32 %v6048, %v6082
      %v6099 = vadd.f32 %v6049, %v6083
      %v6100 = vadd.f32 %v6050, %v6084
      %v6101 = vadd.f32 %v6051, %v6085
      %v6102 = vadd.f32 %v6052, %v6086
      %v6103 = vadd.f32 %v6053, %v6087
      %v6104 = vadd.f32 %v6054, %v6088
      %v6105 = vadd.f32 %v6055, %v6089
      %v6106 = vadd.f32 %v6056, %v6090
      %v6107 = vadd.f32 %v6057, %v6091
      %v6108 = vld [vmem:[%s22] sm:$0x1]
      %v6110 = vperm.slane %v6108, 0
      %v6112 = vadd.f32 %v6092, %v6110
      %v6113 = vadd.f32 %v6093, %v6110
      %v6114 = vadd.f32 %v6094, %v6110
      %v6115 = vadd.f32 %v6095, %v6110
      %v6116 = vadd.f32 %v6096, %v6110
      %v6117 = vadd.f32 %v6097, %v6110
      %v6118 = vadd.f32 %v6098, %v6110
      %v6119 = vadd.f32 %v6099, %v6110
      %v6120 = vadd.f32 %v6100, %v6110
      %v6121 = vadd.f32 %v6101, %v6110
      %v6122 = vadd.f32 %v6102, %v6110
      %v6123 = vadd.f32 %v6103, %v6110
      %v6124 = vadd.f32 %v6104, %v6110
      %v6125 = vadd.f32 %v6105, %v6110
      %v6126 = vadd.f32 %v6106, %v6110
      %v6127 = vadd.f32 %v6107, %v6110
      %v6128 = vmax.f32 %v6112, 0.0
      %v6129 = vmax.f32 %v6113, 0.0
      %v6130 = vmax.f32 %v6114, 0.0
      %v6131 = vmax.f32 %v6115, 0.0
      %v6132 = vmax.f32 %v6116, 0.0
      %v6133 = vmax.f32 %v6117, 0.0
      %v6134 = vmax.f32 %v6118, 0.0
      %v6135 = vmax.f32 %v6119, 0.0
      %v6136 = vmax.f32 %v6120, 0.0
      %v6137 = vmax.f32 %v6121, 0.0
      %v6138 = vmax.f32 %v6122, 0.0
      %v6139 = vmax.f32 %v6123, 0.0
      %v6140 = vmax.f32 %v6124, 0.0
      %v6141 = vmax.f32 %v6125, 0.0
      %v6142 = vmax.f32 %v6126, 0.0
      %v6143 = vmax.f32 %v6127, 0.0
      %6144 = vst [vmem:[#allocation4] sm:$0xff] %v6128
      %6145 = vst [vmem:[#allocation4 + $0x8] sm:$0xff] %v6129
      %6146 = vst [vmem:[#allocation4 + $0x10] sm:$0xff] %v6130
      %6147 = vst [vmem:[#allocation4 + $0x18] sm:$0xff] %v6131
      %6148 = vst [vmem:[#allocation4 + $0x20] sm:$0xff] %v6132
      %6149 = vst [vmem:[#allocation4 + $0x28] sm:$0xff] %v6133
      %6150 = vst [vmem:[#allocation4 + $0x30] sm:$0xff] %v6134
      %6151 = vst [vmem:[#allocation4 + $0x38] sm:$0xff] %v6135
      %6152 = vst [vmem:[#allocation4 + $0x40] sm:$0xff] %v6136
      %6153 = vst [vmem:[#allocation4 + $0x48] sm:$0xff] %v6137
      %6154 = vst [vmem:[#allocation4 + $0x50] sm:$0xff] %v6138
      %6155 = vst [vmem:[#allocation4 + $0x58] sm:$0xff] %v6139
      %6156 = vst [vmem:[#allocation4 + $0x60] sm:$0xff] %v6140
      %6157 = vst [vmem:[#allocation4 + $0x68] sm:$0xff] %v6141
      %6158 = vst [vmem:[#allocation4 + $0x70] sm:$0xff] %v6142
      %6159 = vst [vmem:[#allocation4 + $0x78] sm:$0xff] %v6143
      %v6160 = vld [vmem:[%s1627 + $0x7] sm:$0xff]
      %v6161 = vld [vmem:[%s1627 + $0xf] sm:$0xff]
      %v6162 = vld [vmem:[%s1627 + $0x27] sm:$0xff]
      %v6163 = vld [vmem:[%s1627 + $0x2f] sm:$0xff]
      %v6164 = vld [vmem:[%s1627 + $0x47] sm:$0xff]
      %v6165 = vld [vmem:[%s1627 + $0x4f] sm:$0xff]
      %v6166 = vld [vmem:[%s1627 + $0x67] sm:$0xff]
      %v6167 = vld [vmem:[%s1627 + $0x6f] sm:$0xff]
      %v6168 = vld [vmem:[%s1627 + $0x87] sm:$0xff]
      %v6169 = vld [vmem:[%s1627 + $0x8f] sm:$0xff]
      %v6170 = vld [vmem:[%s1627 + $0xa7] sm:$0xff]
      %v6171 = vld [vmem:[%s1627 + $0xaf] sm:$0xff]
      %v6172 = vld [vmem:[%s1627 + $0xc7] sm:$0xff]
      %v6173 = vld [vmem:[%s1627 + $0xcf] sm:$0xff]
      %v6174 = vld [vmem:[%s1627 + $0xe7] sm:$0xff]
      %v6175 = vld [vmem:[%s1627 + $0xef] sm:$0xff]
      %v6176 = vld [vmem:[%s21] sm:$0x1]
      %v6177 = vperm.slane %v6176, 0
      %v6178 = vmul.f32 %v6160, %v6177
      %v6179 = vmul.f32 %v6161, %v6177
      %v6180 = vmul.f32 %v6162, %v6177
      %v6181 = vmul.f32 %v6163, %v6177
      %v6182 = vmul.f32 %v6164, %v6177
      %v6183 = vmul.f32 %v6165, %v6177
      %v6184 = vmul.f32 %v6166, %v6177
      %v6185 = vmul.f32 %v6167, %v6177
      %v6186 = vmul.f32 %v6168, %v6177
      %v6187 = vmul.f32 %v6169, %v6177
      %v6188 = vmul.f32 %v6170, %v6177
      %v6189 = vmul.f32 %v6171, %v6177
      %v6190 = vmul.f32 %v6172, %v6177
      %v6191 = vmul.f32 %v6173, %v6177
      %v6192 = vmul.f32 %v6174, %v6177
      %v6193 = vmul.f32 %v6175, %v6177
      %v6194 = vadd.f32 %v6178, 0.0
      %v6195 = vadd.f32 %v6179, 0.0
      %v6196 = vadd.f32 %v6180, 0.0
      %v6197 = vadd.f32 %v6181, 0.0
      %v6198 = vadd.f32 %v6182, 0.0
      %v6199 = vadd.f32 %v6183, 0.0
      %v6200 = vadd.f32 %v6184, 0.0
      %v6201 = vadd.f32 %v6185, 0.0
      %v6202 = vadd.f32 %v6186, 0.0
      %v6203 = vadd.f32 %v6187, 0.0
      %v6204 = vadd.f32 %v6188, 0.0
      %v6205 = vadd.f32 %v6189, 0.0
      %v6206 = vadd.f32 %v6190, 0.0
      %v6207 = vadd.f32 %v6191, 0.0
      %v6208 = vadd.f32 %v6192, 0.0
      %v6209 = vadd.f32 %v6193, 0.0
      %v6210 = vld [vmem:[%s1627 + $0x8] sm:$0xff]
      %v6211 = vld [vmem:[%s1627 + $0x10] sm:$0xff]
      %v6212 = vld [vmem:[%s1627 + $0x28] sm:$0xff]
      %v6213 = vld [vmem:[%s1627 + $0x30] sm:$0xff]
      %v6214 = vld [vmem:[%s1627 + $0x48] sm:$0xff]
      %v6215 = vld [vmem:[%s1627 + $0x50] sm:$0xff]
      %v6216 = vld [vmem:[%s1627 + $0x68] sm:$0xff]
      %v6217 = vld [vmem:[%s1627 + $0x70] sm:$0xff]
      %v6218 = vld [vmem:[%s1627 + $0x88] sm:$0xff]
      %v6219 = vld [vmem:[%s1627 + $0x90] sm:$0xff]
      %v6220 = vld [vmem:[%s1627 + $0xa8] sm:$0xff]
      %v6221 = vld [vmem:[%s1627 + $0xb0] sm:$0xff]
      %v6222 = vld [vmem:[%s1627 + $0xc8] sm:$0xff]
      %v6223 = vld [vmem:[%s1627 + $0xd0] sm:$0xff]
      %v6224 = vld [vmem:[%s1627 + $0xe8] sm:$0xff]
      %v6225 = vld [vmem:[%s1627 + $0xf0] sm:$0xff]
      %v6226 = vld [vmem:[%s21 + $0x1] sm:$0x1]
      %v6227 = vperm.slane %v6226, 0
      %v6228 = vmul.f32 %v6210, %v6227
      %v6229 = vmul.f32 %v6211, %v6227
      %v6230 = vmul.f32 %v6212, %v6227
      %v6231 = vmul.f32 %v6213, %v6227
      %v6232 = vmul.f32 %v6214, %v6227
      %v6233 = vmul.f32 %v6215, %v6227
      %v6234 = vmul.f32 %v6216, %v6227
      %v6235 = vmul.f32 %v6217, %v6227
      %v6236 = vmul.f32 %v6218, %v6227
      %v6237 = vmul.f32 %v6219, %v6227
      %v6238 = vmul.f32 %v6220, %v6227
      %v6239 = vmul.f32 %v6221, %v6227
      %v6240 = vmul.f32 %v6222, %v6227
      %v6241 = vmul.f32 %v6223, %v6227
      %v6242 = vmul.f32 %v6224, %v6227
      %v6243 = vmul.f32 %v6225, %v6227
      %v6244 = vadd.f32 %v6194, %v6228
      %v6245 = vadd.f32 %v6195, %v6229
      %v6246 = vadd.f32 %v6196, %v6230
      %v6247 = vadd.f32 %v6197, %v6231
      %v6248 = vadd.f32 %v6198, %v6232
      %v6249 = vadd.f32 %v6199, %v6233
      %v6250 = vadd.f32 %v6200, %v6234
      %v6251 = vadd.f32 %v6201, %v6235
      %v6252 = vadd.f32 %v6202, %v6236
      %v6253 = vadd.f32 %v6203, %v6237
      %v6254 = vadd.f32 %v6204, %v6238
      %v6255 = vadd.f32 %v6205, %v6239
      %v6256 = vadd.f32 %v6206, %v6240
      %v6257 = vadd.f32 %v6207, %v6241
      %v6258 = vadd.f32 %v6208, %v6242
      %v6259 = vadd.f32 %v6209, %v6243
      %v6260 = vld [vmem:[%s1627 + $0x9] sm:$0xff]
      %v6261 = vld [vmem:[%s1627 + $0x11] sm:$0xff]
      %v6262 = vld [vmem:[%s1627 + $0x29] sm:$0xff]
      %v6263 = vld [vmem:[%s1627 + $0x31] sm:$0xff]
      %v6264 = vld [vmem:[%s1627 + $0x49] sm:$0xff]
      %v6265 = vld [vmem:[%s1627 + $0x51] sm:$0xff]
      %v6266 = vld [vmem:[%s1627 + $0x69] sm:$0xff]
      %v6267 = vld [vmem:[%s1627 + $0x71] sm:$0xff]
      %v6268 = vld [vmem:[%s1627 + $0x89] sm:$0xff]
      %v6269 = vld [vmem:[%s1627 + $0x91] sm:$0xff]
      %v6270 = vld [vmem:[%s1627 + $0xa9] sm:$0xff]
      %v6271 = vld [vmem:[%s1627 + $0xb1] sm:$0xff]
      %v6272 = vld [vmem:[%s1627 + $0xc9] sm:$0xff]
      %v6273 = vld [vmem:[%s1627 + $0xd1] sm:$0xff]
      %v6274 = vld [vmem:[%s1627 + $0xe9] sm:$0xff]
      %v6275 = vld [vmem:[%s1627 + $0xf1] sm:$0xff]
      %v6276 = vld [vmem:[%s21 + $0x2] sm:$0x1]
      %v6277 = vperm.slane %v6276, 0
      %v6278 = vmul.f32 %v6260, %v6277
      %v6279 = vmul.f32 %v6261, %v6277
      %v6280 = vmul.f32 %v6262, %v6277
      %v6281 = vmul.f32 %v6263, %v6277
      %v6282 = vmul.f32 %v6264, %v6277
      %v6283 = vmul.f32 %v6265, %v6277
      %v6284 = vmul.f32 %v6266, %v6277
      %v6285 = vmul.f32 %v6267, %v6277
      %v6286 = vmul.f32 %v6268, %v6277
      %v6287 = vmul.f32 %v6269, %v6277
      %v6288 = vmul.f32 %v6270, %v6277
      %v6289 = vmul.f32 %v6271, %v6277
      %v6290 = vmul.f32 %v6272, %v6277
      %v6291 = vmul.f32 %v6273, %v6277
      %v6292 = vmul.f32 %v6274, %v6277
      %v6293 = vmul.f32 %v6275, %v6277
      %v6294 = vadd.f32 %v6244, %v6278
      %v6295 = vadd.f32 %v6245, %v6279
      %v6296 = vadd.f32 %v6246, %v6280
      %v6297 = vadd.f32 %v6247, %v6281
      %v6298 = vadd.f32 %v6248, %v6282
      %v6299 = vadd.f32 %v6249, %v6283
      %v6300 = vadd.f32 %v6250, %v6284
      %v6301 = vadd.f32 %v6251, %v6285
      %v6302 = vadd.f32 %v6252, %v6286
      %v6303 = vadd.f32 %v6253, %v6287
      %v6304 = vadd.f32 %v6254, %v6288
      %v6305 = vadd.f32 %v6255, %v6289
      %v6306 = vadd.f32 %v6256, %v6290
      %v6307 = vadd.f32 %v6257, %v6291
      %v6308 = vadd.f32 %v6258, %v6292
      %v6309 = vadd.f32 %v6259, %v6293
      %v6310 = vld [vmem:[%s1778 + $0x7] sm:$0xff]
      %v6311 = vld [vmem:[%s1778 + $0xf] sm:$0xff]
      %v6312 = vld [vmem:[%s1778 + $0x27] sm:$0xff]
      %v6313 = vld [vmem:[%s1778 + $0x2f] sm:$0xff]
      %v6314 = vld [vmem:[%s1778 + $0x47] sm:$0xff]
      %v6315 = vld [vmem:[%s1778 + $0x4f] sm:$0xff]
      %v6316 = vld [vmem:[%s1778 + $0x67] sm:$0xff]
      %v6317 = vld [vmem:[%s1778 + $0x6f] sm:$0xff]
      %v6318 = vld [vmem:[%s1778 + $0x87] sm:$0xff]
      %v6319 = vld [vmem:[%s1778 + $0x8f] sm:$0xff]
      %v6320 = vld [vmem:[%s1778 + $0xa7] sm:$0xff]
      %v6321 = vld [vmem:[%s1778 + $0xaf] sm:$0xff]
      %v6322 = vld [vmem:[%s1778 + $0xc7] sm:$0xff]
      %v6323 = vld [vmem:[%s1778 + $0xcf] sm:$0xff]
      %v6324 = vld [vmem:[%s1778 + $0xe7] sm:$0xff]
      %v6325 = vld [vmem:[%s1778 + $0xef] sm:$0xff]
      %v6326 = vld [vmem:[%s21 + $0x3] sm:$0x1]
      %v6327 = vperm.slane %v6326, 0
      %v6328 = vmul.f32 %v6310, %v6327
      %v6329 = vmul.f32 %v6311, %v6327
      %v6330 = vmul.f32 %v6312, %v6327
      %v6331 = vmul.f32 %v6313, %v6327
      %v6332 = vmul.f32 %v6314, %v6327
      %v6333 = vmul.f32 %v6315, %v6327
      %v6334 = vmul.f32 %v6316, %v6327
      %v6335 = vmul.f32 %v6317, %v6327
      %v6336 = vmul.f32 %v6318, %v6327
      %v6337 = vmul.f32 %v6319, %v6327
      %v6338 = vmul.f32 %v6320, %v6327
      %v6339 = vmul.f32 %v6321, %v6327
      %v6340 = vmul.f32 %v6322, %v6327
      %v6341 = vmul.f32 %v6323, %v6327
      %v6342 = vmul.f32 %v6324, %v6327
      %v6343 = vmul.f32 %v6325, %v6327
      %v6344 = vadd.f32 %v6294, %v6328
      %v6345 = vadd.f32 %v6295, %v6329
      %v6346 = vadd.f32 %v6296, %v6330
      %v6347 = vadd.f32 %v6297, %v6331
      %v6348 = vadd.f32 %v6298, %v6332
      %v6349 = vadd.f32 %v6299, %v6333
      %v6350 = vadd.f32 %v6300, %v6334
      %v6351 = vadd.f32 %v6301, %v6335
      %v6352 = vadd.f32 %v6302, %v6336
      %v6353 = vadd.f32 %v6303, %v6337
      %v6354 = vadd.f32 %v6304, %v6338
      %v6355 = vadd.f32 %v6305, %v6339
      %v6356 = vadd.f32 %v6306, %v6340
      %v6357 = vadd.f32 %v6307, %v6341
      %v6358 = vadd.f32 %v6308, %v6342
      %v6359 = vadd.f32 %v6309, %v6343
      %v6360 = vld [vmem:[%s1778 + $0x8] sm:$0xff]
      %v6361 = vld [vmem:[%s1778 + $0x10] sm:$0xff]
      %v6362 = vld [vmem:[%s1778 + $0x28] sm:$0xff]
      %v6363 = vld [vmem:[%s1778 + $0x30] sm:$0xff]
      %v6364 = vld [vmem:[%s1778 + $0x48] sm:$0xff]
      %v6365 = vld [vmem:[%s1778 + $0x50] sm:$0xff]
      %v6366 = vld [vmem:[%s1778 + $0x68] sm:$0xff]
      %v6367 = vld [vmem:[%s1778 + $0x70] sm:$0xff]
      %v6368 = vld [vmem:[%s1778 + $0x88] sm:$0xff]
      %v6369 = vld [vmem:[%s1778 + $0x90] sm:$0xff]
      %v6370 = vld [vmem:[%s1778 + $0xa8] sm:$0xff]
      %v6371 = vld [vmem:[%s1778 + $0xb0] sm:$0xff]
      %v6372 = vld [vmem:[%s1778 + $0xc8] sm:$0xff]
      %v6373 = vld [vmem:[%s1778 + $0xd0] sm:$0xff]
      %v6374 = vld [vmem:[%s1778 + $0xe8] sm:$0xff]
      %v6375 = vld [vmem:[%s1778 + $0xf0] sm:$0xff]
      %v6376 = vld [vmem:[%s21 + $0x4] sm:$0x1]
      %v6377 = vperm.slane %v6376, 0
      %v6378 = vmul.f32 %v6360, %v6377
      %v6379 = vmul.f32 %v6361, %v6377
      %v6380 = vmul.f32 %v6362, %v6377
      %v6381 = vmul.f32 %v6363, %v6377
      %v6382 = vmul.f32 %v6364, %v6377
      %v6383 = vmul.f32 %v6365, %v6377
      %v6384 = vmul.f32 %v6366, %v6377
      %v6385 = vmul.f32 %v6367, %v6377
      %v6386 = vmul.f32 %v6368, %v6377
      %v6387 = vmul.f32 %v6369, %v6377
      %v6388 = vmul.f32 %v6370, %v6377
      %v6389 = vmul.f32 %v6371, %v6377
      %v6390 = vmul.f32 %v6372, %v6377
      %v6391 = vmul.f32 %v6373, %v6377
      %v6392 = vmul.f32 %v6374, %v6377
      %v6393 = vmul.f32 %v6375, %v6377
      %v6394 = vadd.f32 %v6344, %v6378
      %v6395 = vadd.f32 %v6345, %v6379
      %v6396 = vadd.f32 %v6346, %v6380
      %v6397 = vadd.f32 %v6347, %v6381
      %v6398 = vadd.f32 %v6348, %v6382
      %v6399 = vadd.f32 %v6349, %v6383
      %v6400 = vadd.f32 %v6350, %v6384
      %v6401 = vadd.f32 %v6351, %v6385
      %v6402 = vadd.f32 %v6352, %v6386
      %v6403 = vadd.f32 %v6353, %v6387
      %v6404 = vadd.f32 %v6354, %v6388
      %v6405 = vadd.f32 %v6355, %v6389
      %v6406 = vadd.f32 %v6356, %v6390
      %v6407 = vadd.f32 %v6357, %v6391
      %v6408 = vadd.f32 %v6358, %v6392
      %v6409 = vadd.f32 %v6359, %v6393
      %v6410 = vld [vmem:[%s1778 + $0x9] sm:$0xff]
      %v6411 = vld [vmem:[%s1778 + $0x11] sm:$0xff]
      %v6412 = vld [vmem:[%s1778 + $0x29] sm:$0xff]
      %v6413 = vld [vmem:[%s1778 + $0x31] sm:$0xff]
      %v6414 = vld [vmem:[%s1778 + $0x49] sm:$0xff]
      %v6415 = vld [vmem:[%s1778 + $0x51] sm:$0xff]
      %v6416 = vld [vmem:[%s1778 + $0x69] sm:$0xff]
      %v6417 = vld [vmem:[%s1778 + $0x71] sm:$0xff]
      %v6418 = vld [vmem:[%s1778 + $0x89] sm:$0xff]
      %v6419 = vld [vmem:[%s1778 + $0x91] sm:$0xff]
      %v6420 = vld [vmem:[%s1778 + $0xa9] sm:$0xff]
      %v6421 = vld [vmem:[%s1778 + $0xb1] sm:$0xff]
      %v6422 = vld [vmem:[%s1778 + $0xc9] sm:$0xff]
      %v6423 = vld [vmem:[%s1778 + $0xd1] sm:$0xff]
      %v6424 = vld [vmem:[%s1778 + $0xe9] sm:$0xff]
      %v6425 = vld [vmem:[%s1778 + $0xf1] sm:$0xff]
      %v6426 = vld [vmem:[%s21 + $0x5] sm:$0x1]
      %v6427 = vperm.slane %v6426, 0
      %v6428 = vmul.f32 %v6410, %v6427
      %v6429 = vmul.f32 %v6411, %v6427
      %v6430 = vmul.f32 %v6412, %v6427
      %v6431 = vmul.f32 %v6413, %v6427
      %v6432 = vmul.f32 %v6414, %v6427
      %v6433 = vmul.f32 %v6415, %v6427
      %v6434 = vmul.f32 %v6416, %v6427
      %v6435 = vmul.f32 %v6417, %v6427
      %v6436 = vmul.f32 %v6418, %v6427
      %v6437 = vmul.f32 %v6419, %v6427
      %v6438 = vmul.f32 %v6420, %v6427
      %v6439 = vmul.f32 %v6421, %v6427
      %v6440 = vmul.f32 %v6422, %v6427
      %v6441 = vmul.f32 %v6423, %v6427
      %v6442 = vmul.f32 %v6424, %v6427
      %v6443 = vmul.f32 %v6425, %v6427
      %v6444 = vadd.f32 %v6394, %v6428
      %v6445 = vadd.f32 %v6395, %v6429
      %v6446 = vadd.f32 %v6396, %v6430
      %v6447 = vadd.f32 %v6397, %v6431
      %v6448 = vadd.f32 %v6398, %v6432
      %v6449 = vadd.f32 %v6399, %v6433
      %v6450 = vadd.f32 %v6400, %v6434
      %v6451 = vadd.f32 %v6401, %v6435
      %v6452 = vadd.f32 %v6402, %v6436
      %v6453 = vadd.f32 %v6403, %v6437
      %v6454 = vadd.f32 %v6404, %v6438
      %v6455 = vadd.f32 %v6405, %v6439
      %v6456 = vadd.f32 %v6406, %v6440
      %v6457 = vadd.f32 %v6407, %v6441
      %v6458 = vadd.f32 %v6408, %v6442
      %v6459 = vadd.f32 %v6409, %v6443
      %v6460 = vld [vmem:[%s1929 + $0x7] sm:$0xff]
      %v6461 = vld [vmem:[%s1929 + $0xf] sm:$0xff]
      %v6462 = vld [vmem:[%s1929 + $0x27] sm:$0xff]
      %v6463 = vld [vmem:[%s1929 + $0x2f] sm:$0xff]
      %v6464 = vld [vmem:[%s1929 + $0x47] sm:$0xff]
      %v6465 = vld [vmem:[%s1929 + $0x4f] sm:$0xff]
      %v6466 = vld [vmem:[%s1929 + $0x67] sm:$0xff]
      %v6467 = vld [vmem:[%s1929 + $0x6f] sm:$0xff]
      %v6468 = vld [vmem:[%s1929 + $0x87] sm:$0xff]
      %v6469 = vld [vmem:[%s1929 + $0x8f] sm:$0xff]
      %v6470 = vld [vmem:[%s1929 + $0xa7] sm:$0xff]
      %v6471 = vld [vmem:[%s1929 + $0xaf] sm:$0xff]
      %v6472 = vld [vmem:[%s1929 + $0xc7] sm:$0xff]
      %v6473 = vld [vmem:[%s1929 + $0xcf] sm:$0xff]
      %v6474 = vld [vmem:[%s1929 + $0xe7] sm:$0xff]
      %v6475 = vld [vmem:[%s1929 + $0xef] sm:$0xff]
      %v6476 = vld [vmem:[%s21 + $0x6] sm:$0x1]
      %v6477 = vperm.slane %v6476, 0
      %v6478 = vmul.f32 %v6460, %v6477
      %v6479 = vmul.f32 %v6461, %v6477
      %v6480 = vmul.f32 %v6462, %v6477
      %v6481 = vmul.f32 %v6463, %v6477
      %v6482 = vmul.f32 %v6464, %v6477
      %v6483 = vmul.f32 %v6465, %v6477
      %v6484 = vmul.f32 %v6466, %v6477
      %v6485 = vmul.f32 %v6467, %v6477
      %v6486 = vmul.f32 %v6468, %v6477
      %v6487 = vmul.f32 %v6469, %v6477
      %v6488 = vmul.f32 %v6470, %v6477
      %v6489 = vmul.f32 %v6471, %v6477
      %v6490 = vmul.f32 %v6472, %v6477
      %v6491 = vmul.f32 %v6473, %v6477
      %v6492 = vmul.f32 %v6474, %v6477
      %v6493 = vmul.f32 %v6475, %v6477
      %v6494 = vadd.f32 %v6444, %v6478
      %v6495 = vadd.f32 %v6445, %v6479
      %v6496 = vadd.f32 %v6446, %v6480
      %v6497 = vadd.f32 %v6447, %v6481
      %v6498 = vadd.f32 %v6448, %v6482
      %v6499 = vadd.f32 %v6449, %v6483
      %v6500 = vadd.f32 %v6450, %v6484
      %v6501 = vadd.f32 %v6451, %v6485
      %v6502 = vadd.f32 %v6452, %v6486
      %v6503 = vadd.f32 %v6453, %v6487
      %v6504 = vadd.f32 %v6454, %v6488
      %v6505 = vadd.f32 %v6455, %v6489
      %v6506 = vadd.f32 %v6456, %v6490
      %v6507 = vadd.f32 %v6457, %v6491
      %v6508 = vadd.f32 %v6458, %v6492
      %v6509 = vadd.f32 %v6459, %v6493
      %v6510 = vld [vmem:[%s1929 + $0x8] sm:$0xff]
      %v6511 = vld [vmem:[%s1929 + $0x10] sm:$0xff]
      %v6512 = vld [vmem:[%s1929 + $0x28] sm:$0xff]
      %v6513 = vld [vmem:[%s1929 + $0x30] sm:$0xff]
      %v6514 = vld [vmem:[%s1929 + $0x48] sm:$0xff]
      %v6515 = vld [vmem:[%s1929 + $0x50] sm:$0xff]
      %v6516 = vld [vmem:[%s1929 + $0x68] sm:$0xff]
      %v6517 = vld [vmem:[%s1929 + $0x70] sm:$0xff]
      %v6518 = vld [vmem:[%s1929 + $0x88] sm:$0xff]
      %v6519 = vld [vmem:[%s1929 + $0x90] sm:$0xff]
      %v6520 = vld [vmem:[%s1929 + $0xa8] sm:$0xff]
      %v6521 = vld [vmem:[%s1929 + $0xb0] sm:$0xff]
      %v6522 = vld [vmem:[%s1929 + $0xc8] sm:$0xff]
      %v6523 = vld [vmem:[%s1929 + $0xd0] sm:$0xff]
      %v6524 = vld [vmem:[%s1929 + $0xe8] sm:$0xff]
      %v6525 = vld [vmem:[%s1929 + $0xf0] sm:$0xff]
      %v6526 = vld [vmem:[%s21 + $0x7] sm:$0x1]
      %v6527 = vperm.slane %v6526, 0
      %v6528 = vmul.f32 %v6510, %v6527
      %v6529 = vmul.f32 %v6511, %v6527
      %v6530 = vmul.f32 %v6512, %v6527
      %v6531 = vmul.f32 %v6513, %v6527
      %v6532 = vmul.f32 %v6514, %v6527
      %v6533 = vmul.f32 %v6515, %v6527
      %v6534 = vmul.f32 %v6516, %v6527
      %v6535 = vmul.f32 %v6517, %v6527
      %v6536 = vmul.f32 %v6518, %v6527
      %v6537 = vmul.f32 %v6519, %v6527
      %v6538 = vmul.f32 %v6520, %v6527
      %v6539 = vmul.f32 %v6521, %v6527
      %v6540 = vmul.f32 %v6522, %v6527
      %v6541 = vmul.f32 %v6523, %v6527
      %v6542 = vmul.f32 %v6524, %v6527
      %v6543 = vmul.f32 %v6525, %v6527
      %v6544 = vadd.f32 %v6494, %v6528
      %v6545 = vadd.f32 %v6495, %v6529
      %v6546 = vadd.f32 %v6496, %v6530
      %v6547 = vadd.f32 %v6497, %v6531
      %v6548 = vadd.f32 %v6498, %v6532
      %v6549 = vadd.f32 %v6499, %v6533
      %v6550 = vadd.f32 %v6500, %v6534
      %v6551 = vadd.f32 %v6501, %v6535
      %v6552 = vadd.f32 %v6502, %v6536
      %v6553 = vadd.f32 %v6503, %v6537
      %v6554 = vadd.f32 %v6504, %v6538
      %v6555 = vadd.f32 %v6505, %v6539
      %v6556 = vadd.f32 %v6506, %v6540
      %v6557 = vadd.f32 %v6507, %v6541
      %v6558 = vadd.f32 %v6508, %v6542
      %v6559 = vadd.f32 %v6509, %v6543
      %v6560 = vld [vmem:[%s1929 + $0x9] sm:$0xff]
      %v6561 = vld [vmem:[%s1929 + $0x11] sm:$0xff]
      %v6562 = vld [vmem:[%s1929 + $0x29] sm:$0xff]
      %v6563 = vld [vmem:[%s1929 + $0x31] sm:$0xff]
      %v6564 = vld [vmem:[%s1929 + $0x49] sm:$0xff]
      %v6565 = vld [vmem:[%s1929 + $0x51] sm:$0xff]
      %v6566 = vld [vmem:[%s1929 + $0x69] sm:$0xff]
      %v6567 = vld [vmem:[%s1929 + $0x71] sm:$0xff]
      %v6568 = vld [vmem:[%s1929 + $0x89] sm:$0xff]
      %v6569 = vld [vmem:[%s1929 + $0x91] sm:$0xff]
      %v6570 = vld [vmem:[%s1929 + $0xa9] sm:$0xff]
      %v6571 = vld [vmem:[%s1929 + $0xb1] sm:$0xff]
      %v6572 = vld [vmem:[%s1929 + $0xc9] sm:$0xff]
      %v6573 = vld [vmem:[%s1929 + $0xd1] sm:$0xff]
      %v6574 = vld [vmem:[%s1929 + $0xe9] sm:$0xff]
      %v6575 = vld [vmem:[%s1929 + $0xf1] sm:$0xff]
      %v6576 = vld [vmem:[%s21 + $0x8] sm:$0x1]
      %v6577 = vperm.slane %v6576, 0
      %v6578 = vmul.f32 %v6560, %v6577
      %v6579 = vmul.f32 %v6561, %v6577
      %v6580 = vmul.f32 %v6562, %v6577
      %v6581 = vmul.f32 %v6563, %v6577
      %v6582 = vmul.f32 %v6564, %v6577
      %v6583 = vmul.f32 %v6565, %v6577
      %v6584 = vmul.f32 %v6566, %v6577
      %v6585 = vmul.f32 %v6567, %v6577
      %v6586 = vmul.f32 %v6568, %v6577
      %v6587 = vmul.f32 %v6569, %v6577
      %v6588 = vmul.f32 %v6570, %v6577
      %v6589 = vmul.f32 %v6571, %v6577
      %v6590 = vmul.f32 %v6572, %v6577
      %v6591 = vmul.f32 %v6573, %v6577
      %v6592 = vmul.f32 %v6574, %v6577
      %v6593 = vmul.f32 %v6575, %v6577
      %v6594 = vadd.f32 %v6544, %v6578
      %v6595 = vadd.f32 %v6545, %v6579
      %v6596 = vadd.f32 %v6546, %v6580
      %v6597 = vadd.f32 %v6547, %v6581
      %v6598 = vadd.f32 %v6548, %v6582
      %v6599 = vadd.f32 %v6549, %v6583
      %v6600 = vadd.f32 %v6550, %v6584
      %v6601 = vadd.f32 %v6551, %v6585
      %v6602 = vadd.f32 %v6552, %v6586
      %v6603 = vadd.f32 %v6553, %v6587
      %v6604 = vadd.f32 %v6554, %v6588
      %v6605 = vadd.f32 %v6555, %v6589
      %v6606 = vadd.f32 %v6556, %v6590
      %v6607 = vadd.f32 %v6557, %v6591
      %v6608 = vadd.f32 %v6558, %v6592
      %v6609 = vadd.f32 %v6559, %v6593
      %v6610 = vld [vmem:[%s22] sm:$0x1]
      %v6612 = vperm.slane %v6610, 0
      %v6614 = vadd.f32 %v6594, %v6612
      %v6615 = vadd.f32 %v6595, %v6612
      %v6616 = vadd.f32 %v6596, %v6612
      %v6617 = vadd.f32 %v6597, %v6612
      %v6618 = vadd.f32 %v6598, %v6612
      %v6619 = vadd.f32 %v6599, %v6612
      %v6620 = vadd.f32 %v6600, %v6612
      %v6621 = vadd.f32 %v6601, %v6612
      %v6622 = vadd.f32 %v6602, %v6612
      %v6623 = vadd.f32 %v6603, %v6612
      %v6624 = vadd.f32 %v6604, %v6612
      %v6625 = vadd.f32 %v6605, %v6612
      %v6626 = vadd.f32 %v6606, %v6612
      %v6627 = vadd.f32 %v6607, %v6612
      %v6628 = vadd.f32 %v6608, %v6612
      %v6629 = vadd.f32 %v6609, %v6612
      %v6630 = vmax.f32 %v6614, 0.0
      %v6631 = vmax.f32 %v6615, 0.0
      %v6632 = vmax.f32 %v6616, 0.0
      %v6633 = vmax.f32 %v6617, 0.0
      %v6634 = vmax.f32 %v6618, 0.0
      %v6635 = vmax.f32 %v6619, 0.0
      %v6636 = vmax.f32 %v6620, 0.0
      %v6637 = vmax.f32 %v6621, 0.0
      %v6638 = vmax.f32 %v6622, 0.0
      %v6639 = vmax.f32 %v6623, 0.0
      %v6640 = vmax.f32 %v6624, 0.0
      %v6641 = vmax.f32 %v6625, 0.0
      %v6642 = vmax.f32 %v6626, 0.0
      %v6643 = vmax.f32 %v6627, 0.0
      %v6644 = vmax.f32 %v6628, 0.0
      %v6645 = vmax.f32 %v6629, 0.0
      %6646 = vst [vmem:[#allocation4 + $0x80] sm:$0xff] %v6630
      %6647 = vst [vmem:[#allocation4 + $0x88] sm:$0xff] %v6631
      %6648 = vst [vmem:[#allocation4 + $0x90] sm:$0xff] %v6632
      %6649 = vst [vmem:[#allocation4 + $0x98] sm:$0xff] %v6633
      %6650 = vst [vmem:[#allocation4 + $0xa0] sm:$0xff] %v6634
      %6651 = vst [vmem:[#allocation4 + $0xa8] sm:$0xff] %v6635
      %6652 = vst [vmem:[#allocation4 + $0xb0] sm:$0xff] %v6636
      %6653 = vst [vmem:[#allocation4 + $0xb8] sm:$0xff] %v6637
      %6654 = vst [vmem:[#allocation4 + $0xc0] sm:$0xff] %v6638
      %6655 = vst [vmem:[#allocation4 + $0xc8] sm:$0xff] %v6639
      %6656 = vst [vmem:[#allocation4 + $0xd0] sm:$0xff] %v6640
      %6657 = vst [vmem:[#allocation4 + $0xd8] sm:$0xff] %v6641
      %6658 = vst [vmem:[#allocation4 + $0xe0] sm:$0xff] %v6642
      %6659 = vst [vmem:[#allocation4 + $0xe8] sm:$0xff] %v6643
      %6660 = vst [vmem:[#allocation4 + $0xf0] sm:$0xff] %v6644
      %6661 = vst [vmem:[#allocation4 + $0xf8] sm:$0xff] %v6645
      %v6662 = vld [vmem:[#allocation4] sm:$0xff]
      %v6663 = vld [vmem:[#allocation4 + $0x8] sm:$0xff]
      %v6664 = vld [vmem:[#allocation4 + $0x10] sm:$0xff]
      %v6665 = vld [vmem:[#allocation4 + $0x18] sm:$0xff]
      %v6666 = vld [vmem:[#allocation4 + $0x20] sm:$0xff]
      %v6667 = vld [vmem:[#allocation4 + $0x28] sm:$0xff]
      %v6668 = vld [vmem:[#allocation4 + $0x30] sm:$0xff]
      %v6669 = vld [vmem:[#allocation4 + $0x38] sm:$0xff]
      %v6670 = vld [vmem:[#allocation4 + $0x40] sm:$0xff]
      %v6671 = vld [vmem:[#allocation4 + $0x48] sm:$0xff]
      %v6672 = vld [vmem:[#allocation4 + $0x50] sm:$0xff]
      %v6673 = vld [vmem:[#allocation4 + $0x58] sm:$0xff]
      %v6674 = vld [vmem:[#allocation4 + $0x60] sm:$0xff]
      %v6675 = vld [vmem:[#allocation4 + $0x68] sm:$0xff]
      %v6676 = vld [vmem:[#allocation4 + $0x70] sm:$0xff]
      %v6677 = vld [vmem:[#allocation4 + $0x78] sm:$0xff]
      %v6678 = vld [vmem:[#allocation4 + $0x80] sm:$0xff]
      %v6679 = vld [vmem:[#allocation4 + $0x88] sm:$0xff]
      %v6680 = vld [vmem:[#allocation4 + $0x90] sm:$0xff]
      %v6681 = vld [vmem:[#allocation4 + $0x98] sm:$0xff]
      %v6682 = vld [vmem:[#allocation4 + $0xa0] sm:$0xff]
      %v6683 = vld [vmem:[#allocation4 + $0xa8] sm:$0xff]
      %v6684 = vld [vmem:[#allocation4 + $0xb0] sm:$0xff]
      %v6685 = vld [vmem:[#allocation4 + $0xb8] sm:$0xff]
      %v6686 = vld [vmem:[#allocation4 + $0xc0] sm:$0xff]
      %v6687 = vld [vmem:[#allocation4 + $0xc8] sm:$0xff]
      %v6688 = vld [vmem:[#allocation4 + $0xd0] sm:$0xff]
      %v6689 = vld [vmem:[#allocation4 + $0xd8] sm:$0xff]
      %v6690 = vld [vmem:[#allocation4 + $0xe0] sm:$0xff]
      %v6691 = vld [vmem:[#allocation4 + $0xe8] sm:$0xff]
      %v6692 = vld [vmem:[#allocation4 + $0xf0] sm:$0xff]
      %v6693 = vld [vmem:[#allocation4 + $0xf8] sm:$0xff]
      %v6694 = vpack.c.bf16 %v6663, %v6662
      %v6695 = vpack.c.bf16 %v6665, %v6664
      %v6696 = vpack.c.bf16 %v6667, %v6666
      %v6697 = vpack.c.bf16 %v6669, %v6668
      %v6698 = vpack.c.bf16 %v6671, %v6670
      %v6699 = vpack.c.bf16 %v6673, %v6672
      %v6700 = vpack.c.bf16 %v6675, %v6674
      %v6701 = vpack.c.bf16 %v6677, %v6676
      %v6702 = vpack.c.bf16 %v6679, %v6678
      %v6703 = vpack.c.bf16 %v6681, %v6680
      %v6704 = vpack.c.bf16 %v6683, %v6682
      %v6705 = vpack.c.bf16 %v6685, %v6684
      %v6706 = vpack.c.bf16 %v6687, %v6686
      %v6707 = vpack.c.bf16 %v6689, %v6688
      %v6708 = vpack.c.bf16 %v6691, %v6690
      %v6709 = vpack.c.bf16 %v6693, %v6692
      %v6710 = vld [vmem:[%s23] sm:$0xf]
      %v6711 = vld [vmem:[%s23 + $0x4] sm:$0xf]
      %v6712 = vld [vmem:[%s23 + $0x8] sm:$0xf]
      %v6713 = vld [vmem:[%s23 + $0xc] sm:$0xf]
      %v6714 = vld [vmem:[%s23 + $0x10] sm:$0xf]
      %v6715 = vld [vmem:[%s23 + $0x14] sm:$0xf]
      %v6716 = vld [vmem:[%s23 + $0x18] sm:$0xf]
      %v6717 = vld [vmem:[%s23 + $0x1c] sm:$0xf]
      %v6718 = vld [vmem:[%s23 + $0x20] sm:$0xf]
      %v6719 = vld [vmem:[%s23 + $0x24] sm:$0xf]
      %v6720 = vld [vmem:[%s23 + $0x28] sm:$0xf]
      %v6721 = vld [vmem:[%s23 + $0x2c] sm:$0xf]
      %v6722 = vld [vmem:[%s23 + $0x30] sm:$0xf]
      %v6723 = vld [vmem:[%s23 + $0x34] sm:$0xf]
      %v6724 = vld [vmem:[%s23 + $0x38] sm:$0xf]
      %v6725 = vld [vmem:[%s23 + $0x3c] sm:$0xf]
      %v6726 = vld [vmem:[%s24] sm:$0x1]
      %v6728 = vperm.slane %v6726, 0
      %v6746 = vunpack.c.l.b16 %v6710
      %v6747 = vunpack.c.l.b16 %v6711
      %v6748 = vunpack.c.l.b16 %v6712
      %v6749 = vunpack.c.l.b16 %v6713
      %v6750 = vunpack.c.l.b16 %v6714
      %v6751 = vunpack.c.l.b16 %v6715
      %v6752 = vunpack.c.l.b16 %v6716
      %v6753 = vunpack.c.l.b16 %v6717
      %v6754 = vunpack.c.l.b16 %v6718
      %v6755 = vunpack.c.l.b16 %v6719
      %v6756 = vunpack.c.l.b16 %v6720
      %v6757 = vunpack.c.l.b16 %v6721
      %v6758 = vunpack.c.l.b16 %v6722
      %v6759 = vunpack.c.l.b16 %v6723
      %v6760 = vunpack.c.l.b16 %v6724
      %v6761 = vunpack.c.l.b16 %v6725
      %v6762 = vpack.c.b16 %v6747, %v6746
      %v6763 = vpack.c.b16 %v6749, %v6748
      %v6764 = vpack.c.b16 %v6751, %v6750
      %v6765 = vpack.c.b16 %v6753, %v6752
      %v6766 = vpack.c.b16 %v6755, %v6754
      %v6767 = vpack.c.b16 %v6757, %v6756
      %v6768 = vpack.c.b16 %v6759, %v6758
      %v6769 = vpack.c.b16 %v6761, %v6760
      %6778 = vmatpush.bf16.msra.mxu0 %v6769
      %6779 = vmatpush.bf16.msra.mxu0 %v6768
      %6780 = vmatpush.bf16.msra.mxu0 %v6767
      %6781 = vmatpush.bf16.msra.mxu0 %v6766
      %6782 = vmatpush.bf16.msra.mxu0 %v6765
      %6783 = vmatpush.bf16.msra.mxu0 %v6764
      %6784 = vmatpush.bf16.msra.mxu0 %v6763
      %6785 = vmatpush.bf16.msra.mxu0 %v6762
      %6786 = vmatmul.bf16.gmra.mxu0 %v6694
      %v6787 = vpop.f32.mrf.mxu0
      %v6788 = vadd.f32 %v6728, %v6787
      %v6789 = vpop.f32.mrf.mxu0
      %v6790 = vadd.f32 %v6728, %v6789
      %6791 = vmatmul.bf16.gmra.mxu0 %v6695
      %v6792 = vpop.f32.mrf.mxu0
      %v6793 = vadd.f32 %v6728, %v6792
      %v6794 = vpop.f32.mrf.mxu0
      %v6795 = vadd.f32 %v6728, %v6794
      %6796 = vmatmul.bf16.gmra.mxu0 %v6696
      %v6797 = vpop.f32.mrf.mxu0
      %v6798 = vadd.f32 %v6728, %v6797
      %v6799 = vpop.f32.mrf.mxu0
      %v6800 = vadd.f32 %v6728, %v6799
      %6801 = vmatmul.bf16.gmra.mxu0 %v6697
      %v6802 = vpop.f32.mrf.mxu0
      %v6803 = vadd.f32 %v6728, %v6802
      %v6804 = vpop.f32.mrf.mxu0
      %v6805 = vadd.f32 %v6728, %v6804
      %6806 = vmatmul.bf16.gmra.mxu0 %v6698
      %v6807 = vpop.f32.mrf.mxu0
      %v6808 = vadd.f32 %v6728, %v6807
      %v6809 = vpop.f32.mrf.mxu0
      %v6810 = vadd.f32 %v6728, %v6809
      %6811 = vmatmul.bf16.gmra.mxu0 %v6699
      %v6812 = vpop.f32.mrf.mxu0
      %v6813 = vadd.f32 %v6728, %v6812
      %v6814 = vpop.f32.mrf.mxu0
      %v6815 = vadd.f32 %v6728, %v6814
      %6816 = vmatmul.bf16.gmra.mxu0 %v6700
      %v6817 = vpop.f32.mrf.mxu0
      %v6818 = vadd.f32 %v6728, %v6817
      %v6819 = vpop.f32.mrf.mxu0
      %v6820 = vadd.f32 %v6728, %v6819
      %6821 = vmatmul.bf16.gmra.mxu0 %v6701
      %v6822 = vpop.f32.mrf.mxu0
      %v6823 = vadd.f32 %v6728, %v6822
      %v6824 = vpop.f32.mrf.mxu0
      %v6825 = vadd.f32 %v6728, %v6824
      %6826 = vmatmul.bf16.gmra.mxu0 %v6702
      %v6827 = vpop.f32.mrf.mxu0
      %v6828 = vadd.f32 %v6728, %v6827
      %v6829 = vpop.f32.mrf.mxu0
      %v6830 = vadd.f32 %v6728, %v6829
      %6831 = vmatmul.bf16.gmra.mxu0 %v6703
      %v6832 = vpop.f32.mrf.mxu0
      %v6833 = vadd.f32 %v6728, %v6832
      %v6834 = vpop.f32.mrf.mxu0
      %v6835 = vadd.f32 %v6728, %v6834
      %6836 = vmatmul.bf16.gmra.mxu0 %v6704
      %v6837 = vpop.f32.mrf.mxu0
      %v6838 = vadd.f32 %v6728, %v6837
      %v6839 = vpop.f32.mrf.mxu0
      %v6840 = vadd.f32 %v6728, %v6839
      %6841 = vmatmul.bf16.gmra.mxu0 %v6705
      %v6842 = vpop.f32.mrf.mxu0
      %v6843 = vadd.f32 %v6728, %v6842
      %v6844 = vpop.f32.mrf.mxu0
      %v6845 = vadd.f32 %v6728, %v6844
      %6846 = vmatmul.bf16.gmra.mxu0 %v6706
      %v6847 = vpop.f32.mrf.mxu0
      %v6848 = vadd.f32 %v6728, %v6847
      %v6849 = vpop.f32.mrf.mxu0
      %v6850 = vadd.f32 %v6728, %v6849
      %6851 = vmatmul.bf16.gmra.mxu0 %v6707
      %v6852 = vpop.f32.mrf.mxu0
      %v6853 = vadd.f32 %v6728, %v6852
      %v6854 = vpop.f32.mrf.mxu0
      %v6855 = vadd.f32 %v6728, %v6854
      %6856 = vmatmul.bf16.gmra.mxu0 %v6708
      %v6857 = vpop.f32.mrf.mxu0
      %v6858 = vadd.f32 %v6728, %v6857
      %v6859 = vpop.f32.mrf.mxu0
      %v6860 = vadd.f32 %v6728, %v6859
      %6861 = vmatmul.bf16.gmra.mxu0 %v6709
      %v6862 = vpop.f32.mrf.mxu0
      %v6863 = vadd.f32 %v6728, %v6862
      %v6864 = vpop.f32.mrf.mxu0
      %v6865 = vadd.f32 %v6728, %v6864
      %6866 = vdwg.mxu0
      %6867 = vst [vmem:[#allocation3] sm:$0xff] %v6788
      %6868 = vst [vmem:[#allocation3 + $0x8] sm:$0xff] %v6790
      %6869 = vst [vmem:[#allocation3 + $0x10] sm:$0xff] %v6793
      %6870 = vst [vmem:[#allocation3 + $0x18] sm:$0xff] %v6795
      %6871 = vst [vmem:[#allocation3 + $0x20] sm:$0xff] %v6798
      %6872 = vst [vmem:[#allocation3 + $0x28] sm:$0xff] %v6800
      %6873 = vst [vmem:[#allocation3 + $0x30] sm:$0xff] %v6803
      %6874 = vst [vmem:[#allocation3 + $0x38] sm:$0xff] %v6805
      %6875 = vst [vmem:[#allocation3 + $0x40] sm:$0xff] %v6808
      %6876 = vst [vmem:[#allocation3 + $0x48] sm:$0xff] %v6810
      %6877 = vst [vmem:[#allocation3 + $0x50] sm:$0xff] %v6813
      %6878 = vst [vmem:[#allocation3 + $0x58] sm:$0xff] %v6815
      %6879 = vst [vmem:[#allocation3 + $0x60] sm:$0xff] %v6818
      %6880 = vst [vmem:[#allocation3 + $0x68] sm:$0xff] %v6820
      %6881 = vst [vmem:[#allocation3 + $0x70] sm:$0xff] %v6823
      %6882 = vst [vmem:[#allocation3 + $0x78] sm:$0xff] %v6825
      %6883 = vst [vmem:[#allocation3 + $0x80] sm:$0xff] %v6828
      %6884 = vst [vmem:[#allocation3 + $0x88] sm:$0xff] %v6830
      %6885 = vst [vmem:[#allocation3 + $0x90] sm:$0xff] %v6833
      %6886 = vst [vmem:[#allocation3 + $0x98] sm:$0xff] %v6835
      %6887 = vst [vmem:[#allocation3 + $0xa0] sm:$0xff] %v6838
      %6888 = vst [vmem:[#allocation3 + $0xa8] sm:$0xff] %v6840
      %6889 = vst [vmem:[#allocation3 + $0xb0] sm:$0xff] %v6843
      %6890 = vst [vmem:[#allocation3 + $0xb8] sm:$0xff] %v6845
      %6891 = vst [vmem:[#allocation3 + $0xc0] sm:$0xff] %v6848
      %6892 = vst [vmem:[#allocation3 + $0xc8] sm:$0xff] %v6850
      %6893 = vst [vmem:[#allocation3 + $0xd0] sm:$0xff] %v6853
      %6894 = vst [vmem:[#allocation3 + $0xd8] sm:$0xff] %v6855
      %6895 = vst [vmem:[#allocation3 + $0xe0] sm:$0xff] %v6858
      %6896 = vst [vmem:[#allocation3 + $0xe8] sm:$0xff] %v6860
      %6897 = vst [vmem:[#allocation3 + $0xf0] sm:$0xff] %v6863
      %6898 = vst [vmem:[#allocation3 + $0xf8] sm:$0xff] %v6865
      %v6899 = vld [vmem:[#allocation3] sm:$0xff]
      %v6900 = vld [vmem:[#allocation3 + $0x8] sm:$0xff]
      %v6901 = vld [vmem:[#allocation3 + $0x10] sm:$0xff]
      %v6902 = vld [vmem:[#allocation3 + $0x18] sm:$0xff]
      %v6903 = vld [vmem:[#allocation3 + $0x20] sm:$0xff]
      %v6904 = vld [vmem:[#allocation3 + $0x28] sm:$0xff]
      %v6905 = vld [vmem:[#allocation3 + $0x30] sm:$0xff]
      %v6906 = vld [vmem:[#allocation3 + $0x38] sm:$0xff]
      %v6907 = vld [vmem:[#allocation3 + $0x40] sm:$0xff]
      %v6908 = vld [vmem:[#allocation3 + $0x48] sm:$0xff]
      %v6909 = vld [vmem:[#allocation3 + $0x50] sm:$0xff]
      %v6910 = vld [vmem:[#allocation3 + $0x58] sm:$0xff]
      %v6911 = vld [vmem:[#allocation3 + $0x60] sm:$0xff]
      %v6912 = vld [vmem:[#allocation3 + $0x68] sm:$0xff]
      %v6913 = vld [vmem:[#allocation3 + $0x70] sm:$0xff]
      %v6914 = vld [vmem:[#allocation3 + $0x78] sm:$0xff]
      %v6915 = vld [vmem:[#allocation3 + $0x80] sm:$0xff]
      %v6916 = vld [vmem:[#allocation3 + $0x88] sm:$0xff]
      %v6917 = vld [vmem:[#allocation3 + $0x90] sm:$0xff]
      %v6918 = vld [vmem:[#allocation3 + $0x98] sm:$0xff]
      %v6919 = vld [vmem:[#allocation3 + $0xa0] sm:$0xff]
      %v6920 = vld [vmem:[#allocation3 + $0xa8] sm:$0xff]
      %v6921 = vld [vmem:[#allocation3 + $0xb0] sm:$0xff]
      %v6922 = vld [vmem:[#allocation3 + $0xb8] sm:$0xff]
      %v6923 = vld [vmem:[#allocation3 + $0xc0] sm:$0xff]
      %v6924 = vld [vmem:[#allocation3 + $0xc8] sm:$0xff]
      %v6925 = vld [vmem:[#allocation3 + $0xd0] sm:$0xff]
      %v6926 = vld [vmem:[#allocation3 + $0xd8] sm:$0xff]
      %v6927 = vld [vmem:[#allocation3 + $0xe0] sm:$0xff]
      %v6928 = vld [vmem:[#allocation3 + $0xe8] sm:$0xff]
      %v6929 = vld [vmem:[#allocation3 + $0xf0] sm:$0xff]
      %v6930 = vld [vmem:[#allocation3 + $0xf8] sm:$0xff]
      %6931 = vst [vmem:[%s829 + $0x8] sm:$0xff] %v6899
      %6932 = vst [vmem:[%s829 + $0x10] sm:$0xff] %v6900
      %6933 = vst [vmem:[%s829 + $0x28] sm:$0xff] %v6901
      %6934 = vst [vmem:[%s829 + $0x30] sm:$0xff] %v6902
      %6935 = vst [vmem:[%s829 + $0x48] sm:$0xff] %v6903
      %6936 = vst [vmem:[%s829 + $0x50] sm:$0xff] %v6904
      %6937 = vst [vmem:[%s829 + $0x68] sm:$0xff] %v6905
      %6938 = vst [vmem:[%s829 + $0x70] sm:$0xff] %v6906
      %6939 = vst [vmem:[%s829 + $0x88] sm:$0xff] %v6907
      %6940 = vst [vmem:[%s829 + $0x90] sm:$0xff] %v6908
      %6941 = vst [vmem:[%s829 + $0xa8] sm:$0xff] %v6909
      %6942 = vst [vmem:[%s829 + $0xb0] sm:$0xff] %v6910
      %6943 = vst [vmem:[%s829 + $0xc8] sm:$0xff] %v6911
      %6944 = vst [vmem:[%s829 + $0xd0] sm:$0xff] %v6912
      %6945 = vst [vmem:[%s829 + $0xe8] sm:$0xff] %v6913
      %6946 = vst [vmem:[%s829 + $0xf0] sm:$0xff] %v6914
      %6947 = vst [vmem:[%s829 + $0x108] sm:$0xff] %v6915
      %6948 = vst [vmem:[%s829 + $0x110] sm:$0xff] %v6916
      %6949 = vst [vmem:[%s829 + $0x128] sm:$0xff] %v6917
      %6950 = vst [vmem:[%s829 + $0x130] sm:$0xff] %v6918
      %6951 = vst [vmem:[%s829 + $0x148] sm:$0xff] %v6919
      %6952 = vst [vmem:[%s829 + $0x150] sm:$0xff] %v6920
      %6953 = vst [vmem:[%s829 + $0x168] sm:$0xff] %v6921
      %6954 = vst [vmem:[%s829 + $0x170] sm:$0xff] %v6922
      %6955 = vst [vmem:[%s829 + $0x188] sm:$0xff] %v6923
      %6956 = vst [vmem:[%s829 + $0x190] sm:$0xff] %v6924
      %6957 = vst [vmem:[%s829 + $0x1a8] sm:$0xff] %v6925
      %6958 = vst [vmem:[%s829 + $0x1b0] sm:$0xff] %v6926
      %6959 = vst [vmem:[%s829 + $0x1c8] sm:$0xff] %v6927
      %6960 = vst [vmem:[%s829 + $0x1d0] sm:$0xff] %v6928
      %6961 = vst [vmem:[%s829 + $0x1e8] sm:$0xff] %v6929
      %6962 = vst [vmem:[%s829 + $0x1f0] sm:$0xff] %v6930
      %v6963 = vld [vmem:[#allocation2 + $0x7] sm:$0xff]
      %v6964 = vld [vmem:[#allocation2 + $0xf] sm:$0xff]
      %v6965 = vld [vmem:[#allocation2 + $0x27] sm:$0xff]
      %v6966 = vld [vmem:[#allocation2 + $0x2f] sm:$0xff]
      %v6967 = vld [vmem:[#allocation2 + $0x47] sm:$0xff]
      %v6968 = vld [vmem:[#allocation2 + $0x4f] sm:$0xff]
      %v6969 = vld [vmem:[#allocation2 + $0x67] sm:$0xff]
      %v6970 = vld [vmem:[#allocation2 + $0x6f] sm:$0xff]
      %v6971 = vld [vmem:[#allocation2 + $0x87] sm:$0xff]
      %v6972 = vld [vmem:[#allocation2 + $0x8f] sm:$0xff]
      %v6973 = vld [vmem:[#allocation2 + $0xa7] sm:$0xff]
      %v6974 = vld [vmem:[#allocation2 + $0xaf] sm:$0xff]
      %v6975 = vld [vmem:[#allocation2 + $0xc7] sm:$0xff]
      %v6976 = vld [vmem:[#allocation2 + $0xcf] sm:$0xff]
      %v6977 = vld [vmem:[#allocation2 + $0xe7] sm:$0xff]
      %v6978 = vld [vmem:[#allocation2 + $0xef] sm:$0xff]
      %v6979 = vld [vmem:[#allocation2 + $0x107] sm:$0xff]
      %v6980 = vld [vmem:[#allocation2 + $0x10f] sm:$0xff]
      %v6981 = vld [vmem:[#allocation2 + $0x127] sm:$0xff]
      %v6982 = vld [vmem:[#allocation2 + $0x12f] sm:$0xff]
      %v6983 = vld [vmem:[#allocation2 + $0x147] sm:$0xff]
      %v6984 = vld [vmem:[#allocation2 + $0x14f] sm:$0xff]
      %v6985 = vld [vmem:[#allocation2 + $0x167] sm:$0xff]
      %v6986 = vld [vmem:[#allocation2 + $0x16f] sm:$0xff]
      %v6987 = vld [vmem:[#allocation2 + $0x187] sm:$0xff]
      %v6988 = vld [vmem:[#allocation2 + $0x18f] sm:$0xff]
      %v6989 = vld [vmem:[#allocation2 + $0x1a7] sm:$0xff]
      %v6990 = vld [vmem:[#allocation2 + $0x1af] sm:$0xff]
      %v6991 = vld [vmem:[#allocation2 + $0x1c7] sm:$0xff]
      %v6992 = vld [vmem:[#allocation2 + $0x1cf] sm:$0xff]
      %v6993 = vld [vmem:[#allocation2 + $0x1e7] sm:$0xff]
      %v6994 = vld [vmem:[#allocation2 + $0x1ef] sm:$0xff]
      %v6995 = vld [vmem:[%s25] sm:$0xf]
      %v6996 = vpack.c.bf16 %v6964, %v6963
      %v6997 = vpack.c.bf16 %v6966, %v6965
      %v6998 = vpack.c.bf16 %v6968, %v6967
      %v6999 = vpack.c.bf16 %v6970, %v6969
      %v7000 = vpack.c.bf16 %v6972, %v6971
      %v7001 = vpack.c.bf16 %v6974, %v6973
      %v7002 = vpack.c.bf16 %v6976, %v6975
      %v7003 = vpack.c.bf16 %v6978, %v6977
      %v7004 = vpack.c.bf16 %v6980, %v6979
      %v7005 = vpack.c.bf16 %v6982, %v6981
      %v7006 = vpack.c.bf16 %v6984, %v6983
      %v7007 = vpack.c.bf16 %v6986, %v6985
      %v7008 = vpack.c.bf16 %v6988, %v6987
      %v7009 = vpack.c.bf16 %v6990, %v6989
      %v7010 = vpack.c.bf16 %v6992, %v6991
      %v7011 = vpack.c.bf16 %v6994, %v6993
      %v7012 = vld [vmem:[#allocation2 + $0x8] sm:$0xff]
      %v7013 = vld [vmem:[#allocation2 + $0x10] sm:$0xff]
      %v7014 = vld [vmem:[#allocation2 + $0x28] sm:$0xff]
      %v7015 = vld [vmem:[#allocation2 + $0x30] sm:$0xff]
      %v7016 = vld [vmem:[#allocation2 + $0x48] sm:$0xff]
      %v7017 = vld [vmem:[#allocation2 + $0x50] sm:$0xff]
      %v7018 = vld [vmem:[#allocation2 + $0x68] sm:$0xff]
      %v7019 = vld [vmem:[#allocation2 + $0x70] sm:$0xff]
      %v7020 = vld [vmem:[#allocation2 + $0x88] sm:$0xff]
      %v7021 = vld [vmem:[#allocation2 + $0x90] sm:$0xff]
      %v7022 = vld [vmem:[#allocation2 + $0xa8] sm:$0xff]
      %v7023 = vld [vmem:[#allocation2 + $0xb0] sm:$0xff]
      %v7024 = vld [vmem:[#allocation2 + $0xc8] sm:$0xff]
      %v7025 = vld [vmem:[#allocation2 + $0xd0] sm:$0xff]
      %v7026 = vld [vmem:[#allocation2 + $0xe8] sm:$0xff]
      %v7027 = vld [vmem:[#allocation2 + $0xf0] sm:$0xff]
      %v7028 = vld [vmem:[#allocation2 + $0x108] sm:$0xff]
      %v7029 = vld [vmem:[#allocation2 + $0x110] sm:$0xff]
      %v7030 = vld [vmem:[#allocation2 + $0x128] sm:$0xff]
      %v7031 = vld [vmem:[#allocation2 + $0x130] sm:$0xff]
      %v7032 = vld [vmem:[#allocation2 + $0x148] sm:$0xff]
      %v7033 = vld [vmem:[#allocation2 + $0x150] sm:$0xff]
      %v7034 = vld [vmem:[#allocation2 + $0x168] sm:$0xff]
      %v7035 = vld [vmem:[#allocation2 + $0x170] sm:$0xff]
      %v7036 = vld [vmem:[#allocation2 + $0x188] sm:$0xff]
      %v7037 = vld [vmem:[#allocation2 + $0x190] sm:$0xff]
      %v7038 = vld [vmem:[#allocation2 + $0x1a8] sm:$0xff]
      %v7039 = vld [vmem:[#allocation2 + $0x1b0] sm:$0xff]
      %v7040 = vld [vmem:[#allocation2 + $0x1c8] sm:$0xff]
      %v7041 = vld [vmem:[#allocation2 + $0x1d0] sm:$0xff]
      %v7042 = vld [vmem:[#allocation2 + $0x1e8] sm:$0xff]
      %v7043 = vld [vmem:[#allocation2 + $0x1f0] sm:$0xff]
      %s7044 = scalar_lea.vmem %s25, 4
      %v7045 = vld [vmem:[%s7044] sm:$0xf]
      %v7046 = vpack.c.bf16 %v7013, %v7012
      %v7047 = vpack.c.bf16 %v7015, %v7014
      %v7048 = vpack.c.bf16 %v7017, %v7016
      %v7049 = vpack.c.bf16 %v7019, %v7018
      %v7050 = vpack.c.bf16 %v7021, %v7020
      %v7051 = vpack.c.bf16 %v7023, %v7022
      %v7052 = vpack.c.bf16 %v7025, %v7024
      %v7053 = vpack.c.bf16 %v7027, %v7026
      %v7054 = vpack.c.bf16 %v7029, %v7028
      %v7055 = vpack.c.bf16 %v7031, %v7030
      %v7056 = vpack.c.bf16 %v7033, %v7032
      %v7057 = vpack.c.bf16 %v7035, %v7034
      %v7058 = vpack.c.bf16 %v7037, %v7036
      %v7059 = vpack.c.bf16 %v7039, %v7038
      %v7060 = vpack.c.bf16 %v7041, %v7040
      %v7061 = vpack.c.bf16 %v7043, %v7042
      %7062 = vmatpush.bf16.xpose.msra.mxu0 %v7053
      %7063 = vmatpush.bf16.xpose.msra.mxu0 %v7052
      %7064 = vmatpush.bf16.xpose.msra.mxu0 %v7051
      %7065 = vmatpush.bf16.xpose.msra.mxu0 %v7050
      %7066 = vmatpush.bf16.xpose.msra.mxu0 %v7049
      %7067 = vmatpush.bf16.xpose.msra.mxu0 %v7048
      %7068 = vmatpush.bf16.xpose.msra.mxu0 %v7047
      %7069 = vmatpush.bf16.xpose.msra.mxu0 %v7046
      %7070 = vmatmul.bf16.gmra.mxu0 %v7045
      %v7071 = vpop.f32.mrf.mxu0
      %v7072 = vadd.f32 0.0, %v7071
      %v7073 = vpop.f32.mrf.mxu0
      %7074 = vdwg.mxu0
      %7075 = vmatpush.bf16.xpose.msra.mxu0 %v7061
      %7076 = vmatpush.bf16.xpose.msra.mxu0 %v7060
      %7077 = vmatpush.bf16.xpose.msra.mxu0 %v7059
      %7078 = vmatpush.bf16.xpose.msra.mxu0 %v7058
      %7079 = vmatpush.bf16.xpose.msra.mxu0 %v7057
      %7080 = vmatpush.bf16.xpose.msra.mxu0 %v7056
      %7081 = vmatpush.bf16.xpose.msra.mxu0 %v7055
      %7082 = vmatpush.bf16.xpose.msra.mxu0 %v7054
      %7083 = vmatmul.bf16.gmra.mxu0 %v7045
      %v7084 = vpop.f32.mrf.mxu0
      %v7085 = vadd.f32 0.0, %v7084
      %v7086 = vpop.f32.mrf.mxu0
      %7087 = vdwg.mxu0
      %7088 = vmatpush.bf16.xpose.msra.mxu0 %v7003
      %7089 = vmatpush.bf16.xpose.msra.mxu0 %v7002
      %7090 = vmatpush.bf16.xpose.msra.mxu0 %v7001
      %7091 = vmatpush.bf16.xpose.msra.mxu0 %v7000
      %7092 = vmatpush.bf16.xpose.msra.mxu0 %v6999
      %7093 = vmatpush.bf16.xpose.msra.mxu0 %v6998
      %7094 = vmatpush.bf16.xpose.msra.mxu0 %v6997
      %7095 = vmatpush.bf16.xpose.msra.mxu0 %v6996
      %7096 = vmatmul.bf16.gmra.mxu0 %v6995
      %v7097 = vpop.f32.mrf.mxu0
      %v7098 = vadd.f32 %v7072, %v7097
      %v7099 = vpop.f32.mrf.mxu0
      %7100 = vdwg.mxu0
      %7101 = vmatpush.bf16.xpose.msra.mxu0 %v7011
      %7102 = vmatpush.bf16.xpose.msra.mxu0 %v7010
      %7103 = vmatpush.bf16.xpose.msra.mxu0 %v7009
      %7104 = vmatpush.bf16.xpose.msra.mxu0 %v7008
      %7105 = vmatpush.bf16.xpose.msra.mxu0 %v7007
      %7106 = vmatpush.bf16.xpose.msra.mxu0 %v7006
      %7107 = vmatpush.bf16.xpose.msra.mxu0 %v7005
      %7108 = vmatpush.bf16.xpose.msra.mxu0 %v7004
      %7109 = vmatmul.bf16.gmra.mxu0 %v6995
      %v7110 = vpop.f32.mrf.mxu0
      %v7111 = vadd.f32 %v7085, %v7110
      %v7112 = vpop.f32.mrf.mxu0
      %7113 = vdwg.mxu0
      %v7114 = vld [vmem:[#allocation2 + $0x9] sm:$0xff]
      %v7115 = vld [vmem:[#allocation2 + $0x11] sm:$0xff]
      %v7116 = vld [vmem:[#allocation2 + $0x29] sm:$0xff]
      %v7117 = vld [vmem:[#allocation2 + $0x31] sm:$0xff]
      %v7118 = vld [vmem:[#allocation2 + $0x49] sm:$0xff]
      %v7119 = vld [vmem:[#allocation2 + $0x51] sm:$0xff]
      %v7120 = vld [vmem:[#allocation2 + $0x69] sm:$0xff]
      %v7121 = vld [vmem:[#allocation2 + $0x71] sm:$0xff]
      %v7122 = vld [vmem:[#allocation2 + $0x89] sm:$0xff]
      %v7123 = vld [vmem:[#allocation2 + $0x91] sm:$0xff]
      %v7124 = vld [vmem:[#allocation2 + $0xa9] sm:$0xff]
      %v7125 = vld [vmem:[#allocation2 + $0xb1] sm:$0xff]
      %v7126 = vld [vmem:[#allocation2 + $0xc9] sm:$0xff]
      %v7127 = vld [vmem:[#allocation2 + $0xd1] sm:$0xff]
      %v7128 = vld [vmem:[#allocation2 + $0xe9] sm:$0xff]
      %v7129 = vld [vmem:[#allocation2 + $0xf1] sm:$0xff]
      %v7130 = vld [vmem:[#allocation2 + $0x109] sm:$0xff]
      %v7131 = vld [vmem:[#allocation2 + $0x111] sm:$0xff]
      %v7132 = vld [vmem:[#allocation2 + $0x129] sm:$0xff]
      %v7133 = vld [vmem:[#allocation2 + $0x131] sm:$0xff]
      %v7134 = vld [vmem:[#allocation2 + $0x149] sm:$0xff]
      %v7135 = vld [vmem:[#allocation2 + $0x151] sm:$0xff]
      %v7136 = vld [vmem:[#allocation2 + $0x169] sm:$0xff]
      %v7137 = vld [vmem:[#allocation2 + $0x171] sm:$0xff]
      %v7138 = vld [vmem:[#allocation2 + $0x189] sm:$0xff]
      %v7139 = vld [vmem:[#allocation2 + $0x191] sm:$0xff]
      %v7140 = vld [vmem:[#allocation2 + $0x1a9] sm:$0xff]
      %v7141 = vld [vmem:[#allocation2 + $0x1b1] sm:$0xff]
      %v7142 = vld [vmem:[#allocation2 + $0x1c9] sm:$0xff]
      %v7143 = vld [vmem:[#allocation2 + $0x1d1] sm:$0xff]
      %v7144 = vld [vmem:[#allocation2 + $0x1e9] sm:$0xff]
      %v7145 = vld [vmem:[#allocation2 + $0x1f1] sm:$0xff]
      %s7146 = scalar_lea.vmem %s25, 8
      %v7147 = vld [vmem:[%s7146] sm:$0xf]
      %v7148 = vpack.c.bf16 %v7115, %v7114
      %v7149 = vpack.c.bf16 %v7117, %v7116
      %v7150 = vpack.c.bf16 %v7119, %v7118
      %v7151 = vpack.c.bf16 %v7121, %v7120
      %v7152 = vpack.c.bf16 %v7123, %v7122
      %v7153 = vpack.c.bf16 %v7125, %v7124
      %v7154 = vpack.c.bf16 %v7127, %v7126
      %v7155 = vpack.c.bf16 %v7129, %v7128
      %v7156 = vpack.c.bf16 %v7131, %v7130
      %v7157 = vpack.c.bf16 %v7133, %v7132
      %v7158 = vpack.c.bf16 %v7135, %v7134
      %v7159 = vpack.c.bf16 %v7137, %v7136
      %v7160 = vpack.c.bf16 %v7139, %v7138
      %v7161 = vpack.c.bf16 %v7141, %v7140
      %v7162 = vpack.c.bf16 %v7143, %v7142
      %v7163 = vpack.c.bf16 %v7145, %v7144
      %7164 = vmatpush.bf16.xpose.msra.mxu0 %v7155
      %7165 = vmatpush.bf16.xpose.msra.mxu0 %v7154
      %7166 = vmatpush.bf16.xpose.msra.mxu0 %v7153
      %7167 = vmatpush.bf16.xpose.msra.mxu0 %v7152
      %7168 = vmatpush.bf16.xpose.msra.mxu0 %v7151
      %7169 = vmatpush.bf16.xpose.msra.mxu0 %v7150
      %7170 = vmatpush.bf16.xpose.msra.mxu0 %v7149
      %7171 = vmatpush.bf16.xpose.msra.mxu0 %v7148
      %7172 = vmatmul.bf16.gmra.mxu0 %v7147
      %v7173 = vpop.f32.mrf.mxu0
      %v7174 = vadd.f32 0.0, %v7173
      %v7175 = vpop.f32.mrf.mxu0
      %7176 = vdwg.mxu0
      %7177 = vmatpush.bf16.xpose.msra.mxu0 %v7163
      %7178 = vmatpush.bf16.xpose.msra.mxu0 %v7162
      %7179 = vmatpush.bf16.xpose.msra.mxu0 %v7161
      %7180 = vmatpush.bf16.xpose.msra.mxu0 %v7160
      %7181 = vmatpush.bf16.xpose.msra.mxu0 %v7159
      %7182 = vmatpush.bf16.xpose.msra.mxu0 %v7158
      %7183 = vmatpush.bf16.xpose.msra.mxu0 %v7157
      %7184 = vmatpush.bf16.xpose.msra.mxu0 %v7156
      %7185 = vmatmul.bf16.gmra.mxu0 %v7147
      %v7186 = vpop.f32.mrf.mxu0
      %v7187 = vadd.f32 0.0, %v7186
      %v7188 = vpop.f32.mrf.mxu0
      %7189 = vdwg.mxu0
      %v7190 = vadd.f32 %v7098, %v7174
      %v7191 = vadd.f32 %v7111, %v7187
      %v7192 = vld [vmem:[%s829 + $0x7] sm:$0xff]
      %v7193 = vld [vmem:[%s829 + $0xf] sm:$0xff]
      %v7194 = vld [vmem:[%s829 + $0x27] sm:$0xff]
      %v7195 = vld [vmem:[%s829 + $0x2f] sm:$0xff]
      %v7196 = vld [vmem:[%s829 + $0x47] sm:$0xff]
      %v7197 = vld [vmem:[%s829 + $0x4f] sm:$0xff]
      %v7198 = vld [vmem:[%s829 + $0x67] sm:$0xff]
      %v7199 = vld [vmem:[%s829 + $0x6f] sm:$0xff]
      %v7200 = vld [vmem:[%s829 + $0x87] sm:$0xff]
      %v7201 = vld [vmem:[%s829 + $0x8f] sm:$0xff]
      %v7202 = vld [vmem:[%s829 + $0xa7] sm:$0xff]
      %v7203 = vld [vmem:[%s829 + $0xaf] sm:$0xff]
      %v7204 = vld [vmem:[%s829 + $0xc7] sm:$0xff]
      %v7205 = vld [vmem:[%s829 + $0xcf] sm:$0xff]
      %v7206 = vld [vmem:[%s829 + $0xe7] sm:$0xff]
      %v7207 = vld [vmem:[%s829 + $0xef] sm:$0xff]
      %v7208 = vld [vmem:[%s829 + $0x107] sm:$0xff]
      %v7209 = vld [vmem:[%s829 + $0x10f] sm:$0xff]
      %v7210 = vld [vmem:[%s829 + $0x127] sm:$0xff]
      %v7211 = vld [vmem:[%s829 + $0x12f] sm:$0xff]
      %v7212 = vld [vmem:[%s829 + $0x147] sm:$0xff]
      %v7213 = vld [vmem:[%s829 + $0x14f] sm:$0xff]
      %v7214 = vld [vmem:[%s829 + $0x167] sm:$0xff]
      %v7215 = vld [vmem:[%s829 + $0x16f] sm:$0xff]
      %v7216 = vld [vmem:[%s829 + $0x187] sm:$0xff]
      %v7217 = vld [vmem:[%s829 + $0x18f] sm:$0xff]
      %v7218 = vld [vmem:[%s829 + $0x1a7] sm:$0xff]
      %v7219 = vld [vmem:[%s829 + $0x1af] sm:$0xff]
      %v7220 = vld [vmem:[%s829 + $0x1c7] sm:$0xff]
      %v7221 = vld [vmem:[%s829 + $0x1cf] sm:$0xff]
      %v7222 = vld [vmem:[%s829 + $0x1e7] sm:$0xff]
      %v7223 = vld [vmem:[%s829 + $0x1ef] sm:$0xff]
      %s7224 = scalar_lea.vmem %s25, 12
      %v7225 = vld [vmem:[%s7224] sm:$0xf]
      %v7226 = vpack.c.bf16 %v7193, %v7192
      %v7227 = vpack.c.bf16 %v7195, %v7194
      %v7228 = vpack.c.bf16 %v7197, %v7196
      %v7229 = vpack.c.bf16 %v7199, %v7198
      %v7230 = vpack.c.bf16 %v7201, %v7200
      %v7231 = vpack.c.bf16 %v7203, %v7202
      %v7232 = vpack.c.bf16 %v7205, %v7204
      %v7233 = vpack.c.bf16 %v7207, %v7206
      %v7234 = vpack.c.bf16 %v7209, %v7208
      %v7235 = vpack.c.bf16 %v7211, %v7210
      %v7236 = vpack.c.bf16 %v7213, %v7212
      %v7237 = vpack.c.bf16 %v7215, %v7214
      %v7238 = vpack.c.bf16 %v7217, %v7216
      %v7239 = vpack.c.bf16 %v7219, %v7218
      %v7240 = vpack.c.bf16 %v7221, %v7220
      %v7241 = vpack.c.bf16 %v7223, %v7222
      %7242 = vmatpush.bf16.xpose.msra.mxu0 %v7233
      %7243 = vmatpush.bf16.xpose.msra.mxu0 %v7232
      %7244 = vmatpush.bf16.xpose.msra.mxu0 %v7231
      %7245 = vmatpush.bf16.xpose.msra.mxu0 %v7230
      %7246 = vmatpush.bf16.xpose.msra.mxu0 %v7229
      %7247 = vmatpush.bf16.xpose.msra.mxu0 %v7228
      %7248 = vmatpush.bf16.xpose.msra.mxu0 %v7227
      %7249 = vmatpush.bf16.xpose.msra.mxu0 %v7226
      %7250 = vmatmul.bf16.gmra.mxu0 %v7225
      %v7251 = vpop.f32.mrf.mxu0
      %v7252 = vadd.f32 0.0, %v7251
      %v7253 = vpop.f32.mrf.mxu0
      %7254 = vdwg.mxu0
      %7255 = vmatpush.bf16.xpose.msra.mxu0 %v7241
      %7256 = vmatpush.bf16.xpose.msra.mxu0 %v7240
      %7257 = vmatpush.bf16.xpose.msra.mxu0 %v7239
      %7258 = vmatpush.bf16.xpose.msra.mxu0 %v7238
      %7259 = vmatpush.bf16.xpose.msra.mxu0 %v7237
      %7260 = vmatpush.bf16.xpose.msra.mxu0 %v7236
      %7261 = vmatpush.bf16.xpose.msra.mxu0 %v7235
      %7262 = vmatpush.bf16.xpose.msra.mxu0 %v7234
      %7263 = vmatmul.bf16.gmra.mxu0 %v7225
      %v7264 = vpop.f32.mrf.mxu0
      %v7265 = vadd.f32 0.0, %v7264
      %v7266 = vpop.f32.mrf.mxu0
      %7267 = vdwg.mxu0
      %v7268 = vadd.f32 %v7190, %v7252
      %v7269 = vadd.f32 %v7191, %v7265
      %v7270 = vld [vmem:[%s829 + $0x8] sm:$0xff]
      %v7271 = vld [vmem:[%s829 + $0x10] sm:$0xff]
      %v7272 = vld [vmem:[%s829 + $0x28] sm:$0xff]
      %v7273 = vld [vmem:[%s829 + $0x30] sm:$0xff]
      %v7274 = vld [vmem:[%s829 + $0x48] sm:$0xff]
      %v7275 = vld [vmem:[%s829 + $0x50] sm:$0xff]
      %v7276 = vld [vmem:[%s829 + $0x68] sm:$0xff]
      %v7277 = vld [vmem:[%s829 + $0x70] sm:$0xff]
      %v7278 = vld [vmem:[%s829 + $0x88] sm:$0xff]
      %v7279 = vld [vmem:[%s829 + $0x90] sm:$0xff]
      %v7280 = vld [vmem:[%s829 + $0xa8] sm:$0xff]
      %v7281 = vld [vmem:[%s829 + $0xb0] sm:$0xff]
      %v7282 = vld [vmem:[%s829 + $0xc8] sm:$0xff]
      %v7283 = vld [vmem:[%s829 + $0xd0] sm:$0xff]
      %v7284 = vld [vmem:[%s829 + $0xe8] sm:$0xff]
      %v7285 = vld [vmem:[%s829 + $0xf0] sm:$0xff]
      %v7286 = vld [vmem:[%s829 + $0x108] sm:$0xff]
      %v7287 = vld [vmem:[%s829 + $0x110] sm:$0xff]
      %v7288 = vld [vmem:[%s829 + $0x128] sm:$0xff]
      %v7289 = vld [vmem:[%s829 + $0x130] sm:$0xff]
      %v7290 = vld [vmem:[%s829 + $0x148] sm:$0xff]
      %v7291 = vld [vmem:[%s829 + $0x150] sm:$0xff]
      %v7292 = vld [vmem:[%s829 + $0x168] sm:$0xff]
      %v7293 = vld [vmem:[%s829 + $0x170] sm:$0xff]
      %v7294 = vld [vmem:[%s829 + $0x188] sm:$0xff]
      %v7295 = vld [vmem:[%s829 + $0x190] sm:$0xff]
      %v7296 = vld [vmem:[%s829 + $0x1a8] sm:$0xff]
      %v7297 = vld [vmem:[%s829 + $0x1b0] sm:$0xff]
      %v7298 = vld [vmem:[%s829 + $0x1c8] sm:$0xff]
      %v7299 = vld [vmem:[%s829 + $0x1d0] sm:$0xff]
      %v7300 = vld [vmem:[%s829 + $0x1e8] sm:$0xff]
      %v7301 = vld [vmem:[%s829 + $0x1f0] sm:$0xff]
      %s7302 = scalar_lea.vmem %s25, 16
      %v7303 = vld [vmem:[%s7302] sm:$0xf]
      %v7304 = vpack.c.bf16 %v7271, %v7270
      %v7305 = vpack.c.bf16 %v7273, %v7272
      %v7306 = vpack.c.bf16 %v7275, %v7274
      %v7307 = vpack.c.bf16 %v7277, %v7276
      %v7308 = vpack.c.bf16 %v7279, %v7278
      %v7309 = vpack.c.bf16 %v7281, %v7280
      %v7310 = vpack.c.bf16 %v7283, %v7282
      %v7311 = vpack.c.bf16 %v7285, %v7284
      %v7312 = vpack.c.bf16 %v7287, %v7286
      %v7313 = vpack.c.bf16 %v7289, %v7288
      %v7314 = vpack.c.bf16 %v7291, %v7290
      %v7315 = vpack.c.bf16 %v7293, %v7292
      %v7316 = vpack.c.bf16 %v7295, %v7294
      %v7317 = vpack.c.bf16 %v7297, %v7296
      %v7318 = vpack.c.bf16 %v7299, %v7298
      %v7319 = vpack.c.bf16 %v7301, %v7300
      %7320 = vmatpush.bf16.xpose.msra.mxu0 %v7311
      %7321 = vmatpush.bf16.xpose.msra.mxu0 %v7310
      %7322 = vmatpush.bf16.xpose.msra.mxu0 %v7309
      %7323 = vmatpush.bf16.xpose.msra.mxu0 %v7308
      %7324 = vmatpush.bf16.xpose.msra.mxu0 %v7307
      %7325 = vmatpush.bf16.xpose.msra.mxu0 %v7306
      %7326 = vmatpush.bf16.xpose.msra.mxu0 %v7305
      %7327 = vmatpush.bf16.xpose.msra.mxu0 %v7304
      %7328 = vmatmul.bf16.gmra.mxu0 %v7303
      %v7329 = vpop.f32.mrf.mxu0
      %v7330 = vadd.f32 0.0, %v7329
      %v7331 = vpop.f32.mrf.mxu0
      %7332 = vdwg.mxu0
      %7333 = vmatpush.bf16.xpose.msra.mxu0 %v7319
      %7334 = vmatpush.bf16.xpose.msra.mxu0 %v7318
      %7335 = vmatpush.bf16.xpose.msra.mxu0 %v7317
      %7336 = vmatpush.bf16.xpose.msra.mxu0 %v7316
      %7337 = vmatpush.bf16.xpose.msra.mxu0 %v7315
      %7338 = vmatpush.bf16.xpose.msra.mxu0 %v7314
      %7339 = vmatpush.bf16.xpose.msra.mxu0 %v7313
      %7340 = vmatpush.bf16.xpose.msra.mxu0 %v7312
      %7341 = vmatmul.bf16.gmra.mxu0 %v7303
      %v7342 = vpop.f32.mrf.mxu0
      %v7343 = vadd.f32 0.0, %v7342
      %v7344 = vpop.f32.mrf.mxu0
      %7345 = vdwg.mxu0
      %v7346 = vadd.f32 %v7268, %v7330
      %v7347 = vadd.f32 %v7269, %v7343
      %v7348 = vld [vmem:[%s829 + $0x9] sm:$0xff]
      %v7349 = vld [vmem:[%s829 + $0x11] sm:$0xff]
      %v7350 = vld [vmem:[%s829 + $0x29] sm:$0xff]
      %v7351 = vld [vmem:[%s829 + $0x31] sm:$0xff]
      %v7352 = vld [vmem:[%s829 + $0x49] sm:$0xff]
      %v7353 = vld [vmem:[%s829 + $0x51] sm:$0xff]
      %v7354 = vld [vmem:[%s829 + $0x69] sm:$0xff]
      %v7355 = vld [vmem:[%s829 + $0x71] sm:$0xff]
      %v7356 = vld [vmem:[%s829 + $0x89] sm:$0xff]
      %v7357 = vld [vmem:[%s829 + $0x91] sm:$0xff]
      %v7358 = vld [vmem:[%s829 + $0xa9] sm:$0xff]
      %v7359 = vld [vmem:[%s829 + $0xb1] sm:$0xff]
      %v7360 = vld [vmem:[%s829 + $0xc9] sm:$0xff]
      %v7361 = vld [vmem:[%s829 + $0xd1] sm:$0xff]
      %v7362 = vld [vmem:[%s829 + $0xe9] sm:$0xff]
      %v7363 = vld [vmem:[%s829 + $0xf1] sm:$0xff]
      %v7364 = vld [vmem:[%s829 + $0x109] sm:$0xff]
      %v7365 = vld [vmem:[%s829 + $0x111] sm:$0xff]
      %v7366 = vld [vmem:[%s829 + $0x129] sm:$0xff]
      %v7367 = vld [vmem:[%s829 + $0x131] sm:$0xff]
      %v7368 = vld [vmem:[%s829 + $0x149] sm:$0xff]
      %v7369 = vld [vmem:[%s829 + $0x151] sm:$0xff]
      %v7370 = vld [vmem:[%s829 + $0x169] sm:$0xff]
      %v7371 = vld [vmem:[%s829 + $0x171] sm:$0xff]
      %v7372 = vld [vmem:[%s829 + $0x189] sm:$0xff]
      %v7373 = vld [vmem:[%s829 + $0x191] sm:$0xff]
      %v7374 = vld [vmem:[%s829 + $0x1a9] sm:$0xff]
      %v7375 = vld [vmem:[%s829 + $0x1b1] sm:$0xff]
      %v7376 = vld [vmem:[%s829 + $0x1c9] sm:$0xff]
      %v7377 = vld [vmem:[%s829 + $0x1d1] sm:$0xff]
      %v7378 = vld [vmem:[%s829 + $0x1e9] sm:$0xff]
      %v7379 = vld [vmem:[%s829 + $0x1f1] sm:$0xff]
      %s7380 = scalar_lea.vmem %s25, 20
      %v7381 = vld [vmem:[%s7380] sm:$0xf]
      %v7382 = vpack.c.bf16 %v7349, %v7348
      %v7383 = vpack.c.bf16 %v7351, %v7350
      %v7384 = vpack.c.bf16 %v7353, %v7352
      %v7385 = vpack.c.bf16 %v7355, %v7354
      %v7386 = vpack.c.bf16 %v7357, %v7356
      %v7387 = vpack.c.bf16 %v7359, %v7358
      %v7388 = vpack.c.bf16 %v7361, %v7360
      %v7389 = vpack.c.bf16 %v7363, %v7362
      %v7390 = vpack.c.bf16 %v7365, %v7364
      %v7391 = vpack.c.bf16 %v7367, %v7366
      %v7392 = vpack.c.bf16 %v7369, %v7368
      %v7393 = vpack.c.bf16 %v7371, %v7370
      %v7394 = vpack.c.bf16 %v7373, %v7372
      %v7395 = vpack.c.bf16 %v7375, %v7374
      %v7396 = vpack.c.bf16 %v7377, %v7376
      %v7397 = vpack.c.bf16 %v7379, %v7378
      %7398 = vmatpush.bf16.xpose.msra.mxu0 %v7389
      %7399 = vmatpush.bf16.xpose.msra.mxu0 %v7388
      %7400 = vmatpush.bf16.xpose.msra.mxu0 %v7387
      %7401 = vmatpush.bf16.xpose.msra.mxu0 %v7386
      %7402 = vmatpush.bf16.xpose.msra.mxu0 %v7385
      %7403 = vmatpush.bf16.xpose.msra.mxu0 %v7384
      %7404 = vmatpush.bf16.xpose.msra.mxu0 %v7383
      %7405 = vmatpush.bf16.xpose.msra.mxu0 %v7382
      %7406 = vmatmul.bf16.gmra.mxu0 %v7381
      %v7407 = vpop.f32.mrf.mxu0
      %v7408 = vadd.f32 0.0, %v7407
      %v7409 = vpop.f32.mrf.mxu0
      %7410 = vdwg.mxu0
      %7411 = vmatpush.bf16.xpose.msra.mxu0 %v7397
      %7412 = vmatpush.bf16.xpose.msra.mxu0 %v7396
      %7413 = vmatpush.bf16.xpose.msra.mxu0 %v7395
      %7414 = vmatpush.bf16.xpose.msra.mxu0 %v7394
      %7415 = vmatpush.bf16.xpose.msra.mxu0 %v7393
      %7416 = vmatpush.bf16.xpose.msra.mxu0 %v7392
      %7417 = vmatpush.bf16.xpose.msra.mxu0 %v7391
      %7418 = vmatpush.bf16.xpose.msra.mxu0 %v7390
      %7419 = vmatmul.bf16.gmra.mxu0 %v7381
      %v7420 = vpop.f32.mrf.mxu0
      %v7421 = vadd.f32 0.0, %v7420
      %v7422 = vpop.f32.mrf.mxu0
      %7423 = vdwg.mxu0
      %v7424 = vadd.f32 %v7346, %v7408
      %v7425 = vadd.f32 %v7347, %v7421
      %v7426 = vld [vmem:[%s1424 + $0x7] sm:$0xff]
      %v7427 = vld [vmem:[%s1424 + $0xf] sm:$0xff]
      %v7428 = vld [vmem:[%s1424 + $0x27] sm:$0xff]
      %v7429 = vld [vmem:[%s1424 + $0x2f] sm:$0xff]
      %v7430 = vld [vmem:[%s1424 + $0x47] sm:$0xff]
      %v7431 = vld [vmem:[%s1424 + $0x4f] sm:$0xff]
      %v7432 = vld [vmem:[%s1424 + $0x67] sm:$0xff]
      %v7433 = vld [vmem:[%s1424 + $0x6f] sm:$0xff]
      %v7434 = vld [vmem:[%s1424 + $0x87] sm:$0xff]
      %v7435 = vld [vmem:[%s1424 + $0x8f] sm:$0xff]
      %v7436 = vld [vmem:[%s1424 + $0xa7] sm:$0xff]
      %v7437 = vld [vmem:[%s1424 + $0xaf] sm:$0xff]
      %v7438 = vld [vmem:[%s1424 + $0xc7] sm:$0xff]
      %v7439 = vld [vmem:[%s1424 + $0xcf] sm:$0xff]
      %v7440 = vld [vmem:[%s1424 + $0xe7] sm:$0xff]
      %v7441 = vld [vmem:[%s1424 + $0xef] sm:$0xff]
      %v7442 = vld [vmem:[%s1424 + $0x107] sm:$0xff]
      %v7443 = vld [vmem:[%s1424 + $0x10f] sm:$0xff]
      %v7444 = vld [vmem:[%s1424 + $0x127] sm:$0xff]
      %v7445 = vld [vmem:[%s1424 + $0x12f] sm:$0xff]
      %v7446 = vld [vmem:[%s1424 + $0x147] sm:$0xff]
      %v7447 = vld [vmem:[%s1424 + $0x14f] sm:$0xff]
      %v7448 = vld [vmem:[%s1424 + $0x167] sm:$0xff]
      %v7449 = vld [vmem:[%s1424 + $0x16f] sm:$0xff]
      %v7450 = vld [vmem:[%s1424 + $0x187] sm:$0xff]
      %v7451 = vld [vmem:[%s1424 + $0x18f] sm:$0xff]
      %v7452 = vld [vmem:[%s1424 + $0x1a7] sm:$0xff]
      %v7453 = vld [vmem:[%s1424 + $0x1af] sm:$0xff]
      %v7454 = vld [vmem:[%s1424 + $0x1c7] sm:$0xff]
      %v7455 = vld [vmem:[%s1424 + $0x1cf] sm:$0xff]
      %v7456 = vld [vmem:[%s1424 + $0x1e7] sm:$0xff]
      %v7457 = vld [vmem:[%s1424 + $0x1ef] sm:$0xff]
      %s7458 = scalar_lea.vmem %s25, 24
      %v7459 = vld [vmem:[%s7458] sm:$0xf]
      %v7460 = vpack.c.bf16 %v7427, %v7426
      %v7461 = vpack.c.bf16 %v7429, %v7428
      %v7462 = vpack.c.bf16 %v7431, %v7430
      %v7463 = vpack.c.bf16 %v7433, %v7432
      %v7464 = vpack.c.bf16 %v7435, %v7434
      %v7465 = vpack.c.bf16 %v7437, %v7436
      %v7466 = vpack.c.bf16 %v7439, %v7438
      %v7467 = vpack.c.bf16 %v7441, %v7440
      %v7468 = vpack.c.bf16 %v7443, %v7442
      %v7469 = vpack.c.bf16 %v7445, %v7444
      %v7470 = vpack.c.bf16 %v7447, %v7446
      %v7471 = vpack.c.bf16 %v7449, %v7448
      %v7472 = vpack.c.bf16 %v7451, %v7450
      %v7473 = vpack.c.bf16 %v7453, %v7452
      %v7474 = vpack.c.bf16 %v7455, %v7454
      %v7475 = vpack.c.bf16 %v7457, %v7456
      %7476 = vmatpush.bf16.xpose.msra.mxu0 %v7467
      %7477 = vmatpush.bf16.xpose.msra.mxu0 %v7466
      %7478 = vmatpush.bf16.xpose.msra.mxu0 %v7465
      %7479 = vmatpush.bf16.xpose.msra.mxu0 %v7464
      %7480 = vmatpush.bf16.xpose.msra.mxu0 %v7463
      %7481 = vmatpush.bf16.xpose.msra.mxu0 %v7462
      %7482 = vmatpush.bf16.xpose.msra.mxu0 %v7461
      %7483 = vmatpush.bf16.xpose.msra.mxu0 %v7460
      %7484 = vmatmul.bf16.gmra.mxu0 %v7459
      %v7485 = vpop.f32.mrf.mxu0
      %v7486 = vadd.f32 0.0, %v7485
      %v7487 = vpop.f32.mrf.mxu0
      %7488 = vdwg.mxu0
      %7489 = vmatpush.bf16.xpose.msra.mxu0 %v7475
      %7490 = vmatpush.bf16.xpose.msra.mxu0 %v7474
      %7491 = vmatpush.bf16.xpose.msra.mxu0 %v7473
      %7492 = vmatpush.bf16.xpose.msra.mxu0 %v7472
      %7493 = vmatpush.bf16.xpose.msra.mxu0 %v7471
      %7494 = vmatpush.bf16.xpose.msra.mxu0 %v7470
      %7495 = vmatpush.bf16.xpose.msra.mxu0 %v7469
      %7496 = vmatpush.bf16.xpose.msra.mxu0 %v7468
      %7497 = vmatmul.bf16.gmra.mxu0 %v7459
      %v7498 = vpop.f32.mrf.mxu0
      %v7499 = vadd.f32 0.0, %v7498
      %v7500 = vpop.f32.mrf.mxu0
      %7501 = vdwg.mxu0
      %v7502 = vadd.f32 %v7424, %v7486
      %v7503 = vadd.f32 %v7425, %v7499
      %v7504 = vld [vmem:[%s1424 + $0x8] sm:$0xff]
      %v7505 = vld [vmem:[%s1424 + $0x10] sm:$0xff]
      %v7506 = vld [vmem:[%s1424 + $0x28] sm:$0xff]
      %v7507 = vld [vmem:[%s1424 + $0x30] sm:$0xff]
      %v7508 = vld [vmem:[%s1424 + $0x48] sm:$0xff]
      %v7509 = vld [vmem:[%s1424 + $0x50] sm:$0xff]
      %v7510 = vld [vmem:[%s1424 + $0x68] sm:$0xff]
      %v7511 = vld [vmem:[%s1424 + $0x70] sm:$0xff]
      %v7512 = vld [vmem:[%s1424 + $0x88] sm:$0xff]
      %v7513 = vld [vmem:[%s1424 + $0x90] sm:$0xff]
      %v7514 = vld [vmem:[%s1424 + $0xa8] sm:$0xff]
      %v7515 = vld [vmem:[%s1424 + $0xb0] sm:$0xff]
      %v7516 = vld [vmem:[%s1424 + $0xc8] sm:$0xff]
      %v7517 = vld [vmem:[%s1424 + $0xd0] sm:$0xff]
      %v7518 = vld [vmem:[%s1424 + $0xe8] sm:$0xff]
      %v7519 = vld [vmem:[%s1424 + $0xf0] sm:$0xff]
      %v7520 = vld [vmem:[%s1424 + $0x108] sm:$0xff]
      %v7521 = vld [vmem:[%s1424 + $0x110] sm:$0xff]
      %v7522 = vld [vmem:[%s1424 + $0x128] sm:$0xff]
      %v7523 = vld [vmem:[%s1424 + $0x130] sm:$0xff]
      %v7524 = vld [vmem:[%s1424 + $0x148] sm:$0xff]
      %v7525 = vld [vmem:[%s1424 + $0x150] sm:$0xff]
      %v7526 = vld [vmem:[%s1424 + $0x168] sm:$0xff]
      %v7527 = vld [vmem:[%s1424 + $0x170] sm:$0xff]
      %v7528 = vld [vmem:[%s1424 + $0x188] sm:$0xff]
      %v7529 = vld [vmem:[%s1424 + $0x190] sm:$0xff]
      %v7530 = vld [vmem:[%s1424 + $0x1a8] sm:$0xff]
      %v7531 = vld [vmem:[%s1424 + $0x1b0] sm:$0xff]
      %v7532 = vld [vmem:[%s1424 + $0x1c8] sm:$0xff]
      %v7533 = vld [vmem:[%s1424 + $0x1d0] sm:$0xff]
      %v7534 = vld [vmem:[%s1424 + $0x1e8] sm:$0xff]
      %v7535 = vld [vmem:[%s1424 + $0x1f0] sm:$0xff]
      %s7536 = scalar_lea.vmem %s25, 28
      %v7537 = vld [vmem:[%s7536] sm:$0xf]
      %v7538 = vpack.c.bf16 %v7505, %v7504
      %v7539 = vpack.c.bf16 %v7507, %v7506
      %v7540 = vpack.c.bf16 %v7509, %v7508
      %v7541 = vpack.c.bf16 %v7511, %v7510
      %v7542 = vpack.c.bf16 %v7513, %v7512
      %v7543 = vpack.c.bf16 %v7515, %v7514
      %v7544 = vpack.c.bf16 %v7517, %v7516
      %v7545 = vpack.c.bf16 %v7519, %v7518
      %v7546 = vpack.c.bf16 %v7521, %v7520
      %v7547 = vpack.c.bf16 %v7523, %v7522
      %v7548 = vpack.c.bf16 %v7525, %v7524
      %v7549 = vpack.c.bf16 %v7527, %v7526
      %v7550 = vpack.c.bf16 %v7529, %v7528
      %v7551 = vpack.c.bf16 %v7531, %v7530
      %v7552 = vpack.c.bf16 %v7533, %v7532
      %v7553 = vpack.c.bf16 %v7535, %v7534
      %7554 = vmatpush.bf16.xpose.msra.mxu0 %v7545
      %7555 = vmatpush.bf16.xpose.msra.mxu0 %v7544
      %7556 = vmatpush.bf16.xpose.msra.mxu0 %v7543
      %7557 = vmatpush.bf16.xpose.msra.mxu0 %v7542
      %7558 = vmatpush.bf16.xpose.msra.mxu0 %v7541
      %7559 = vmatpush.bf16.xpose.msra.mxu0 %v7540
      %7560 = vmatpush.bf16.xpose.msra.mxu0 %v7539
      %7561 = vmatpush.bf16.xpose.msra.mxu0 %v7538
      %7562 = vmatmul.bf16.gmra.mxu0 %v7537
      %v7563 = vpop.f32.mrf.mxu0
      %v7564 = vadd.f32 0.0, %v7563
      %v7565 = vpop.f32.mrf.mxu0
      %7566 = vdwg.mxu0
      %7567 = vmatpush.bf16.xpose.msra.mxu0 %v7553
      %7568 = vmatpush.bf16.xpose.msra.mxu0 %v7552
      %7569 = vmatpush.bf16.xpose.msra.mxu0 %v7551
      %7570 = vmatpush.bf16.xpose.msra.mxu0 %v7550
      %7571 = vmatpush.bf16.xpose.msra.mxu0 %v7549
      %7572 = vmatpush.bf16.xpose.msra.mxu0 %v7548
      %7573 = vmatpush.bf16.xpose.msra.mxu0 %v7547
      %7574 = vmatpush.bf16.xpose.msra.mxu0 %v7546
      %7575 = vmatmul.bf16.gmra.mxu0 %v7537
      %v7576 = vpop.f32.mrf.mxu0
      %v7577 = vadd.f32 0.0, %v7576
      %v7578 = vpop.f32.mrf.mxu0
      %7579 = vdwg.mxu0
      %v7580 = vadd.f32 %v7502, %v7564
      %v7581 = vadd.f32 %v7503, %v7577
      %v7582 = vld [vmem:[%s1424 + $0x9] sm:$0xff]
      %v7583 = vld [vmem:[%s1424 + $0x11] sm:$0xff]
      %v7584 = vld [vmem:[%s1424 + $0x29] sm:$0xff]
      %v7585 = vld [vmem:[%s1424 + $0x31] sm:$0xff]
      %v7586 = vld [vmem:[%s1424 + $0x49] sm:$0xff]
      %v7587 = vld [vmem:[%s1424 + $0x51] sm:$0xff]
      %v7588 = vld [vmem:[%s1424 + $0x69] sm:$0xff]
      %v7589 = vld [vmem:[%s1424 + $0x71] sm:$0xff]
      %v7590 = vld [vmem:[%s1424 + $0x89] sm:$0xff]
      %v7591 = vld [vmem:[%s1424 + $0x91] sm:$0xff]
      %v7592 = vld [vmem:[%s1424 + $0xa9] sm:$0xff]
      %v7593 = vld [vmem:[%s1424 + $0xb1] sm:$0xff]
      %v7594 = vld [vmem:[%s1424 + $0xc9] sm:$0xff]
      %v7595 = vld [vmem:[%s1424 + $0xd1] sm:$0xff]
      %v7596 = vld [vmem:[%s1424 + $0xe9] sm:$0xff]
      %v7597 = vld [vmem:[%s1424 + $0xf1] sm:$0xff]
      %v7598 = vld [vmem:[%s1424 + $0x109] sm:$0xff]
      %v7599 = vld [vmem:[%s1424 + $0x111] sm:$0xff]
      %v7600 = vld [vmem:[%s1424 + $0x129] sm:$0xff]
      %v7601 = vld [vmem:[%s1424 + $0x131] sm:$0xff]
      %v7602 = vld [vmem:[%s1424 + $0x149] sm:$0xff]
      %v7603 = vld [vmem:[%s1424 + $0x151] sm:$0xff]
      %v7604 = vld [vmem:[%s1424 + $0x169] sm:$0xff]
      %v7605 = vld [vmem:[%s1424 + $0x171] sm:$0xff]
      %v7606 = vld [vmem:[%s1424 + $0x189] sm:$0xff]
      %v7607 = vld [vmem:[%s1424 + $0x191] sm:$0xff]
      %v7608 = vld [vmem:[%s1424 + $0x1a9] sm:$0xff]
      %v7609 = vld [vmem:[%s1424 + $0x1b1] sm:$0xff]
      %v7610 = vld [vmem:[%s1424 + $0x1c9] sm:$0xff]
      %v7611 = vld [vmem:[%s1424 + $0x1d1] sm:$0xff]
      %v7612 = vld [vmem:[%s1424 + $0x1e9] sm:$0xff]
      %v7613 = vld [vmem:[%s1424 + $0x1f1] sm:$0xff]
      %s7614 = scalar_lea.vmem %s25, 32
      %v7615 = vld [vmem:[%s7614] sm:$0xf]
      %v7616 = vpack.c.bf16 %v7583, %v7582
      %v7617 = vpack.c.bf16 %v7585, %v7584
      %v7618 = vpack.c.bf16 %v7587, %v7586
      %v7619 = vpack.c.bf16 %v7589, %v7588
      %v7620 = vpack.c.bf16 %v7591, %v7590
      %v7621 = vpack.c.bf16 %v7593, %v7592
      %v7622 = vpack.c.bf16 %v7595, %v7594
      %v7623 = vpack.c.bf16 %v7597, %v7596
      %v7624 = vpack.c.bf16 %v7599, %v7598
      %v7625 = vpack.c.bf16 %v7601, %v7600
      %v7626 = vpack.c.bf16 %v7603, %v7602
      %v7627 = vpack.c.bf16 %v7605, %v7604
      %v7628 = vpack.c.bf16 %v7607, %v7606
      %v7629 = vpack.c.bf16 %v7609, %v7608
      %v7630 = vpack.c.bf16 %v7611, %v7610
      %v7631 = vpack.c.bf16 %v7613, %v7612
      %7632 = vmatpush.bf16.xpose.msra.mxu0 %v7623
      %7633 = vmatpush.bf16.xpose.msra.mxu0 %v7622
      %7634 = vmatpush.bf16.xpose.msra.mxu0 %v7621
      %7635 = vmatpush.bf16.xpose.msra.mxu0 %v7620
      %7636 = vmatpush.bf16.xpose.msra.mxu0 %v7619
      %7637 = vmatpush.bf16.xpose.msra.mxu0 %v7618
      %7638 = vmatpush.bf16.xpose.msra.mxu0 %v7617
      %7639 = vmatpush.bf16.xpose.msra.mxu0 %v7616
      %7640 = vmatmul.bf16.gmra.mxu0 %v7615
      %v7641 = vpop.f32.mrf.mxu0
      %v7642 = vadd.f32 0.0, %v7641
      %v7643 = vpop.f32.mrf.mxu0
      %7644 = vdwg.mxu0
      %7645 = vmatpush.bf16.xpose.msra.mxu0 %v7631
      %7646 = vmatpush.bf16.xpose.msra.mxu0 %v7630
      %7647 = vmatpush.bf16.xpose.msra.mxu0 %v7629
      %7648 = vmatpush.bf16.xpose.msra.mxu0 %v7628
      %7649 = vmatpush.bf16.xpose.msra.mxu0 %v7627
      %7650 = vmatpush.bf16.xpose.msra.mxu0 %v7626
      %7651 = vmatpush.bf16.xpose.msra.mxu0 %v7625
      %7652 = vmatpush.bf16.xpose.msra.mxu0 %v7624
      %7653 = vmatmul.bf16.gmra.mxu0 %v7615
      %v7654 = vpop.f32.mrf.mxu0
      %v7655 = vadd.f32 0.0, %v7654
      %v7656 = vpop.f32.mrf.mxu0
      %7657 = vdwg.mxu0
      %v7658 = vadd.f32 %v7580, %v7642
      %v7659 = vadd.f32 %v7581, %v7655
      %v7660 = vld [vmem:[%s26] sm:$0x3]
      %7662 = vset.pattern.permute.xlu0 0
      %7663 = vperm.xlu0 %7662, %v7660
      %v7664 = vpop.permute.xlu0 %7663
      %v7666 = vadd.f32 %v7658, %v7664
      %v7667 = vadd.f32 %v7659, %v7664
      %v7670 = vrot.slane %v7667, 6
      %vm7671 = vcmask 1041408
      %v7672 = vsel %vm7671, %v7666, %v7670
      %7674 = vst [vmem:[%s818] sm:$0xf] %v7672
      %p7675 = scmp.lt.s32.totalorder %s38, 1
      %s7676 = scalar_select %p7675, %s38, 1
      %s7677 = smul.addr %s7676, 2
      %s7678 = smul.addr %s7677, 2
      %s7679 = scalar_lea.vmem %s27, %s7678
      // Predicated region
      $region129: #{optical_flow_estimator_forward.1} parent=127 // pred_check
        %p7680 = pneg %p628
      $region130: #{optical_flow_estimator_forward.1} parent=127 // pred_check_branch
        %7682 = sbr.rel (%p7680) target = $region132
      $region131: #{optical_flow_estimator_forward.1} parent=127 // pred_region
        _
      $region132: #{optical_flow_estimator_forward.1} parent=127 // pred_fallthru
        _
    $region128: #{optical_flow_estimator_forward.1} parent=5 // pred_fallthru
      _
    %p7683 = scmp.le.s32.totalorder 2, %s33
    // Predicated region
    $region133: #{optical_flow_estimator_forward.1} parent=5 // pred_check
      %p7684 = pneg %p7683
    $region134: #{optical_flow_estimator_forward.1} parent=5 // pred_check_branch
      %7686 = sbr.rel (%p7684) target = $region136
    $region135: #{optical_flow_estimator_forward.1} parent=5 // pred_region
      %s7687 = ssub.s32 %s33, 2
      // Predicated region
      $region137: #{optical_flow_estimator_forward.1} parent=135 // pred_check
        %p7688 = pneg %p634
      $region138: #{optical_flow_estimator_forward.1} parent=135 // pred_check_branch
        %7690 = sbr.rel (%p7688) target = $region140
      $region139: #{optical_flow_estimator_forward.1} parent=135 // pred_region
        %p7691 = scmp.lt.s32.totalorder %s39, 1
        %s7692 = scalar_select %p7691, %s39, 1
        %s7693 = smul.addr %s7692, 2
        %s7694 = smul.addr %s7693, 2
        %s7695 = scalar_lea.vmem %s27, %s7694
      $region140: #{optical_flow_estimator_forward.1} parent=135 // pred_fallthru
        _
    $region136: #{optical_flow_estimator_forward.1} parent=5 // pred_fallthru
      _
  $region6: #{optical_flow_estimator_forward.1} parent=0 // loop_footer
    %s37 = sadd.s32 1, %s33
  $region7: #{optical_flow_estimator_forward.1} parent=0 // loop_footer_branch
    %32 = sbr.rel target = $region3
  $region8: #{optical_flow_estimator_forward.1} parent=0 // loop_exit
    _

</llo_original>
